<compile_context>
chip_gen: v6e
topology: v6e:2x2x1
jax: 0.10.0
libtpu: 0.0.40
codegen_flags: <defaults>
</compile_context>

<pallas_src>
import jax
import jax.numpy as jnp
from jax.experimental import pallas as pl
from jax.experimental.pallas import tpu as pltpu


def _round_up(x, m):
    return ((x + m - 1) // m) * m


def _leaky_relu(h):
    # max(h, 0.2*h) == LeakyReLU(h, 0.2): single VPU max instead of cmp+select.
    return jnp.maximum(h, 0.2 * h)


# ----------------------------------------------------------------------------
# Fused Pallas kernel: whole Discriminator forward in one call.
#   grid = (M_blocks [parallel], K_blocks [arbitrary, reduction over n_genes])
# ----------------------------------------------------------------------------
def _disc_fused_kernel(x_ref, w1_ref, b1_ref, w2_ref, b2_ref, w3_ref, b3_ref,
                       wout_ref, bout_ref, o_ref, acc_ref):
    k = pl.program_id(1)

    @pl.when(k == 0)
    def _():
        acc_ref[...] = jnp.zeros_like(acc_ref)

    # Layer 1 partial product: stream (tk, 2048) bf16 weight tiles, f32 acc.
    acc_ref[...] += jnp.dot(
        x_ref[...], w1_ref[...], preferred_element_type=jnp.float32
    )

    # Epilogue on the last K step: bias+LeakyReLU, layers 2/3, 1-D projection.
    @pl.when(k == pl.num_programs(1) - 1)
    def _():
        # Layer 1 epilogue (f32 math, tissue emb already folded into bias).
        h = _leaky_relu(acc_ref[...] + b1_ref[...])
        # Layer 2: 2048 -> 1024 (VMEM-resident bf16 weight).
        h = _leaky_relu(
            jnp.dot(h.astype(w2_ref.dtype), w2_ref[...],
                    preferred_element_type=jnp.float32) + b2_ref[...])
        # Layer 3: 1024 -> dim_emb (padded to 128 lanes).
        h = _leaky_relu(
            jnp.dot(h.astype(w3_ref.dtype), w3_ref[...],
                    preferred_element_type=jnp.float32) + b3_ref[...])
        # Output layer dim_emb -> 1 as elementwise-mul + lane reduction
        # (avoids a lane-sparse N=1 matmul / extra kernel launch).
        score = jnp.sum(h * wout_ref[...].astype(jnp.float32),
                        axis=-1, keepdims=True) + bout_ref[...]
        o_ref[...] = score.astype(o_ref.dtype)


def discriminator_forward(params, expr, tissue_idx, *, tk=512):
    """Fused forward pass.  expr: [batch, n_genes] f32 -> score [batch, 1] f32.

    `params` must come from `prepare_discriminator_params` (padded, bf16
    weights).  Tissue conditioning is folded into the per-layer bias (glue).
    """
    M, K = expr.shape
    w1 = params["w1"]
    K_pad, H1 = w1.shape
    H2 = params["w2"].shape[1]
    E_pad = params["w3"].shape[1]
    assert K <= K_pad

    tk = min(tk, K_pad)
    assert K_pad % tk == 0, "prepare_discriminator_params pads K to a tk multiple"

    # Batch tiling: sublane-dense (>=8 rows); cap at 256 rows so the layer-1
    # f32 accumulator (bm x 2048) and resident weights all fit VMEM while the
    # streamed w1 is re-fetched as few times as possible at large batch.
    bm = min(_round_up(M, 8), 256)
    M_pad = _round_up(M, bm)

    # Tissue conditioning folded into the bias vectors (plain-JAX glue).
    b1 = (params["b1"] + params["t1"][tissue_idx]).reshape(1, H1)
    b2 = (params["b2"] + params["t2"][tissue_idx]).reshape(1, H2)
    b3 = (params["b3"] + params["t3"][tissue_idx]).reshape(1, E_pad)
    wout = params["w_out"].reshape(1, E_pad)
    bout = params["b_out"].reshape(1, 1)

    # Zero-pad the activations (rows to M_pad, genes to K_pad) and cast bf16.
    x = jnp.pad(expr.astype(jnp.bfloat16), ((0, M_pad - M), (0, K_pad - K)))

    grid = (M_pad // bm, K_pad // tk)

    out = pl.pallas_call(
        _disc_fused_kernel,
        out_shape=jax.ShapeDtypeStruct((M_pad, 1), jnp.float32),
        grid_spec=pltpu.PrefetchScalarGridSpec(
            num_scalar_prefetch=0,
            grid=grid,
            in_specs=[
                pl.BlockSpec((bm, tk), lambda i, k: (i, k)),     # x tile
                pl.BlockSpec((tk, H1), lambda i, k: (k, 0)),     # w1 stream
                pl.BlockSpec((1, H1), lambda i, k: (0, 0)),      # b1 (resident)
                pl.BlockSpec((H1, H2), lambda i, k: (0, 0)),     # w2 (resident)
                pl.BlockSpec((1, H2), lambda i, k: (0, 0)),      # b2
                pl.BlockSpec((H2, E_pad), lambda i, k: (0, 0)),  # w3 (resident)
                pl.BlockSpec((1, E_pad), lambda i, k: (0, 0)),   # b3
                pl.BlockSpec((1, E_pad), lambda i, k: (0, 0)),   # w_out
                pl.BlockSpec((1, 1), lambda i, k: (0, 0)),       # b_out
            ],
            out_specs=pl.BlockSpec((bm, 1), lambda i, k: (i, 0)),
            scratch_shapes=[pltpu.VMEM((bm, H1), jnp.float32)],  # layer-1 acc
        ),
        compiler_params=pltpu.CompilerParams(
            dimension_semantics=("parallel", "arbitrary"),
            vmem_limit_bytes=32 * 1024 * 1024,
        ),
    )(x, w1, b1, params["w2"], b2, params["w3"], b3, wout, bout)

    return out[:M]


# ----------------------------------------------------------------------------
# Parameter setup (glue, plain JAX).
# ----------------------------------------------------------------------------
def spectral_normalize(w, n_iters=10):
    """Divide w by its largest singular value (power iteration), like
    torch.nn.utils.spectral_norm at eval time."""
    u = jnp.ones((w.shape[1],), w.dtype) / jnp.sqrt(jnp.float32(w.shape[1]))
    v = w @ u
    for _ in range(n_iters):
        v = w @ u
        v = v / (jnp.linalg.norm(v) + 1e-12)
        u = w.T @ v
        u = u / (jnp.linalg.norm(u) + 1e-12)
    sigma = jnp.dot(v, w @ u)
    return w / sigma


def init_discriminator_params(key, n_genes, n_tissues, dim_emb):
    """Raw f32 parameters matching the torch module's structure."""
    dims = [(n_genes, 2048), (2048, 1024), (1024, dim_emb)]
    params = {"layers": [], "out": None}
    for (din, dout) in dims:
        key, kw, kb, kt = jax.random.split(key, 4)
        w = jax.random.normal(kw, (din, dout), jnp.float32) * 0.02
        w = spectral_normalize(w)
        b = jax.random.normal(kb, (dout,), jnp.float32) * 0.01
        temb = jax.random.normal(kt, (n_tissues, dout), jnp.float32) * 0.01
        params["layers"].append({"w": w, "b": b, "tissue_emb": temb})
    key, kw, kb = jax.random.split(key, 3)
    w_out = jax.random.normal(kw, (dim_emb, 1), jnp.float32) * 0.02
    w_out = spectral_normalize(w_out)
    b_out = jax.random.normal(kb, (1,), jnp.float32) * 0.01
    params["out"] = {"w": w_out, "b": b_out}
    return params


def prepare_discriminator_params(raw, *, tk=512, lane=128):
    """Pad + cast raw params for the fused kernel:
       - n_genes (layer-1 K) zero-padded to a multiple of tk,
       - dim_emb zero-padded to a multiple of 128 (lane-dense),
       - weights cast to bf16 (HBM bandwidth); biases/embeddings stay f32."""
    l1, l2, l3 = raw["layers"]
    K = l1["w"].shape[0]
    K_pad = _round_up(K, tk)
    E = l3["w"].shape[1]
    E_pad = _round_up(E, lane)

    w1 = jnp.zeros((K_pad, l1["w"].shape[1]), jnp.bfloat16)
    w1 = w1.at[:K].set(l1["w"].astype(jnp.bfloat16))
    w2 = l2["w"].astype(jnp.bfloat16)
    w3 = jnp.zeros((l3["w"].shape[0], E_pad), jnp.bfloat16)
    w3 = w3.at[:, :E].set(l3["w"].astype(jnp.bfloat16))
    b3 = jnp.zeros((E_pad,), jnp.float32).at[:E].set(l3["b"])
    t3 = jnp.zeros((l3["tissue_emb"].shape[0], E_pad), jnp.float32)
    t3 = t3.at[:, :E].set(l3["tissue_emb"])
    w_out = jnp.zeros((1, E_pad), jnp.bfloat16)
    w_out = w_out.at[0, :E].set(raw["out"]["w"][:, 0].astype(jnp.bfloat16))

    return {
        "w1": w1, "b1": l1["b"], "t1": l1["tissue_emb"],
        "w2": w2, "b2": l2["b"], "t2": l2["tissue_emb"],
        "w3": w3, "b3": b3, "t3": t3,
        "w_out": w_out, "b_out": raw["out"]["b"].astype(jnp.float32),
        "n_genes": K, "dim_emb": E,
    }


# ----------------------------------------------------------------------------
# Plain-JAX reference mirroring the kernel's numerics (bf16 operands, f32 acc).
# ----------------------------------------------------------------------------
def reference_forward(params, expr, tissue_idx):
    M, K = expr.shape
    K_pad = params["w1"].shape[0]
    x = jnp.zeros((M, K_pad), jnp.float32)
    x = x.at[:, :K].set(expr.astype(jnp.bfloat16).astype(jnp.float32))

    h = x @ params["w1"].astype(jnp.float32)
    h = h + params["b1"] + params["t1"][tissue_idx]
    h = jnp.maximum(h, 0.2 * h)

    h = h.astype(jnp.bfloat16).astype(jnp.float32) @ params["w2"].astype(jnp.float32)
    h = h + params["b2"] + params["t2"][tissue_idx]
    h = jnp.maximum(h, 0.2 * h)

    h = h.astype(jnp.bfloat16).astype(jnp.float32) @ params["w3"].astype(jnp.float32)
    h = h + params["b3"] + params["t3"][tissue_idx]
    h = jnp.maximum(h, 0.2 * h)

    score = jnp.sum(h * params["w_out"].astype(jnp.float32), axis=-1,
                    keepdims=True) + params["b_out"]
    return score


if __name__ == "__main__":
    # Small shapes consistent with the module: hidden sizes 2048/1024 are
    # hard-coded; n_genes / n_tissues / dim_emb are free (dim_emb=100 and a
    # non-multiple n_genes deliberately exercise the padding paths, and
    # n_genes > 512 exercises the K-reduction grid).
    batch, n_genes, n_tissues, dim_emb = 4, 1000, 8, 100
    tissue_idx = 3

    key = jax.random.PRNGKey(0)
    kp, kx = jax.random.split(key)
    raw = init_discriminator_params(kp, n_genes, n_tissues, dim_emb)
    params = prepare_discriminator_params(raw, tk=512)
    expr = jax.random.normal(kx, (batch, n_genes), jnp.float32)

    score = discriminator_forward(params, expr, tissue_idx)
    score = jax.block_until_ready(score)
    assert score.shape == (batch, 1) and score.dtype == jnp.float32

    score_ref = reference_forward(params, expr, tissue_idx)
    assert jnp.allclose(score, score_ref, atol=1e-2, rtol=1e-2), (score, score_ref)

    print("KERNEL_OK")
</pallas_src>

<mosaic_0001>
module attributes {stable_mosaic.version = 11 : i64} {
  func.func @_disc_fused_kernel(%arg0: i32, %arg1: i32, %arg2: memref<8x512xbf16, #tpu.memory_space<vmem>>, %arg3: memref<512x2048xbf16, #tpu.memory_space<vmem>>, %arg4: memref<1x2048xf32, #tpu.memory_space<vmem>>, %arg5: memref<2048x1024xbf16, #tpu.memory_space<vmem>>, %arg6: memref<1x1024xf32, #tpu.memory_space<vmem>>, %arg7: memref<1024x128xbf16, #tpu.memory_space<vmem>>, %arg8: memref<1x128xf32, #tpu.memory_space<vmem>>, %arg9: memref<1x128xbf16, #tpu.memory_space<vmem>>, %arg10: memref<1x1xf32, #tpu.memory_space<vmem>>, %arg11: memref<8x1xf32, #tpu.memory_space<vmem>>, %arg12: memref<8x2048xf32, #tpu.memory_space<vmem>>) attributes {dimension_semantics = [#tpu.dimension_semantics<parallel>, #tpu.dimension_semantics<arbitrary>], iteration_bounds = array<i64: 1, 2>, scalar_prefetch = 0 : i64, scratch_operands = 1 : i64, tpu.core_type = #tpu.core_type<tc>, window_params = [{transform_indices = @transform_0, window_bounds = array<i64: 8, 512>}, {transform_indices = @transform_1, window_bounds = array<i64: 512, 2048>}, {pipeline_mode = #tpu.pipeline_mode<synchronous>, transform_indices = @transform_2, window_bounds = array<i64: 1, 2048>}, {pipeline_mode = #tpu.pipeline_mode<synchronous>, transform_indices = @transform_3, window_bounds = array<i64: 2048, 1024>}, {pipeline_mode = #tpu.pipeline_mode<synchronous>, transform_indices = @transform_4, window_bounds = array<i64: 1, 1024>}, {pipeline_mode = #tpu.pipeline_mode<synchronous>, transform_indices = @transform_5, window_bounds = array<i64: 1024, 128>}, {pipeline_mode = #tpu.pipeline_mode<synchronous>, transform_indices = @transform_6, window_bounds = array<i64: 1, 128>}, {pipeline_mode = #tpu.pipeline_mode<synchronous>, transform_indices = @transform_7, window_bounds = array<i64: 1, 128>}, {pipeline_mode = #tpu.pipeline_mode<synchronous>, transform_indices = @transform_8, window_bounds = array<i64: 1, 1>}, {transform_indices = @transform_9, window_bounds = array<i64: 8, 1>}]} {
    %c0_i32 = arith.constant 0 : i32
    %0 = arith.cmpi eq, %arg1, %c0_i32 : i32
    %1 = arith.extui %0 : i1 to i32
    %c0_i32_0 = arith.constant 0 : i32
    %2 = arith.cmpi ne, %1, %c0_i32_0 : i32
    scf.if %2 {
      %cst_9 = arith.constant 0.000000e+00 : f32
      %12 = vector.broadcast %cst_9 : f32 to vector<8x2048xf32>
      %c0_10 = arith.constant 0 : index
      %c0_11 = arith.constant 0 : index
      %13 = vector.load %arg12[%c0_10, %c0_11] : memref<8x2048xf32, #tpu.memory_space<vmem>>, vector<8x2048xf32>
      tpu.vector_store %arg12[%c0_10, %c0_11], %12 {strides = array<i32>} : memref<8x2048xf32, #tpu.memory_space<vmem>>, vector<8x2048xf32>,
    } else {
    }
    %c0 = arith.constant 0 : index
    %c0_1 = arith.constant 0 : index
    %3 = vector.load %arg12[%c0, %c0_1] : memref<8x2048xf32, #tpu.memory_space<vmem>>, vector<8x2048xf32>
    %c0_2 = arith.constant 0 : index
    %c0_3 = arith.constant 0 : index
    %4 = vector.load %arg2[%c0_2, %c0_3] : memref<8x512xbf16, #tpu.memory_space<vmem>>, vector<8x512xbf16>
    %c0_4 = arith.constant 0 : index
    %c0_5 = arith.constant 0 : index
    %5 = vector.load %arg3[%c0_4, %c0_5] : memref<512x2048xbf16, #tpu.memory_space<vmem>>, vector<512x2048xbf16>
    %cst = arith.constant dense<0.000000e+00> : vector<8x2048xf32>
    %6 = tpu.matmul %4, %5, %cst {dimension_numbers = #tpu.dot_dimension_numbers<[1], [0], [0], [1], [0, 0, 1, 1], [], []>} : vector<8x512xbf16>, vector<512x2048xbf16>, vector<8x2048xf32> -> vector<8x2048xf32>
    %7 = arith.addf %3, %6 : vector<8x2048xf32>
    %c0_6 = arith.constant 0 : index
    %c0_7 = arith.constant 0 : index
    %8 = vector.load %arg12[%c0_6, %c0_7] : memref<8x2048xf32, #tpu.memory_space<vmem>>, vector<8x2048xf32>
    tpu.vector_store %arg12[%c0_6, %c0_7], %7 {strides = array<i32>} : memref<8x2048xf32, #tpu.memory_space<vmem>>, vector<8x2048xf32>,
    %c1_i32 = arith.constant 1 : i32
    %9 = arith.cmpi eq, %arg1, %c1_i32 : i32
    %10 = arith.extui %9 : i1 to i32
    %c0_i32_8 = arith.constant 0 : i32
    %11 = arith.cmpi ne, %10, %c0_i32_8 : i32
    scf.if %11 {
      %c0_9 = arith.constant 0 : index
      %c0_10 = arith.constant 0 : index
      %12 = vector.load %arg12[%c0_9, %c0_10] : memref<8x2048xf32, #tpu.memory_space<vmem>>, vector<8x2048xf32>
      %c0_11 = arith.constant 0 : index
      %c0_12 = arith.constant 0 : index
      %13 = vector.load %arg4[%c0_11, %c0_12] : memref<1x2048xf32, #tpu.memory_space<vmem>>, vector<1x2048xf32>
      %14 = vector.broadcast %13 : vector<1x2048xf32> to vector<8x2048xf32>
      %15 = arith.addf %12, %14 : vector<8x2048xf32>
      %cst_13 = arith.constant 2.000000e-01 : f32
      %16 = vector.broadcast %cst_13 : f32 to vector<8x2048xf32>
      %17 = arith.mulf %16, %15 : vector<8x2048xf32>
      %18 = arith.maximumf %15, %17 : vector<8x2048xf32>
      %19 = arith.truncf %18 : vector<8x2048xf32> to vector<8x2048xbf16>
      %c0_14 = arith.constant 0 : index
      %c0_15 = arith.constant 0 : index
      %20 = vector.load %arg5[%c0_14, %c0_15] : memref<2048x1024xbf16, #tpu.memory_space<vmem>>, vector<2048x1024xbf16>
      %cst_16 = arith.constant dense<0.000000e+00> : vector<8x1024xf32>
      %21 = tpu.matmul %19, %20, %cst_16 {dimension_numbers = #tpu.dot_dimension_numbers<[1], [0], [0], [1], [0, 0, 1, 1], [], []>} : vector<8x2048xbf16>, vector<2048x1024xbf16>, vector<8x1024xf32> -> vector<8x1024xf32>
      %c0_17 = arith.constant 0 : index
      %c0_18 = arith.constant 0 : index
      %22 = vector.load %arg6[%c0_17, %c0_18] : memref<1x1024xf32, #tpu.memory_space<vmem>>, vector<1x1024xf32>
      %23 = vector.broadcast %22 : vector<1x1024xf32> to vector<8x1024xf32>
      %24 = arith.addf %21, %23 : vector<8x1024xf32>
      %cst_19 = arith.constant 2.000000e-01 : f32
      %25 = vector.broadcast %cst_19 : f32 to vector<8x1024xf32>
      %26 = arith.mulf %25, %24 : vector<8x1024xf32>
      %27 = arith.maximumf %24, %26 : vector<8x1024xf32>
      %28 = arith.truncf %27 : vector<8x1024xf32> to vector<8x1024xbf16>
      %c0_20 = arith.constant 0 : index
      %c0_21 = arith.constant 0 : index
      %29 = vector.load %arg7[%c0_20, %c0_21] : memref<1024x128xbf16, #tpu.memory_space<vmem>>, vector<1024x128xbf16>
      %cst_22 = arith.constant dense<0.000000e+00> : vector<8x128xf32>
      %30 = tpu.matmul %28, %29, %cst_22 {dimension_numbers = #tpu.dot_dimension_numbers<[1], [0], [0], [1], [0, 0, 1, 1], [], []>} : vector<8x1024xbf16>, vector<1024x128xbf16>, vector<8x128xf32> -> vector<8x128xf32>
      %c0_23 = arith.constant 0 : index
      %c0_24 = arith.constant 0 : index
      %31 = vector.load %arg8[%c0_23, %c0_24] : memref<1x128xf32, #tpu.memory_space<vmem>>, vector<1x128xf32>
      %32 = vector.broadcast %31 : vector<1x128xf32> to vector<8x128xf32>
      %33 = arith.addf %30, %32 : vector<8x128xf32>
      %cst_25 = arith.constant 2.000000e-01 : f32
      %34 = vector.broadcast %cst_25 : f32 to vector<8x128xf32>
      %35 = arith.mulf %34, %33 : vector<8x128xf32>
      %36 = arith.maximumf %33, %35 : vector<8x128xf32>
      %c0_26 = arith.constant 0 : index
      %c0_27 = arith.constant 0 : index
      %37 = vector.load %arg9[%c0_26, %c0_27] : memref<1x128xbf16, #tpu.memory_space<vmem>>, vector<1x128xbf16>
      %38 = arith.extf %37 : vector<1x128xbf16> to vector<1x128xf32>
      %39 = vector.broadcast %38 : vector<1x128xf32> to vector<8x128xf32>
      %40 = arith.mulf %36, %39 : vector<8x128xf32>
      %cst_28 = arith.constant dense<0.000000e+00> : vector<8xf32>
      %41 = vector.multi_reduction <add>, %40, %cst_28 [1] : vector<8x128xf32> to vector<8xf32>
      %42 = vector.shape_cast %41 : vector<8xf32> to vector<8x1xf32>
      %c0_29 = arith.constant 0 : index
      %c0_30 = arith.constant 0 : index
      %43 = vector.load %arg10[%c0_29, %c0_30] : memref<1x1xf32, #tpu.memory_space<vmem>>, vector<1x1xf32>
      %44 = vector.broadcast %43 : vector<1x1xf32> to vector<8x1xf32>
      %45 = arith.addf %42, %44 : vector<8x1xf32>
      %c0_31 = arith.constant 0 : index
      %c0_32 = arith.constant 0 : index
      %46 = vector.load %arg11[%c0_31, %c0_32] : memref<8x1xf32, #tpu.memory_space<vmem>>, vector<8x1xf32>
      tpu.vector_store %arg11[%c0_31, %c0_32], %45 {strides = array<i32>} : memref<8x1xf32, #tpu.memory_space<vmem>>, vector<8x1xf32>,
    } else {
    }
    return
  }
  func.func @transform_0(%arg0: i32, %arg1: i32) -> (i32, i32) {
    %c0_i32 = arith.constant 0 : i32
    return %arg0, %arg1 : i32, i32
  }
  func.func @transform_1(%arg0: i32, %arg1: i32) -> (i32, i32) {
    %c0_i32 = arith.constant 0 : i32
    %c0_i32_0 = arith.constant 0 : i32
    return %arg1, %c0_i32 : i32, i32
  }
  func.func @transform_2(%arg0: i32, %arg1: i32) -> (i32, i32) {
    %c0_i32 = arith.constant 0 : i32
    %c0_i32_0 = arith.constant 0 : i32
    %c0_i32_1 = arith.constant 0 : i32
    return %c0_i32, %c0_i32_0 : i32, i32
  }
  func.func @transform_3(%arg0: i32, %arg1: i32) -> (i32, i32) {
    %c0_i32 = arith.constant 0 : i32
    %c0_i32_0 = arith.constant 0 : i32
    %c0_i32_1 = arith.constant 0 : i32
    return %c0_i32, %c0_i32_0 : i32, i32
  }
  func.func @transform_4(%arg0: i32, %arg1: i32) -> (i32, i32) {
    %c0_i32 = arith.constant 0 : i32
    %c0_i32_0 = arith.constant 0 : i32
    %c0_i32_1 = arith.constant 0 : i32
    return %c0_i32, %c0_i32_0 : i32, i32
  }
  func.func @transform_5(%arg0: i32, %arg1: i32) -> (i32, i32) {
    %c0_i32 = arith.constant 0 : i32
    %c0_i32_0 = arith.constant 0 : i32
    %c0_i32_1 = arith.constant 0 : i32
    return %c0_i32, %c0_i32_0 : i32, i32
  }
  func.func @transform_6(%arg0: i32, %arg1: i32) -> (i32, i32) {
    %c0_i32 = arith.constant 0 : i32
    %c0_i32_0 = arith.constant 0 : i32
    %c0_i32_1 = arith.constant 0 : i32
    return %c0_i32, %c0_i32_0 : i32, i32
  }
  func.func @transform_7(%arg0: i32, %arg1: i32) -> (i32, i32) {
    %c0_i32 = arith.constant 0 : i32
    %c0_i32_0 = arith.constant 0 : i32
    %c0_i32_1 = arith.constant 0 : i32
    return %c0_i32, %c0_i32_0 : i32, i32
  }
  func.func @transform_8(%arg0: i32, %arg1: i32) -> (i32, i32) {
    %c0_i32 = arith.constant 0 : i32
    %c0_i32_0 = arith.constant 0 : i32
    %c0_i32_1 = arith.constant 0 : i32
    return %c0_i32, %c0_i32_0 : i32, i32
  }
  func.func @transform_9(%arg0: i32, %arg1: i32) -> (i32, i32) {
    %c0_i32 = arith.constant 0 : i32
    %c0_i32_0 = arith.constant 0 : i32
    return %arg0, %c0_i32 : i32, i32
  }
}

</mosaic_0001>

<llo_original>
// kernel: tpu_custom_call.1
$region0: #{tpu_custom_call.1}
  #allocation0 [shape = 'u32[]', space=smem, size = 0x4, offset = 0x4, fixed_abs, tag = 'smem constant byte address 0x4 - core index']
  #allocation1 [shape = 'u32[144,128]{1,0:T(1,128)}', space=vmem, size = 0x12000, scoped, tag = 'internal scratch']
  #allocation2 [shape = 'f32[8,2048]{1,0:T(8,128)}', space=vmem, size = 0x10000, scoped, tag = 'scratch operand']
  #allocation3 [shape = 'f32[1,1]{1,0:T(1,128)S(1)}', space=vmem, size = 0x200, scoped, tag = 'scoped memory for tpu_custom_call.1']
  %s0 = inlined_call_operand.hbm [shape: bf16[8,1024], index: 0, kind: input, shape index: {}]
  %s1 = inlined_call_operand.hbm [shape: bf16[1024,2048], index: 1, kind: input, shape index: {}]
  %s2 = inlined_call_operand.hbm [shape: f32[1,2048], index: 2, kind: input, shape index: {}]
  %s3 = inlined_call_operand.hbm [shape: bf16[2048,1024], index: 3, kind: input, shape index: {}]
  %s4 = inlined_call_operand.hbm [shape: f32[1,1024], index: 4, kind: input, shape index: {}]
  %s5 = inlined_call_operand.hbm [shape: bf16[1024,128], index: 5, kind: input, shape index: {}]
  %s6 = inlined_call_operand.hbm [shape: f32[1,128], index: 6, kind: input, shape index: {}]
  %s7 = inlined_call_operand.hbm [shape: bf16[1,128], index: 7, kind: input, shape index: {}]
  %s8 = inlined_call_operand.<no memory space> [shape: f32[1,1], index: 8, kind: input, shape index: {}]
  %s9 = inlined_call_operand.vmem [shape: f32[8,1], index: 9, kind: output, shape index: {}]
  %s10 = sld [smem:[#allocation0]]
  $region109: #{tpu_custom_call.1} parent=0
    _
  %s12 = ssub.s32 1, %s10
  %s13 = scalar_select 0, %s12, %s10
  %v14 = vstv %s8
  %15 = vst [vmem:[#allocation3] sm:$0x1] %v14
  $region1: #{tpu_custom_call.1} parent=0
    #allocation4 [shape = 'u8[16384]{0}', space=vmem, size = 0x4000, scoped, tag = 'input window, operand 0']
    #allocation5 [shape = 's32[2]{0}', space=sflag, size = 0x8, scoped, tag = 'scoped memory for tpu_custom_call.1']
    #allocation6 [shape = 'u8[4194304]{0}', space=vmem, size = 0x400000, scoped, tag = 'input window, operand 1']
    #allocation7 [shape = 's32[2]{0}', space=sflag, size = 0x8, scoped, tag = 'scoped memory for tpu_custom_call.1']
    #allocation8 [shape = 'u8[8192]{0}', space=vmem, size = 0x2000, scoped, tag = 'input window, operand 2, single buffered']
    #allocation9 [shape = 'u8[4194304]{0}', space=vmem, size = 0x400000, scoped, tag = 'input window, operand 3, single buffered']
    #allocation10 [shape = 's32[1]{0}', space=sflag, size = 0x4, scoped, tag = 'scoped memory for tpu_custom_call.1']
    #allocation11 [shape = 'u8[4096]{0}', space=vmem, size = 0x1000, scoped, tag = 'input window, operand 4, single buffered']
    #allocation12 [shape = 'u8[262144]{0}', space=vmem, size = 0x40000, scoped, tag = 'input window, operand 5, single buffered']
    #allocation13 [shape = 's32[1]{0}', space=sflag, size = 0x4, scoped, tag = 'scoped memory for tpu_custom_call.1']
    #allocation14 [shape = 'u8[512]{0}', space=vmem, size = 0x400, scoped, tag = 'input window, operand 6, single buffered']
    #allocation15 [shape = 'u8[512]{0}', space=vmem, size = 0x400, scoped, tag = 'input window, operand 7, single buffered']
    #allocation16 [shape = 's32[1]{0}', space=sflag, size = 0x4, scoped, tag = 'scoped memory for tpu_custom_call.1']
    %16 = vsyncpa [#allocation5], 0
    %s17 = scalar_lea.sflag [#allocation5], 1
    %18 = vsyncpa %s17, 0
    %19 = vsyncpa [#allocation7], 0
    %s20 = scalar_lea.sflag [#allocation7], 1
    %21 = vsyncpa %s20, 0
    %22 = vsyncpa [#allocation10], 0
    %23 = vsyncpa [#allocation13], 0
    %24 = vsyncpa [#allocation16], 0
    loop: start=0, step=1, limit=4
    $region2: #{tpu_custom_call.1} parent=1 // loop_pre_header
      _
    $region3: #{tpu_custom_call.1} parent=1 // loop_header
      %s26 = sphi 0, %s30
      %p27 = scmp.ge.s32.totalorder %s26, 4
      %s33 = sphi 0, %s45
      %s34 = sphi 0, %s41
      %s35 = sphi 0, %s33
      %s36 = sphi 0, %s34
      %s37 = sphi 0, %s35
      %s38 = sphi 0, %s36
      %s50 = sphi 0, %s52
      %s53 = sphi 0, %s50
      %s54 = sphi 0, %s53
      %s70 = sphi 0, %s54
      %s76 = sphi 0, %s78
      %s79 = sphi 0, %s76
      %s80 = sphi 0, %s79
      %s96 = sphi 0, %s80
      %s100 = sphi 0, %s100
      %s102 = sphi 0, %s100
      %s103 = sphi 0, %s102
      %s117 = sphi 0, %s103
      %s121 = sphi 0, %s121
      %s123 = sphi 0, %s121
      %s124 = sphi 0, %s123
      %s138 = sphi 0, %s124
      %s142 = sphi 0, %s142
      %s144 = sphi 0, %s142
      %s145 = sphi 0, %s144
      %s159 = sphi 0, %s145
      %s163 = sphi 0, %s163
      %s165 = sphi 0, %s163
      %s166 = sphi 0, %s165
      %s180 = sphi 0, %s166
      %s184 = sphi 0, %s184
      %s186 = sphi 0, %s184
      %s187 = sphi 0, %s186
      %s201 = sphi 0, %s187
      %s205 = sphi 0, %s205
      %s207 = sphi 0, %s205
      %s208 = sphi 0, %s207
      %s222 = sphi 0, %s208
      %s226 = sphi 0, %s226
      %s228 = sphi 0, %s226
      %s229 = sphi 0, %s228
      %s243 = sphi 0, %s229
      %s249 = sphi 0, %s251
      %s252 = sphi 0, %s249
      %s253 = sphi 0, %s252
      %s269 = sphi 0, %s253
    $region4: #{tpu_custom_call.1} parent=1 // loop_header_branch
      %29 = sbr.rel (%p27) target = $region8
    $region5: #{tpu_custom_call.1} parent=1 // loop_body
      %s31 = ssub.s32 %s26, 1
      %s32 = ssub.s32 %s26, 2
      %s39 = sadd.s32 1, %s34
      %p40 = scmp.ge.s32.totalorder %s39, 2
      %s41 = scalar_select %p40, 0, %s39
      %s42 = sadd.s32 1, %s33
      %s43 = scalar_select %p40, %s42, %s33
      %p44 = scmp.ge.s32.totalorder %s43, 1
      %s45 = scalar_select %p44, 0, %s43
      %s46 = ssub.s32 %s33, %s45
      %s47 = ssub.s32 %s34, %s41
      %s48 = sor.u32 %s46, %s47
      %p49 = scmp.eq.s32.totalorder %s48, 0
      %s51 = sadd.s32 %s50, 1
      %s52 = scalar_select %p49, %s50, %s51
      %p55 = pneg %p49
      %p56 = scmp.eq.s32.totalorder %s26, 1
      %p57 = por %p55, %p56
      %p58 = scmp.ne.s32.totalorder %s50, %s53
      %p59 = scmp.eq.s32.totalorder %s26, 0
      %p60 = por %p58, %p59
      %p61 = scmp.ne.s32.totalorder %s50, %s53
      %p62 = scmp.eq.s32.totalorder %s31, 1
      %p63 = por %p61, %p62
      %p64 = scmp.ne.s32.totalorder %s53, %s54
      %p65 = scmp.eq.s32.totalorder %s31, 0
      %p66 = por %p64, %p65
      %p67 = scmp.ne.s32.totalorder %s53, %s54
      %p68 = scmp.eq.s32.totalorder %s32, 1
      %p69 = por %p67, %p68
      %p71 = scmp.ne.s32.totalorder %s54, %s70
      %p72 = scmp.eq.s32.totalorder %s32, 0
      %p73 = por %p71, %p72
      %s74 = ssub.s32 %s34, %s41
      %p75 = scmp.eq.s32.totalorder %s74, 0
      %s77 = sadd.s32 %s76, 1
      %s78 = scalar_select %p75, %s76, %s77
      %p81 = pneg %p75
      %p82 = scmp.eq.s32.totalorder %s26, 1
      %p83 = por %p81, %p82
      %p84 = scmp.ne.s32.totalorder %s76, %s79
      %p85 = scmp.eq.s32.totalorder %s26, 0
      %p86 = por %p84, %p85
      %p87 = scmp.ne.s32.totalorder %s76, %s79
      %p88 = scmp.eq.s32.totalorder %s31, 1
      %p89 = por %p87, %p88
      %p90 = scmp.ne.s32.totalorder %s79, %s80
      %p91 = scmp.eq.s32.totalorder %s31, 0
      %p92 = por %p90, %p91
      %p93 = scmp.ne.s32.totalorder %s79, %s80
      %p94 = scmp.eq.s32.totalorder %s32, 1
      %p95 = por %p93, %p94
      %p97 = scmp.ne.s32.totalorder %s80, %s96
      %p98 = scmp.eq.s32.totalorder %s32, 0
      %p99 = por %p97, %p98
      %s101 = sadd.s32 %s100, 1
      %p104 = scmp.eq.s32.totalorder %s26, 1
      %p105 = scmp.ne.s32.totalorder %s100, %s102
      %p106 = scmp.eq.s32.totalorder %s26, 0
      %p107 = por %p105, %p106
      %p108 = scmp.ne.s32.totalorder %s100, %s102
      %p109 = scmp.eq.s32.totalorder %s31, 1
      %p110 = por %p108, %p109
      %p111 = scmp.ne.s32.totalorder %s102, %s103
      %p112 = scmp.eq.s32.totalorder %s31, 0
      %p113 = por %p111, %p112
      %p114 = scmp.ne.s32.totalorder %s102, %s103
      %p115 = scmp.eq.s32.totalorder %s32, 1
      %p116 = por %p114, %p115
      %p118 = scmp.ne.s32.totalorder %s103, %s117
      %p119 = scmp.eq.s32.totalorder %s32, 0
      %p120 = por %p118, %p119
      %s122 = sadd.s32 %s121, 1
      %p125 = scmp.eq.s32.totalorder %s26, 1
      %p126 = scmp.ne.s32.totalorder %s121, %s123
      %p127 = scmp.eq.s32.totalorder %s26, 0
      %p128 = por %p126, %p127
      %p129 = scmp.ne.s32.totalorder %s121, %s123
      %p130 = scmp.eq.s32.totalorder %s31, 1
      %p131 = por %p129, %p130
      %p132 = scmp.ne.s32.totalorder %s123, %s124
      %p133 = scmp.eq.s32.totalorder %s31, 0
      %p134 = por %p132, %p133
      %p135 = scmp.ne.s32.totalorder %s123, %s124
      %p136 = scmp.eq.s32.totalorder %s32, 1
      %p137 = por %p135, %p136
      %p139 = scmp.ne.s32.totalorder %s124, %s138
      %p140 = scmp.eq.s32.totalorder %s32, 0
      %p141 = por %p139, %p140
      %s143 = sadd.s32 %s142, 1
      %p146 = scmp.eq.s32.totalorder %s26, 1
      %p147 = scmp.ne.s32.totalorder %s142, %s144
      %p148 = scmp.eq.s32.totalorder %s26, 0
      %p149 = por %p147, %p148
      %p150 = scmp.ne.s32.totalorder %s142, %s144
      %p151 = scmp.eq.s32.totalorder %s31, 1
      %p152 = por %p150, %p151
      %p153 = scmp.ne.s32.totalorder %s144, %s145
      %p154 = scmp.eq.s32.totalorder %s31, 0
      %p155 = por %p153, %p154
      %p156 = scmp.ne.s32.totalorder %s144, %s145
      %p157 = scmp.eq.s32.totalorder %s32, 1
      %p158 = por %p156, %p157
      %p160 = scmp.ne.s32.totalorder %s145, %s159
      %p161 = scmp.eq.s32.totalorder %s32, 0
      %p162 = por %p160, %p161
      %s164 = sadd.s32 %s163, 1
      %p167 = scmp.eq.s32.totalorder %s26, 1
      %p168 = scmp.ne.s32.totalorder %s163, %s165
      %p169 = scmp.eq.s32.totalorder %s26, 0
      %p170 = por %p168, %p169
      %p171 = scmp.ne.s32.totalorder %s163, %s165
      %p172 = scmp.eq.s32.totalorder %s31, 1
      %p173 = por %p171, %p172
      %p174 = scmp.ne.s32.totalorder %s165, %s166
      %p175 = scmp.eq.s32.totalorder %s31, 0
      %p176 = por %p174, %p175
      %p177 = scmp.ne.s32.totalorder %s165, %s166
      %p178 = scmp.eq.s32.totalorder %s32, 1
      %p179 = por %p177, %p178
      %p181 = scmp.ne.s32.totalorder %s166, %s180
      %p182 = scmp.eq.s32.totalorder %s32, 0
      %p183 = por %p181, %p182
      %s185 = sadd.s32 %s184, 1
      %p188 = scmp.eq.s32.totalorder %s26, 1
      %p189 = scmp.ne.s32.totalorder %s184, %s186
      %p190 = scmp.eq.s32.totalorder %s26, 0
      %p191 = por %p189, %p190
      %p192 = scmp.ne.s32.totalorder %s184, %s186
      %p193 = scmp.eq.s32.totalorder %s31, 1
      %p194 = por %p192, %p193
      %p195 = scmp.ne.s32.totalorder %s186, %s187
      %p196 = scmp.eq.s32.totalorder %s31, 0
      %p197 = por %p195, %p196
      %p198 = scmp.ne.s32.totalorder %s186, %s187
      %p199 = scmp.eq.s32.totalorder %s32, 1
      %p200 = por %p198, %p199
      %p202 = scmp.ne.s32.totalorder %s187, %s201
      %p203 = scmp.eq.s32.totalorder %s32, 0
      %p204 = por %p202, %p203
      %s206 = sadd.s32 %s205, 1
      %p209 = scmp.eq.s32.totalorder %s26, 1
      %p210 = scmp.ne.s32.totalorder %s205, %s207
      %p211 = scmp.eq.s32.totalorder %s26, 0
      %p212 = por %p210, %p211
      %p213 = scmp.ne.s32.totalorder %s205, %s207
      %p214 = scmp.eq.s32.totalorder %s31, 1
      %p215 = por %p213, %p214
      %p216 = scmp.ne.s32.totalorder %s207, %s208
      %p217 = scmp.eq.s32.totalorder %s31, 0
      %p218 = por %p216, %p217
      %p219 = scmp.ne.s32.totalorder %s207, %s208
      %p220 = scmp.eq.s32.totalorder %s32, 1
      %p221 = por %p219, %p220
      %p223 = scmp.ne.s32.totalorder %s208, %s222
      %p224 = scmp.eq.s32.totalorder %s32, 0
      %p225 = por %p223, %p224
      %s227 = sadd.s32 %s226, 1
      %p230 = scmp.eq.s32.totalorder %s26, 1
      %p231 = scmp.ne.s32.totalorder %s226, %s228
      %p232 = scmp.eq.s32.totalorder %s26, 0
      %p233 = por %p231, %p232
      %p234 = scmp.ne.s32.totalorder %s226, %s228
      %p235 = scmp.eq.s32.totalorder %s31, 1
      %p236 = por %p234, %p235
      %p237 = scmp.ne.s32.totalorder %s228, %s229
      %p238 = scmp.eq.s32.totalorder %s31, 0
      %p239 = por %p237, %p238
      %p240 = scmp.ne.s32.totalorder %s228, %s229
      %p241 = scmp.eq.s32.totalorder %s32, 1
      %p242 = por %p240, %p241
      %p244 = scmp.ne.s32.totalorder %s229, %s243
      %p245 = scmp.eq.s32.totalorder %s32, 0
      %p246 = por %p244, %p245
      %s247 = ssub.s32 %s33, %s45
      %p248 = scmp.eq.s32.totalorder %s247, 0
      %s250 = sadd.s32 %s249, 1
      %s251 = scalar_select %p248, %s249, %s250
      %p254 = pneg %p248
      %p255 = scmp.eq.s32.totalorder %s26, 1
      %p256 = por %p254, %p255
      %p257 = scmp.ne.s32.totalorder %s249, %s252
      %p258 = scmp.eq.s32.totalorder %s26, 0
      %p259 = por %p257, %p258
      %p260 = scmp.ne.s32.totalorder %s249, %s252
      %p261 = scmp.eq.s32.totalorder %s31, 1
      %p262 = por %p260, %p261
      %p263 = scmp.ne.s32.totalorder %s252, %s253
      %p264 = scmp.eq.s32.totalorder %s31, 0
      %p265 = por %p263, %p264
      %p266 = scmp.ne.s32.totalorder %s252, %s253
      %p267 = scmp.eq.s32.totalorder %s32, 1
      %p268 = por %p266, %p267
      %p270 = scmp.ne.s32.totalorder %s253, %s269
      %p271 = scmp.eq.s32.totalorder %s32, 0
      %p272 = por %p270, %p271
      %p273 = scmp.le.s32.totalorder 1, %s26
      %p274 = scmp.lt.s32.totalorder %s26, 3
      %p275 = pnand %p273, %p274
      %p276 = pneg %p275
      // Predicated region
      $region9: #{tpu_custom_call.1} parent=5 // pred_check
        _
      $region10: #{tpu_custom_call.1} parent=5 // pred_check_branch
        %278 = sbr.rel (%p275) target = $region12
      $region11: #{tpu_custom_call.1} parent=5 // pred_region
        %s279 = ssub.s32 %s26, 1
        // Predicated region
        $region13: #{tpu_custom_call.1} parent=11 // pred_check
          %p280 = pneg %p113
        $region14: #{tpu_custom_call.1} parent=11 // pred_check_branch
          %282 = sbr.rel (%p280) target = $region16
        $region15: #{tpu_custom_call.1} parent=11 // pred_region
          %s284 = ssub.s32 256, 256
          %285 = vsyncadd [#allocation7], %s284
          %s287 = sshll.u32 [#allocation8], 4
          %s288 = int_to_ptr.vmem [resolvable:$true] %s287
          %290 = dma.hbm_to_vmem [thread:$0]  %s2, 256, %s288, [#allocation7]
        $region16: #{tpu_custom_call.1} parent=11 // pred_fallthru
          _
        // Predicated region
        $region17: #{tpu_custom_call.1} parent=11 // pred_check
          %p291 = pneg %p134
        $region18: #{tpu_custom_call.1} parent=11 // pred_check_branch
          %293 = sbr.rel (%p291) target = $region20
        $region19: #{tpu_custom_call.1} parent=11 // pred_region
          %s295 = ssub.s32 131072, 131072
          %296 = vsyncadd [#allocation10], %s295
          %s297 = sshll.u32 [#allocation9], 4
          %s298 = int_to_ptr.vmem [resolvable:$true] %s297
          %303 = dma.hbm_to_vmem [thread:$0]  %s3, 131072, %s298, [#allocation10], 512, 512, 32
        $region20: #{tpu_custom_call.1} parent=11 // pred_fallthru
          _
        // Predicated region
        $region21: #{tpu_custom_call.1} parent=11 // pred_check
          %p304 = pneg %p155
        $region22: #{tpu_custom_call.1} parent=11 // pred_check_branch
          %306 = sbr.rel (%p304) target = $region24
        $region23: #{tpu_custom_call.1} parent=11 // pred_region
          %s308 = ssub.s32 128, 128
          %309 = vsyncadd [#allocation10], %s308
          %s311 = sshll.u32 [#allocation11], 4
          %s312 = int_to_ptr.vmem [resolvable:$true] %s311
          %314 = dma.hbm_to_vmem [thread:$0]  %s4, 128, %s312, [#allocation10]
        $region24: #{tpu_custom_call.1} parent=11 // pred_fallthru
          _
        // Predicated region
        $region25: #{tpu_custom_call.1} parent=11 // pred_check
          %p315 = pneg %p176
        $region26: #{tpu_custom_call.1} parent=11 // pred_check_branch
          %317 = sbr.rel (%p315) target = $region28
        $region27: #{tpu_custom_call.1} parent=11 // pred_region
          %s319 = ssub.s32 8192, 8192
          %320 = vsyncadd [#allocation13], %s319
          %s321 = sshll.u32 [#allocation12], 4
          %s322 = int_to_ptr.vmem [resolvable:$true] %s321
          %327 = dma.hbm_to_vmem [thread:$0]  %s5, 8192, %s322, [#allocation13], 64, 64, 4
        $region28: #{tpu_custom_call.1} parent=11 // pred_fallthru
          _
        // Predicated region
        $region29: #{tpu_custom_call.1} parent=11 // pred_check
          %p328 = pneg %p197
        $region30: #{tpu_custom_call.1} parent=11 // pred_check_branch
          %330 = sbr.rel (%p328) target = $region32
        $region31: #{tpu_custom_call.1} parent=11 // pred_region
          %s332 = ssub.s32 16, 16
          %333 = vsyncadd [#allocation13], %s332
          %s335 = sshll.u32 [#allocation14], 4
          %s336 = int_to_ptr.vmem [resolvable:$true] %s335
          %338 = dma.hbm_to_vmem [thread:$0]  %s6, 16, %s336, [#allocation13]
        $region32: #{tpu_custom_call.1} parent=11 // pred_fallthru
          _
        // Predicated region
        $region33: #{tpu_custom_call.1} parent=11 // pred_check
          %p339 = pneg %p218
        $region34: #{tpu_custom_call.1} parent=11 // pred_check_branch
          %341 = sbr.rel (%p339) target = $region36
        $region35: #{tpu_custom_call.1} parent=11 // pred_region
          %s343 = ssub.s32 16, 16
          %344 = vsyncadd [#allocation16], %s343
          %s346 = sshll.u32 [#allocation15], 4
          %s347 = int_to_ptr.vmem [resolvable:$true] %s346
          %349 = dma.hbm_to_vmem [thread:$0]  %s7, 16, %s347, [#allocation16]
        $region36: #{tpu_custom_call.1} parent=11 // pred_fallthru
          _
        // Predicated region
        $region37: #{tpu_custom_call.1} parent=11 // pred_check
          %p350 = pneg %p239
        $region38: #{tpu_custom_call.1} parent=11 // pred_check_branch
          %352 = sbr.rel (%p350) target = $region40
        $region39: #{tpu_custom_call.1} parent=11 // pred_region
          _
        $region40: #{tpu_custom_call.1} parent=11 // pred_fallthru
          _
      $region12: #{tpu_custom_call.1} parent=5 // pred_fallthru
        _
      %p353 = scmp.lt.s32.totalorder %s26, 2
      // Predicated region
      $region41: #{tpu_custom_call.1} parent=5 // pred_check
        %p354 = pneg %p353
      $region42: #{tpu_custom_call.1} parent=5 // pred_check_branch
        %356 = sbr.rel (%p354) target = $region44
      $region43: #{tpu_custom_call.1} parent=5 // pred_region
        // Predicated region
        $region45: #{tpu_custom_call.1} parent=43 // pred_check
          %p357 = pneg %p60
        $region46: #{tpu_custom_call.1} parent=43 // pred_check_branch
          %359 = sbr.rel (%p357) target = $region48
        $region47: #{tpu_custom_call.1} parent=43 // pred_region
          %s360 = sand.u32 %s50, 1
          %s361 = scalar_lea.sflag [#allocation5], %s360
          %s362 = sand.u32 %s50, 1
          %s363 = smul.addr %s362, 16
          %s364 = scalar_lea.vmem [#allocation4], %s363
          %s365 = smul.u32 4, %s34
          %s367 = ssub.s32 256, 256
          %368 = vsyncadd %s361, %s367
          %s369 = smul.addr %s33, 8
          %s370 = sadd.s32 %s365, %s369
          %s371 = smul.addr %s370, 64
          %s372 = scalar_lea.hbm %s0, %s371
          %s374 = sshll.u32 %s364, 4
          %s375 = int_to_ptr.vmem [resolvable:$true] %s374
          %377 = dma.hbm_to_vmem [thread:$0]  %s372, 256, %s375, %s361
        $region48: #{tpu_custom_call.1} parent=43 // pred_fallthru
          _
        // Predicated region
        $region49: #{tpu_custom_call.1} parent=43 // pred_check
          %p378 = pneg %p86
        $region50: #{tpu_custom_call.1} parent=43 // pred_check_branch
          %380 = sbr.rel (%p378) target = $region52
        $region51: #{tpu_custom_call.1} parent=43 // pred_region
          %s381 = sand.u32 %s26, 1
          %s382 = scalar_lea.sflag [#allocation7], %s381
          %s383 = sand.u32 %s76, 1
          %s384 = smul.addr %s383, 4096
          %s385 = scalar_lea.vmem [#allocation6], %s384
          %s386 = smul.u32 64, %s34
          %s388 = ssub.s32 65536, 65536
          %389 = vsyncadd %s382, %s388
          %s390 = smul.addr %s386, 16
          %s391 = smul.addr %s390, 64
          %s392 = scalar_lea.hbm %s1, %s391
          %s393 = sshll.u32 %s385, 4
          %s394 = int_to_ptr.vmem [resolvable:$true] %s393
          %399 = dma.hbm_to_vmem [thread:$0]  %s392, 65536, %s394, %s382, 1024, 1024, 64
        $region52: #{tpu_custom_call.1} parent=43 // pred_fallthru
          _
      $region44: #{tpu_custom_call.1} parent=5 // pred_fallthru
        _
      %p400 = scmp.le.s32.totalorder 1, %s26
      %p401 = scmp.lt.s32.totalorder %s26, 3
      %p402 = pnand %p400, %p401
      %p403 = pneg %p402
      // Predicated region
      $region53: #{tpu_custom_call.1} parent=5 // pred_check
        _
      $region54: #{tpu_custom_call.1} parent=5 // pred_check_branch
        %405 = sbr.rel (%p402) target = $region56
      $region55: #{tpu_custom_call.1} parent=5 // pred_region
        %s406 = ssub.s32 %s26, 1
        %s407 = sand.u32 %s53, 1
        %s408 = scalar_lea.sflag [#allocation5], %s407
        %s409 = sand.u32 %s53, 1
        %s410 = smul.addr %s409, 16
        %s411 = scalar_lea.vmem [#allocation4], %s410
        // Predicated region
        $region57: #{tpu_custom_call.1} parent=55 // pred_check
          %p412 = pneg %p66
        $region58: #{tpu_custom_call.1} parent=55 // pred_check_branch
          %414 = sbr.rel (%p412) target = $region60
        $region59: #{tpu_custom_call.1} parent=55 // pred_region
          %415 = dma.done %s408, 256
        $region60: #{tpu_custom_call.1} parent=55 // pred_fallthru
          _
        %s416 = sand.u32 %s31, 1
        %s417 = scalar_lea.sflag [#allocation7], %s416
        %s418 = sand.u32 %s79, 1
        %s419 = smul.addr %s418, 4096
        %s420 = scalar_lea.vmem [#allocation6], %s419
        // Predicated region
        $region61: #{tpu_custom_call.1} parent=55 // pred_check
          %p421 = pneg %p92
        $region62: #{tpu_custom_call.1} parent=55 // pred_check_branch
          %423 = sbr.rel (%p421) target = $region64
        $region63: #{tpu_custom_call.1} parent=55 // pred_region
          %424 = dma.done %s417, 65536
        $region64: #{tpu_custom_call.1} parent=55 // pred_fallthru
          _
        // Predicated region
        $region65: #{tpu_custom_call.1} parent=55 // pred_check
          %p425 = pneg %p113
        $region66: #{tpu_custom_call.1} parent=55 // pred_check_branch
          %427 = sbr.rel (%p425) target = $region68
        $region67: #{tpu_custom_call.1} parent=55 // pred_region
          %428 = dma.done [#allocation7], 256
        $region68: #{tpu_custom_call.1} parent=55 // pred_fallthru
          _
        // Predicated region
        $region69: #{tpu_custom_call.1} parent=55 // pred_check
          %p429 = pneg %p134
        $region70: #{tpu_custom_call.1} parent=55 // pred_check_branch
          %431 = sbr.rel (%p429) target = $region72
        $region71: #{tpu_custom_call.1} parent=55 // pred_region
          %432 = dma.done [#allocation10], 131072
        $region72: #{tpu_custom_call.1} parent=55 // pred_fallthru
          _
        // Predicated region
        $region73: #{tpu_custom_call.1} parent=55 // pred_check
          %p433 = pneg %p155
        $region74: #{tpu_custom_call.1} parent=55 // pred_check_branch
          %435 = sbr.rel (%p433) target = $region76
        $region75: #{tpu_custom_call.1} parent=55 // pred_region
          %436 = dma.done [#allocation10], 128
        $region76: #{tpu_custom_call.1} parent=55 // pred_fallthru
          _
        // Predicated region
        $region77: #{tpu_custom_call.1} parent=55 // pred_check
          %p437 = pneg %p176
        $region78: #{tpu_custom_call.1} parent=55 // pred_check_branch
          %439 = sbr.rel (%p437) target = $region80
        $region79: #{tpu_custom_call.1} parent=55 // pred_region
          %440 = dma.done [#allocation13], 8192
        $region80: #{tpu_custom_call.1} parent=55 // pred_fallthru
          _
        // Predicated region
        $region81: #{tpu_custom_call.1} parent=55 // pred_check
          %p441 = pneg %p197
        $region82: #{tpu_custom_call.1} parent=55 // pred_check_branch
          %443 = sbr.rel (%p441) target = $region84
        $region83: #{tpu_custom_call.1} parent=55 // pred_region
          %444 = dma.done [#allocation13], 16
        $region84: #{tpu_custom_call.1} parent=55 // pred_fallthru
          _
        // Predicated region
        $region85: #{tpu_custom_call.1} parent=55 // pred_check
          %p445 = pneg %p218
        $region86: #{tpu_custom_call.1} parent=55 // pred_check_branch
          %447 = sbr.rel (%p445) target = $region88
        $region87: #{tpu_custom_call.1} parent=55 // pred_region
          %448 = dma.done [#allocation16], 16
        $region88: #{tpu_custom_call.1} parent=55 // pred_fallthru
          _
        %s449 = sand.u32 %s53, 1
        %s450 = scalar_lea.sflag [#allocation5], %s449
        %s451 = sand.u32 %s53, 1
        %s452 = smul.addr %s451, 16
        %s453 = scalar_lea.vmem [#allocation4], %s452
        %p454 = pneg %p66
        %p455 = pneg %p63
        %s456 = sand.u32 %s31, 1
        %s457 = scalar_lea.sflag [#allocation7], %s456
        %s458 = sand.u32 %s79, 1
        %s459 = smul.addr %s458, 4096
        %s460 = scalar_lea.vmem [#allocation6], %s459
        %p461 = pneg %p92
        %p462 = pneg %p89
        %p463 = pneg %p113
        %p464 = pneg %p110
        %p465 = pneg %p134
        %p466 = pneg %p131
        %p467 = pneg %p155
        %p468 = pneg %p152
        %p469 = pneg %p176
        %p470 = pneg %p173
        %p471 = pneg %p197
        %p472 = pneg %p194
        %p473 = pneg %p218
        %p474 = pneg %p215
        %p475 = pneg %p239
        %p476 = pneg %p236
        %p477 = pneg %p265
        %p478 = pneg %p262
        %p479 = scmp.lt.s32.totalorder %s35, 0
        %s480 = scalar_select %p479, %s35, 0
        %s481 = smul.addr %s480, 8
        %s482 = scalar_lea.vmem %s9, %s481
        %s483 = smul.u32 4, %s36
        %s484 = smul.u32 64, %s36
        %p485 = scmp.lt.s32.totalorder %s35, 0
        %s486 = scalar_select %p485, %s35, 0
        %s487 = smul.addr %s486, 8
        %s488 = scalar_lea.vmem %s9, %s487
        %p490 = scmp.eq.s32.totalorder %s36, 0
        // Predicated region
        $region89: #{tpu_custom_call.1} parent=55 // pred_check
          %p491 = pneg %p490
        $region90: #{tpu_custom_call.1} parent=55 // pred_check_branch
          %493 = sbr.rel (%p491) target = $region92
        $region91: #{tpu_custom_call.1} parent=55 // pred_region
          %494 = vst [vmem:[#allocation2] sm:$0xff] 0.0
          %495 = vst [vmem:[#allocation2 + $0x8] sm:$0xff] 0.0
          %496 = vst [vmem:[#allocation2 + $0x10] sm:$0xff] 0.0
          %497 = vst [vmem:[#allocation2 + $0x18] sm:$0xff] 0.0
          %498 = vst [vmem:[#allocation2 + $0x20] sm:$0xff] 0.0
          %499 = vst [vmem:[#allocation2 + $0x28] sm:$0xff] 0.0
          %500 = vst [vmem:[#allocation2 + $0x30] sm:$0xff] 0.0
          %501 = vst [vmem:[#allocation2 + $0x38] sm:$0xff] 0.0
          %502 = vst [vmem:[#allocation2 + $0x40] sm:$0xff] 0.0
          %503 = vst [vmem:[#allocation2 + $0x48] sm:$0xff] 0.0
          %504 = vst [vmem:[#allocation2 + $0x50] sm:$0xff] 0.0
          %505 = vst [vmem:[#allocation2 + $0x58] sm:$0xff] 0.0
          %506 = vst [vmem:[#allocation2 + $0x60] sm:$0xff] 0.0
          %507 = vst [vmem:[#allocation2 + $0x68] sm:$0xff] 0.0
          %508 = vst [vmem:[#allocation2 + $0x70] sm:$0xff] 0.0
          %509 = vst [vmem:[#allocation2 + $0x78] sm:$0xff] 0.0
        $region92: #{tpu_custom_call.1} parent=55 // pred_fallthru
          _
        %v510 = vld [vmem:[#allocation2] sm:$0xff]
        %v511 = vld [vmem:[#allocation2 + $0x8] sm:$0xff]
        %v512 = vld [vmem:[#allocation2 + $0x10] sm:$0xff]
        %v513 = vld [vmem:[#allocation2 + $0x18] sm:$0xff]
        %v514 = vld [vmem:[#allocation2 + $0x20] sm:$0xff]
        %v515 = vld [vmem:[#allocation2 + $0x28] sm:$0xff]
        %v516 = vld [vmem:[#allocation2 + $0x30] sm:$0xff]
        %v517 = vld [vmem:[#allocation2 + $0x38] sm:$0xff]
        %v518 = vld [vmem:[#allocation2 + $0x40] sm:$0xff]
        %v519 = vld [vmem:[#allocation2 + $0x48] sm:$0xff]
        %v520 = vld [vmem:[#allocation2 + $0x50] sm:$0xff]
        %v521 = vld [vmem:[#allocation2 + $0x58] sm:$0xff]
        %v522 = vld [vmem:[#allocation2 + $0x60] sm:$0xff]
        %v523 = vld [vmem:[#allocation2 + $0x68] sm:$0xff]
        %v524 = vld [vmem:[#allocation2 + $0x70] sm:$0xff]
        %v525 = vld [vmem:[#allocation2 + $0x78] sm:$0xff]
        %v526 = vld [vmem:[%s411] sm:$0xff]
        %v527 = vld [vmem:[%s411 + $0x8] sm:$0xff]
        %v528 = vld [vmem:[%s420] sm:$0xff]
        %v529 = vld [vmem:[%s420 + $0x8] sm:$0xff]
        %v530 = vld [vmem:[%s420 + $0x10] sm:$0xff]
        %v531 = vld [vmem:[%s420 + $0x18] sm:$0xff]
        %v532 = vld [vmem:[%s420 + $0x20] sm:$0xff]
        %v533 = vld [vmem:[%s420 + $0x28] sm:$0xff]
        %v534 = vld [vmem:[%s420 + $0x30] sm:$0xff]
        %v535 = vld [vmem:[%s420 + $0x38] sm:$0xff]
        %v536 = vld [vmem:[%s420 + $0x40] sm:$0xff]
        %v537 = vld [vmem:[%s420 + $0x48] sm:$0xff]
        %v538 = vld [vmem:[%s420 + $0x50] sm:$0xff]
        %v539 = vld [vmem:[%s420 + $0x58] sm:$0xff]
        %v540 = vld [vmem:[%s420 + $0x60] sm:$0xff]
        %v541 = vld [vmem:[%s420 + $0x68] sm:$0xff]
        %v542 = vld [vmem:[%s420 + $0x70] sm:$0xff]
        %v543 = vld [vmem:[%s420 + $0x78] sm:$0xff]
        %v544 = vld [vmem:[%s420 + $0x80] sm:$0xff]
        %v545 = vld [vmem:[%s420 + $0x88] sm:$0xff]
        %v546 = vld [vmem:[%s420 + $0x90] sm:$0xff]
        %v547 = vld [vmem:[%s420 + $0x98] sm:$0xff]
        %v548 = vld [vmem:[%s420 + $0xa0] sm:$0xff]
        %v549 = vld [vmem:[%s420 + $0xa8] sm:$0xff]
        %v550 = vld [vmem:[%s420 + $0xb0] sm:$0xff]
        %v551 = vld [vmem:[%s420 + $0xb8] sm:$0xff]
        %v552 = vld [vmem:[%s420 + $0xc0] sm:$0xff]
        %v553 = vld [vmem:[%s420 + $0xc8] sm:$0xff]
        %v554 = vld [vmem:[%s420 + $0xd0] sm:$0xff]
        %v555 = vld [vmem:[%s420 + $0xd8] sm:$0xff]
        %v556 = vld [vmem:[%s420 + $0xe0] sm:$0xff]
        %v557 = vld [vmem:[%s420 + $0xe8] sm:$0xff]
        %v558 = vld [vmem:[%s420 + $0xf0] sm:$0xff]
        %v559 = vld [vmem:[%s420 + $0xf8] sm:$0xff]
        %v560 = vld [vmem:[%s420 + $0x100] sm:$0xff]
        %v561 = vld [vmem:[%s420 + $0x108] sm:$0xff]
        %v562 = vld [vmem:[%s420 + $0x110] sm:$0xff]
        %v563 = vld [vmem:[%s420 + $0x118] sm:$0xff]
        %v564 = vld [vmem:[%s420 + $0x120] sm:$0xff]
        %v565 = vld [vmem:[%s420 + $0x128] sm:$0xff]
        %v566 = vld [vmem:[%s420 + $0x130] sm:$0xff]
        %v567 = vld [vmem:[%s420 + $0x138] sm:$0xff]
        %v568 = vld [vmem:[%s420 + $0x140] sm:$0xff]
        %v569 = vld [vmem:[%s420 + $0x148] sm:$0xff]
        %v570 = vld [vmem:[%s420 + $0x150] sm:$0xff]
        %v571 = vld [vmem:[%s420 + $0x158] sm:$0xff]
        %v572 = vld [vmem:[%s420 + $0x160] sm:$0xff]
        %v573 = vld [vmem:[%s420 + $0x168] sm:$0xff]
        %v574 = vld [vmem:[%s420 + $0x170] sm:$0xff]
        %v575 = vld [vmem:[%s420 + $0x178] sm:$0xff]
        %v576 = vld [vmem:[%s420 + $0x180] sm:$0xff]
        %v577 = vld [vmem:[%s420 + $0x188] sm:$0xff]
        %v578 = vld [vmem:[%s420 + $0x190] sm:$0xff]
        %v579 = vld [vmem:[%s420 + $0x198] sm:$0xff]
        %v580 = vld [vmem:[%s420 + $0x1a0] sm:$0xff]
        %v581 = vld [vmem:[%s420 + $0x1a8] sm:$0xff]
        %v582 = vld [vmem:[%s420 + $0x1b0] sm:$0xff]
        %v583 = vld [vmem:[%s420 + $0x1b8] sm:$0xff]
        %v584 = vld [vmem:[%s420 + $0x1c0] sm:$0xff]
        %v585 = vld [vmem:[%s420 + $0x1c8] sm:$0xff]
        %v586 = vld [vmem:[%s420 + $0x1d0] sm:$0xff]
        %v587 = vld [vmem:[%s420 + $0x1d8] sm:$0xff]
        %v588 = vld [vmem:[%s420 + $0x1e0] sm:$0xff]
        %v589 = vld [vmem:[%s420 + $0x1e8] sm:$0xff]
        %v590 = vld [vmem:[%s420 + $0x1f0] sm:$0xff]
        %v591 = vld [vmem:[%s420 + $0x1f8] sm:$0xff]
        %v592 = vld [vmem:[%s420 + $0x200] sm:$0xff]
        %v593 = vld [vmem:[%s420 + $0x208] sm:$0xff]
        %v594 = vld [vmem:[%s420 + $0x210] sm:$0xff]
        %v595 = vld [vmem:[%s420 + $0x218] sm:$0xff]
        %v596 = vld [vmem:[%s420 + $0x220] sm:$0xff]
        %v597 = vld [vmem:[%s420 + $0x228] sm:$0xff]
        %v598 = vld [vmem:[%s420 + $0x230] sm:$0xff]
        %v599 = vld [vmem:[%s420 + $0x238] sm:$0xff]
        %v600 = vld [vmem:[%s420 + $0x240] sm:$0xff]
        %v601 = vld [vmem:[%s420 + $0x248] sm:$0xff]
        %v602 = vld [vmem:[%s420 + $0x250] sm:$0xff]
        %v603 = vld [vmem:[%s420 + $0x258] sm:$0xff]
        %v604 = vld [vmem:[%s420 + $0x260] sm:$0xff]
        %v605 = vld [vmem:[%s420 + $0x268] sm:$0xff]
        %v606 = vld [vmem:[%s420 + $0x270] sm:$0xff]
        %v607 = vld [vmem:[%s420 + $0x278] sm:$0xff]
        %v608 = vld [vmem:[%s420 + $0x280] sm:$0xff]
        %v609 = vld [vmem:[%s420 + $0x288] sm:$0xff]
        %v610 = vld [vmem:[%s420 + $0x290] sm:$0xff]
        %v611 = vld [vmem:[%s420 + $0x298] sm:$0xff]
        %v612 = vld [vmem:[%s420 + $0x2a0] sm:$0xff]
        %v613 = vld [vmem:[%s420 + $0x2a8] sm:$0xff]
        %v614 = vld [vmem:[%s420 + $0x2b0] sm:$0xff]
        %v615 = vld [vmem:[%s420 + $0x2b8] sm:$0xff]
        %v616 = vld [vmem:[%s420 + $0x2c0] sm:$0xff]
        %v617 = vld [vmem:[%s420 + $0x2c8] sm:$0xff]
        %v618 = vld [vmem:[%s420 + $0x2d0] sm:$0xff]
        %v619 = vld [vmem:[%s420 + $0x2d8] sm:$0xff]
        %v620 = vld [vmem:[%s420 + $0x2e0] sm:$0xff]
        %v621 = vld [vmem:[%s420 + $0x2e8] sm:$0xff]
        %v622 = vld [vmem:[%s420 + $0x2f0] sm:$0xff]
        %v623 = vld [vmem:[%s420 + $0x2f8] sm:$0xff]
        %v624 = vld [vmem:[%s420 + $0x300] sm:$0xff]
        %v625 = vld [vmem:[%s420 + $0x308] sm:$0xff]
        %v626 = vld [vmem:[%s420 + $0x310] sm:$0xff]
        %v627 = vld [vmem:[%s420 + $0x318] sm:$0xff]
        %v628 = vld [vmem:[%s420 + $0x320] sm:$0xff]
        %v629 = vld [vmem:[%s420 + $0x328] sm:$0xff]
        %v630 = vld [vmem:[%s420 + $0x330] sm:$0xff]
        %v631 = vld [vmem:[%s420 + $0x338] sm:$0xff]
        %v632 = vld [vmem:[%s420 + $0x340] sm:$0xff]
        %v633 = vld [vmem:[%s420 + $0x348] sm:$0xff]
        %v634 = vld [vmem:[%s420 + $0x350] sm:$0xff]
        %v635 = vld [vmem:[%s420 + $0x358] sm:$0xff]
        %v636 = vld [vmem:[%s420 + $0x360] sm:$0xff]
        %v637 = vld [vmem:[%s420 + $0x368] sm:$0xff]
        %v638 = vld [vmem:[%s420 + $0x370] sm:$0xff]
        %v639 = vld [vmem:[%s420 + $0x378] sm:$0xff]
        %v640 = vld [vmem:[%s420 + $0x380] sm:$0xff]
        %v641 = vld [vmem:[%s420 + $0x388] sm:$0xff]
        %v642 = vld [vmem:[%s420 + $0x390] sm:$0xff]
        %v643 = vld [vmem:[%s420 + $0x398] sm:$0xff]
        %v644 = vld [vmem:[%s420 + $0x3a0] sm:$0xff]
        %v645 = vld [vmem:[%s420 + $0x3a8] sm:$0xff]
        %v646 = vld [vmem:[%s420 + $0x3b0] sm:$0xff]
        %v647 = vld [vmem:[%s420 + $0x3b8] sm:$0xff]
        %v648 = vld [vmem:[%s420 + $0x3c0] sm:$0xff]
        %v649 = vld [vmem:[%s420 + $0x3c8] sm:$0xff]
        %v650 = vld [vmem:[%s420 + $0x3d0] sm:$0xff]
        %v651 = vld [vmem:[%s420 + $0x3d8] sm:$0xff]
        %v652 = vld [vmem:[%s420 + $0x3e0] sm:$0xff]
        %v653 = vld [vmem:[%s420 + $0x3e8] sm:$0xff]
        %v654 = vld [vmem:[%s420 + $0x3f0] sm:$0xff]
        %v655 = vld [vmem:[%s420 + $0x3f8] sm:$0xff]
        %v656 = vld [vmem:[%s420 + $0x400] sm:$0xff]
        %v657 = vld [vmem:[%s420 + $0x408] sm:$0xff]
        %v658 = vld [vmem:[%s420 + $0x410] sm:$0xff]
        %v659 = vld [vmem:[%s420 + $0x418] sm:$0xff]
        %v660 = vld [vmem:[%s420 + $0x420] sm:$0xff]
        %v661 = vld [vmem:[%s420 + $0x428] sm:$0xff]
        %v662 = vld [vmem:[%s420 + $0x430] sm:$0xff]
        %v663 = vld [vmem:[%s420 + $0x438] sm:$0xff]
        %v664 = vld [vmem:[%s420 + $0x440] sm:$0xff]
        %v665 = vld [vmem:[%s420 + $0x448] sm:$0xff]
        %v666 = vld [vmem:[%s420 + $0x450] sm:$0xff]
        %v667 = vld [vmem:[%s420 + $0x458] sm:$0xff]
        %v668 = vld [vmem:[%s420 + $0x460] sm:$0xff]
        %v669 = vld [vmem:[%s420 + $0x468] sm:$0xff]
        %v670 = vld [vmem:[%s420 + $0x470] sm:$0xff]
        %v671 = vld [vmem:[%s420 + $0x478] sm:$0xff]
        %v672 = vld [vmem:[%s420 + $0x480] sm:$0xff]
        %v673 = vld [vmem:[%s420 + $0x488] sm:$0xff]
        %v674 = vld [vmem:[%s420 + $0x490] sm:$0xff]
        %v675 = vld [vmem:[%s420 + $0x498] sm:$0xff]
        %v676 = vld [vmem:[%s420 + $0x4a0] sm:$0xff]
        %v677 = vld [vmem:[%s420 + $0x4a8] sm:$0xff]
        %v678 = vld [vmem:[%s420 + $0x4b0] sm:$0xff]
        %v679 = vld [vmem:[%s420 + $0x4b8] sm:$0xff]
        %v680 = vld [vmem:[%s420 + $0x4c0] sm:$0xff]
        %v681 = vld [vmem:[%s420 + $0x4c8] sm:$0xff]
        %v682 = vld [vmem:[%s420 + $0x4d0] sm:$0xff]
        %v683 = vld [vmem:[%s420 + $0x4d8] sm:$0xff]
        %v684 = vld [vmem:[%s420 + $0x4e0] sm:$0xff]
        %v685 = vld [vmem:[%s420 + $0x4e8] sm:$0xff]
        %v686 = vld [vmem:[%s420 + $0x4f0] sm:$0xff]
        %v687 = vld [vmem:[%s420 + $0x4f8] sm:$0xff]
        %v688 = vld [vmem:[%s420 + $0x500] sm:$0xff]
        %v689 = vld [vmem:[%s420 + $0x508] sm:$0xff]
        %v690 = vld [vmem:[%s420 + $0x510] sm:$0xff]
        %v691 = vld [vmem:[%s420 + $0x518] sm:$0xff]
        %v692 = vld [vmem:[%s420 + $0x520] sm:$0xff]
        %v693 = vld [vmem:[%s420 + $0x528] sm:$0xff]
        %v694 = vld [vmem:[%s420 + $0x530] sm:$0xff]
        %v695 = vld [vmem:[%s420 + $0x538] sm:$0xff]
        %v696 = vld [vmem:[%s420 + $0x540] sm:$0xff]
        %v697 = vld [vmem:[%s420 + $0x548] sm:$0xff]
        %v698 = vld [vmem:[%s420 + $0x550] sm:$0xff]
        %v699 = vld [vmem:[%s420 + $0x558] sm:$0xff]
        %v700 = vld [vmem:[%s420 + $0x560] sm:$0xff]
        %v701 = vld [vmem:[%s420 + $0x568] sm:$0xff]
        %v702 = vld [vmem:[%s420 + $0x570] sm:$0xff]
        %v703 = vld [vmem:[%s420 + $0x578] sm:$0xff]
        %v704 = vld [vmem:[%s420 + $0x580] sm:$0xff]
        %v705 = vld [vmem:[%s420 + $0x588] sm:$0xff]
        %v706 = vld [vmem:[%s420 + $0x590] sm:$0xff]
        %v707 = vld [vmem:[%s420 + $0x598] sm:$0xff]
        %v708 = vld [vmem:[%s420 + $0x5a0] sm:$0xff]
        %v709 = vld [vmem:[%s420 + $0x5a8] sm:$0xff]
        %v710 = vld [vmem:[%s420 + $0x5b0] sm:$0xff]
        %v711 = vld [vmem:[%s420 + $0x5b8] sm:$0xff]
        %v712 = vld [vmem:[%s420 + $0x5c0] sm:$0xff]
        %v713 = vld [vmem:[%s420 + $0x5c8] sm:$0xff]
        %v714 = vld [vmem:[%s420 + $0x5d0] sm:$0xff]
        %v715 = vld [vmem:[%s420 + $0x5d8] sm:$0xff]
        %v716 = vld [vmem:[%s420 + $0x5e0] sm:$0xff]
        %v717 = vld [vmem:[%s420 + $0x5e8] sm:$0xff]
        %v718 = vld [vmem:[%s420 + $0x5f0] sm:$0xff]
        %v719 = vld [vmem:[%s420 + $0x5f8] sm:$0xff]
        %v720 = vld [vmem:[%s420 + $0x600] sm:$0xff]
        %v721 = vld [vmem:[%s420 + $0x608] sm:$0xff]
        %v722 = vld [vmem:[%s420 + $0x610] sm:$0xff]
        %v723 = vld [vmem:[%s420 + $0x618] sm:$0xff]
        %v724 = vld [vmem:[%s420 + $0x620] sm:$0xff]
        %v725 = vld [vmem:[%s420 + $0x628] sm:$0xff]
        %v726 = vld [vmem:[%s420 + $0x630] sm:$0xff]
        %v727 = vld [vmem:[%s420 + $0x638] sm:$0xff]
        %v728 = vld [vmem:[%s420 + $0x640] sm:$0xff]
        %v729 = vld [vmem:[%s420 + $0x648] sm:$0xff]
        %v730 = vld [vmem:[%s420 + $0x650] sm:$0xff]
        %v731 = vld [vmem:[%s420 + $0x658] sm:$0xff]
        %v732 = vld [vmem:[%s420 + $0x660] sm:$0xff]
        %v733 = vld [vmem:[%s420 + $0x668] sm:$0xff]
        %v734 = vld [vmem:[%s420 + $0x670] sm:$0xff]
        %v735 = vld [vmem:[%s420 + $0x678] sm:$0xff]
        %v736 = vld [vmem:[%s420 + $0x680] sm:$0xff]
        %v737 = vld [vmem:[%s420 + $0x688] sm:$0xff]
        %v738 = vld [vmem:[%s420 + $0x690] sm:$0xff]
        %v739 = vld [vmem:[%s420 + $0x698] sm:$0xff]
        %v740 = vld [vmem:[%s420 + $0x6a0] sm:$0xff]
        %v741 = vld [vmem:[%s420 + $0x6a8] sm:$0xff]
        %v742 = vld [vmem:[%s420 + $0x6b0] sm:$0xff]
        %v743 = vld [vmem:[%s420 + $0x6b8] sm:$0xff]
        %v744 = vld [vmem:[%s420 + $0x6c0] sm:$0xff]
        %v745 = vld [vmem:[%s420 + $0x6c8] sm:$0xff]
        %v746 = vld [vmem:[%s420 + $0x6d0] sm:$0xff]
        %v747 = vld [vmem:[%s420 + $0x6d8] sm:$0xff]
        %v748 = vld [vmem:[%s420 + $0x6e0] sm:$0xff]
        %v749 = vld [vmem:[%s420 + $0x6e8] sm:$0xff]
        %v750 = vld [vmem:[%s420 + $0x6f0] sm:$0xff]
        %v751 = vld [vmem:[%s420 + $0x6f8] sm:$0xff]
        %v752 = vld [vmem:[%s420 + $0x700] sm:$0xff]
        %v753 = vld [vmem:[%s420 + $0x708] sm:$0xff]
        %v754 = vld [vmem:[%s420 + $0x710] sm:$0xff]
        %v755 = vld [vmem:[%s420 + $0x718] sm:$0xff]
        %v756 = vld [vmem:[%s420 + $0x720] sm:$0xff]
        %v757 = vld [vmem:[%s420 + $0x728] sm:$0xff]
        %v758 = vld [vmem:[%s420 + $0x730] sm:$0xff]
        %v759 = vld [vmem:[%s420 + $0x738] sm:$0xff]
        %v760 = vld [vmem:[%s420 + $0x740] sm:$0xff]
        %v761 = vld [vmem:[%s420 + $0x748] sm:$0xff]
        %v762 = vld [vmem:[%s420 + $0x750] sm:$0xff]
        %v763 = vld [vmem:[%s420 + $0x758] sm:$0xff]
        %v764 = vld [vmem:[%s420 + $0x760] sm:$0xff]
        %v765 = vld [vmem:[%s420 + $0x768] sm:$0xff]
        %v766 = vld [vmem:[%s420 + $0x770] sm:$0xff]
        %v767 = vld [vmem:[%s420 + $0x778] sm:$0xff]
        %v768 = vld [vmem:[%s420 + $0x780] sm:$0xff]
        %v769 = vld [vmem:[%s420 + $0x788] sm:$0xff]
        %v770 = vld [vmem:[%s420 + $0x790] sm:$0xff]
        %v771 = vld [vmem:[%s420 + $0x798] sm:$0xff]
        %v772 = vld [vmem:[%s420 + $0x7a0] sm:$0xff]
        %v773 = vld [vmem:[%s420 + $0x7a8] sm:$0xff]
        %v774 = vld [vmem:[%s420 + $0x7b0] sm:$0xff]
        %v775 = vld [vmem:[%s420 + $0x7b8] sm:$0xff]
        %v776 = vld [vmem:[%s420 + $0x7c0] sm:$0xff]
        %v777 = vld [vmem:[%s420 + $0x7c8] sm:$0xff]
        %v778 = vld [vmem:[%s420 + $0x7d0] sm:$0xff]
        %v779 = vld [vmem:[%s420 + $0x7d8] sm:$0xff]
        %v780 = vld [vmem:[%s420 + $0x7e0] sm:$0xff]
        %v781 = vld [vmem:[%s420 + $0x7e8] sm:$0xff]
        %v782 = vld [vmem:[%s420 + $0x7f0] sm:$0xff]
        %v783 = vld [vmem:[%s420 + $0x7f8] sm:$0xff]
        %v784 = vld [vmem:[%s420 + $0x800] sm:$0xff]
        %v785 = vld [vmem:[%s420 + $0x808] sm:$0xff]
        %v786 = vld [vmem:[%s420 + $0x810] sm:$0xff]
        %v787 = vld [vmem:[%s420 + $0x818] sm:$0xff]
        %v788 = vld [vmem:[%s420 + $0x820] sm:$0xff]
        %v789 = vld [vmem:[%s420 + $0x828] sm:$0xff]
        %v790 = vld [vmem:[%s420 + $0x830] sm:$0xff]
        %v791 = vld [vmem:[%s420 + $0x838] sm:$0xff]
        %v792 = vld [vmem:[%s420 + $0x840] sm:$0xff]
        %v793 = vld [vmem:[%s420 + $0x848] sm:$0xff]
        %v794 = vld [vmem:[%s420 + $0x850] sm:$0xff]
        %v795 = vld [vmem:[%s420 + $0x858] sm:$0xff]
        %v796 = vld [vmem:[%s420 + $0x860] sm:$0xff]
        %v797 = vld [vmem:[%s420 + $0x868] sm:$0xff]
        %v798 = vld [vmem:[%s420 + $0x870] sm:$0xff]
        %v799 = vld [vmem:[%s420 + $0x878] sm:$0xff]
        %v800 = vld [vmem:[%s420 + $0x880] sm:$0xff]
        %v801 = vld [vmem:[%s420 + $0x888] sm:$0xff]
        %v802 = vld [vmem:[%s420 + $0x890] sm:$0xff]
        %v803 = vld [vmem:[%s420 + $0x898] sm:$0xff]
        %v804 = vld [vmem:[%s420 + $0x8a0] sm:$0xff]
        %v805 = vld [vmem:[%s420 + $0x8a8] sm:$0xff]
        %v806 = vld [vmem:[%s420 + $0x8b0] sm:$0xff]
        %v807 = vld [vmem:[%s420 + $0x8b8] sm:$0xff]
        %v808 = vld [vmem:[%s420 + $0x8c0] sm:$0xff]
        %v809 = vld [vmem:[%s420 + $0x8c8] sm:$0xff]
        %v810 = vld [vmem:[%s420 + $0x8d0] sm:$0xff]
        %v811 = vld [vmem:[%s420 + $0x8d8] sm:$0xff]
        %v812 = vld [vmem:[%s420 + $0x8e0] sm:$0xff]
        %v813 = vld [vmem:[%s420 + $0x8e8] sm:$0xff]
        %v814 = vld [vmem:[%s420 + $0x8f0] sm:$0xff]
        %v815 = vld [vmem:[%s420 + $0x8f8] sm:$0xff]
        %v816 = vld [vmem:[%s420 + $0x900] sm:$0xff]
        %v817 = vld [vmem:[%s420 + $0x908] sm:$0xff]
        %v818 = vld [vmem:[%s420 + $0x910] sm:$0xff]
        %v819 = vld [vmem:[%s420 + $0x918] sm:$0xff]
        %v820 = vld [vmem:[%s420 + $0x920] sm:$0xff]
        %v821 = vld [vmem:[%s420 + $0x928] sm:$0xff]
        %v822 = vld [vmem:[%s420 + $0x930] sm:$0xff]
        %v823 = vld [vmem:[%s420 + $0x938] sm:$0xff]
        %v824 = vld [vmem:[%s420 + $0x940] sm:$0xff]
        %v825 = vld [vmem:[%s420 + $0x948] sm:$0xff]
        %v826 = vld [vmem:[%s420 + $0x950] sm:$0xff]
        %v827 = vld [vmem:[%s420 + $0x958] sm:$0xff]
        %v828 = vld [vmem:[%s420 + $0x960] sm:$0xff]
        %v829 = vld [vmem:[%s420 + $0x968] sm:$0xff]
        %v830 = vld [vmem:[%s420 + $0x970] sm:$0xff]
        %v831 = vld [vmem:[%s420 + $0x978] sm:$0xff]
        %v832 = vld [vmem:[%s420 + $0x980] sm:$0xff]
        %v833 = vld [vmem:[%s420 + $0x988] sm:$0xff]
        %v834 = vld [vmem:[%s420 + $0x990] sm:$0xff]
        %v835 = vld [vmem:[%s420 + $0x998] sm:$0xff]
        %v836 = vld [vmem:[%s420 + $0x9a0] sm:$0xff]
        %v837 = vld [vmem:[%s420 + $0x9a8] sm:$0xff]
        %v838 = vld [vmem:[%s420 + $0x9b0] sm:$0xff]
        %v839 = vld [vmem:[%s420 + $0x9b8] sm:$0xff]
        %v840 = vld [vmem:[%s420 + $0x9c0] sm:$0xff]
        %v841 = vld [vmem:[%s420 + $0x9c8] sm:$0xff]
        %v842 = vld [vmem:[%s420 + $0x9d0] sm:$0xff]
        %v843 = vld [vmem:[%s420 + $0x9d8] sm:$0xff]
        %v844 = vld [vmem:[%s420 + $0x9e0] sm:$0xff]
        %v845 = vld [vmem:[%s420 + $0x9e8] sm:$0xff]
        %v846 = vld [vmem:[%s420 + $0x9f0] sm:$0xff]
        %v847 = vld [vmem:[%s420 + $0x9f8] sm:$0xff]
        %v848 = vld [vmem:[%s420 + $0xa00] sm:$0xff]
        %v849 = vld [vmem:[%s420 + $0xa08] sm:$0xff]
        %v850 = vld [vmem:[%s420 + $0xa10] sm:$0xff]
        %v851 = vld [vmem:[%s420 + $0xa18] sm:$0xff]
        %v852 = vld [vmem:[%s420 + $0xa20] sm:$0xff]
        %v853 = vld [vmem:[%s420 + $0xa28] sm:$0xff]
        %v854 = vld [vmem:[%s420 + $0xa30] sm:$0xff]
        %v855 = vld [vmem:[%s420 + $0xa38] sm:$0xff]
        %v856 = vld [vmem:[%s420 + $0xa40] sm:$0xff]
        %v857 = vld [vmem:[%s420 + $0xa48] sm:$0xff]
        %v858 = vld [vmem:[%s420 + $0xa50] sm:$0xff]
        %v859 = vld [vmem:[%s420 + $0xa58] sm:$0xff]
        %v860 = vld [vmem:[%s420 + $0xa60] sm:$0xff]
        %v861 = vld [vmem:[%s420 + $0xa68] sm:$0xff]
        %v862 = vld [vmem:[%s420 + $0xa70] sm:$0xff]
        %v863 = vld [vmem:[%s420 + $0xa78] sm:$0xff]
        %v864 = vld [vmem:[%s420 + $0xa80] sm:$0xff]
        %v865 = vld [vmem:[%s420 + $0xa88] sm:$0xff]
        %v866 = vld [vmem:[%s420 + $0xa90] sm:$0xff]
        %v867 = vld [vmem:[%s420 + $0xa98] sm:$0xff]
        %v868 = vld [vmem:[%s420 + $0xaa0] sm:$0xff]
        %v869 = vld [vmem:[%s420 + $0xaa8] sm:$0xff]
        %v870 = vld [vmem:[%s420 + $0xab0] sm:$0xff]
        %v871 = vld [vmem:[%s420 + $0xab8] sm:$0xff]
        %v872 = vld [vmem:[%s420 + $0xac0] sm:$0xff]
        %v873 = vld [vmem:[%s420 + $0xac8] sm:$0xff]
        %v874 = vld [vmem:[%s420 + $0xad0] sm:$0xff]
        %v875 = vld [vmem:[%s420 + $0xad8] sm:$0xff]
        %v876 = vld [vmem:[%s420 + $0xae0] sm:$0xff]
        %v877 = vld [vmem:[%s420 + $0xae8] sm:$0xff]
        %v878 = vld [vmem:[%s420 + $0xaf0] sm:$0xff]
        %v879 = vld [vmem:[%s420 + $0xaf8] sm:$0xff]
        %v880 = vld [vmem:[%s420 + $0xb00] sm:$0xff]
        %v881 = vld [vmem:[%s420 + $0xb08] sm:$0xff]
        %v882 = vld [vmem:[%s420 + $0xb10] sm:$0xff]
        %v883 = vld [vmem:[%s420 + $0xb18] sm:$0xff]
        %v884 = vld [vmem:[%s420 + $0xb20] sm:$0xff]
        %v885 = vld [vmem:[%s420 + $0xb28] sm:$0xff]
        %v886 = vld [vmem:[%s420 + $0xb30] sm:$0xff]
        %v887 = vld [vmem:[%s420 + $0xb38] sm:$0xff]
        %v888 = vld [vmem:[%s420 + $0xb40] sm:$0xff]
        %v889 = vld [vmem:[%s420 + $0xb48] sm:$0xff]
        %v890 = vld [vmem:[%s420 + $0xb50] sm:$0xff]
        %v891 = vld [vmem:[%s420 + $0xb58] sm:$0xff]
        %v892 = vld [vmem:[%s420 + $0xb60] sm:$0xff]
        %v893 = vld [vmem:[%s420 + $0xb68] sm:$0xff]
        %v894 = vld [vmem:[%s420 + $0xb70] sm:$0xff]
        %v895 = vld [vmem:[%s420 + $0xb78] sm:$0xff]
        %v896 = vld [vmem:[%s420 + $0xb80] sm:$0xff]
        %v897 = vld [vmem:[%s420 + $0xb88] sm:$0xff]
        %v898 = vld [vmem:[%s420 + $0xb90] sm:$0xff]
        %v899 = vld [vmem:[%s420 + $0xb98] sm:$0xff]
        %v900 = vld [vmem:[%s420 + $0xba0] sm:$0xff]
        %v901 = vld [vmem:[%s420 + $0xba8] sm:$0xff]
        %v902 = vld [vmem:[%s420 + $0xbb0] sm:$0xff]
        %v903 = vld [vmem:[%s420 + $0xbb8] sm:$0xff]
        %v904 = vld [vmem:[%s420 + $0xbc0] sm:$0xff]
        %v905 = vld [vmem:[%s420 + $0xbc8] sm:$0xff]
        %v906 = vld [vmem:[%s420 + $0xbd0] sm:$0xff]
        %v907 = vld [vmem:[%s420 + $0xbd8] sm:$0xff]
        %v908 = vld [vmem:[%s420 + $0xbe0] sm:$0xff]
        %v909 = vld [vmem:[%s420 + $0xbe8] sm:$0xff]
        %v910 = vld [vmem:[%s420 + $0xbf0] sm:$0xff]
        %v911 = vld [vmem:[%s420 + $0xbf8] sm:$0xff]
        %v912 = vld [vmem:[%s420 + $0xc00] sm:$0xff]
        %v913 = vld [vmem:[%s420 + $0xc08] sm:$0xff]
        %v914 = vld [vmem:[%s420 + $0xc10] sm:$0xff]
        %v915 = vld [vmem:[%s420 + $0xc18] sm:$0xff]
        %v916 = vld [vmem:[%s420 + $0xc20] sm:$0xff]
        %v917 = vld [vmem:[%s420 + $0xc28] sm:$0xff]
        %v918 = vld [vmem:[%s420 + $0xc30] sm:$0xff]
        %v919 = vld [vmem:[%s420 + $0xc38] sm:$0xff]
        %v920 = vld [vmem:[%s420 + $0xc40] sm:$0xff]
        %v921 = vld [vmem:[%s420 + $0xc48] sm:$0xff]
        %v922 = vld [vmem:[%s420 + $0xc50] sm:$0xff]
        %v923 = vld [vmem:[%s420 + $0xc58] sm:$0xff]
        %v924 = vld [vmem:[%s420 + $0xc60] sm:$0xff]
        %v925 = vld [vmem:[%s420 + $0xc68] sm:$0xff]
        %v926 = vld [vmem:[%s420 + $0xc70] sm:$0xff]
        %v927 = vld [vmem:[%s420 + $0xc78] sm:$0xff]
        %v928 = vld [vmem:[%s420 + $0xc80] sm:$0xff]
        %v929 = vld [vmem:[%s420 + $0xc88] sm:$0xff]
        %v930 = vld [vmem:[%s420 + $0xc90] sm:$0xff]
        %v931 = vld [vmem:[%s420 + $0xc98] sm:$0xff]
        %v932 = vld [vmem:[%s420 + $0xca0] sm:$0xff]
        %v933 = vld [vmem:[%s420 + $0xca8] sm:$0xff]
        %v934 = vld [vmem:[%s420 + $0xcb0] sm:$0xff]
        %v935 = vld [vmem:[%s420 + $0xcb8] sm:$0xff]
        %v936 = vld [vmem:[%s420 + $0xcc0] sm:$0xff]
        %v937 = vld [vmem:[%s420 + $0xcc8] sm:$0xff]
        %v938 = vld [vmem:[%s420 + $0xcd0] sm:$0xff]
        %v939 = vld [vmem:[%s420 + $0xcd8] sm:$0xff]
        %v940 = vld [vmem:[%s420 + $0xce0] sm:$0xff]
        %v941 = vld [vmem:[%s420 + $0xce8] sm:$0xff]
        %v942 = vld [vmem:[%s420 + $0xcf0] sm:$0xff]
        %v943 = vld [vmem:[%s420 + $0xcf8] sm:$0xff]
        %v944 = vld [vmem:[%s420 + $0xd00] sm:$0xff]
        %v945 = vld [vmem:[%s420 + $0xd08] sm:$0xff]
        %v946 = vld [vmem:[%s420 + $0xd10] sm:$0xff]
        %v947 = vld [vmem:[%s420 + $0xd18] sm:$0xff]
        %v948 = vld [vmem:[%s420 + $0xd20] sm:$0xff]
        %v949 = vld [vmem:[%s420 + $0xd28] sm:$0xff]
        %v950 = vld [vmem:[%s420 + $0xd30] sm:$0xff]
        %v951 = vld [vmem:[%s420 + $0xd38] sm:$0xff]
        %v952 = vld [vmem:[%s420 + $0xd40] sm:$0xff]
        %v953 = vld [vmem:[%s420 + $0xd48] sm:$0xff]
        %v954 = vld [vmem:[%s420 + $0xd50] sm:$0xff]
        %v955 = vld [vmem:[%s420 + $0xd58] sm:$0xff]
        %v956 = vld [vmem:[%s420 + $0xd60] sm:$0xff]
        %v957 = vld [vmem:[%s420 + $0xd68] sm:$0xff]
        %v958 = vld [vmem:[%s420 + $0xd70] sm:$0xff]
        %v959 = vld [vmem:[%s420 + $0xd78] sm:$0xff]
        %v960 = vld [vmem:[%s420 + $0xd80] sm:$0xff]
        %v961 = vld [vmem:[%s420 + $0xd88] sm:$0xff]
        %v962 = vld [vmem:[%s420 + $0xd90] sm:$0xff]
        %v963 = vld [vmem:[%s420 + $0xd98] sm:$0xff]
        %v964 = vld [vmem:[%s420 + $0xda0] sm:$0xff]
        %v965 = vld [vmem:[%s420 + $0xda8] sm:$0xff]
        %v966 = vld [vmem:[%s420 + $0xdb0] sm:$0xff]
        %v967 = vld [vmem:[%s420 + $0xdb8] sm:$0xff]
        %v968 = vld [vmem:[%s420 + $0xdc0] sm:$0xff]
        %v969 = vld [vmem:[%s420 + $0xdc8] sm:$0xff]
        %v970 = vld [vmem:[%s420 + $0xdd0] sm:$0xff]
        %v971 = vld [vmem:[%s420 + $0xdd8] sm:$0xff]
        %v972 = vld [vmem:[%s420 + $0xde0] sm:$0xff]
        %v973 = vld [vmem:[%s420 + $0xde8] sm:$0xff]
        %v974 = vld [vmem:[%s420 + $0xdf0] sm:$0xff]
        %v975 = vld [vmem:[%s420 + $0xdf8] sm:$0xff]
        %v976 = vld [vmem:[%s420 + $0xe00] sm:$0xff]
        %v977 = vld [vmem:[%s420 + $0xe08] sm:$0xff]
        %v978 = vld [vmem:[%s420 + $0xe10] sm:$0xff]
        %v979 = vld [vmem:[%s420 + $0xe18] sm:$0xff]
        %v980 = vld [vmem:[%s420 + $0xe20] sm:$0xff]
        %v981 = vld [vmem:[%s420 + $0xe28] sm:$0xff]
        %v982 = vld [vmem:[%s420 + $0xe30] sm:$0xff]
        %v983 = vld [vmem:[%s420 + $0xe38] sm:$0xff]
        %v984 = vld [vmem:[%s420 + $0xe40] sm:$0xff]
        %v985 = vld [vmem:[%s420 + $0xe48] sm:$0xff]
        %v986 = vld [vmem:[%s420 + $0xe50] sm:$0xff]
        %v987 = vld [vmem:[%s420 + $0xe58] sm:$0xff]
        %v988 = vld [vmem:[%s420 + $0xe60] sm:$0xff]
        %v989 = vld [vmem:[%s420 + $0xe68] sm:$0xff]
        %v990 = vld [vmem:[%s420 + $0xe70] sm:$0xff]
        %v991 = vld [vmem:[%s420 + $0xe78] sm:$0xff]
        %v992 = vld [vmem:[%s420 + $0xe80] sm:$0xff]
        %v993 = vld [vmem:[%s420 + $0xe88] sm:$0xff]
        %v994 = vld [vmem:[%s420 + $0xe90] sm:$0xff]
        %v995 = vld [vmem:[%s420 + $0xe98] sm:$0xff]
        %v996 = vld [vmem:[%s420 + $0xea0] sm:$0xff]
        %v997 = vld [vmem:[%s420 + $0xea8] sm:$0xff]
        %v998 = vld [vmem:[%s420 + $0xeb0] sm:$0xff]
        %v999 = vld [vmem:[%s420 + $0xeb8] sm:$0xff]
        %v1000 = vld [vmem:[%s420 + $0xec0] sm:$0xff]
        %v1001 = vld [vmem:[%s420 + $0xec8] sm:$0xff]
        %v1002 = vld [vmem:[%s420 + $0xed0] sm:$0xff]
        %v1003 = vld [vmem:[%s420 + $0xed8] sm:$0xff]
        %v1004 = vld [vmem:[%s420 + $0xee0] sm:$0xff]
        %v1005 = vld [vmem:[%s420 + $0xee8] sm:$0xff]
        %v1006 = vld [vmem:[%s420 + $0xef0] sm:$0xff]
        %v1007 = vld [vmem:[%s420 + $0xef8] sm:$0xff]
        %v1008 = vld [vmem:[%s420 + $0xf00] sm:$0xff]
        %v1009 = vld [vmem:[%s420 + $0xf08] sm:$0xff]
        %v1010 = vld [vmem:[%s420 + $0xf10] sm:$0xff]
        %v1011 = vld [vmem:[%s420 + $0xf18] sm:$0xff]
        %v1012 = vld [vmem:[%s420 + $0xf20] sm:$0xff]
        %v1013 = vld [vmem:[%s420 + $0xf28] sm:$0xff]
        %v1014 = vld [vmem:[%s420 + $0xf30] sm:$0xff]
        %v1015 = vld [vmem:[%s420 + $0xf38] sm:$0xff]
        %v1016 = vld [vmem:[%s420 + $0xf40] sm:$0xff]
        %v1017 = vld [vmem:[%s420 + $0xf48] sm:$0xff]
        %v1018 = vld [vmem:[%s420 + $0xf50] sm:$0xff]
        %v1019 = vld [vmem:[%s420 + $0xf58] sm:$0xff]
        %v1020 = vld [vmem:[%s420 + $0xf60] sm:$0xff]
        %v1021 = vld [vmem:[%s420 + $0xf68] sm:$0xff]
        %v1022 = vld [vmem:[%s420 + $0xf70] sm:$0xff]
        %v1023 = vld [vmem:[%s420 + $0xf78] sm:$0xff]
        %v1024 = vld [vmem:[%s420 + $0xf80] sm:$0xff]
        %v1025 = vld [vmem:[%s420 + $0xf88] sm:$0xff]
        %v1026 = vld [vmem:[%s420 + $0xf90] sm:$0xff]
        %v1027 = vld [vmem:[%s420 + $0xf98] sm:$0xff]
        %v1028 = vld [vmem:[%s420 + $0xfa0] sm:$0xff]
        %v1029 = vld [vmem:[%s420 + $0xfa8] sm:$0xff]
        %v1030 = vld [vmem:[%s420 + $0xfb0] sm:$0xff]
        %v1031 = vld [vmem:[%s420 + $0xfb8] sm:$0xff]
        %v1032 = vld [vmem:[%s420 + $0xfc0] sm:$0xff]
        %v1033 = vld [vmem:[%s420 + $0xfc8] sm:$0xff]
        %v1034 = vld [vmem:[%s420 + $0xfd0] sm:$0xff]
        %v1035 = vld [vmem:[%s420 + $0xfd8] sm:$0xff]
        %v1036 = vld [vmem:[%s420 + $0xfe0] sm:$0xff]
        %v1037 = vld [vmem:[%s420 + $0xfe8] sm:$0xff]
        %v1038 = vld [vmem:[%s420 + $0xff0] sm:$0xff]
        %v1039 = vld [vmem:[%s420 + $0xff8] sm:$0xff]
        %v1042 = vunpack.c.l.b16 %v526
        %v1043 = vunpack.c.h.b16 %v526
        %v1044 = vunpack.c.l.b16 %v527
        %v1045 = vunpack.c.h.b16 %v527
        %v1046 = vpack.c.b16 %v1042, %v1042
        %v1047 = vpack.c.b16 %v1043, %v1043
        %v1048 = vpack.c.b16 %v1044, %v1044
        %v1049 = vpack.c.b16 %v1045, %v1045
        %v1566 = vunpack.c.l.b16 %v528
        %v1567 = vunpack.c.h.b16 %v528
        %v1568 = vunpack.c.l.b16 %v529
        %v1569 = vunpack.c.h.b16 %v529
        %v1570 = vunpack.c.l.b16 %v530
        %v1571 = vunpack.c.h.b16 %v530
        %v1572 = vunpack.c.l.b16 %v531
        %v1573 = vunpack.c.h.b16 %v531
        %v1574 = vunpack.c.l.b16 %v532
        %v1575 = vunpack.c.h.b16 %v532
        %v1576 = vunpack.c.l.b16 %v533
        %v1577 = vunpack.c.h.b16 %v533
        %v1578 = vunpack.c.l.b16 %v534
        %v1579 = vunpack.c.h.b16 %v534
        %v1580 = vunpack.c.l.b16 %v535
        %v1581 = vunpack.c.h.b16 %v535
        %v1582 = vunpack.c.l.b16 %v536
        %v1583 = vunpack.c.h.b16 %v536
        %v1584 = vunpack.c.l.b16 %v537
        %v1585 = vunpack.c.h.b16 %v537
        %v1586 = vunpack.c.l.b16 %v538
        %v1587 = vunpack.c.h.b16 %v538
        %v1588 = vunpack.c.l.b16 %v539
        %v1589 = vunpack.c.h.b16 %v539
        %v1590 = vunpack.c.l.b16 %v540
        %v1591 = vunpack.c.h.b16 %v540
        %v1592 = vunpack.c.l.b16 %v541
        %v1593 = vunpack.c.h.b16 %v541
        %v1594 = vunpack.c.l.b16 %v542
        %v1595 = vunpack.c.h.b16 %v542
        %v1596 = vunpack.c.l.b16 %v543
        %v1597 = vunpack.c.h.b16 %v543
        %v1598 = vunpack.c.l.b16 %v544
        %v1599 = vunpack.c.h.b16 %v544
        %v1600 = vunpack.c.l.b16 %v545
        %v1601 = vunpack.c.h.b16 %v545
        %v1602 = vunpack.c.l.b16 %v546
        %v1603 = vunpack.c.h.b16 %v546
        %v1604 = vunpack.c.l.b16 %v547
        %v1605 = vunpack.c.h.b16 %v547
        %v1606 = vunpack.c.l.b16 %v548
        %v1607 = vunpack.c.h.b16 %v548
        %v1608 = vunpack.c.l.b16 %v549
        %v1609 = vunpack.c.h.b16 %v549
        %v1610 = vunpack.c.l.b16 %v550
        %v1611 = vunpack.c.h.b16 %v550
        %v1612 = vunpack.c.l.b16 %v551
        %v1613 = vunpack.c.h.b16 %v551
        %v1614 = vunpack.c.l.b16 %v552
        %v1615 = vunpack.c.h.b16 %v552
        %v1616 = vunpack.c.l.b16 %v553
        %v1617 = vunpack.c.h.b16 %v553
        %v1618 = vunpack.c.l.b16 %v554
        %v1619 = vunpack.c.h.b16 %v554
        %v1620 = vunpack.c.l.b16 %v555
        %v1621 = vunpack.c.h.b16 %v555
        %v1622 = vunpack.c.l.b16 %v556
        %v1623 = vunpack.c.h.b16 %v556
        %v1624 = vunpack.c.l.b16 %v557
        %v1625 = vunpack.c.h.b16 %v557
        %v1626 = vunpack.c.l.b16 %v558
        %v1627 = vunpack.c.h.b16 %v558
        %v1628 = vunpack.c.l.b16 %v559
        %v1629 = vunpack.c.h.b16 %v559
        %v1630 = vunpack.c.l.b16 %v560
        %v1631 = vunpack.c.h.b16 %v560
        %v1632 = vunpack.c.l.b16 %v561
        %v1633 = vunpack.c.h.b16 %v561
        %v1634 = vunpack.c.l.b16 %v562
        %v1635 = vunpack.c.h.b16 %v562
        %v1636 = vunpack.c.l.b16 %v563
        %v1637 = vunpack.c.h.b16 %v563
        %v1638 = vunpack.c.l.b16 %v564
        %v1639 = vunpack.c.h.b16 %v564
        %v1640 = vunpack.c.l.b16 %v565
        %v1641 = vunpack.c.h.b16 %v565
        %v1642 = vunpack.c.l.b16 %v566
        %v1643 = vunpack.c.h.b16 %v566
        %v1644 = vunpack.c.l.b16 %v567
        %v1645 = vunpack.c.h.b16 %v567
        %v1646 = vunpack.c.l.b16 %v568
        %v1647 = vunpack.c.h.b16 %v568
        %v1648 = vunpack.c.l.b16 %v569
        %v1649 = vunpack.c.h.b16 %v569
        %v1650 = vunpack.c.l.b16 %v570
        %v1651 = vunpack.c.h.b16 %v570
        %v1652 = vunpack.c.l.b16 %v571
        %v1653 = vunpack.c.h.b16 %v571
        %v1654 = vunpack.c.l.b16 %v572
        %v1655 = vunpack.c.h.b16 %v572
        %v1656 = vunpack.c.l.b16 %v573
        %v1657 = vunpack.c.h.b16 %v573
        %v1658 = vunpack.c.l.b16 %v574
        %v1659 = vunpack.c.h.b16 %v574
        %v1660 = vunpack.c.l.b16 %v575
        %v1661 = vunpack.c.h.b16 %v575
        %v1662 = vunpack.c.l.b16 %v576
        %v1663 = vunpack.c.h.b16 %v576
        %v1664 = vunpack.c.l.b16 %v577
        %v1665 = vunpack.c.h.b16 %v577
        %v1666 = vunpack.c.l.b16 %v578
        %v1667 = vunpack.c.h.b16 %v578
        %v1668 = vunpack.c.l.b16 %v579
        %v1669 = vunpack.c.h.b16 %v579
        %v1670 = vunpack.c.l.b16 %v580
        %v1671 = vunpack.c.h.b16 %v580
        %v1672 = vunpack.c.l.b16 %v581
        %v1673 = vunpack.c.h.b16 %v581
        %v1674 = vunpack.c.l.b16 %v582
        %v1675 = vunpack.c.h.b16 %v582
        %v1676 = vunpack.c.l.b16 %v583
        %v1677 = vunpack.c.h.b16 %v583
        %v1678 = vunpack.c.l.b16 %v584
        %v1679 = vunpack.c.h.b16 %v584
        %v1680 = vunpack.c.l.b16 %v585
        %v1681 = vunpack.c.h.b16 %v585
        %v1682 = vunpack.c.l.b16 %v586
        %v1683 = vunpack.c.h.b16 %v586
        %v1684 = vunpack.c.l.b16 %v587
        %v1685 = vunpack.c.h.b16 %v587
        %v1686 = vunpack.c.l.b16 %v588
        %v1687 = vunpack.c.h.b16 %v588
        %v1688 = vunpack.c.l.b16 %v589
        %v1689 = vunpack.c.h.b16 %v589
        %v1690 = vunpack.c.l.b16 %v590
        %v1691 = vunpack.c.h.b16 %v590
        %v1692 = vunpack.c.l.b16 %v591
        %v1693 = vunpack.c.h.b16 %v591
        %v1694 = vunpack.c.l.b16 %v592
        %v1695 = vunpack.c.h.b16 %v592
        %v1696 = vunpack.c.l.b16 %v593
        %v1697 = vunpack.c.h.b16 %v593
        %v1698 = vunpack.c.l.b16 %v594
        %v1699 = vunpack.c.h.b16 %v594
        %v1700 = vunpack.c.l.b16 %v595
        %v1701 = vunpack.c.h.b16 %v595
        %v1702 = vunpack.c.l.b16 %v596
        %v1703 = vunpack.c.h.b16 %v596
        %v1704 = vunpack.c.l.b16 %v597
        %v1705 = vunpack.c.h.b16 %v597
        %v1706 = vunpack.c.l.b16 %v598
        %v1707 = vunpack.c.h.b16 %v598
        %v1708 = vunpack.c.l.b16 %v599
        %v1709 = vunpack.c.h.b16 %v599
        %v1710 = vunpack.c.l.b16 %v600
        %v1711 = vunpack.c.h.b16 %v600
        %v1712 = vunpack.c.l.b16 %v601
        %v1713 = vunpack.c.h.b16 %v601
        %v1714 = vunpack.c.l.b16 %v602
        %v1715 = vunpack.c.h.b16 %v602
        %v1716 = vunpack.c.l.b16 %v603
        %v1717 = vunpack.c.h.b16 %v603
        %v1718 = vunpack.c.l.b16 %v604
        %v1719 = vunpack.c.h.b16 %v604
        %v1720 = vunpack.c.l.b16 %v605
        %v1721 = vunpack.c.h.b16 %v605
        %v1722 = vunpack.c.l.b16 %v606
        %v1723 = vunpack.c.h.b16 %v606
        %v1724 = vunpack.c.l.b16 %v607
        %v1725 = vunpack.c.h.b16 %v607
        %v1726 = vunpack.c.l.b16 %v608
        %v1727 = vunpack.c.h.b16 %v608
        %v1728 = vunpack.c.l.b16 %v609
        %v1729 = vunpack.c.h.b16 %v609
        %v1730 = vunpack.c.l.b16 %v610
        %v1731 = vunpack.c.h.b16 %v610
        %v1732 = vunpack.c.l.b16 %v611
        %v1733 = vunpack.c.h.b16 %v611
        %v1734 = vunpack.c.l.b16 %v612
        %v1735 = vunpack.c.h.b16 %v612
        %v1736 = vunpack.c.l.b16 %v613
        %v1737 = vunpack.c.h.b16 %v613
        %v1738 = vunpack.c.l.b16 %v614
        %v1739 = vunpack.c.h.b16 %v614
        %v1740 = vunpack.c.l.b16 %v615
        %v1741 = vunpack.c.h.b16 %v615
        %v1742 = vunpack.c.l.b16 %v616
        %v1743 = vunpack.c.h.b16 %v616
        %v1744 = vunpack.c.l.b16 %v617
        %v1745 = vunpack.c.h.b16 %v617
        %v1746 = vunpack.c.l.b16 %v618
        %v1747 = vunpack.c.h.b16 %v618
        %v1748 = vunpack.c.l.b16 %v619
        %v1749 = vunpack.c.h.b16 %v619
        %v1750 = vunpack.c.l.b16 %v620
        %v1751 = vunpack.c.h.b16 %v620
        %v1752 = vunpack.c.l.b16 %v621
        %v1753 = vunpack.c.h.b16 %v621
        %v1754 = vunpack.c.l.b16 %v622
        %v1755 = vunpack.c.h.b16 %v622
        %v1756 = vunpack.c.l.b16 %v623
        %v1757 = vunpack.c.h.b16 %v623
        %v1758 = vunpack.c.l.b16 %v624
        %v1759 = vunpack.c.h.b16 %v624
        %v1760 = vunpack.c.l.b16 %v625
        %v1761 = vunpack.c.h.b16 %v625
        %v1762 = vunpack.c.l.b16 %v626
        %v1763 = vunpack.c.h.b16 %v626
        %v1764 = vunpack.c.l.b16 %v627
        %v1765 = vunpack.c.h.b16 %v627
        %v1766 = vunpack.c.l.b16 %v628
        %v1767 = vunpack.c.h.b16 %v628
        %v1768 = vunpack.c.l.b16 %v629
        %v1769 = vunpack.c.h.b16 %v629
        %v1770 = vunpack.c.l.b16 %v630
        %v1771 = vunpack.c.h.b16 %v630
        %v1772 = vunpack.c.l.b16 %v631
        %v1773 = vunpack.c.h.b16 %v631
        %v1774 = vunpack.c.l.b16 %v632
        %v1775 = vunpack.c.h.b16 %v632
        %v1776 = vunpack.c.l.b16 %v633
        %v1777 = vunpack.c.h.b16 %v633
        %v1778 = vunpack.c.l.b16 %v634
        %v1779 = vunpack.c.h.b16 %v634
        %v1780 = vunpack.c.l.b16 %v635
        %v1781 = vunpack.c.h.b16 %v635
        %v1782 = vunpack.c.l.b16 %v636
        %v1783 = vunpack.c.h.b16 %v636
        %v1784 = vunpack.c.l.b16 %v637
        %v1785 = vunpack.c.h.b16 %v637
        %v1786 = vunpack.c.l.b16 %v638
        %v1787 = vunpack.c.h.b16 %v638
        %v1788 = vunpack.c.l.b16 %v639
        %v1789 = vunpack.c.h.b16 %v639
        %v1790 = vunpack.c.l.b16 %v640
        %v1791 = vunpack.c.h.b16 %v640
        %v1792 = vunpack.c.l.b16 %v641
        %v1793 = vunpack.c.h.b16 %v641
        %v1794 = vunpack.c.l.b16 %v642
        %v1795 = vunpack.c.h.b16 %v642
        %v1796 = vunpack.c.l.b16 %v643
        %v1797 = vunpack.c.h.b16 %v643
        %v1798 = vunpack.c.l.b16 %v644
        %v1799 = vunpack.c.h.b16 %v644
        %v1800 = vunpack.c.l.b16 %v645
        %v1801 = vunpack.c.h.b16 %v645
        %v1802 = vunpack.c.l.b16 %v646
        %v1803 = vunpack.c.h.b16 %v646
        %v1804 = vunpack.c.l.b16 %v647
        %v1805 = vunpack.c.h.b16 %v647
        %v1806 = vunpack.c.l.b16 %v648
        %v1807 = vunpack.c.h.b16 %v648
        %v1808 = vunpack.c.l.b16 %v649
        %v1809 = vunpack.c.h.b16 %v649
        %v1810 = vunpack.c.l.b16 %v650
        %v1811 = vunpack.c.h.b16 %v650
        %v1812 = vunpack.c.l.b16 %v651
        %v1813 = vunpack.c.h.b16 %v651
        %v1814 = vunpack.c.l.b16 %v652
        %v1815 = vunpack.c.h.b16 %v652
        %v1816 = vunpack.c.l.b16 %v653
        %v1817 = vunpack.c.h.b16 %v653
        %v1818 = vunpack.c.l.b16 %v654
        %v1819 = vunpack.c.h.b16 %v654
        %v1820 = vunpack.c.l.b16 %v655
        %v1821 = vunpack.c.h.b16 %v655
        %v1822 = vunpack.c.l.b16 %v656
        %v1823 = vunpack.c.h.b16 %v656
        %v1824 = vunpack.c.l.b16 %v657
        %v1825 = vunpack.c.h.b16 %v657
        %v1826 = vunpack.c.l.b16 %v658
        %v1827 = vunpack.c.h.b16 %v658
        %v1828 = vunpack.c.l.b16 %v659
        %v1829 = vunpack.c.h.b16 %v659
        %v1830 = vunpack.c.l.b16 %v660
        %v1831 = vunpack.c.h.b16 %v660
        %v1832 = vunpack.c.l.b16 %v661
        %v1833 = vunpack.c.h.b16 %v661
        %v1834 = vunpack.c.l.b16 %v662
        %v1835 = vunpack.c.h.b16 %v662
        %v1836 = vunpack.c.l.b16 %v663
        %v1837 = vunpack.c.h.b16 %v663
        %v1838 = vunpack.c.l.b16 %v664
        %v1839 = vunpack.c.h.b16 %v664
        %v1840 = vunpack.c.l.b16 %v665
        %v1841 = vunpack.c.h.b16 %v665
        %v1842 = vunpack.c.l.b16 %v666
        %v1843 = vunpack.c.h.b16 %v666
        %v1844 = vunpack.c.l.b16 %v667
        %v1845 = vunpack.c.h.b16 %v667
        %v1846 = vunpack.c.l.b16 %v668
        %v1847 = vunpack.c.h.b16 %v668
        %v1848 = vunpack.c.l.b16 %v669
        %v1849 = vunpack.c.h.b16 %v669
        %v1850 = vunpack.c.l.b16 %v670
        %v1851 = vunpack.c.h.b16 %v670
        %v1852 = vunpack.c.l.b16 %v671
        %v1853 = vunpack.c.h.b16 %v671
        %v1854 = vunpack.c.l.b16 %v672
        %v1855 = vunpack.c.h.b16 %v672
        %v1856 = vunpack.c.l.b16 %v673
        %v1857 = vunpack.c.h.b16 %v673
        %v1858 = vunpack.c.l.b16 %v674
        %v1859 = vunpack.c.h.b16 %v674
        %v1860 = vunpack.c.l.b16 %v675
        %v1861 = vunpack.c.h.b16 %v675
        %v1862 = vunpack.c.l.b16 %v676
        %v1863 = vunpack.c.h.b16 %v676
        %v1864 = vunpack.c.l.b16 %v677
        %v1865 = vunpack.c.h.b16 %v677
        %v1866 = vunpack.c.l.b16 %v678
        %v1867 = vunpack.c.h.b16 %v678
        %v1868 = vunpack.c.l.b16 %v679
        %v1869 = vunpack.c.h.b16 %v679
        %v1870 = vunpack.c.l.b16 %v680
        %v1871 = vunpack.c.h.b16 %v680
        %v1872 = vunpack.c.l.b16 %v681
        %v1873 = vunpack.c.h.b16 %v681
        %v1874 = vunpack.c.l.b16 %v682
        %v1875 = vunpack.c.h.b16 %v682
        %v1876 = vunpack.c.l.b16 %v683
        %v1877 = vunpack.c.h.b16 %v683
        %v1878 = vunpack.c.l.b16 %v684
        %v1879 = vunpack.c.h.b16 %v684
        %v1880 = vunpack.c.l.b16 %v685
        %v1881 = vunpack.c.h.b16 %v685
        %v1882 = vunpack.c.l.b16 %v686
        %v1883 = vunpack.c.h.b16 %v686
        %v1884 = vunpack.c.l.b16 %v687
        %v1885 = vunpack.c.h.b16 %v687
        %v1886 = vunpack.c.l.b16 %v688
        %v1887 = vunpack.c.h.b16 %v688
        %v1888 = vunpack.c.l.b16 %v689
        %v1889 = vunpack.c.h.b16 %v689
        %v1890 = vunpack.c.l.b16 %v690
        %v1891 = vunpack.c.h.b16 %v690
        %v1892 = vunpack.c.l.b16 %v691
        %v1893 = vunpack.c.h.b16 %v691
        %v1894 = vunpack.c.l.b16 %v692
        %v1895 = vunpack.c.h.b16 %v692
        %v1896 = vunpack.c.l.b16 %v693
        %v1897 = vunpack.c.h.b16 %v693
        %v1898 = vunpack.c.l.b16 %v694
        %v1899 = vunpack.c.h.b16 %v694
        %v1900 = vunpack.c.l.b16 %v695
        %v1901 = vunpack.c.h.b16 %v695
        %v1902 = vunpack.c.l.b16 %v696
        %v1903 = vunpack.c.h.b16 %v696
        %v1904 = vunpack.c.l.b16 %v697
        %v1905 = vunpack.c.h.b16 %v697
        %v1906 = vunpack.c.l.b16 %v698
        %v1907 = vunpack.c.h.b16 %v698
        %v1908 = vunpack.c.l.b16 %v699
        %v1909 = vunpack.c.h.b16 %v699
        %v1910 = vunpack.c.l.b16 %v700
        %v1911 = vunpack.c.h.b16 %v700
        %v1912 = vunpack.c.l.b16 %v701
        %v1913 = vunpack.c.h.b16 %v701
        %v1914 = vunpack.c.l.b16 %v702
        %v1915 = vunpack.c.h.b16 %v702
        %v1916 = vunpack.c.l.b16 %v703
        %v1917 = vunpack.c.h.b16 %v703
        %v1918 = vunpack.c.l.b16 %v704
        %v1919 = vunpack.c.h.b16 %v704
        %v1920 = vunpack.c.l.b16 %v705
        %v1921 = vunpack.c.h.b16 %v705
        %v1922 = vunpack.c.l.b16 %v706
        %v1923 = vunpack.c.h.b16 %v706
        %v1924 = vunpack.c.l.b16 %v707
        %v1925 = vunpack.c.h.b16 %v707
        %v1926 = vunpack.c.l.b16 %v708
        %v1927 = vunpack.c.h.b16 %v708
        %v1928 = vunpack.c.l.b16 %v709
        %v1929 = vunpack.c.h.b16 %v709
        %v1930 = vunpack.c.l.b16 %v710
        %v1931 = vunpack.c.h.b16 %v710
        %v1932 = vunpack.c.l.b16 %v711
        %v1933 = vunpack.c.h.b16 %v711
        %v1934 = vunpack.c.l.b16 %v712
        %v1935 = vunpack.c.h.b16 %v712
        %v1936 = vunpack.c.l.b16 %v713
        %v1937 = vunpack.c.h.b16 %v713
        %v1938 = vunpack.c.l.b16 %v714
        %v1939 = vunpack.c.h.b16 %v714
        %v1940 = vunpack.c.l.b16 %v715
        %v1941 = vunpack.c.h.b16 %v715
        %v1942 = vunpack.c.l.b16 %v716
        %v1943 = vunpack.c.h.b16 %v716
        %v1944 = vunpack.c.l.b16 %v717
        %v1945 = vunpack.c.h.b16 %v717
        %v1946 = vunpack.c.l.b16 %v718
        %v1947 = vunpack.c.h.b16 %v718
        %v1948 = vunpack.c.l.b16 %v719
        %v1949 = vunpack.c.h.b16 %v719
        %v1950 = vunpack.c.l.b16 %v720
        %v1951 = vunpack.c.h.b16 %v720
        %v1952 = vunpack.c.l.b16 %v721
        %v1953 = vunpack.c.h.b16 %v721
        %v1954 = vunpack.c.l.b16 %v722
        %v1955 = vunpack.c.h.b16 %v722
        %v1956 = vunpack.c.l.b16 %v723
        %v1957 = vunpack.c.h.b16 %v723
        %v1958 = vunpack.c.l.b16 %v724
        %v1959 = vunpack.c.h.b16 %v724
        %v1960 = vunpack.c.l.b16 %v725
        %v1961 = vunpack.c.h.b16 %v725
        %v1962 = vunpack.c.l.b16 %v726
        %v1963 = vunpack.c.h.b16 %v726
        %v1964 = vunpack.c.l.b16 %v727
        %v1965 = vunpack.c.h.b16 %v727
        %v1966 = vunpack.c.l.b16 %v728
        %v1967 = vunpack.c.h.b16 %v728
        %v1968 = vunpack.c.l.b16 %v729
        %v1969 = vunpack.c.h.b16 %v729
        %v1970 = vunpack.c.l.b16 %v730
        %v1971 = vunpack.c.h.b16 %v730
        %v1972 = vunpack.c.l.b16 %v731
        %v1973 = vunpack.c.h.b16 %v731
        %v1974 = vunpack.c.l.b16 %v732
        %v1975 = vunpack.c.h.b16 %v732
        %v1976 = vunpack.c.l.b16 %v733
        %v1977 = vunpack.c.h.b16 %v733
        %v1978 = vunpack.c.l.b16 %v734
        %v1979 = vunpack.c.h.b16 %v734
        %v1980 = vunpack.c.l.b16 %v735
        %v1981 = vunpack.c.h.b16 %v735
        %v1982 = vunpack.c.l.b16 %v736
        %v1983 = vunpack.c.h.b16 %v736
        %v1984 = vunpack.c.l.b16 %v737
        %v1985 = vunpack.c.h.b16 %v737
        %v1986 = vunpack.c.l.b16 %v738
        %v1987 = vunpack.c.h.b16 %v738
        %v1988 = vunpack.c.l.b16 %v739
        %v1989 = vunpack.c.h.b16 %v739
        %v1990 = vunpack.c.l.b16 %v740
        %v1991 = vunpack.c.h.b16 %v740
        %v1992 = vunpack.c.l.b16 %v741
        %v1993 = vunpack.c.h.b16 %v741
        %v1994 = vunpack.c.l.b16 %v742
        %v1995 = vunpack.c.h.b16 %v742
        %v1996 = vunpack.c.l.b16 %v743
        %v1997 = vunpack.c.h.b16 %v743
        %v1998 = vunpack.c.l.b16 %v744
        %v1999 = vunpack.c.h.b16 %v744
        %v2000 = vunpack.c.l.b16 %v745
        %v2001 = vunpack.c.h.b16 %v745
        %v2002 = vunpack.c.l.b16 %v746
        %v2003 = vunpack.c.h.b16 %v746
        %v2004 = vunpack.c.l.b16 %v747
        %v2005 = vunpack.c.h.b16 %v747
        %v2006 = vunpack.c.l.b16 %v748
        %v2007 = vunpack.c.h.b16 %v748
        %v2008 = vunpack.c.l.b16 %v749
        %v2009 = vunpack.c.h.b16 %v749
        %v2010 = vunpack.c.l.b16 %v750
        %v2011 = vunpack.c.h.b16 %v750
        %v2012 = vunpack.c.l.b16 %v751
        %v2013 = vunpack.c.h.b16 %v751
        %v2014 = vunpack.c.l.b16 %v752
        %v2015 = vunpack.c.h.b16 %v752
        %v2016 = vunpack.c.l.b16 %v753
        %v2017 = vunpack.c.h.b16 %v753
        %v2018 = vunpack.c.l.b16 %v754
        %v2019 = vunpack.c.h.b16 %v754
        %v2020 = vunpack.c.l.b16 %v755
        %v2021 = vunpack.c.h.b16 %v755
        %v2022 = vunpack.c.l.b16 %v756
        %v2023 = vunpack.c.h.b16 %v756
        %v2024 = vunpack.c.l.b16 %v757
        %v2025 = vunpack.c.h.b16 %v757
        %v2026 = vunpack.c.l.b16 %v758
        %v2027 = vunpack.c.h.b16 %v758
        %v2028 = vunpack.c.l.b16 %v759
        %v2029 = vunpack.c.h.b16 %v759
        %v2030 = vunpack.c.l.b16 %v760
        %v2031 = vunpack.c.h.b16 %v760
        %v2032 = vunpack.c.l.b16 %v761
        %v2033 = vunpack.c.h.b16 %v761
        %v2034 = vunpack.c.l.b16 %v762
        %v2035 = vunpack.c.h.b16 %v762
        %v2036 = vunpack.c.l.b16 %v763
        %v2037 = vunpack.c.h.b16 %v763
        %v2038 = vunpack.c.l.b16 %v764
        %v2039 = vunpack.c.h.b16 %v764
        %v2040 = vunpack.c.l.b16 %v765
        %v2041 = vunpack.c.h.b16 %v765
        %v2042 = vunpack.c.l.b16 %v766
        %v2043 = vunpack.c.h.b16 %v766
        %v2044 = vunpack.c.l.b16 %v767
        %v2045 = vunpack.c.h.b16 %v767
        %v2046 = vunpack.c.l.b16 %v768
        %v2047 = vunpack.c.h.b16 %v768
        %v2048 = vunpack.c.l.b16 %v769
        %v2049 = vunpack.c.h.b16 %v769
        %v2050 = vunpack.c.l.b16 %v770
        %v2051 = vunpack.c.h.b16 %v770
        %v2052 = vunpack.c.l.b16 %v771
        %v2053 = vunpack.c.h.b16 %v771
        %v2054 = vunpack.c.l.b16 %v772
        %v2055 = vunpack.c.h.b16 %v772
        %v2056 = vunpack.c.l.b16 %v773
        %v2057 = vunpack.c.h.b16 %v773
        %v2058 = vunpack.c.l.b16 %v774
        %v2059 = vunpack.c.h.b16 %v774
        %v2060 = vunpack.c.l.b16 %v775
        %v2061 = vunpack.c.h.b16 %v775
        %v2062 = vunpack.c.l.b16 %v776
        %v2063 = vunpack.c.h.b16 %v776
        %v2064 = vunpack.c.l.b16 %v777
        %v2065 = vunpack.c.h.b16 %v777
        %v2066 = vunpack.c.l.b16 %v778
        %v2067 = vunpack.c.h.b16 %v778
        %v2068 = vunpack.c.l.b16 %v779
        %v2069 = vunpack.c.h.b16 %v779
        %v2070 = vunpack.c.l.b16 %v780
        %v2071 = vunpack.c.h.b16 %v780
        %v2072 = vunpack.c.l.b16 %v781
        %v2073 = vunpack.c.h.b16 %v781
        %v2074 = vunpack.c.l.b16 %v782
        %v2075 = vunpack.c.h.b16 %v782
        %v2076 = vunpack.c.l.b16 %v783
        %v2077 = vunpack.c.h.b16 %v783
        %v2078 = vunpack.c.l.b16 %v784
        %v2079 = vunpack.c.h.b16 %v784
        %v2080 = vunpack.c.l.b16 %v785
        %v2081 = vunpack.c.h.b16 %v785
        %v2082 = vunpack.c.l.b16 %v786
        %v2083 = vunpack.c.h.b16 %v786
        %v2084 = vunpack.c.l.b16 %v787
        %v2085 = vunpack.c.h.b16 %v787
        %v2086 = vunpack.c.l.b16 %v788
        %v2087 = vunpack.c.h.b16 %v788
        %v2088 = vunpack.c.l.b16 %v789
        %v2089 = vunpack.c.h.b16 %v789
        %v2090 = vunpack.c.l.b16 %v790
        %v2091 = vunpack.c.h.b16 %v790
        %v2092 = vunpack.c.l.b16 %v791
        %v2093 = vunpack.c.h.b16 %v791
        %v2094 = vunpack.c.l.b16 %v792
        %v2095 = vunpack.c.h.b16 %v792
        %v2096 = vunpack.c.l.b16 %v793
        %v2097 = vunpack.c.h.b16 %v793
        %v2098 = vunpack.c.l.b16 %v794
        %v2099 = vunpack.c.h.b16 %v794
        %v2100 = vunpack.c.l.b16 %v795
        %v2101 = vunpack.c.h.b16 %v795
        %v2102 = vunpack.c.l.b16 %v796
        %v2103 = vunpack.c.h.b16 %v796
        %v2104 = vunpack.c.l.b16 %v797
        %v2105 = vunpack.c.h.b16 %v797
        %v2106 = vunpack.c.l.b16 %v798
        %v2107 = vunpack.c.h.b16 %v798
        %v2108 = vunpack.c.l.b16 %v799
        %v2109 = vunpack.c.h.b16 %v799
        %v2110 = vunpack.c.l.b16 %v800
        %v2111 = vunpack.c.h.b16 %v800
        %v2112 = vunpack.c.l.b16 %v801
        %v2113 = vunpack.c.h.b16 %v801
        %v2114 = vunpack.c.l.b16 %v802
        %v2115 = vunpack.c.h.b16 %v802
        %v2116 = vunpack.c.l.b16 %v803
        %v2117 = vunpack.c.h.b16 %v803
        %v2118 = vunpack.c.l.b16 %v804
        %v2119 = vunpack.c.h.b16 %v804
        %v2120 = vunpack.c.l.b16 %v805
        %v2121 = vunpack.c.h.b16 %v805
        %v2122 = vunpack.c.l.b16 %v806
        %v2123 = vunpack.c.h.b16 %v806
        %v2124 = vunpack.c.l.b16 %v807
        %v2125 = vunpack.c.h.b16 %v807
        %v2126 = vunpack.c.l.b16 %v808
        %v2127 = vunpack.c.h.b16 %v808
        %v2128 = vunpack.c.l.b16 %v809
        %v2129 = vunpack.c.h.b16 %v809
        %v2130 = vunpack.c.l.b16 %v810
        %v2131 = vunpack.c.h.b16 %v810
        %v2132 = vunpack.c.l.b16 %v811
        %v2133 = vunpack.c.h.b16 %v811
        %v2134 = vunpack.c.l.b16 %v812
        %v2135 = vunpack.c.h.b16 %v812
        %v2136 = vunpack.c.l.b16 %v813
        %v2137 = vunpack.c.h.b16 %v813
        %v2138 = vunpack.c.l.b16 %v814
        %v2139 = vunpack.c.h.b16 %v814
        %v2140 = vunpack.c.l.b16 %v815
        %v2141 = vunpack.c.h.b16 %v815
        %v2142 = vunpack.c.l.b16 %v816
        %v2143 = vunpack.c.h.b16 %v816
        %v2144 = vunpack.c.l.b16 %v817
        %v2145 = vunpack.c.h.b16 %v817
        %v2146 = vunpack.c.l.b16 %v818
        %v2147 = vunpack.c.h.b16 %v818
        %v2148 = vunpack.c.l.b16 %v819
        %v2149 = vunpack.c.h.b16 %v819
        %v2150 = vunpack.c.l.b16 %v820
        %v2151 = vunpack.c.h.b16 %v820
        %v2152 = vunpack.c.l.b16 %v821
        %v2153 = vunpack.c.h.b16 %v821
        %v2154 = vunpack.c.l.b16 %v822
        %v2155 = vunpack.c.h.b16 %v822
        %v2156 = vunpack.c.l.b16 %v823
        %v2157 = vunpack.c.h.b16 %v823
        %v2158 = vunpack.c.l.b16 %v824
        %v2159 = vunpack.c.h.b16 %v824
        %v2160 = vunpack.c.l.b16 %v825
        %v2161 = vunpack.c.h.b16 %v825
        %v2162 = vunpack.c.l.b16 %v826
        %v2163 = vunpack.c.h.b16 %v826
        %v2164 = vunpack.c.l.b16 %v827
        %v2165 = vunpack.c.h.b16 %v827
        %v2166 = vunpack.c.l.b16 %v828
        %v2167 = vunpack.c.h.b16 %v828
        %v2168 = vunpack.c.l.b16 %v829
        %v2169 = vunpack.c.h.b16 %v829
        %v2170 = vunpack.c.l.b16 %v830
        %v2171 = vunpack.c.h.b16 %v830
        %v2172 = vunpack.c.l.b16 %v831
        %v2173 = vunpack.c.h.b16 %v831
        %v2174 = vunpack.c.l.b16 %v832
        %v2175 = vunpack.c.h.b16 %v832
        %v2176 = vunpack.c.l.b16 %v833
        %v2177 = vunpack.c.h.b16 %v833
        %v2178 = vunpack.c.l.b16 %v834
        %v2179 = vunpack.c.h.b16 %v834
        %v2180 = vunpack.c.l.b16 %v835
        %v2181 = vunpack.c.h.b16 %v835
        %v2182 = vunpack.c.l.b16 %v836
        %v2183 = vunpack.c.h.b16 %v836
        %v2184 = vunpack.c.l.b16 %v837
        %v2185 = vunpack.c.h.b16 %v837
        %v2186 = vunpack.c.l.b16 %v838
        %v2187 = vunpack.c.h.b16 %v838
        %v2188 = vunpack.c.l.b16 %v839
        %v2189 = vunpack.c.h.b16 %v839
        %v2190 = vunpack.c.l.b16 %v840
        %v2191 = vunpack.c.h.b16 %v840
        %v2192 = vunpack.c.l.b16 %v841
        %v2193 = vunpack.c.h.b16 %v841
        %v2194 = vunpack.c.l.b16 %v842
        %v2195 = vunpack.c.h.b16 %v842
        %v2196 = vunpack.c.l.b16 %v843
        %v2197 = vunpack.c.h.b16 %v843
        %v2198 = vunpack.c.l.b16 %v844
        %v2199 = vunpack.c.h.b16 %v844
        %v2200 = vunpack.c.l.b16 %v845
        %v2201 = vunpack.c.h.b16 %v845
        %v2202 = vunpack.c.l.b16 %v846
        %v2203 = vunpack.c.h.b16 %v846
        %v2204 = vunpack.c.l.b16 %v847
        %v2205 = vunpack.c.h.b16 %v847
        %v2206 = vunpack.c.l.b16 %v848
        %v2207 = vunpack.c.h.b16 %v848
        %v2208 = vunpack.c.l.b16 %v849
        %v2209 = vunpack.c.h.b16 %v849
        %v2210 = vunpack.c.l.b16 %v850
        %v2211 = vunpack.c.h.b16 %v850
        %v2212 = vunpack.c.l.b16 %v851
        %v2213 = vunpack.c.h.b16 %v851
        %v2214 = vunpack.c.l.b16 %v852
        %v2215 = vunpack.c.h.b16 %v852
        %v2216 = vunpack.c.l.b16 %v853
        %v2217 = vunpack.c.h.b16 %v853
        %v2218 = vunpack.c.l.b16 %v854
        %v2219 = vunpack.c.h.b16 %v854
        %v2220 = vunpack.c.l.b16 %v855
        %v2221 = vunpack.c.h.b16 %v855
        %v2222 = vunpack.c.l.b16 %v856
        %v2223 = vunpack.c.h.b16 %v856
        %v2224 = vunpack.c.l.b16 %v857
        %v2225 = vunpack.c.h.b16 %v857
        %v2226 = vunpack.c.l.b16 %v858
        %v2227 = vunpack.c.h.b16 %v858
        %v2228 = vunpack.c.l.b16 %v859
        %v2229 = vunpack.c.h.b16 %v859
        %v2230 = vunpack.c.l.b16 %v860
        %v2231 = vunpack.c.h.b16 %v860
        %v2232 = vunpack.c.l.b16 %v861
        %v2233 = vunpack.c.h.b16 %v861
        %v2234 = vunpack.c.l.b16 %v862
        %v2235 = vunpack.c.h.b16 %v862
        %v2236 = vunpack.c.l.b16 %v863
        %v2237 = vunpack.c.h.b16 %v863
        %v2238 = vunpack.c.l.b16 %v864
        %v2239 = vunpack.c.h.b16 %v864
        %v2240 = vunpack.c.l.b16 %v865
        %v2241 = vunpack.c.h.b16 %v865
        %v2242 = vunpack.c.l.b16 %v866
        %v2243 = vunpack.c.h.b16 %v866
        %v2244 = vunpack.c.l.b16 %v867
        %v2245 = vunpack.c.h.b16 %v867
        %v2246 = vunpack.c.l.b16 %v868
        %v2247 = vunpack.c.h.b16 %v868
        %v2248 = vunpack.c.l.b16 %v869
        %v2249 = vunpack.c.h.b16 %v869
        %v2250 = vunpack.c.l.b16 %v870
        %v2251 = vunpack.c.h.b16 %v870
        %v2252 = vunpack.c.l.b16 %v871
        %v2253 = vunpack.c.h.b16 %v871
        %v2254 = vunpack.c.l.b16 %v872
        %v2255 = vunpack.c.h.b16 %v872
        %v2256 = vunpack.c.l.b16 %v873
        %v2257 = vunpack.c.h.b16 %v873
        %v2258 = vunpack.c.l.b16 %v874
        %v2259 = vunpack.c.h.b16 %v874
        %v2260 = vunpack.c.l.b16 %v875
        %v2261 = vunpack.c.h.b16 %v875
        %v2262 = vunpack.c.l.b16 %v876
        %v2263 = vunpack.c.h.b16 %v876
        %v2264 = vunpack.c.l.b16 %v877
        %v2265 = vunpack.c.h.b16 %v877
        %v2266 = vunpack.c.l.b16 %v878
        %v2267 = vunpack.c.h.b16 %v878
        %v2268 = vunpack.c.l.b16 %v879
        %v2269 = vunpack.c.h.b16 %v879
        %v2270 = vunpack.c.l.b16 %v880
        %v2271 = vunpack.c.h.b16 %v880
        %v2272 = vunpack.c.l.b16 %v881
        %v2273 = vunpack.c.h.b16 %v881
        %v2274 = vunpack.c.l.b16 %v882
        %v2275 = vunpack.c.h.b16 %v882
        %v2276 = vunpack.c.l.b16 %v883
        %v2277 = vunpack.c.h.b16 %v883
        %v2278 = vunpack.c.l.b16 %v884
        %v2279 = vunpack.c.h.b16 %v884
        %v2280 = vunpack.c.l.b16 %v885
        %v2281 = vunpack.c.h.b16 %v885
        %v2282 = vunpack.c.l.b16 %v886
        %v2283 = vunpack.c.h.b16 %v886
        %v2284 = vunpack.c.l.b16 %v887
        %v2285 = vunpack.c.h.b16 %v887
        %v2286 = vunpack.c.l.b16 %v888
        %v2287 = vunpack.c.h.b16 %v888
        %v2288 = vunpack.c.l.b16 %v889
        %v2289 = vunpack.c.h.b16 %v889
        %v2290 = vunpack.c.l.b16 %v890
        %v2291 = vunpack.c.h.b16 %v890
        %v2292 = vunpack.c.l.b16 %v891
        %v2293 = vunpack.c.h.b16 %v891
        %v2294 = vunpack.c.l.b16 %v892
        %v2295 = vunpack.c.h.b16 %v892
        %v2296 = vunpack.c.l.b16 %v893
        %v2297 = vunpack.c.h.b16 %v893
        %v2298 = vunpack.c.l.b16 %v894
        %v2299 = vunpack.c.h.b16 %v894
        %v2300 = vunpack.c.l.b16 %v895
        %v2301 = vunpack.c.h.b16 %v895
        %v2302 = vunpack.c.l.b16 %v896
        %v2303 = vunpack.c.h.b16 %v896
        %v2304 = vunpack.c.l.b16 %v897
        %v2305 = vunpack.c.h.b16 %v897
        %v2306 = vunpack.c.l.b16 %v898
        %v2307 = vunpack.c.h.b16 %v898
        %v2308 = vunpack.c.l.b16 %v899
        %v2309 = vunpack.c.h.b16 %v899
        %v2310 = vunpack.c.l.b16 %v900
        %v2311 = vunpack.c.h.b16 %v900
        %v2312 = vunpack.c.l.b16 %v901
        %v2313 = vunpack.c.h.b16 %v901
        %v2314 = vunpack.c.l.b16 %v902
        %v2315 = vunpack.c.h.b16 %v902
        %v2316 = vunpack.c.l.b16 %v903
        %v2317 = vunpack.c.h.b16 %v903
        %v2318 = vunpack.c.l.b16 %v904
        %v2319 = vunpack.c.h.b16 %v904
        %v2320 = vunpack.c.l.b16 %v905
        %v2321 = vunpack.c.h.b16 %v905
        %v2322 = vunpack.c.l.b16 %v906
        %v2323 = vunpack.c.h.b16 %v906
        %v2324 = vunpack.c.l.b16 %v907
        %v2325 = vunpack.c.h.b16 %v907
        %v2326 = vunpack.c.l.b16 %v908
        %v2327 = vunpack.c.h.b16 %v908
        %v2328 = vunpack.c.l.b16 %v909
        %v2329 = vunpack.c.h.b16 %v909
        %v2330 = vunpack.c.l.b16 %v910
        %v2331 = vunpack.c.h.b16 %v910
        %v2332 = vunpack.c.l.b16 %v911
        %v2333 = vunpack.c.h.b16 %v911
        %v2334 = vunpack.c.l.b16 %v912
        %v2335 = vunpack.c.h.b16 %v912
        %v2336 = vunpack.c.l.b16 %v913
        %v2337 = vunpack.c.h.b16 %v913
        %v2338 = vunpack.c.l.b16 %v914
        %v2339 = vunpack.c.h.b16 %v914
        %v2340 = vunpack.c.l.b16 %v915
        %v2341 = vunpack.c.h.b16 %v915
        %v2342 = vunpack.c.l.b16 %v916
        %v2343 = vunpack.c.h.b16 %v916
        %v2344 = vunpack.c.l.b16 %v917
        %v2345 = vunpack.c.h.b16 %v917
        %v2346 = vunpack.c.l.b16 %v918
        %v2347 = vunpack.c.h.b16 %v918
        %v2348 = vunpack.c.l.b16 %v919
        %v2349 = vunpack.c.h.b16 %v919
        %v2350 = vunpack.c.l.b16 %v920
        %v2351 = vunpack.c.h.b16 %v920
        %v2352 = vunpack.c.l.b16 %v921
        %v2353 = vunpack.c.h.b16 %v921
        %v2354 = vunpack.c.l.b16 %v922
        %v2355 = vunpack.c.h.b16 %v922
        %v2356 = vunpack.c.l.b16 %v923
        %v2357 = vunpack.c.h.b16 %v923
        %v2358 = vunpack.c.l.b16 %v924
        %v2359 = vunpack.c.h.b16 %v924
        %v2360 = vunpack.c.l.b16 %v925
        %v2361 = vunpack.c.h.b16 %v925
        %v2362 = vunpack.c.l.b16 %v926
        %v2363 = vunpack.c.h.b16 %v926
        %v2364 = vunpack.c.l.b16 %v927
        %v2365 = vunpack.c.h.b16 %v927
        %v2366 = vunpack.c.l.b16 %v928
        %v2367 = vunpack.c.h.b16 %v928
        %v2368 = vunpack.c.l.b16 %v929
        %v2369 = vunpack.c.h.b16 %v929
        %v2370 = vunpack.c.l.b16 %v930
        %v2371 = vunpack.c.h.b16 %v930
        %v2372 = vunpack.c.l.b16 %v931
        %v2373 = vunpack.c.h.b16 %v931
        %v2374 = vunpack.c.l.b16 %v932
        %v2375 = vunpack.c.h.b16 %v932
        %v2376 = vunpack.c.l.b16 %v933
        %v2377 = vunpack.c.h.b16 %v933
        %v2378 = vunpack.c.l.b16 %v934
        %v2379 = vunpack.c.h.b16 %v934
        %v2380 = vunpack.c.l.b16 %v935
        %v2381 = vunpack.c.h.b16 %v935
        %v2382 = vunpack.c.l.b16 %v936
        %v2383 = vunpack.c.h.b16 %v936
        %v2384 = vunpack.c.l.b16 %v937
        %v2385 = vunpack.c.h.b16 %v937
        %v2386 = vunpack.c.l.b16 %v938
        %v2387 = vunpack.c.h.b16 %v938
        %v2388 = vunpack.c.l.b16 %v939
        %v2389 = vunpack.c.h.b16 %v939
        %v2390 = vunpack.c.l.b16 %v940
        %v2391 = vunpack.c.h.b16 %v940
        %v2392 = vunpack.c.l.b16 %v941
        %v2393 = vunpack.c.h.b16 %v941
        %v2394 = vunpack.c.l.b16 %v942
        %v2395 = vunpack.c.h.b16 %v942
        %v2396 = vunpack.c.l.b16 %v943
        %v2397 = vunpack.c.h.b16 %v943
        %v2398 = vunpack.c.l.b16 %v944
        %v2399 = vunpack.c.h.b16 %v944
        %v2400 = vunpack.c.l.b16 %v945
        %v2401 = vunpack.c.h.b16 %v945
        %v2402 = vunpack.c.l.b16 %v946
        %v2403 = vunpack.c.h.b16 %v946
        %v2404 = vunpack.c.l.b16 %v947
        %v2405 = vunpack.c.h.b16 %v947
        %v2406 = vunpack.c.l.b16 %v948
        %v2407 = vunpack.c.h.b16 %v948
        %v2408 = vunpack.c.l.b16 %v949
        %v2409 = vunpack.c.h.b16 %v949
        %v2410 = vunpack.c.l.b16 %v950
        %v2411 = vunpack.c.h.b16 %v950
        %v2412 = vunpack.c.l.b16 %v951
        %v2413 = vunpack.c.h.b16 %v951
        %v2414 = vunpack.c.l.b16 %v952
        %v2415 = vunpack.c.h.b16 %v952
        %v2416 = vunpack.c.l.b16 %v953
        %v2417 = vunpack.c.h.b16 %v953
        %v2418 = vunpack.c.l.b16 %v954
        %v2419 = vunpack.c.h.b16 %v954
        %v2420 = vunpack.c.l.b16 %v955
        %v2421 = vunpack.c.h.b16 %v955
        %v2422 = vunpack.c.l.b16 %v956
        %v2423 = vunpack.c.h.b16 %v956
        %v2424 = vunpack.c.l.b16 %v957
        %v2425 = vunpack.c.h.b16 %v957
        %v2426 = vunpack.c.l.b16 %v958
        %v2427 = vunpack.c.h.b16 %v958
        %v2428 = vunpack.c.l.b16 %v959
        %v2429 = vunpack.c.h.b16 %v959
        %v2430 = vunpack.c.l.b16 %v960
        %v2431 = vunpack.c.h.b16 %v960
        %v2432 = vunpack.c.l.b16 %v961
        %v2433 = vunpack.c.h.b16 %v961
        %v2434 = vunpack.c.l.b16 %v962
        %v2435 = vunpack.c.h.b16 %v962
        %v2436 = vunpack.c.l.b16 %v963
        %v2437 = vunpack.c.h.b16 %v963
        %v2438 = vunpack.c.l.b16 %v964
        %v2439 = vunpack.c.h.b16 %v964
        %v2440 = vunpack.c.l.b16 %v965
        %v2441 = vunpack.c.h.b16 %v965
        %v2442 = vunpack.c.l.b16 %v966
        %v2443 = vunpack.c.h.b16 %v966
        %v2444 = vunpack.c.l.b16 %v967
        %v2445 = vunpack.c.h.b16 %v967
        %v2446 = vunpack.c.l.b16 %v968
        %v2447 = vunpack.c.h.b16 %v968
        %v2448 = vunpack.c.l.b16 %v969
        %v2449 = vunpack.c.h.b16 %v969
        %v2450 = vunpack.c.l.b16 %v970
        %v2451 = vunpack.c.h.b16 %v970
        %v2452 = vunpack.c.l.b16 %v971
        %v2453 = vunpack.c.h.b16 %v971
        %v2454 = vunpack.c.l.b16 %v972
        %v2455 = vunpack.c.h.b16 %v972
        %v2456 = vunpack.c.l.b16 %v973
        %v2457 = vunpack.c.h.b16 %v973
        %v2458 = vunpack.c.l.b16 %v974
        %v2459 = vunpack.c.h.b16 %v974
        %v2460 = vunpack.c.l.b16 %v975
        %v2461 = vunpack.c.h.b16 %v975
        %v2462 = vunpack.c.l.b16 %v976
        %v2463 = vunpack.c.h.b16 %v976
        %v2464 = vunpack.c.l.b16 %v977
        %v2465 = vunpack.c.h.b16 %v977
        %v2466 = vunpack.c.l.b16 %v978
        %v2467 = vunpack.c.h.b16 %v978
        %v2468 = vunpack.c.l.b16 %v979
        %v2469 = vunpack.c.h.b16 %v979
        %v2470 = vunpack.c.l.b16 %v980
        %v2471 = vunpack.c.h.b16 %v980
        %v2472 = vunpack.c.l.b16 %v981
        %v2473 = vunpack.c.h.b16 %v981
        %v2474 = vunpack.c.l.b16 %v982
        %v2475 = vunpack.c.h.b16 %v982
        %v2476 = vunpack.c.l.b16 %v983
        %v2477 = vunpack.c.h.b16 %v983
        %v2478 = vunpack.c.l.b16 %v984
        %v2479 = vunpack.c.h.b16 %v984
        %v2480 = vunpack.c.l.b16 %v985
        %v2481 = vunpack.c.h.b16 %v985
        %v2482 = vunpack.c.l.b16 %v986
        %v2483 = vunpack.c.h.b16 %v986
        %v2484 = vunpack.c.l.b16 %v987
        %v2485 = vunpack.c.h.b16 %v987
        %v2486 = vunpack.c.l.b16 %v988
        %v2487 = vunpack.c.h.b16 %v988
        %v2488 = vunpack.c.l.b16 %v989
        %v2489 = vunpack.c.h.b16 %v989
        %v2490 = vunpack.c.l.b16 %v990
        %v2491 = vunpack.c.h.b16 %v990
        %v2492 = vunpack.c.l.b16 %v991
        %v2493 = vunpack.c.h.b16 %v991
        %v2494 = vunpack.c.l.b16 %v992
        %v2495 = vunpack.c.h.b16 %v992
        %v2496 = vunpack.c.l.b16 %v993
        %v2497 = vunpack.c.h.b16 %v993
        %v2498 = vunpack.c.l.b16 %v994
        %v2499 = vunpack.c.h.b16 %v994
        %v2500 = vunpack.c.l.b16 %v995
        %v2501 = vunpack.c.h.b16 %v995
        %v2502 = vunpack.c.l.b16 %v996
        %v2503 = vunpack.c.h.b16 %v996
        %v2504 = vunpack.c.l.b16 %v997
        %v2505 = vunpack.c.h.b16 %v997
        %v2506 = vunpack.c.l.b16 %v998
        %v2507 = vunpack.c.h.b16 %v998
        %v2508 = vunpack.c.l.b16 %v999
        %v2509 = vunpack.c.h.b16 %v999
        %v2510 = vunpack.c.l.b16 %v1000
        %v2511 = vunpack.c.h.b16 %v1000
        %v2512 = vunpack.c.l.b16 %v1001
        %v2513 = vunpack.c.h.b16 %v1001
        %v2514 = vunpack.c.l.b16 %v1002
        %v2515 = vunpack.c.h.b16 %v1002
        %v2516 = vunpack.c.l.b16 %v1003
        %v2517 = vunpack.c.h.b16 %v1003
        %v2518 = vunpack.c.l.b16 %v1004
        %v2519 = vunpack.c.h.b16 %v1004
        %v2520 = vunpack.c.l.b16 %v1005
        %v2521 = vunpack.c.h.b16 %v1005
        %v2522 = vunpack.c.l.b16 %v1006
        %v2523 = vunpack.c.h.b16 %v1006
        %v2524 = vunpack.c.l.b16 %v1007
        %v2525 = vunpack.c.h.b16 %v1007
        %v2526 = vunpack.c.l.b16 %v1008
        %v2527 = vunpack.c.h.b16 %v1008
        %v2528 = vunpack.c.l.b16 %v1009
        %v2529 = vunpack.c.h.b16 %v1009
        %v2530 = vunpack.c.l.b16 %v1010
        %v2531 = vunpack.c.h.b16 %v1010
        %v2532 = vunpack.c.l.b16 %v1011
        %v2533 = vunpack.c.h.b16 %v1011
        %v2534 = vunpack.c.l.b16 %v1012
        %v2535 = vunpack.c.h.b16 %v1012
        %v2536 = vunpack.c.l.b16 %v1013
        %v2537 = vunpack.c.h.b16 %v1013
        %v2538 = vunpack.c.l.b16 %v1014
        %v2539 = vunpack.c.h.b16 %v1014
        %v2540 = vunpack.c.l.b16 %v1015
        %v2541 = vunpack.c.h.b16 %v1015
        %v2542 = vunpack.c.l.b16 %v1016
        %v2543 = vunpack.c.h.b16 %v1016
        %v2544 = vunpack.c.l.b16 %v1017
        %v2545 = vunpack.c.h.b16 %v1017
        %v2546 = vunpack.c.l.b16 %v1018
        %v2547 = vunpack.c.h.b16 %v1018
        %v2548 = vunpack.c.l.b16 %v1019
        %v2549 = vunpack.c.h.b16 %v1019
        %v2550 = vunpack.c.l.b16 %v1020
        %v2551 = vunpack.c.h.b16 %v1020
        %v2552 = vunpack.c.l.b16 %v1021
        %v2553 = vunpack.c.h.b16 %v1021
        %v2554 = vunpack.c.l.b16 %v1022
        %v2555 = vunpack.c.h.b16 %v1022
        %v2556 = vunpack.c.l.b16 %v1023
        %v2557 = vunpack.c.h.b16 %v1023
        %v2558 = vunpack.c.l.b16 %v1024
        %v2559 = vunpack.c.h.b16 %v1024
        %v2560 = vunpack.c.l.b16 %v1025
        %v2561 = vunpack.c.h.b16 %v1025
        %v2562 = vunpack.c.l.b16 %v1026
        %v2563 = vunpack.c.h.b16 %v1026
        %v2564 = vunpack.c.l.b16 %v1027
        %v2565 = vunpack.c.h.b16 %v1027
        %v2566 = vunpack.c.l.b16 %v1028
        %v2567 = vunpack.c.h.b16 %v1028
        %v2568 = vunpack.c.l.b16 %v1029
        %v2569 = vunpack.c.h.b16 %v1029
        %v2570 = vunpack.c.l.b16 %v1030
        %v2571 = vunpack.c.h.b16 %v1030
        %v2572 = vunpack.c.l.b16 %v1031
        %v2573 = vunpack.c.h.b16 %v1031
        %v2574 = vunpack.c.l.b16 %v1032
        %v2575 = vunpack.c.h.b16 %v1032
        %v2576 = vunpack.c.l.b16 %v1033
        %v2577 = vunpack.c.h.b16 %v1033
        %v2578 = vunpack.c.l.b16 %v1034
        %v2579 = vunpack.c.h.b16 %v1034
        %v2580 = vunpack.c.l.b16 %v1035
        %v2581 = vunpack.c.h.b16 %v1035
        %v2582 = vunpack.c.l.b16 %v1036
        %v2583 = vunpack.c.h.b16 %v1036
        %v2584 = vunpack.c.l.b16 %v1037
        %v2585 = vunpack.c.h.b16 %v1037
        %v2586 = vunpack.c.l.b16 %v1038
        %v2587 = vunpack.c.h.b16 %v1038
        %v2588 = vunpack.c.l.b16 %v1039
        %v2589 = vunpack.c.h.b16 %v1039
        %v2590 = vpack.c.b16 %v1582, %v1566
        %v2591 = vpack.c.b16 %v1583, %v1567
        %v2592 = vpack.c.b16 %v1584, %v1568
        %v2593 = vpack.c.b16 %v1585, %v1569
        %v2594 = vpack.c.b16 %v1586, %v1570
        %v2595 = vpack.c.b16 %v1587, %v1571
        %v2596 = vpack.c.b16 %v1588, %v1572
        %v2597 = vpack.c.b16 %v1589, %v1573
        %v2598 = vpack.c.b16 %v1590, %v1574
        %v2599 = vpack.c.b16 %v1591, %v1575
        %v2600 = vpack.c.b16 %v1592, %v1576
        %v2601 = vpack.c.b16 %v1593, %v1577
        %v2602 = vpack.c.b16 %v1594, %v1578
        %v2603 = vpack.c.b16 %v1595, %v1579
        %v2604 = vpack.c.b16 %v1596, %v1580
        %v2605 = vpack.c.b16 %v1597, %v1581
        %v2606 = vpack.c.b16 %v1614, %v1598
        %v2607 = vpack.c.b16 %v1615, %v1599
        %v2608 = vpack.c.b16 %v1616, %v1600
        %v2609 = vpack.c.b16 %v1617, %v1601
        %v2610 = vpack.c.b16 %v1618, %v1602
        %v2611 = vpack.c.b16 %v1619, %v1603
        %v2612 = vpack.c.b16 %v1620, %v1604
        %v2613 = vpack.c.b16 %v1621, %v1605
        %v2614 = vpack.c.b16 %v1622, %v1606
        %v2615 = vpack.c.b16 %v1623, %v1607
        %v2616 = vpack.c.b16 %v1624, %v1608
        %v2617 = vpack.c.b16 %v1625, %v1609
        %v2618 = vpack.c.b16 %v1626, %v1610
        %v2619 = vpack.c.b16 %v1627, %v1611
        %v2620 = vpack.c.b16 %v1628, %v1612
        %v2621 = vpack.c.b16 %v1629, %v1613
        %v2622 = vpack.c.b16 %v1646, %v1630
        %v2623 = vpack.c.b16 %v1647, %v1631
        %v2624 = vpack.c.b16 %v1648, %v1632
        %v2625 = vpack.c.b16 %v1649, %v1633
        %v2626 = vpack.c.b16 %v1650, %v1634
        %v2627 = vpack.c.b16 %v1651, %v1635
        %v2628 = vpack.c.b16 %v1652, %v1636
        %v2629 = vpack.c.b16 %v1653, %v1637
        %v2630 = vpack.c.b16 %v1654, %v1638
        %v2631 = vpack.c.b16 %v1655, %v1639
        %v2632 = vpack.c.b16 %v1656, %v1640
        %v2633 = vpack.c.b16 %v1657, %v1641
        %v2634 = vpack.c.b16 %v1658, %v1642
        %v2635 = vpack.c.b16 %v1659, %v1643
        %v2636 = vpack.c.b16 %v1660, %v1644
        %v2637 = vpack.c.b16 %v1661, %v1645
        %v2638 = vpack.c.b16 %v1678, %v1662
        %v2639 = vpack.c.b16 %v1679, %v1663
        %v2640 = vpack.c.b16 %v1680, %v1664
        %v2641 = vpack.c.b16 %v1681, %v1665
        %v2642 = vpack.c.b16 %v1682, %v1666
        %v2643 = vpack.c.b16 %v1683, %v1667
        %v2644 = vpack.c.b16 %v1684, %v1668
        %v2645 = vpack.c.b16 %v1685, %v1669
        %v2646 = vpack.c.b16 %v1686, %v1670
        %v2647 = vpack.c.b16 %v1687, %v1671
        %v2648 = vpack.c.b16 %v1688, %v1672
        %v2649 = vpack.c.b16 %v1689, %v1673
        %v2650 = vpack.c.b16 %v1690, %v1674
        %v2651 = vpack.c.b16 %v1691, %v1675
        %v2652 = vpack.c.b16 %v1692, %v1676
        %v2653 = vpack.c.b16 %v1693, %v1677
        %v2654 = vpack.c.b16 %v1710, %v1694
        %v2655 = vpack.c.b16 %v1711, %v1695
        %v2656 = vpack.c.b16 %v1712, %v1696
        %v2657 = vpack.c.b16 %v1713, %v1697
        %v2658 = vpack.c.b16 %v1714, %v1698
        %v2659 = vpack.c.b16 %v1715, %v1699
        %v2660 = vpack.c.b16 %v1716, %v1700
        %v2661 = vpack.c.b16 %v1717, %v1701
        %v2662 = vpack.c.b16 %v1718, %v1702
        %v2663 = vpack.c.b16 %v1719, %v1703
        %v2664 = vpack.c.b16 %v1720, %v1704
        %v2665 = vpack.c.b16 %v1721, %v1705
        %v2666 = vpack.c.b16 %v1722, %v1706
        %v2667 = vpack.c.b16 %v1723, %v1707
        %v2668 = vpack.c.b16 %v1724, %v1708
        %v2669 = vpack.c.b16 %v1725, %v1709
        %v2670 = vpack.c.b16 %v1742, %v1726
        %v2671 = vpack.c.b16 %v1743, %v1727
        %v2672 = vpack.c.b16 %v1744, %v1728
        %v2673 = vpack.c.b16 %v1745, %v1729
        %v2674 = vpack.c.b16 %v1746, %v1730
        %v2675 = vpack.c.b16 %v1747, %v1731
        %v2676 = vpack.c.b16 %v1748, %v1732
        %v2677 = vpack.c.b16 %v1749, %v1733
        %v2678 = vpack.c.b16 %v1750, %v1734
        %v2679 = vpack.c.b16 %v1751, %v1735
        %v2680 = vpack.c.b16 %v1752, %v1736
        %v2681 = vpack.c.b16 %v1753, %v1737
        %v2682 = vpack.c.b16 %v1754, %v1738
        %v2683 = vpack.c.b16 %v1755, %v1739
        %v2684 = vpack.c.b16 %v1756, %v1740
        %v2685 = vpack.c.b16 %v1757, %v1741
        %v2686 = vpack.c.b16 %v1774, %v1758
        %v2687 = vpack.c.b16 %v1775, %v1759
        %v2688 = vpack.c.b16 %v1776, %v1760
        %v2689 = vpack.c.b16 %v1777, %v1761
        %v2690 = vpack.c.b16 %v1778, %v1762
        %v2691 = vpack.c.b16 %v1779, %v1763
        %v2692 = vpack.c.b16 %v1780, %v1764
        %v2693 = vpack.c.b16 %v1781, %v1765
        %v2694 = vpack.c.b16 %v1782, %v1766
        %v2695 = vpack.c.b16 %v1783, %v1767
        %v2696 = vpack.c.b16 %v1784, %v1768
        %v2697 = vpack.c.b16 %v1785, %v1769
        %v2698 = vpack.c.b16 %v1786, %v1770
        %v2699 = vpack.c.b16 %v1787, %v1771
        %v2700 = vpack.c.b16 %v1788, %v1772
        %v2701 = vpack.c.b16 %v1789, %v1773
        %v2702 = vpack.c.b16 %v1806, %v1790
        %v2703 = vpack.c.b16 %v1807, %v1791
        %v2704 = vpack.c.b16 %v1808, %v1792
        %v2705 = vpack.c.b16 %v1809, %v1793
        %v2706 = vpack.c.b16 %v1810, %v1794
        %v2707 = vpack.c.b16 %v1811, %v1795
        %v2708 = vpack.c.b16 %v1812, %v1796
        %v2709 = vpack.c.b16 %v1813, %v1797
        %v2710 = vpack.c.b16 %v1814, %v1798
        %v2711 = vpack.c.b16 %v1815, %v1799
        %v2712 = vpack.c.b16 %v1816, %v1800
        %v2713 = vpack.c.b16 %v1817, %v1801
        %v2714 = vpack.c.b16 %v1818, %v1802
        %v2715 = vpack.c.b16 %v1819, %v1803
        %v2716 = vpack.c.b16 %v1820, %v1804
        %v2717 = vpack.c.b16 %v1821, %v1805
        %v2718 = vpack.c.b16 %v1838, %v1822
        %v2719 = vpack.c.b16 %v1839, %v1823
        %v2720 = vpack.c.b16 %v1840, %v1824
        %v2721 = vpack.c.b16 %v1841, %v1825
        %v2722 = vpack.c.b16 %v1842, %v1826
        %v2723 = vpack.c.b16 %v1843, %v1827
        %v2724 = vpack.c.b16 %v1844, %v1828
        %v2725 = vpack.c.b16 %v1845, %v1829
        %v2726 = vpack.c.b16 %v1846, %v1830
        %v2727 = vpack.c.b16 %v1847, %v1831
        %v2728 = vpack.c.b16 %v1848, %v1832
        %v2729 = vpack.c.b16 %v1849, %v1833
        %v2730 = vpack.c.b16 %v1850, %v1834
        %v2731 = vpack.c.b16 %v1851, %v1835
        %v2732 = vpack.c.b16 %v1852, %v1836
        %v2733 = vpack.c.b16 %v1853, %v1837
        %v2734 = vpack.c.b16 %v1870, %v1854
        %v2735 = vpack.c.b16 %v1871, %v1855
        %v2736 = vpack.c.b16 %v1872, %v1856
        %v2737 = vpack.c.b16 %v1873, %v1857
        %v2738 = vpack.c.b16 %v1874, %v1858
        %v2739 = vpack.c.b16 %v1875, %v1859
        %v2740 = vpack.c.b16 %v1876, %v1860
        %v2741 = vpack.c.b16 %v1877, %v1861
        %v2742 = vpack.c.b16 %v1878, %v1862
        %v2743 = vpack.c.b16 %v1879, %v1863
        %v2744 = vpack.c.b16 %v1880, %v1864
        %v2745 = vpack.c.b16 %v1881, %v1865
        %v2746 = vpack.c.b16 %v1882, %v1866
        %v2747 = vpack.c.b16 %v1883, %v1867
        %v2748 = vpack.c.b16 %v1884, %v1868
        %v2749 = vpack.c.b16 %v1885, %v1869
        %v2750 = vpack.c.b16 %v1902, %v1886
        %v2751 = vpack.c.b16 %v1903, %v1887
        %v2752 = vpack.c.b16 %v1904, %v1888
        %v2753 = vpack.c.b16 %v1905, %v1889
        %v2754 = vpack.c.b16 %v1906, %v1890
        %v2755 = vpack.c.b16 %v1907, %v1891
        %v2756 = vpack.c.b16 %v1908, %v1892
        %v2757 = vpack.c.b16 %v1909, %v1893
        %v2758 = vpack.c.b16 %v1910, %v1894
        %v2759 = vpack.c.b16 %v1911, %v1895
        %v2760 = vpack.c.b16 %v1912, %v1896
        %v2761 = vpack.c.b16 %v1913, %v1897
        %v2762 = vpack.c.b16 %v1914, %v1898
        %v2763 = vpack.c.b16 %v1915, %v1899
        %v2764 = vpack.c.b16 %v1916, %v1900
        %v2765 = vpack.c.b16 %v1917, %v1901
        %v2766 = vpack.c.b16 %v1934, %v1918
        %v2767 = vpack.c.b16 %v1935, %v1919
        %v2768 = vpack.c.b16 %v1936, %v1920
        %v2769 = vpack.c.b16 %v1937, %v1921
        %v2770 = vpack.c.b16 %v1938, %v1922
        %v2771 = vpack.c.b16 %v1939, %v1923
        %v2772 = vpack.c.b16 %v1940, %v1924
        %v2773 = vpack.c.b16 %v1941, %v1925
        %v2774 = vpack.c.b16 %v1942, %v1926
        %v2775 = vpack.c.b16 %v1943, %v1927
        %v2776 = vpack.c.b16 %v1944, %v1928
        %v2777 = vpack.c.b16 %v1945, %v1929
        %v2778 = vpack.c.b16 %v1946, %v1930
        %v2779 = vpack.c.b16 %v1947, %v1931
        %v2780 = vpack.c.b16 %v1948, %v1932
        %v2781 = vpack.c.b16 %v1949, %v1933
        %v2782 = vpack.c.b16 %v1966, %v1950
        %v2783 = vpack.c.b16 %v1967, %v1951
        %v2784 = vpack.c.b16 %v1968, %v1952
        %v2785 = vpack.c.b16 %v1969, %v1953
        %v2786 = vpack.c.b16 %v1970, %v1954
        %v2787 = vpack.c.b16 %v1971, %v1955
        %v2788 = vpack.c.b16 %v1972, %v1956
        %v2789 = vpack.c.b16 %v1973, %v1957
        %v2790 = vpack.c.b16 %v1974, %v1958
        %v2791 = vpack.c.b16 %v1975, %v1959
        %v2792 = vpack.c.b16 %v1976, %v1960
        %v2793 = vpack.c.b16 %v1977, %v1961
        %v2794 = vpack.c.b16 %v1978, %v1962
        %v2795 = vpack.c.b16 %v1979, %v1963
        %v2796 = vpack.c.b16 %v1980, %v1964
        %v2797 = vpack.c.b16 %v1981, %v1965
        %v2798 = vpack.c.b16 %v1998, %v1982
        %v2799 = vpack.c.b16 %v1999, %v1983
        %v2800 = vpack.c.b16 %v2000, %v1984
        %v2801 = vpack.c.b16 %v2001, %v1985
        %v2802 = vpack.c.b16 %v2002, %v1986
        %v2803 = vpack.c.b16 %v2003, %v1987
        %v2804 = vpack.c.b16 %v2004, %v1988
        %v2805 = vpack.c.b16 %v2005, %v1989
        %v2806 = vpack.c.b16 %v2006, %v1990
        %v2807 = vpack.c.b16 %v2007, %v1991
        %v2808 = vpack.c.b16 %v2008, %v1992
        %v2809 = vpack.c.b16 %v2009, %v1993
        %v2810 = vpack.c.b16 %v2010, %v1994
        %v2811 = vpack.c.b16 %v2011, %v1995
        %v2812 = vpack.c.b16 %v2012, %v1996
        %v2813 = vpack.c.b16 %v2013, %v1997
        %v2814 = vpack.c.b16 %v2030, %v2014
        %v2815 = vpack.c.b16 %v2031, %v2015
        %v2816 = vpack.c.b16 %v2032, %v2016
        %v2817 = vpack.c.b16 %v2033, %v2017
        %v2818 = vpack.c.b16 %v2034, %v2018
        %v2819 = vpack.c.b16 %v2035, %v2019
        %v2820 = vpack.c.b16 %v2036, %v2020
        %v2821 = vpack.c.b16 %v2037, %v2021
        %v2822 = vpack.c.b16 %v2038, %v2022
        %v2823 = vpack.c.b16 %v2039, %v2023
        %v2824 = vpack.c.b16 %v2040, %v2024
        %v2825 = vpack.c.b16 %v2041, %v2025
        %v2826 = vpack.c.b16 %v2042, %v2026
        %v2827 = vpack.c.b16 %v2043, %v2027
        %v2828 = vpack.c.b16 %v2044, %v2028
        %v2829 = vpack.c.b16 %v2045, %v2029
        %v2830 = vpack.c.b16 %v2062, %v2046
        %v2831 = vpack.c.b16 %v2063, %v2047
        %v2832 = vpack.c.b16 %v2064, %v2048
        %v2833 = vpack.c.b16 %v2065, %v2049
        %v2834 = vpack.c.b16 %v2066, %v2050
        %v2835 = vpack.c.b16 %v2067, %v2051
        %v2836 = vpack.c.b16 %v2068, %v2052
        %v2837 = vpack.c.b16 %v2069, %v2053
        %v2838 = vpack.c.b16 %v2070, %v2054
        %v2839 = vpack.c.b16 %v2071, %v2055
        %v2840 = vpack.c.b16 %v2072, %v2056
        %v2841 = vpack.c.b16 %v2073, %v2057
        %v2842 = vpack.c.b16 %v2074, %v2058
        %v2843 = vpack.c.b16 %v2075, %v2059
        %v2844 = vpack.c.b16 %v2076, %v2060
        %v2845 = vpack.c.b16 %v2077, %v2061
        %v2846 = vpack.c.b16 %v2094, %v2078
        %v2847 = vpack.c.b16 %v2095, %v2079
        %v2848 = vpack.c.b16 %v2096, %v2080
        %v2849 = vpack.c.b16 %v2097, %v2081
        %v2850 = vpack.c.b16 %v2098, %v2082
        %v2851 = vpack.c.b16 %v2099, %v2083
        %v2852 = vpack.c.b16 %v2100, %v2084
        %v2853 = vpack.c.b16 %v2101, %v2085
        %v2854 = vpack.c.b16 %v2102, %v2086
        %v2855 = vpack.c.b16 %v2103, %v2087
        %v2856 = vpack.c.b16 %v2104, %v2088
        %v2857 = vpack.c.b16 %v2105, %v2089
        %v2858 = vpack.c.b16 %v2106, %v2090
        %v2859 = vpack.c.b16 %v2107, %v2091
        %v2860 = vpack.c.b16 %v2108, %v2092
        %v2861 = vpack.c.b16 %v2109, %v2093
        %v2862 = vpack.c.b16 %v2126, %v2110
        %v2863 = vpack.c.b16 %v2127, %v2111
        %v2864 = vpack.c.b16 %v2128, %v2112
        %v2865 = vpack.c.b16 %v2129, %v2113
        %v2866 = vpack.c.b16 %v2130, %v2114
        %v2867 = vpack.c.b16 %v2131, %v2115
        %v2868 = vpack.c.b16 %v2132, %v2116
        %v2869 = vpack.c.b16 %v2133, %v2117
        %v2870 = vpack.c.b16 %v2134, %v2118
        %v2871 = vpack.c.b16 %v2135, %v2119
        %v2872 = vpack.c.b16 %v2136, %v2120
        %v2873 = vpack.c.b16 %v2137, %v2121
        %v2874 = vpack.c.b16 %v2138, %v2122
        %v2875 = vpack.c.b16 %v2139, %v2123
        %v2876 = vpack.c.b16 %v2140, %v2124
        %v2877 = vpack.c.b16 %v2141, %v2125
        %v2878 = vpack.c.b16 %v2158, %v2142
        %v2879 = vpack.c.b16 %v2159, %v2143
        %v2880 = vpack.c.b16 %v2160, %v2144
        %v2881 = vpack.c.b16 %v2161, %v2145
        %v2882 = vpack.c.b16 %v2162, %v2146
        %v2883 = vpack.c.b16 %v2163, %v2147
        %v2884 = vpack.c.b16 %v2164, %v2148
        %v2885 = vpack.c.b16 %v2165, %v2149
        %v2886 = vpack.c.b16 %v2166, %v2150
        %v2887 = vpack.c.b16 %v2167, %v2151
        %v2888 = vpack.c.b16 %v2168, %v2152
        %v2889 = vpack.c.b16 %v2169, %v2153
        %v2890 = vpack.c.b16 %v2170, %v2154
        %v2891 = vpack.c.b16 %v2171, %v2155
        %v2892 = vpack.c.b16 %v2172, %v2156
        %v2893 = vpack.c.b16 %v2173, %v2157
        %v2894 = vpack.c.b16 %v2190, %v2174
        %v2895 = vpack.c.b16 %v2191, %v2175
        %v2896 = vpack.c.b16 %v2192, %v2176
        %v2897 = vpack.c.b16 %v2193, %v2177
        %v2898 = vpack.c.b16 %v2194, %v2178
        %v2899 = vpack.c.b16 %v2195, %v2179
        %v2900 = vpack.c.b16 %v2196, %v2180
        %v2901 = vpack.c.b16 %v2197, %v2181
        %v2902 = vpack.c.b16 %v2198, %v2182
        %v2903 = vpack.c.b16 %v2199, %v2183
        %v2904 = vpack.c.b16 %v2200, %v2184
        %v2905 = vpack.c.b16 %v2201, %v2185
        %v2906 = vpack.c.b16 %v2202, %v2186
        %v2907 = vpack.c.b16 %v2203, %v2187
        %v2908 = vpack.c.b16 %v2204, %v2188
        %v2909 = vpack.c.b16 %v2205, %v2189
        %v2910 = vpack.c.b16 %v2222, %v2206
        %v2911 = vpack.c.b16 %v2223, %v2207
        %v2912 = vpack.c.b16 %v2224, %v2208
        %v2913 = vpack.c.b16 %v2225, %v2209
        %v2914 = vpack.c.b16 %v2226, %v2210
        %v2915 = vpack.c.b16 %v2227, %v2211
        %v2916 = vpack.c.b16 %v2228, %v2212
        %v2917 = vpack.c.b16 %v2229, %v2213
        %v2918 = vpack.c.b16 %v2230, %v2214
        %v2919 = vpack.c.b16 %v2231, %v2215
        %v2920 = vpack.c.b16 %v2232, %v2216
        %v2921 = vpack.c.b16 %v2233, %v2217
        %v2922 = vpack.c.b16 %v2234, %v2218
        %v2923 = vpack.c.b16 %v2235, %v2219
        %v2924 = vpack.c.b16 %v2236, %v2220
        %v2925 = vpack.c.b16 %v2237, %v2221
        %v2926 = vpack.c.b16 %v2254, %v2238
        %v2927 = vpack.c.b16 %v2255, %v2239
        %v2928 = vpack.c.b16 %v2256, %v2240
        %v2929 = vpack.c.b16 %v2257, %v2241
        %v2930 = vpack.c.b16 %v2258, %v2242
        %v2931 = vpack.c.b16 %v2259, %v2243
        %v2932 = vpack.c.b16 %v2260, %v2244
        %v2933 = vpack.c.b16 %v2261, %v2245
        %v2934 = vpack.c.b16 %v2262, %v2246
        %v2935 = vpack.c.b16 %v2263, %v2247
        %v2936 = vpack.c.b16 %v2264, %v2248
        %v2937 = vpack.c.b16 %v2265, %v2249
        %v2938 = vpack.c.b16 %v2266, %v2250
        %v2939 = vpack.c.b16 %v2267, %v2251
        %v2940 = vpack.c.b16 %v2268, %v2252
        %v2941 = vpack.c.b16 %v2269, %v2253
        %v2942 = vpack.c.b16 %v2286, %v2270
        %v2943 = vpack.c.b16 %v2287, %v2271
        %v2944 = vpack.c.b16 %v2288, %v2272
        %v2945 = vpack.c.b16 %v2289, %v2273
        %v2946 = vpack.c.b16 %v2290, %v2274
        %v2947 = vpack.c.b16 %v2291, %v2275
        %v2948 = vpack.c.b16 %v2292, %v2276
        %v2949 = vpack.c.b16 %v2293, %v2277
        %v2950 = vpack.c.b16 %v2294, %v2278
        %v2951 = vpack.c.b16 %v2295, %v2279
        %v2952 = vpack.c.b16 %v2296, %v2280
        %v2953 = vpack.c.b16 %v2297, %v2281
        %v2954 = vpack.c.b16 %v2298, %v2282
        %v2955 = vpack.c.b16 %v2299, %v2283
        %v2956 = vpack.c.b16 %v2300, %v2284
        %v2957 = vpack.c.b16 %v2301, %v2285
        %v2958 = vpack.c.b16 %v2318, %v2302
        %v2959 = vpack.c.b16 %v2319, %v2303
        %v2960 = vpack.c.b16 %v2320, %v2304
        %v2961 = vpack.c.b16 %v2321, %v2305
        %v2962 = vpack.c.b16 %v2322, %v2306
        %v2963 = vpack.c.b16 %v2323, %v2307
        %v2964 = vpack.c.b16 %v2324, %v2308
        %v2965 = vpack.c.b16 %v2325, %v2309
        %v2966 = vpack.c.b16 %v2326, %v2310
        %v2967 = vpack.c.b16 %v2327, %v2311
        %v2968 = vpack.c.b16 %v2328, %v2312
        %v2969 = vpack.c.b16 %v2329, %v2313
        %v2970 = vpack.c.b16 %v2330, %v2314
        %v2971 = vpack.c.b16 %v2331, %v2315
        %v2972 = vpack.c.b16 %v2332, %v2316
        %v2973 = vpack.c.b16 %v2333, %v2317
        %v2974 = vpack.c.b16 %v2350, %v2334
        %v2975 = vpack.c.b16 %v2351, %v2335
        %v2976 = vpack.c.b16 %v2352, %v2336
        %v2977 = vpack.c.b16 %v2353, %v2337
        %v2978 = vpack.c.b16 %v2354, %v2338
        %v2979 = vpack.c.b16 %v2355, %v2339
        %v2980 = vpack.c.b16 %v2356, %v2340
        %v2981 = vpack.c.b16 %v2357, %v2341
        %v2982 = vpack.c.b16 %v2358, %v2342
        %v2983 = vpack.c.b16 %v2359, %v2343
        %v2984 = vpack.c.b16 %v2360, %v2344
        %v2985 = vpack.c.b16 %v2361, %v2345
        %v2986 = vpack.c.b16 %v2362, %v2346
        %v2987 = vpack.c.b16 %v2363, %v2347
        %v2988 = vpack.c.b16 %v2364, %v2348
        %v2989 = vpack.c.b16 %v2365, %v2349
        %v2990 = vpack.c.b16 %v2382, %v2366
        %v2991 = vpack.c.b16 %v2383, %v2367
        %v2992 = vpack.c.b16 %v2384, %v2368
        %v2993 = vpack.c.b16 %v2385, %v2369
        %v2994 = vpack.c.b16 %v2386, %v2370
        %v2995 = vpack.c.b16 %v2387, %v2371
        %v2996 = vpack.c.b16 %v2388, %v2372
        %v2997 = vpack.c.b16 %v2389, %v2373
        %v2998 = vpack.c.b16 %v2390, %v2374
        %v2999 = vpack.c.b16 %v2391, %v2375
        %v3000 = vpack.c.b16 %v2392, %v2376
        %v3001 = vpack.c.b16 %v2393, %v2377
        %v3002 = vpack.c.b16 %v2394, %v2378
        %v3003 = vpack.c.b16 %v2395, %v2379
        %v3004 = vpack.c.b16 %v2396, %v2380
        %v3005 = vpack.c.b16 %v2397, %v2381
        %v3006 = vpack.c.b16 %v2414, %v2398
        %v3007 = vpack.c.b16 %v2415, %v2399
        %v3008 = vpack.c.b16 %v2416, %v2400
        %v3009 = vpack.c.b16 %v2417, %v2401
        %v3010 = vpack.c.b16 %v2418, %v2402
        %v3011 = vpack.c.b16 %v2419, %v2403
        %v3012 = vpack.c.b16 %v2420, %v2404
        %v3013 = vpack.c.b16 %v2421, %v2405
        %v3014 = vpack.c.b16 %v2422, %v2406
        %v3015 = vpack.c.b16 %v2423, %v2407
        %v3016 = vpack.c.b16 %v2424, %v2408
        %v3017 = vpack.c.b16 %v2425, %v2409
        %v3018 = vpack.c.b16 %v2426, %v2410
        %v3019 = vpack.c.b16 %v2427, %v2411
        %v3020 = vpack.c.b16 %v2428, %v2412
        %v3021 = vpack.c.b16 %v2429, %v2413
        %v3022 = vpack.c.b16 %v2446, %v2430
        %v3023 = vpack.c.b16 %v2447, %v2431
        %v3024 = vpack.c.b16 %v2448, %v2432
        %v3025 = vpack.c.b16 %v2449, %v2433
        %v3026 = vpack.c.b16 %v2450, %v2434
        %v3027 = vpack.c.b16 %v2451, %v2435
        %v3028 = vpack.c.b16 %v2452, %v2436
        %v3029 = vpack.c.b16 %v2453, %v2437
        %v3030 = vpack.c.b16 %v2454, %v2438
        %v3031 = vpack.c.b16 %v2455, %v2439
        %v3032 = vpack.c.b16 %v2456, %v2440
        %v3033 = vpack.c.b16 %v2457, %v2441
        %v3034 = vpack.c.b16 %v2458, %v2442
        %v3035 = vpack.c.b16 %v2459, %v2443
        %v3036 = vpack.c.b16 %v2460, %v2444
        %v3037 = vpack.c.b16 %v2461, %v2445
        %v3038 = vpack.c.b16 %v2478, %v2462
        %v3039 = vpack.c.b16 %v2479, %v2463
        %v3040 = vpack.c.b16 %v2480, %v2464
        %v3041 = vpack.c.b16 %v2481, %v2465
        %v3042 = vpack.c.b16 %v2482, %v2466
        %v3043 = vpack.c.b16 %v2483, %v2467
        %v3044 = vpack.c.b16 %v2484, %v2468
        %v3045 = vpack.c.b16 %v2485, %v2469
        %v3046 = vpack.c.b16 %v2486, %v2470
        %v3047 = vpack.c.b16 %v2487, %v2471
        %v3048 = vpack.c.b16 %v2488, %v2472
        %v3049 = vpack.c.b16 %v2489, %v2473
        %v3050 = vpack.c.b16 %v2490, %v2474
        %v3051 = vpack.c.b16 %v2491, %v2475
        %v3052 = vpack.c.b16 %v2492, %v2476
        %v3053 = vpack.c.b16 %v2493, %v2477
        %v3054 = vpack.c.b16 %v2510, %v2494
        %v3055 = vpack.c.b16 %v2511, %v2495
        %v3056 = vpack.c.b16 %v2512, %v2496
        %v3057 = vpack.c.b16 %v2513, %v2497
        %v3058 = vpack.c.b16 %v2514, %v2498
        %v3059 = vpack.c.b16 %v2515, %v2499
        %v3060 = vpack.c.b16 %v2516, %v2500
        %v3061 = vpack.c.b16 %v2517, %v2501
        %v3062 = vpack.c.b16 %v2518, %v2502
        %v3063 = vpack.c.b16 %v2519, %v2503
        %v3064 = vpack.c.b16 %v2520, %v2504
        %v3065 = vpack.c.b16 %v2521, %v2505
        %v3066 = vpack.c.b16 %v2522, %v2506
        %v3067 = vpack.c.b16 %v2523, %v2507
        %v3068 = vpack.c.b16 %v2524, %v2508
        %v3069 = vpack.c.b16 %v2525, %v2509
        %v3070 = vpack.c.b16 %v2542, %v2526
        %v3071 = vpack.c.b16 %v2543, %v2527
        %v3072 = vpack.c.b16 %v2544, %v2528
        %v3073 = vpack.c.b16 %v2545, %v2529
        %v3074 = vpack.c.b16 %v2546, %v2530
        %v3075 = vpack.c.b16 %v2547, %v2531
        %v3076 = vpack.c.b16 %v2548, %v2532
        %v3077 = vpack.c.b16 %v2549, %v2533
        %v3078 = vpack.c.b16 %v2550, %v2534
        %v3079 = vpack.c.b16 %v2551, %v2535
        %v3080 = vpack.c.b16 %v2552, %v2536
        %v3081 = vpack.c.b16 %v2553, %v2537
        %v3082 = vpack.c.b16 %v2554, %v2538
        %v3083 = vpack.c.b16 %v2555, %v2539
        %v3084 = vpack.c.b16 %v2556, %v2540
        %v3085 = vpack.c.b16 %v2557, %v2541
        %v3086 = vpack.c.b16 %v2574, %v2558
        %v3087 = vpack.c.b16 %v2575, %v2559
        %v3088 = vpack.c.b16 %v2576, %v2560
        %v3089 = vpack.c.b16 %v2577, %v2561
        %v3090 = vpack.c.b16 %v2578, %v2562
        %v3091 = vpack.c.b16 %v2579, %v2563
        %v3092 = vpack.c.b16 %v2580, %v2564
        %v3093 = vpack.c.b16 %v2581, %v2565
        %v3094 = vpack.c.b16 %v2582, %v2566
        %v3095 = vpack.c.b16 %v2583, %v2567
        %v3096 = vpack.c.b16 %v2584, %v2568
        %v3097 = vpack.c.b16 %v2585, %v2569
        %v3098 = vpack.c.b16 %v2586, %v2570
        %v3099 = vpack.c.b16 %v2587, %v2571
        %v3100 = vpack.c.b16 %v2588, %v2572
        %v3101 = vpack.c.b16 %v2589, %v2573
        %3614 = vmatprep.subr.bf16.mxu0 %v2703
        %3615 = vmatpush1.bf16.msra.mxu0 %v2702
        %3616 = vmatprep.subr.bf16.mxu0 %v2687
        %3617 = vmatpush1.bf16.msra.mxu0 %v2686
        %3618 = vmatprep.subr.bf16.mxu0 %v2671
        %3619 = vmatpush1.bf16.msra.mxu0 %v2670
        %3620 = vmatprep.subr.bf16.mxu0 %v2655
        %3621 = vmatpush1.bf16.msra.mxu0 %v2654
        %3622 = vmatprep.subr.bf16.mxu0 %v2639
        %3623 = vmatpush1.bf16.msra.mxu0 %v2638
        %3624 = vmatprep.subr.bf16.mxu0 %v2623
        %3625 = vmatpush1.bf16.msra.mxu0 %v2622
        %3626 = vmatprep.subr.bf16.mxu0 %v2607
        %3627 = vmatpush1.bf16.msra.mxu0 %v2606
        %3628 = vmatprep.subr.bf16.mxu0 %v2591
        %3629 = vmatpush1.bf16.msra.mxu0 %v2590
        %3630 = vmatprep.subr.bf16.mxu0 %v2831
        %3631 = vmatpush2.bf16.msra.mxu0 %v2830
        %3632 = vmatprep.subr.bf16.mxu0 %v2815
        %3633 = vmatpush2.bf16.msra.mxu0 %v2814
        %3634 = vmatprep.subr.bf16.mxu0 %v2799
        %3635 = vmatpush2.bf16.msra.mxu0 %v2798
        %3636 = vmatprep.subr.bf16.mxu0 %v2783
        %3637 = vmatpush2.bf16.msra.mxu0 %v2782
        %3638 = vmatprep.subr.bf16.mxu0 %v2767
        %3639 = vmatpush2.bf16.msra.mxu0 %v2766
        %3640 = vmatprep.subr.bf16.mxu0 %v2751
        %3641 = vmatpush2.bf16.msra.mxu0 %v2750
        %3642 = vmatprep.subr.bf16.mxu0 %v2735
        %3643 = vmatpush2.bf16.msra.mxu0 %v2734
        %3644 = vmatprep.subr.bf16.mxu0 %v2719
        %3645 = vmatpush2.bf16.msra.mxu0 %v2718
        %3646 = vmatprep.mubr.bf16.mxu0 %v1047
        %3647 = vmatmul.mubr.bf16.gmra.mxu0 %v1046
        %v3648 = vpop.f32.mrf.mxu0
        %v3649 = vadd.f32 0.0, %v3648
        %v3650 = vpop.f32.mrf.mxu0
        %v3651 = vadd.f32 0.0, %v3650
        %v3652 = vpop.f32.mrf.mxu0
        %v3653 = vpop.f32.mrf.mxu0
        %3654 = vdwg.mxu0
        %3655 = vmatprep.subr.bf16.mxu0 %v2959
        %3656 = vmatpush1.bf16.msra.mxu0 %v2958
        %3657 = vmatprep.subr.bf16.mxu0 %v2943
        %3658 = vmatpush1.bf16.msra.mxu0 %v2942
        %3659 = vmatprep.subr.bf16.mxu0 %v2927
        %3660 = vmatpush1.bf16.msra.mxu0 %v2926
        %3661 = vmatprep.subr.bf16.mxu0 %v2911
        %3662 = vmatpush1.bf16.msra.mxu0 %v2910
        %3663 = vmatprep.subr.bf16.mxu0 %v2895
        %3664 = vmatpush1.bf16.msra.mxu0 %v2894
        %3665 = vmatprep.subr.bf16.mxu0 %v2879
        %3666 = vmatpush1.bf16.msra.mxu0 %v2878
        %3667 = vmatprep.subr.bf16.mxu0 %v2863
        %3668 = vmatpush1.bf16.msra.mxu0 %v2862
        %3669 = vmatprep.subr.bf16.mxu0 %v2847
        %3670 = vmatpush1.bf16.msra.mxu0 %v2846
        %3671 = vmatprep.subr.bf16.mxu0 %v3087
        %3672 = vmatpush2.bf16.msra.mxu0 %v3086
        %3673 = vmatprep.subr.bf16.mxu0 %v3071
        %3674 = vmatpush2.bf16.msra.mxu0 %v3070
        %3675 = vmatprep.subr.bf16.mxu0 %v3055
        %3676 = vmatpush2.bf16.msra.mxu0 %v3054
        %3677 = vmatprep.subr.bf16.mxu0 %v3039
        %3678 = vmatpush2.bf16.msra.mxu0 %v3038
        %3679 = vmatprep.subr.bf16.mxu0 %v3023
        %3680 = vmatpush2.bf16.msra.mxu0 %v3022
        %3681 = vmatprep.subr.bf16.mxu0 %v3007
        %3682 = vmatpush2.bf16.msra.mxu0 %v3006
        %3683 = vmatprep.subr.bf16.mxu0 %v2991
        %3684 = vmatpush2.bf16.msra.mxu0 %v2990
        %3685 = vmatprep.subr.bf16.mxu0 %v2975
        %3686 = vmatpush2.bf16.msra.mxu0 %v2974
        %3687 = vmatprep.mubr.bf16.mxu0 %v1049
        %3688 = vmatmul.mubr.bf16.gmra.mxu0 %v1048
        %v3689 = vpop.f32.mrf.mxu0
        %v3690 = vadd.f32 %v3649, %v3689
        %v3691 = vpop.f32.mrf.mxu0
        %v3692 = vadd.f32 %v3651, %v3691
        %v3693 = vpop.f32.mrf.mxu0
        %v3694 = vpop.f32.mrf.mxu0
        %3695 = vdwg.mxu0
        %3696 = vmatprep.subr.bf16.mxu0 %v2705
        %3697 = vmatpush1.bf16.msra.mxu0 %v2704
        %3698 = vmatprep.subr.bf16.mxu0 %v2689
        %3699 = vmatpush1.bf16.msra.mxu0 %v2688
        %3700 = vmatprep.subr.bf16.mxu0 %v2673
        %3701 = vmatpush1.bf16.msra.mxu0 %v2672
        %3702 = vmatprep.subr.bf16.mxu0 %v2657
        %3703 = vmatpush1.bf16.msra.mxu0 %v2656
        %3704 = vmatprep.subr.bf16.mxu0 %v2641
        %3705 = vmatpush1.bf16.msra.mxu0 %v2640
        %3706 = vmatprep.subr.bf16.mxu0 %v2625
        %3707 = vmatpush1.bf16.msra.mxu0 %v2624
        %3708 = vmatprep.subr.bf16.mxu0 %v2609
        %3709 = vmatpush1.bf16.msra.mxu0 %v2608
        %3710 = vmatprep.subr.bf16.mxu0 %v2593
        %3711 = vmatpush1.bf16.msra.mxu0 %v2592
        %3712 = vmatprep.subr.bf16.mxu0 %v2833
        %3713 = vmatpush2.bf16.msra.mxu0 %v2832
        %3714 = vmatprep.subr.bf16.mxu0 %v2817
        %3715 = vmatpush2.bf16.msra.mxu0 %v2816
        %3716 = vmatprep.subr.bf16.mxu0 %v2801
        %3717 = vmatpush2.bf16.msra.mxu0 %v2800
        %3718 = vmatprep.subr.bf16.mxu0 %v2785
        %3719 = vmatpush2.bf16.msra.mxu0 %v2784
        %3720 = vmatprep.subr.bf16.mxu0 %v2769
        %3721 = vmatpush2.bf16.msra.mxu0 %v2768
        %3722 = vmatprep.subr.bf16.mxu0 %v2753
        %3723 = vmatpush2.bf16.msra.mxu0 %v2752
        %3724 = vmatprep.subr.bf16.mxu0 %v2737
        %3725 = vmatpush2.bf16.msra.mxu0 %v2736
        %3726 = vmatprep.subr.bf16.mxu0 %v2721
        %3727 = vmatpush2.bf16.msra.mxu0 %v2720
        %3728 = vmatprep.mubr.bf16.mxu0 %v1047
        %3729 = vmatmul.mubr.bf16.gmra.mxu0 %v1046
        %v3730 = vpop.f32.mrf.mxu0
        %v3731 = vadd.f32 0.0, %v3730
        %v3732 = vpop.f32.mrf.mxu0
        %v3733 = vadd.f32 0.0, %v3732
        %v3734 = vpop.f32.mrf.mxu0
        %v3735 = vpop.f32.mrf.mxu0
        %3736 = vdwg.mxu0
        %3737 = vmatprep.subr.bf16.mxu0 %v2961
        %3738 = vmatpush1.bf16.msra.mxu0 %v2960
        %3739 = vmatprep.subr.bf16.mxu0 %v2945
        %3740 = vmatpush1.bf16.msra.mxu0 %v2944
        %3741 = vmatprep.subr.bf16.mxu0 %v2929
        %3742 = vmatpush1.bf16.msra.mxu0 %v2928
        %3743 = vmatprep.subr.bf16.mxu0 %v2913
        %3744 = vmatpush1.bf16.msra.mxu0 %v2912
        %3745 = vmatprep.subr.bf16.mxu0 %v2897
        %3746 = vmatpush1.bf16.msra.mxu0 %v2896
        %3747 = vmatprep.subr.bf16.mxu0 %v2881
        %3748 = vmatpush1.bf16.msra.mxu0 %v2880
        %3749 = vmatprep.subr.bf16.mxu0 %v2865
        %3750 = vmatpush1.bf16.msra.mxu0 %v2864
        %3751 = vmatprep.subr.bf16.mxu0 %v2849
        %3752 = vmatpush1.bf16.msra.mxu0 %v2848
        %3753 = vmatprep.subr.bf16.mxu0 %v3089
        %3754 = vmatpush2.bf16.msra.mxu0 %v3088
        %3755 = vmatprep.subr.bf16.mxu0 %v3073
        %3756 = vmatpush2.bf16.msra.mxu0 %v3072
        %3757 = vmatprep.subr.bf16.mxu0 %v3057
        %3758 = vmatpush2.bf16.msra.mxu0 %v3056
        %3759 = vmatprep.subr.bf16.mxu0 %v3041
        %3760 = vmatpush2.bf16.msra.mxu0 %v3040
        %3761 = vmatprep.subr.bf16.mxu0 %v3025
        %3762 = vmatpush2.bf16.msra.mxu0 %v3024
        %3763 = vmatprep.subr.bf16.mxu0 %v3009
        %3764 = vmatpush2.bf16.msra.mxu0 %v3008
        %3765 = vmatprep.subr.bf16.mxu0 %v2993
        %3766 = vmatpush2.bf16.msra.mxu0 %v2992
        %3767 = vmatprep.subr.bf16.mxu0 %v2977
        %3768 = vmatpush2.bf16.msra.mxu0 %v2976
        %3769 = vmatprep.mubr.bf16.mxu0 %v1049
        %3770 = vmatmul.mubr.bf16.gmra.mxu0 %v1048
        %v3771 = vpop.f32.mrf.mxu0
        %v3772 = vadd.f32 %v3731, %v3771
        %v3773 = vpop.f32.mrf.mxu0
        %v3774 = vadd.f32 %v3733, %v3773
        %v3775 = vpop.f32.mrf.mxu0
        %v3776 = vpop.f32.mrf.mxu0
        %3777 = vdwg.mxu0
        %3778 = vmatprep.subr.bf16.mxu0 %v2707
        %3779 = vmatpush1.bf16.msra.mxu0 %v2706
        %3780 = vmatprep.subr.bf16.mxu0 %v2691
        %3781 = vmatpush1.bf16.msra.mxu0 %v2690
        %3782 = vmatprep.subr.bf16.mxu0 %v2675
        %3783 = vmatpush1.bf16.msra.mxu0 %v2674
        %3784 = vmatprep.subr.bf16.mxu0 %v2659
        %3785 = vmatpush1.bf16.msra.mxu0 %v2658
        %3786 = vmatprep.subr.bf16.mxu0 %v2643
        %3787 = vmatpush1.bf16.msra.mxu0 %v2642
        %3788 = vmatprep.subr.bf16.mxu0 %v2627
        %3789 = vmatpush1.bf16.msra.mxu0 %v2626
        %3790 = vmatprep.subr.bf16.mxu0 %v2611
        %3791 = vmatpush1.bf16.msra.mxu0 %v2610
        %3792 = vmatprep.subr.bf16.mxu0 %v2595
        %3793 = vmatpush1.bf16.msra.mxu0 %v2594
        %3794 = vmatprep.subr.bf16.mxu0 %v2835
        %3795 = vmatpush2.bf16.msra.mxu0 %v2834
        %3796 = vmatprep.subr.bf16.mxu0 %v2819
        %3797 = vmatpush2.bf16.msra.mxu0 %v2818
        %3798 = vmatprep.subr.bf16.mxu0 %v2803
        %3799 = vmatpush2.bf16.msra.mxu0 %v2802
        %3800 = vmatprep.subr.bf16.mxu0 %v2787
        %3801 = vmatpush2.bf16.msra.mxu0 %v2786
        %3802 = vmatprep.subr.bf16.mxu0 %v2771
        %3803 = vmatpush2.bf16.msra.mxu0 %v2770
        %3804 = vmatprep.subr.bf16.mxu0 %v2755
        %3805 = vmatpush2.bf16.msra.mxu0 %v2754
        %3806 = vmatprep.subr.bf16.mxu0 %v2739
        %3807 = vmatpush2.bf16.msra.mxu0 %v2738
        %3808 = vmatprep.subr.bf16.mxu0 %v2723
        %3809 = vmatpush2.bf16.msra.mxu0 %v2722
        %3810 = vmatprep.mubr.bf16.mxu0 %v1047
        %3811 = vmatmul.mubr.bf16.gmra.mxu0 %v1046
        %v3812 = vpop.f32.mrf.mxu0
        %v3813 = vadd.f32 0.0, %v3812
        %v3814 = vpop.f32.mrf.mxu0
        %v3815 = vadd.f32 0.0, %v3814
        %v3816 = vpop.f32.mrf.mxu0
        %v3817 = vpop.f32.mrf.mxu0
        %3818 = vdwg.mxu0
        %3819 = vmatprep.subr.bf16.mxu0 %v2963
        %3820 = vmatpush1.bf16.msra.mxu0 %v2962
        %3821 = vmatprep.subr.bf16.mxu0 %v2947
        %3822 = vmatpush1.bf16.msra.mxu0 %v2946
        %3823 = vmatprep.subr.bf16.mxu0 %v2931
        %3824 = vmatpush1.bf16.msra.mxu0 %v2930
        %3825 = vmatprep.subr.bf16.mxu0 %v2915
        %3826 = vmatpush1.bf16.msra.mxu0 %v2914
        %3827 = vmatprep.subr.bf16.mxu0 %v2899
        %3828 = vmatpush1.bf16.msra.mxu0 %v2898
        %3829 = vmatprep.subr.bf16.mxu0 %v2883
        %3830 = vmatpush1.bf16.msra.mxu0 %v2882
        %3831 = vmatprep.subr.bf16.mxu0 %v2867
        %3832 = vmatpush1.bf16.msra.mxu0 %v2866
        %3833 = vmatprep.subr.bf16.mxu0 %v2851
        %3834 = vmatpush1.bf16.msra.mxu0 %v2850
        %3835 = vmatprep.subr.bf16.mxu0 %v3091
        %3836 = vmatpush2.bf16.msra.mxu0 %v3090
        %3837 = vmatprep.subr.bf16.mxu0 %v3075
        %3838 = vmatpush2.bf16.msra.mxu0 %v3074
        %3839 = vmatprep.subr.bf16.mxu0 %v3059
        %3840 = vmatpush2.bf16.msra.mxu0 %v3058
        %3841 = vmatprep.subr.bf16.mxu0 %v3043
        %3842 = vmatpush2.bf16.msra.mxu0 %v3042
        %3843 = vmatprep.subr.bf16.mxu0 %v3027
        %3844 = vmatpush2.bf16.msra.mxu0 %v3026
        %3845 = vmatprep.subr.bf16.mxu0 %v3011
        %3846 = vmatpush2.bf16.msra.mxu0 %v3010
        %3847 = vmatprep.subr.bf16.mxu0 %v2995
        %3848 = vmatpush2.bf16.msra.mxu0 %v2994
        %3849 = vmatprep.subr.bf16.mxu0 %v2979
        %3850 = vmatpush2.bf16.msra.mxu0 %v2978
        %3851 = vmatprep.mubr.bf16.mxu0 %v1049
        %3852 = vmatmul.mubr.bf16.gmra.mxu0 %v1048
        %v3853 = vpop.f32.mrf.mxu0
        %v3854 = vadd.f32 %v3813, %v3853
        %v3855 = vpop.f32.mrf.mxu0
        %v3856 = vadd.f32 %v3815, %v3855
        %v3857 = vpop.f32.mrf.mxu0
        %v3858 = vpop.f32.mrf.mxu0
        %3859 = vdwg.mxu0
        %3860 = vmatprep.subr.bf16.mxu0 %v2709
        %3861 = vmatpush1.bf16.msra.mxu0 %v2708
        %3862 = vmatprep.subr.bf16.mxu0 %v2693
        %3863 = vmatpush1.bf16.msra.mxu0 %v2692
        %3864 = vmatprep.subr.bf16.mxu0 %v2677
        %3865 = vmatpush1.bf16.msra.mxu0 %v2676
        %3866 = vmatprep.subr.bf16.mxu0 %v2661
        %3867 = vmatpush1.bf16.msra.mxu0 %v2660
        %3868 = vmatprep.subr.bf16.mxu0 %v2645
        %3869 = vmatpush1.bf16.msra.mxu0 %v2644
        %3870 = vmatprep.subr.bf16.mxu0 %v2629
        %3871 = vmatpush1.bf16.msra.mxu0 %v2628
        %3872 = vmatprep.subr.bf16.mxu0 %v2613
        %3873 = vmatpush1.bf16.msra.mxu0 %v2612
        %3874 = vmatprep.subr.bf16.mxu0 %v2597
        %3875 = vmatpush1.bf16.msra.mxu0 %v2596
        %3876 = vmatprep.subr.bf16.mxu0 %v2837
        %3877 = vmatpush2.bf16.msra.mxu0 %v2836
        %3878 = vmatprep.subr.bf16.mxu0 %v2821
        %3879 = vmatpush2.bf16.msra.mxu0 %v2820
        %3880 = vmatprep.subr.bf16.mxu0 %v2805
        %3881 = vmatpush2.bf16.msra.mxu0 %v2804
        %3882 = vmatprep.subr.bf16.mxu0 %v2789
        %3883 = vmatpush2.bf16.msra.mxu0 %v2788
        %3884 = vmatprep.subr.bf16.mxu0 %v2773
        %3885 = vmatpush2.bf16.msra.mxu0 %v2772
        %3886 = vmatprep.subr.bf16.mxu0 %v2757
        %3887 = vmatpush2.bf16.msra.mxu0 %v2756
        %3888 = vmatprep.subr.bf16.mxu0 %v2741
        %3889 = vmatpush2.bf16.msra.mxu0 %v2740
        %3890 = vmatprep.subr.bf16.mxu0 %v2725
        %3891 = vmatpush2.bf16.msra.mxu0 %v2724
        %3892 = vmatprep.mubr.bf16.mxu0 %v1047
        %3893 = vmatmul.mubr.bf16.gmra.mxu0 %v1046
        %v3894 = vpop.f32.mrf.mxu0
        %v3895 = vadd.f32 0.0, %v3894
        %v3896 = vpop.f32.mrf.mxu0
        %v3897 = vadd.f32 0.0, %v3896
        %v3898 = vpop.f32.mrf.mxu0
        %v3899 = vpop.f32.mrf.mxu0
        %3900 = vdwg.mxu0
        %3901 = vmatprep.subr.bf16.mxu0 %v2965
        %3902 = vmatpush1.bf16.msra.mxu0 %v2964
        %3903 = vmatprep.subr.bf16.mxu0 %v2949
        %3904 = vmatpush1.bf16.msra.mxu0 %v2948
        %3905 = vmatprep.subr.bf16.mxu0 %v2933
        %3906 = vmatpush1.bf16.msra.mxu0 %v2932
        %3907 = vmatprep.subr.bf16.mxu0 %v2917
        %3908 = vmatpush1.bf16.msra.mxu0 %v2916
        %3909 = vmatprep.subr.bf16.mxu0 %v2901
        %3910 = vmatpush1.bf16.msra.mxu0 %v2900
        %3911 = vmatprep.subr.bf16.mxu0 %v2885
        %3912 = vmatpush1.bf16.msra.mxu0 %v2884
        %3913 = vmatprep.subr.bf16.mxu0 %v2869
        %3914 = vmatpush1.bf16.msra.mxu0 %v2868
        %3915 = vmatprep.subr.bf16.mxu0 %v2853
        %3916 = vmatpush1.bf16.msra.mxu0 %v2852
        %3917 = vmatprep.subr.bf16.mxu0 %v3093
        %3918 = vmatpush2.bf16.msra.mxu0 %v3092
        %3919 = vmatprep.subr.bf16.mxu0 %v3077
        %3920 = vmatpush2.bf16.msra.mxu0 %v3076
        %3921 = vmatprep.subr.bf16.mxu0 %v3061
        %3922 = vmatpush2.bf16.msra.mxu0 %v3060
        %3923 = vmatprep.subr.bf16.mxu0 %v3045
        %3924 = vmatpush2.bf16.msra.mxu0 %v3044
        %3925 = vmatprep.subr.bf16.mxu0 %v3029
        %3926 = vmatpush2.bf16.msra.mxu0 %v3028
        %3927 = vmatprep.subr.bf16.mxu0 %v3013
        %3928 = vmatpush2.bf16.msra.mxu0 %v3012
        %3929 = vmatprep.subr.bf16.mxu0 %v2997
        %3930 = vmatpush2.bf16.msra.mxu0 %v2996
        %3931 = vmatprep.subr.bf16.mxu0 %v2981
        %3932 = vmatpush2.bf16.msra.mxu0 %v2980
        %3933 = vmatprep.mubr.bf16.mxu0 %v1049
        %3934 = vmatmul.mubr.bf16.gmra.mxu0 %v1048
        %v3935 = vpop.f32.mrf.mxu0
        %v3936 = vadd.f32 %v3895, %v3935
        %v3937 = vpop.f32.mrf.mxu0
        %v3938 = vadd.f32 %v3897, %v3937
        %v3939 = vpop.f32.mrf.mxu0
        %v3940 = vpop.f32.mrf.mxu0
        %3941 = vdwg.mxu0
        %3942 = vmatprep.subr.bf16.mxu0 %v2711
        %3943 = vmatpush1.bf16.msra.mxu0 %v2710
        %3944 = vmatprep.subr.bf16.mxu0 %v2695
        %3945 = vmatpush1.bf16.msra.mxu0 %v2694
        %3946 = vmatprep.subr.bf16.mxu0 %v2679
        %3947 = vmatpush1.bf16.msra.mxu0 %v2678
        %3948 = vmatprep.subr.bf16.mxu0 %v2663
        %3949 = vmatpush1.bf16.msra.mxu0 %v2662
        %3950 = vmatprep.subr.bf16.mxu0 %v2647
        %3951 = vmatpush1.bf16.msra.mxu0 %v2646
        %3952 = vmatprep.subr.bf16.mxu0 %v2631
        %3953 = vmatpush1.bf16.msra.mxu0 %v2630
        %3954 = vmatprep.subr.bf16.mxu0 %v2615
        %3955 = vmatpush1.bf16.msra.mxu0 %v2614
        %3956 = vmatprep.subr.bf16.mxu0 %v2599
        %3957 = vmatpush1.bf16.msra.mxu0 %v2598
        %3958 = vmatprep.subr.bf16.mxu0 %v2839
        %3959 = vmatpush2.bf16.msra.mxu0 %v2838
        %3960 = vmatprep.subr.bf16.mxu0 %v2823
        %3961 = vmatpush2.bf16.msra.mxu0 %v2822
        %3962 = vmatprep.subr.bf16.mxu0 %v2807
        %3963 = vmatpush2.bf16.msra.mxu0 %v2806
        %3964 = vmatprep.subr.bf16.mxu0 %v2791
        %3965 = vmatpush2.bf16.msra.mxu0 %v2790
        %3966 = vmatprep.subr.bf16.mxu0 %v2775
        %3967 = vmatpush2.bf16.msra.mxu0 %v2774
        %3968 = vmatprep.subr.bf16.mxu0 %v2759
        %3969 = vmatpush2.bf16.msra.mxu0 %v2758
        %3970 = vmatprep.subr.bf16.mxu0 %v2743
        %3971 = vmatpush2.bf16.msra.mxu0 %v2742
        %3972 = vmatprep.subr.bf16.mxu0 %v2727
        %3973 = vmatpush2.bf16.msra.mxu0 %v2726
        %3974 = vmatprep.mubr.bf16.mxu0 %v1047
        %3975 = vmatmul.mubr.bf16.gmra.mxu0 %v1046
        %v3976 = vpop.f32.mrf.mxu0
        %v3977 = vadd.f32 0.0, %v3976
        %v3978 = vpop.f32.mrf.mxu0
        %v3979 = vadd.f32 0.0, %v3978
        %v3980 = vpop.f32.mrf.mxu0
        %v3981 = vpop.f32.mrf.mxu0
        %3982 = vdwg.mxu0
        %3983 = vmatprep.subr.bf16.mxu0 %v2967
        %3984 = vmatpush1.bf16.msra.mxu0 %v2966
        %3985 = vmatprep.subr.bf16.mxu0 %v2951
        %3986 = vmatpush1.bf16.msra.mxu0 %v2950
        %3987 = vmatprep.subr.bf16.mxu0 %v2935
        %3988 = vmatpush1.bf16.msra.mxu0 %v2934
        %3989 = vmatprep.subr.bf16.mxu0 %v2919
        %3990 = vmatpush1.bf16.msra.mxu0 %v2918
        %3991 = vmatprep.subr.bf16.mxu0 %v2903
        %3992 = vmatpush1.bf16.msra.mxu0 %v2902
        %3993 = vmatprep.subr.bf16.mxu0 %v2887
        %3994 = vmatpush1.bf16.msra.mxu0 %v2886
        %3995 = vmatprep.subr.bf16.mxu0 %v2871
        %3996 = vmatpush1.bf16.msra.mxu0 %v2870
        %3997 = vmatprep.subr.bf16.mxu0 %v2855
        %3998 = vmatpush1.bf16.msra.mxu0 %v2854
        %3999 = vmatprep.subr.bf16.mxu0 %v3095
        %4000 = vmatpush2.bf16.msra.mxu0 %v3094
        %4001 = vmatprep.subr.bf16.mxu0 %v3079
        %4002 = vmatpush2.bf16.msra.mxu0 %v3078
        %4003 = vmatprep.subr.bf16.mxu0 %v3063
        %4004 = vmatpush2.bf16.msra.mxu0 %v3062
        %4005 = vmatprep.subr.bf16.mxu0 %v3047
        %4006 = vmatpush2.bf16.msra.mxu0 %v3046
        %4007 = vmatprep.subr.bf16.mxu0 %v3031
        %4008 = vmatpush2.bf16.msra.mxu0 %v3030
        %4009 = vmatprep.subr.bf16.mxu0 %v3015
        %4010 = vmatpush2.bf16.msra.mxu0 %v3014
        %4011 = vmatprep.subr.bf16.mxu0 %v2999
        %4012 = vmatpush2.bf16.msra.mxu0 %v2998
        %4013 = vmatprep.subr.bf16.mxu0 %v2983
        %4014 = vmatpush2.bf16.msra.mxu0 %v2982
        %4015 = vmatprep.mubr.bf16.mxu0 %v1049
        %4016 = vmatmul.mubr.bf16.gmra.mxu0 %v1048
        %v4017 = vpop.f32.mrf.mxu0
        %v4018 = vadd.f32 %v3977, %v4017
        %v4019 = vpop.f32.mrf.mxu0
        %v4020 = vadd.f32 %v3979, %v4019
        %v4021 = vpop.f32.mrf.mxu0
        %v4022 = vpop.f32.mrf.mxu0
        %4023 = vdwg.mxu0
        %4024 = vmatprep.subr.bf16.mxu0 %v2713
        %4025 = vmatpush1.bf16.msra.mxu0 %v2712
        %4026 = vmatprep.subr.bf16.mxu0 %v2697
        %4027 = vmatpush1.bf16.msra.mxu0 %v2696
        %4028 = vmatprep.subr.bf16.mxu0 %v2681
        %4029 = vmatpush1.bf16.msra.mxu0 %v2680
        %4030 = vmatprep.subr.bf16.mxu0 %v2665
        %4031 = vmatpush1.bf16.msra.mxu0 %v2664
        %4032 = vmatprep.subr.bf16.mxu0 %v2649
        %4033 = vmatpush1.bf16.msra.mxu0 %v2648
        %4034 = vmatprep.subr.bf16.mxu0 %v2633
        %4035 = vmatpush1.bf16.msra.mxu0 %v2632
        %4036 = vmatprep.subr.bf16.mxu0 %v2617
        %4037 = vmatpush1.bf16.msra.mxu0 %v2616
        %4038 = vmatprep.subr.bf16.mxu0 %v2601
        %4039 = vmatpush1.bf16.msra.mxu0 %v2600
        %4040 = vmatprep.subr.bf16.mxu0 %v2841
        %4041 = vmatpush2.bf16.msra.mxu0 %v2840
        %4042 = vmatprep.subr.bf16.mxu0 %v2825
        %4043 = vmatpush2.bf16.msra.mxu0 %v2824
        %4044 = vmatprep.subr.bf16.mxu0 %v2809
        %4045 = vmatpush2.bf16.msra.mxu0 %v2808
        %4046 = vmatprep.subr.bf16.mxu0 %v2793
        %4047 = vmatpush2.bf16.msra.mxu0 %v2792
        %4048 = vmatprep.subr.bf16.mxu0 %v2777
        %4049 = vmatpush2.bf16.msra.mxu0 %v2776
        %4050 = vmatprep.subr.bf16.mxu0 %v2761
        %4051 = vmatpush2.bf16.msra.mxu0 %v2760
        %4052 = vmatprep.subr.bf16.mxu0 %v2745
        %4053 = vmatpush2.bf16.msra.mxu0 %v2744
        %4054 = vmatprep.subr.bf16.mxu0 %v2729
        %4055 = vmatpush2.bf16.msra.mxu0 %v2728
        %4056 = vmatprep.mubr.bf16.mxu0 %v1047
        %4057 = vmatmul.mubr.bf16.gmra.mxu0 %v1046
        %v4058 = vpop.f32.mrf.mxu0
        %v4059 = vadd.f32 0.0, %v4058
        %v4060 = vpop.f32.mrf.mxu0
        %v4061 = vadd.f32 0.0, %v4060
        %v4062 = vpop.f32.mrf.mxu0
        %v4063 = vpop.f32.mrf.mxu0
        %4064 = vdwg.mxu0
        %4065 = vmatprep.subr.bf16.mxu0 %v2969
        %4066 = vmatpush1.bf16.msra.mxu0 %v2968
        %4067 = vmatprep.subr.bf16.mxu0 %v2953
        %4068 = vmatpush1.bf16.msra.mxu0 %v2952
        %4069 = vmatprep.subr.bf16.mxu0 %v2937
        %4070 = vmatpush1.bf16.msra.mxu0 %v2936
        %4071 = vmatprep.subr.bf16.mxu0 %v2921
        %4072 = vmatpush1.bf16.msra.mxu0 %v2920
        %4073 = vmatprep.subr.bf16.mxu0 %v2905
        %4074 = vmatpush1.bf16.msra.mxu0 %v2904
        %4075 = vmatprep.subr.bf16.mxu0 %v2889
        %4076 = vmatpush1.bf16.msra.mxu0 %v2888
        %4077 = vmatprep.subr.bf16.mxu0 %v2873
        %4078 = vmatpush1.bf16.msra.mxu0 %v2872
        %4079 = vmatprep.subr.bf16.mxu0 %v2857
        %4080 = vmatpush1.bf16.msra.mxu0 %v2856
        %4081 = vmatprep.subr.bf16.mxu0 %v3097
        %4082 = vmatpush2.bf16.msra.mxu0 %v3096
        %4083 = vmatprep.subr.bf16.mxu0 %v3081
        %4084 = vmatpush2.bf16.msra.mxu0 %v3080
        %4085 = vmatprep.subr.bf16.mxu0 %v3065
        %4086 = vmatpush2.bf16.msra.mxu0 %v3064
        %4087 = vmatprep.subr.bf16.mxu0 %v3049
        %4088 = vmatpush2.bf16.msra.mxu0 %v3048
        %4089 = vmatprep.subr.bf16.mxu0 %v3033
        %4090 = vmatpush2.bf16.msra.mxu0 %v3032
        %4091 = vmatprep.subr.bf16.mxu0 %v3017
        %4092 = vmatpush2.bf16.msra.mxu0 %v3016
        %4093 = vmatprep.subr.bf16.mxu0 %v3001
        %4094 = vmatpush2.bf16.msra.mxu0 %v3000
        %4095 = vmatprep.subr.bf16.mxu0 %v2985
        %4096 = vmatpush2.bf16.msra.mxu0 %v2984
        %4097 = vmatprep.mubr.bf16.mxu0 %v1049
        %4098 = vmatmul.mubr.bf16.gmra.mxu0 %v1048
        %v4099 = vpop.f32.mrf.mxu0
        %v4100 = vadd.f32 %v4059, %v4099
        %v4101 = vpop.f32.mrf.mxu0
        %v4102 = vadd.f32 %v4061, %v4101
        %v4103 = vpop.f32.mrf.mxu0
        %v4104 = vpop.f32.mrf.mxu0
        %4105 = vdwg.mxu0
        %4106 = vmatprep.subr.bf16.mxu0 %v2715
        %4107 = vmatpush1.bf16.msra.mxu0 %v2714
        %4108 = vmatprep.subr.bf16.mxu0 %v2699
        %4109 = vmatpush1.bf16.msra.mxu0 %v2698
        %4110 = vmatprep.subr.bf16.mxu0 %v2683
        %4111 = vmatpush1.bf16.msra.mxu0 %v2682
        %4112 = vmatprep.subr.bf16.mxu0 %v2667
        %4113 = vmatpush1.bf16.msra.mxu0 %v2666
        %4114 = vmatprep.subr.bf16.mxu0 %v2651
        %4115 = vmatpush1.bf16.msra.mxu0 %v2650
        %4116 = vmatprep.subr.bf16.mxu0 %v2635
        %4117 = vmatpush1.bf16.msra.mxu0 %v2634
        %4118 = vmatprep.subr.bf16.mxu0 %v2619
        %4119 = vmatpush1.bf16.msra.mxu0 %v2618
        %4120 = vmatprep.subr.bf16.mxu0 %v2603
        %4121 = vmatpush1.bf16.msra.mxu0 %v2602
        %4122 = vmatprep.subr.bf16.mxu0 %v2843
        %4123 = vmatpush2.bf16.msra.mxu0 %v2842
        %4124 = vmatprep.subr.bf16.mxu0 %v2827
        %4125 = vmatpush2.bf16.msra.mxu0 %v2826
        %4126 = vmatprep.subr.bf16.mxu0 %v2811
        %4127 = vmatpush2.bf16.msra.mxu0 %v2810
        %4128 = vmatprep.subr.bf16.mxu0 %v2795
        %4129 = vmatpush2.bf16.msra.mxu0 %v2794
        %4130 = vmatprep.subr.bf16.mxu0 %v2779
        %4131 = vmatpush2.bf16.msra.mxu0 %v2778
        %4132 = vmatprep.subr.bf16.mxu0 %v2763
        %4133 = vmatpush2.bf16.msra.mxu0 %v2762
        %4134 = vmatprep.subr.bf16.mxu0 %v2747
        %4135 = vmatpush2.bf16.msra.mxu0 %v2746
        %4136 = vmatprep.subr.bf16.mxu0 %v2731
        %4137 = vmatpush2.bf16.msra.mxu0 %v2730
        %4138 = vmatprep.mubr.bf16.mxu0 %v1047
        %4139 = vmatmul.mubr.bf16.gmra.mxu0 %v1046
        %v4140 = vpop.f32.mrf.mxu0
        %v4141 = vadd.f32 0.0, %v4140
        %v4142 = vpop.f32.mrf.mxu0
        %v4143 = vadd.f32 0.0, %v4142
        %v4144 = vpop.f32.mrf.mxu0
        %v4145 = vpop.f32.mrf.mxu0
        %4146 = vdwg.mxu0
        %4147 = vmatprep.subr.bf16.mxu0 %v2971
        %4148 = vmatpush1.bf16.msra.mxu0 %v2970
        %4149 = vmatprep.subr.bf16.mxu0 %v2955
        %4150 = vmatpush1.bf16.msra.mxu0 %v2954
        %4151 = vmatprep.subr.bf16.mxu0 %v2939
        %4152 = vmatpush1.bf16.msra.mxu0 %v2938
        %4153 = vmatprep.subr.bf16.mxu0 %v2923
        %4154 = vmatpush1.bf16.msra.mxu0 %v2922
        %4155 = vmatprep.subr.bf16.mxu0 %v2907
        %4156 = vmatpush1.bf16.msra.mxu0 %v2906
        %4157 = vmatprep.subr.bf16.mxu0 %v2891
        %4158 = vmatpush1.bf16.msra.mxu0 %v2890
        %4159 = vmatprep.subr.bf16.mxu0 %v2875
        %4160 = vmatpush1.bf16.msra.mxu0 %v2874
        %4161 = vmatprep.subr.bf16.mxu0 %v2859
        %4162 = vmatpush1.bf16.msra.mxu0 %v2858
        %4163 = vmatprep.subr.bf16.mxu0 %v3099
        %4164 = vmatpush2.bf16.msra.mxu0 %v3098
        %4165 = vmatprep.subr.bf16.mxu0 %v3083
        %4166 = vmatpush2.bf16.msra.mxu0 %v3082
        %4167 = vmatprep.subr.bf16.mxu0 %v3067
        %4168 = vmatpush2.bf16.msra.mxu0 %v3066
        %4169 = vmatprep.subr.bf16.mxu0 %v3051
        %4170 = vmatpush2.bf16.msra.mxu0 %v3050
        %4171 = vmatprep.subr.bf16.mxu0 %v3035
        %4172 = vmatpush2.bf16.msra.mxu0 %v3034
        %4173 = vmatprep.subr.bf16.mxu0 %v3019
        %4174 = vmatpush2.bf16.msra.mxu0 %v3018
        %4175 = vmatprep.subr.bf16.mxu0 %v3003
        %4176 = vmatpush2.bf16.msra.mxu0 %v3002
        %4177 = vmatprep.subr.bf16.mxu0 %v2987
        %4178 = vmatpush2.bf16.msra.mxu0 %v2986
        %4179 = vmatprep.mubr.bf16.mxu0 %v1049
        %4180 = vmatmul.mubr.bf16.gmra.mxu0 %v1048
        %v4181 = vpop.f32.mrf.mxu0
        %v4182 = vadd.f32 %v4141, %v4181
        %v4183 = vpop.f32.mrf.mxu0
        %v4184 = vadd.f32 %v4143, %v4183
        %v4185 = vpop.f32.mrf.mxu0
        %v4186 = vpop.f32.mrf.mxu0
        %4187 = vdwg.mxu0
        %4188 = vmatprep.subr.bf16.mxu0 %v2717
        %4189 = vmatpush1.bf16.msra.mxu0 %v2716
        %4190 = vmatprep.subr.bf16.mxu0 %v2701
        %4191 = vmatpush1.bf16.msra.mxu0 %v2700
        %4192 = vmatprep.subr.bf16.mxu0 %v2685
        %4193 = vmatpush1.bf16.msra.mxu0 %v2684
        %4194 = vmatprep.subr.bf16.mxu0 %v2669
        %4195 = vmatpush1.bf16.msra.mxu0 %v2668
        %4196 = vmatprep.subr.bf16.mxu0 %v2653
        %4197 = vmatpush1.bf16.msra.mxu0 %v2652
        %4198 = vmatprep.subr.bf16.mxu0 %v2637
        %4199 = vmatpush1.bf16.msra.mxu0 %v2636
        %4200 = vmatprep.subr.bf16.mxu0 %v2621
        %4201 = vmatpush1.bf16.msra.mxu0 %v2620
        %4202 = vmatprep.subr.bf16.mxu0 %v2605
        %4203 = vmatpush1.bf16.msra.mxu0 %v2604
        %4204 = vmatprep.subr.bf16.mxu0 %v2845
        %4205 = vmatpush2.bf16.msra.mxu0 %v2844
        %4206 = vmatprep.subr.bf16.mxu0 %v2829
        %4207 = vmatpush2.bf16.msra.mxu0 %v2828
        %4208 = vmatprep.subr.bf16.mxu0 %v2813
        %4209 = vmatpush2.bf16.msra.mxu0 %v2812
        %4210 = vmatprep.subr.bf16.mxu0 %v2797
        %4211 = vmatpush2.bf16.msra.mxu0 %v2796
        %4212 = vmatprep.subr.bf16.mxu0 %v2781
        %4213 = vmatpush2.bf16.msra.mxu0 %v2780
        %4214 = vmatprep.subr.bf16.mxu0 %v2765
        %4215 = vmatpush2.bf16.msra.mxu0 %v2764
        %4216 = vmatprep.subr.bf16.mxu0 %v2749
        %4217 = vmatpush2.bf16.msra.mxu0 %v2748
        %4218 = vmatprep.subr.bf16.mxu0 %v2733
        %4219 = vmatpush2.bf16.msra.mxu0 %v2732
        %4220 = vmatprep.mubr.bf16.mxu0 %v1047
        %4221 = vmatmul.mubr.bf16.gmra.mxu0 %v1046
        %v4222 = vpop.f32.mrf.mxu0
        %v4223 = vadd.f32 0.0, %v4222
        %v4224 = vpop.f32.mrf.mxu0
        %v4225 = vadd.f32 0.0, %v4224
        %v4226 = vpop.f32.mrf.mxu0
        %v4227 = vpop.f32.mrf.mxu0
        %4228 = vdwg.mxu0
        %4229 = vmatprep.subr.bf16.mxu0 %v2973
        %4230 = vmatpush1.bf16.msra.mxu0 %v2972
        %4231 = vmatprep.subr.bf16.mxu0 %v2957
        %4232 = vmatpush1.bf16.msra.mxu0 %v2956
        %4233 = vmatprep.subr.bf16.mxu0 %v2941
        %4234 = vmatpush1.bf16.msra.mxu0 %v2940
        %4235 = vmatprep.subr.bf16.mxu0 %v2925
        %4236 = vmatpush1.bf16.msra.mxu0 %v2924
        %4237 = vmatprep.subr.bf16.mxu0 %v2909
        %4238 = vmatpush1.bf16.msra.mxu0 %v2908
        %4239 = vmatprep.subr.bf16.mxu0 %v2893
        %4240 = vmatpush1.bf16.msra.mxu0 %v2892
        %4241 = vmatprep.subr.bf16.mxu0 %v2877
        %4242 = vmatpush1.bf16.msra.mxu0 %v2876
        %4243 = vmatprep.subr.bf16.mxu0 %v2861
        %4244 = vmatpush1.bf16.msra.mxu0 %v2860
        %4245 = vmatprep.subr.bf16.mxu0 %v3101
        %4246 = vmatpush2.bf16.msra.mxu0 %v3100
        %4247 = vmatprep.subr.bf16.mxu0 %v3085
        %4248 = vmatpush2.bf16.msra.mxu0 %v3084
        %4249 = vmatprep.subr.bf16.mxu0 %v3069
        %4250 = vmatpush2.bf16.msra.mxu0 %v3068
        %4251 = vmatprep.subr.bf16.mxu0 %v3053
        %4252 = vmatpush2.bf16.msra.mxu0 %v3052
        %4253 = vmatprep.subr.bf16.mxu0 %v3037
        %4254 = vmatpush2.bf16.msra.mxu0 %v3036
        %4255 = vmatprep.subr.bf16.mxu0 %v3021
        %4256 = vmatpush2.bf16.msra.mxu0 %v3020
        %4257 = vmatprep.subr.bf16.mxu0 %v3005
        %4258 = vmatpush2.bf16.msra.mxu0 %v3004
        %4259 = vmatprep.subr.bf16.mxu0 %v2989
        %4260 = vmatpush2.bf16.msra.mxu0 %v2988
        %4261 = vmatprep.mubr.bf16.mxu0 %v1049
        %4262 = vmatmul.mubr.bf16.gmra.mxu0 %v1048
        %v4263 = vpop.f32.mrf.mxu0
        %v4264 = vadd.f32 %v4223, %v4263
        %v4265 = vpop.f32.mrf.mxu0
        %v4266 = vadd.f32 %v4225, %v4265
        %v4267 = vpop.f32.mrf.mxu0
        %v4268 = vpop.f32.mrf.mxu0
        %4269 = vdwg.mxu0
        %v4270 = vadd.f32 %v510, %v3690
        %v4271 = vadd.f32 %v511, %v3692
        %v4272 = vadd.f32 %v512, %v3772
        %v4273 = vadd.f32 %v513, %v3774
        %v4274 = vadd.f32 %v514, %v3854
        %v4275 = vadd.f32 %v515, %v3856
        %v4276 = vadd.f32 %v516, %v3936
        %v4277 = vadd.f32 %v517, %v3938
        %v4278 = vadd.f32 %v518, %v4018
        %v4279 = vadd.f32 %v519, %v4020
        %v4280 = vadd.f32 %v520, %v4100
        %v4281 = vadd.f32 %v521, %v4102
        %v4282 = vadd.f32 %v522, %v4182
        %v4283 = vadd.f32 %v523, %v4184
        %v4284 = vadd.f32 %v524, %v4264
        %v4285 = vadd.f32 %v525, %v4266
        %4286 = vst [vmem:[#allocation2] sm:$0xff] %v4270
        %4287 = vst [vmem:[#allocation2 + $0x8] sm:$0xff] %v4271
        %4288 = vst [vmem:[#allocation2 + $0x10] sm:$0xff] %v4272
        %4289 = vst [vmem:[#allocation2 + $0x18] sm:$0xff] %v4273
        %4290 = vst [vmem:[#allocation2 + $0x20] sm:$0xff] %v4274
        %4291 = vst [vmem:[#allocation2 + $0x28] sm:$0xff] %v4275
        %4292 = vst [vmem:[#allocation2 + $0x30] sm:$0xff] %v4276
        %4293 = vst [vmem:[#allocation2 + $0x38] sm:$0xff] %v4277
        %4294 = vst [vmem:[#allocation2 + $0x40] sm:$0xff] %v4278
        %4295 = vst [vmem:[#allocation2 + $0x48] sm:$0xff] %v4279
        %4296 = vst [vmem:[#allocation2 + $0x50] sm:$0xff] %v4280
        %4297 = vst [vmem:[#allocation2 + $0x58] sm:$0xff] %v4281
        %4298 = vst [vmem:[#allocation2 + $0x60] sm:$0xff] %v4282
        %4299 = vst [vmem:[#allocation2 + $0x68] sm:$0xff] %v4283
        %4300 = vst [vmem:[#allocation2 + $0x70] sm:$0xff] %v4284
        %4301 = vst [vmem:[#allocation2 + $0x78] sm:$0xff] %v4285
        %p4302 = scmp.eq.s32.totalorder %s36, 1
        // Predicated region
        $region93: #{tpu_custom_call.1} parent=55 // pred_check
          %p4303 = pneg %p4302
        $region94: #{tpu_custom_call.1} parent=55 // pred_check_branch
          %4305 = sbr.rel (%p4303) target = $region96
        $region95: #{tpu_custom_call.1} parent=55 // pred_region
          %v4306 = vld [vmem:[#allocation2] sm:$0xff]
          %v4307 = vld [vmem:[#allocation2 + $0x8] sm:$0xff]
          %v4308 = vld [vmem:[#allocation2 + $0x10] sm:$0xff]
          %v4309 = vld [vmem:[#allocation2 + $0x18] sm:$0xff]
          %v4310 = vld [vmem:[#allocation2 + $0x20] sm:$0xff]
          %v4311 = vld [vmem:[#allocation2 + $0x28] sm:$0xff]
          %v4312 = vld [vmem:[#allocation2 + $0x30] sm:$0xff]
          %v4313 = vld [vmem:[#allocation2 + $0x38] sm:$0xff]
          %v4314 = vld [vmem:[#allocation2 + $0x40] sm:$0xff]
          %v4315 = vld [vmem:[#allocation2 + $0x48] sm:$0xff]
          %v4316 = vld [vmem:[#allocation2 + $0x50] sm:$0xff]
          %v4317 = vld [vmem:[#allocation2 + $0x58] sm:$0xff]
          %v4318 = vld [vmem:[#allocation2 + $0x60] sm:$0xff]
          %v4319 = vld [vmem:[#allocation2 + $0x68] sm:$0xff]
          %v4320 = vld [vmem:[#allocation2 + $0x70] sm:$0xff]
          %v4321 = vld [vmem:[#allocation2 + $0x78] sm:$0xff]
          %v4322 = vld [vmem:[#allocation8] sm:$0xff]
          %v4323 = vld [vmem:[#allocation8 + $0x8] sm:$0xff]
          %v4326 = vlaneseq
          %v4327 = vshrl.u32 %v4326, 7
          %v4328 = vsub.s32 0, %v4327
          %v4329 = vrot.slane %v4322, %v4328
          %v4330 = vlaneseq
          %v4331 = vshrl.u32 %v4330, 7
          %v4332 = vsub.s32 1, %v4331
          %v4333 = vrot.slane %v4322, %v4332
          %v4334 = vlaneseq
          %v4335 = vshrl.u32 %v4334, 7
          %v4336 = vsub.s32 2, %v4335
          %v4337 = vrot.slane %v4322, %v4336
          %v4338 = vlaneseq
          %v4339 = vshrl.u32 %v4338, 7
          %v4340 = vsub.s32 3, %v4339
          %v4341 = vrot.slane %v4322, %v4340
          %v4342 = vlaneseq
          %v4343 = vshrl.u32 %v4342, 7
          %v4344 = vsub.s32 4, %v4343
          %v4345 = vrot.slane %v4322, %v4344
          %v4346 = vlaneseq
          %v4347 = vshrl.u32 %v4346, 7
          %v4348 = vsub.s32 5, %v4347
          %v4349 = vrot.slane %v4322, %v4348
          %v4350 = vlaneseq
          %v4351 = vshrl.u32 %v4350, 7
          %v4352 = vsub.s32 6, %v4351
          %v4353 = vrot.slane %v4322, %v4352
          %v4354 = vlaneseq
          %v4355 = vshrl.u32 %v4354, 7
          %v4356 = vsub.s32 7, %v4355
          %v4357 = vrot.slane %v4322, %v4356
          %v4358 = vlaneseq
          %v4359 = vshrl.u32 %v4358, 7
          %v4360 = vsub.s32 0, %v4359
          %v4361 = vrot.slane %v4323, %v4360
          %v4362 = vlaneseq
          %v4363 = vshrl.u32 %v4362, 7
          %v4364 = vsub.s32 1, %v4363
          %v4365 = vrot.slane %v4323, %v4364
          %v4366 = vlaneseq
          %v4367 = vshrl.u32 %v4366, 7
          %v4368 = vsub.s32 2, %v4367
          %v4369 = vrot.slane %v4323, %v4368
          %v4370 = vlaneseq
          %v4371 = vshrl.u32 %v4370, 7
          %v4372 = vsub.s32 3, %v4371
          %v4373 = vrot.slane %v4323, %v4372
          %v4374 = vlaneseq
          %v4375 = vshrl.u32 %v4374, 7
          %v4376 = vsub.s32 4, %v4375
          %v4377 = vrot.slane %v4323, %v4376
          %v4378 = vlaneseq
          %v4379 = vshrl.u32 %v4378, 7
          %v4380 = vsub.s32 5, %v4379
          %v4381 = vrot.slane %v4323, %v4380
          %v4382 = vlaneseq
          %v4383 = vshrl.u32 %v4382, 7
          %v4384 = vsub.s32 6, %v4383
          %v4385 = vrot.slane %v4323, %v4384
          %v4386 = vlaneseq
          %v4387 = vshrl.u32 %v4386, 7
          %v4388 = vsub.s32 7, %v4387
          %v4389 = vrot.slane %v4323, %v4388
          %v4406 = vadd.f32 %v4306, %v4329
          %v4407 = vadd.f32 %v4307, %v4333
          %v4408 = vadd.f32 %v4308, %v4337
          %v4409 = vadd.f32 %v4309, %v4341
          %v4410 = vadd.f32 %v4310, %v4345
          %v4411 = vadd.f32 %v4311, %v4349
          %v4412 = vadd.f32 %v4312, %v4353
          %v4413 = vadd.f32 %v4313, %v4357
          %v4414 = vadd.f32 %v4314, %v4361
          %v4415 = vadd.f32 %v4315, %v4365
          %v4416 = vadd.f32 %v4316, %v4369
          %v4417 = vadd.f32 %v4317, %v4373
          %v4418 = vadd.f32 %v4318, %v4377
          %v4419 = vadd.f32 %v4319, %v4381
          %v4420 = vadd.f32 %v4320, %v4385
          %v4421 = vadd.f32 %v4321, %v4389
          %v4422 = vmul.f32 %v4406, 0.2
          %v4423 = vmul.f32 %v4407, 0.2
          %v4424 = vmul.f32 %v4408, 0.2
          %v4425 = vmul.f32 %v4409, 0.2
          %v4426 = vmul.f32 %v4410, 0.2
          %v4427 = vmul.f32 %v4411, 0.2
          %v4428 = vmul.f32 %v4412, 0.2
          %v4429 = vmul.f32 %v4413, 0.2
          %v4430 = vmul.f32 %v4414, 0.2
          %v4431 = vmul.f32 %v4415, 0.2
          %v4432 = vmul.f32 %v4416, 0.2
          %v4433 = vmul.f32 %v4417, 0.2
          %v4434 = vmul.f32 %v4418, 0.2
          %v4435 = vmul.f32 %v4419, 0.2
          %v4436 = vmul.f32 %v4420, 0.2
          %v4437 = vmul.f32 %v4421, 0.2
          %v4438 = vmax.f32 %v4406, %v4422
          %v4439 = vmax.f32 %v4407, %v4423
          %v4440 = vmax.f32 %v4408, %v4424
          %v4441 = vmax.f32 %v4409, %v4425
          %v4442 = vmax.f32 %v4410, %v4426
          %v4443 = vmax.f32 %v4411, %v4427
          %v4444 = vmax.f32 %v4412, %v4428
          %v4445 = vmax.f32 %v4413, %v4429
          %v4446 = vmax.f32 %v4414, %v4430
          %v4447 = vmax.f32 %v4415, %v4431
          %v4448 = vmax.f32 %v4416, %v4432
          %v4449 = vmax.f32 %v4417, %v4433
          %v4450 = vmax.f32 %v4418, %v4434
          %v4451 = vmax.f32 %v4419, %v4435
          %v4452 = vmax.f32 %v4420, %v4436
          %v4453 = vmax.f32 %v4421, %v4437
          %v4454 = vpack.c.bf16 %v4438, %v4438
          %v4455 = vpack.c.bf16 %v4439, %v4439
          %v4456 = vpack.c.bf16 %v4440, %v4440
          %v4457 = vpack.c.bf16 %v4441, %v4441
          %v4458 = vpack.c.bf16 %v4442, %v4442
          %v4459 = vpack.c.bf16 %v4443, %v4443
          %v4460 = vpack.c.bf16 %v4444, %v4444
          %v4461 = vpack.c.bf16 %v4445, %v4445
          %v4462 = vpack.c.bf16 %v4446, %v4446
          %v4463 = vpack.c.bf16 %v4447, %v4447
          %v4464 = vpack.c.bf16 %v4448, %v4448
          %v4465 = vpack.c.bf16 %v4449, %v4449
          %v4466 = vpack.c.bf16 %v4450, %v4450
          %v4467 = vpack.c.bf16 %v4451, %v4451
          %v4468 = vpack.c.bf16 %v4452, %v4452
          %v4469 = vpack.c.bf16 %v4453, %v4453
          %v4470 = vld [vmem:[#allocation9] sm:$0xff]
          %v4471 = vld [vmem:[#allocation9 + $0x8] sm:$0xff]
          %v4472 = vld [vmem:[#allocation9 + $0x10] sm:$0xff]
          %v4473 = vld [vmem:[#allocation9 + $0x18] sm:$0xff]
          %v4474 = vld [vmem:[#allocation9 + $0x20] sm:$0xff]
          %v4475 = vld [vmem:[#allocation9 + $0x28] sm:$0xff]
          %v4476 = vld [vmem:[#allocation9 + $0x30] sm:$0xff]
          %v4477 = vld [vmem:[#allocation9 + $0x38] sm:$0xff]
          %v4478 = vld [vmem:[#allocation9 + $0x40] sm:$0xff]
          %v4479 = vld [vmem:[#allocation9 + $0x48] sm:$0xff]
          %v4480 = vld [vmem:[#allocation9 + $0x50] sm:$0xff]
          %v4481 = vld [vmem:[#allocation9 + $0x58] sm:$0xff]
          %v4482 = vld [vmem:[#allocation9 + $0x60] sm:$0xff]
          %v4483 = vld [vmem:[#allocation9 + $0x68] sm:$0xff]
          %v4484 = vld [vmem:[#allocation9 + $0x70] sm:$0xff]
          %v4485 = vld [vmem:[#allocation9 + $0x78] sm:$0xff]
          %v4486 = vld [vmem:[#allocation9 + $0x80] sm:$0xff]
          %v4487 = vld [vmem:[#allocation9 + $0x88] sm:$0xff]
          %v4488 = vld [vmem:[#allocation9 + $0x90] sm:$0xff]
          %v4489 = vld [vmem:[#allocation9 + $0x98] sm:$0xff]
          %v4490 = vld [vmem:[#allocation9 + $0xa0] sm:$0xff]
          %v4491 = vld [vmem:[#allocation9 + $0xa8] sm:$0xff]
          %v4492 = vld [vmem:[#allocation9 + $0xb0] sm:$0xff]
          %v4493 = vld [vmem:[#allocation9 + $0xb8] sm:$0xff]
          %v4494 = vld [vmem:[#allocation9 + $0xc0] sm:$0xff]
          %v4495 = vld [vmem:[#allocation9 + $0xc8] sm:$0xff]
          %v4496 = vld [vmem:[#allocation9 + $0xd0] sm:$0xff]
          %v4497 = vld [vmem:[#allocation9 + $0xd8] sm:$0xff]
          %v4498 = vld [vmem:[#allocation9 + $0xe0] sm:$0xff]
          %v4499 = vld [vmem:[#allocation9 + $0xe8] sm:$0xff]
          %v4500 = vld [vmem:[#allocation9 + $0xf0] sm:$0xff]
          %v4501 = vld [vmem:[#allocation9 + $0xf8] sm:$0xff]
          %v4502 = vld [vmem:[#allocation9 + $0x100] sm:$0xff]
          %v4503 = vld [vmem:[#allocation9 + $0x108] sm:$0xff]
          %v4504 = vld [vmem:[#allocation9 + $0x110] sm:$0xff]
          %v4505 = vld [vmem:[#allocation9 + $0x118] sm:$0xff]
          %v4506 = vld [vmem:[#allocation9 + $0x120] sm:$0xff]
          %v4507 = vld [vmem:[#allocation9 + $0x128] sm:$0xff]
          %v4508 = vld [vmem:[#allocation9 + $0x130] sm:$0xff]
          %v4509 = vld [vmem:[#allocation9 + $0x138] sm:$0xff]
          %v4510 = vld [vmem:[#allocation9 + $0x140] sm:$0xff]
          %v4511 = vld [vmem:[#allocation9 + $0x148] sm:$0xff]
          %v4512 = vld [vmem:[#allocation9 + $0x150] sm:$0xff]
          %v4513 = vld [vmem:[#allocation9 + $0x158] sm:$0xff]
          %v4514 = vld [vmem:[#allocation9 + $0x160] sm:$0xff]
          %v4515 = vld [vmem:[#allocation9 + $0x168] sm:$0xff]
          %v4516 = vld [vmem:[#allocation9 + $0x170] sm:$0xff]
          %v4517 = vld [vmem:[#allocation9 + $0x178] sm:$0xff]
          %v4518 = vld [vmem:[#allocation9 + $0x180] sm:$0xff]
          %v4519 = vld [vmem:[#allocation9 + $0x188] sm:$0xff]
          %v4520 = vld [vmem:[#allocation9 + $0x190] sm:$0xff]
          %v4521 = vld [vmem:[#allocation9 + $0x198] sm:$0xff]
          %v4522 = vld [vmem:[#allocation9 + $0x1a0] sm:$0xff]
          %v4523 = vld [vmem:[#allocation9 + $0x1a8] sm:$0xff]
          %v4524 = vld [vmem:[#allocation9 + $0x1b0] sm:$0xff]
          %v4525 = vld [vmem:[#allocation9 + $0x1b8] sm:$0xff]
          %v4526 = vld [vmem:[#allocation9 + $0x1c0] sm:$0xff]
          %v4527 = vld [vmem:[#allocation9 + $0x1c8] sm:$0xff]
          %v4528 = vld [vmem:[#allocation9 + $0x1d0] sm:$0xff]
          %v4529 = vld [vmem:[#allocation9 + $0x1d8] sm:$0xff]
          %v4530 = vld [vmem:[#allocation9 + $0x1e0] sm:$0xff]
          %v4531 = vld [vmem:[#allocation9 + $0x1e8] sm:$0xff]
          %v4532 = vld [vmem:[#allocation9 + $0x1f0] sm:$0xff]
          %v4533 = vld [vmem:[#allocation9 + $0x1f8] sm:$0xff]
          %v4534 = vld [vmem:[#allocation9 + $0x200] sm:$0xff]
          %v4535 = vld [vmem:[#allocation9 + $0x208] sm:$0xff]
          %v4536 = vld [vmem:[#allocation9 + $0x210] sm:$0xff]
          %v4537 = vld [vmem:[#allocation9 + $0x218] sm:$0xff]
          %v4538 = vld [vmem:[#allocation9 + $0x220] sm:$0xff]
          %v4539 = vld [vmem:[#allocation9 + $0x228] sm:$0xff]
          %v4540 = vld [vmem:[#allocation9 + $0x230] sm:$0xff]
          %v4541 = vld [vmem:[#allocation9 + $0x238] sm:$0xff]
          %v4542 = vld [vmem:[#allocation9 + $0x240] sm:$0xff]
          %v4543 = vld [vmem:[#allocation9 + $0x248] sm:$0xff]
          %v4544 = vld [vmem:[#allocation9 + $0x250] sm:$0xff]
          %v4545 = vld [vmem:[#allocation9 + $0x258] sm:$0xff]
          %v4546 = vld [vmem:[#allocation9 + $0x260] sm:$0xff]
          %v4547 = vld [vmem:[#allocation9 + $0x268] sm:$0xff]
          %v4548 = vld [vmem:[#allocation9 + $0x270] sm:$0xff]
          %v4549 = vld [vmem:[#allocation9 + $0x278] sm:$0xff]
          %v4550 = vld [vmem:[#allocation9 + $0x280] sm:$0xff]
          %v4551 = vld [vmem:[#allocation9 + $0x288] sm:$0xff]
          %v4552 = vld [vmem:[#allocation9 + $0x290] sm:$0xff]
          %v4553 = vld [vmem:[#allocation9 + $0x298] sm:$0xff]
          %v4554 = vld [vmem:[#allocation9 + $0x2a0] sm:$0xff]
          %v4555 = vld [vmem:[#allocation9 + $0x2a8] sm:$0xff]
          %v4556 = vld [vmem:[#allocation9 + $0x2b0] sm:$0xff]
          %v4557 = vld [vmem:[#allocation9 + $0x2b8] sm:$0xff]
          %v4558 = vld [vmem:[#allocation9 + $0x2c0] sm:$0xff]
          %v4559 = vld [vmem:[#allocation9 + $0x2c8] sm:$0xff]
          %v4560 = vld [vmem:[#allocation9 + $0x2d0] sm:$0xff]
          %v4561 = vld [vmem:[#allocation9 + $0x2d8] sm:$0xff]
          %v4562 = vld [vmem:[#allocation9 + $0x2e0] sm:$0xff]
          %v4563 = vld [vmem:[#allocation9 + $0x2e8] sm:$0xff]
          %v4564 = vld [vmem:[#allocation9 + $0x2f0] sm:$0xff]
          %v4565 = vld [vmem:[#allocation9 + $0x2f8] sm:$0xff]
          %v4566 = vld [vmem:[#allocation9 + $0x300] sm:$0xff]
          %v4567 = vld [vmem:[#allocation9 + $0x308] sm:$0xff]
          %v4568 = vld [vmem:[#allocation9 + $0x310] sm:$0xff]
          %v4569 = vld [vmem:[#allocation9 + $0x318] sm:$0xff]
          %v4570 = vld [vmem:[#allocation9 + $0x320] sm:$0xff]
          %v4571 = vld [vmem:[#allocation9 + $0x328] sm:$0xff]
          %v4572 = vld [vmem:[#allocation9 + $0x330] sm:$0xff]
          %v4573 = vld [vmem:[#allocation9 + $0x338] sm:$0xff]
          %v4574 = vld [vmem:[#allocation9 + $0x340] sm:$0xff]
          %v4575 = vld [vmem:[#allocation9 + $0x348] sm:$0xff]
          %v4576 = vld [vmem:[#allocation9 + $0x350] sm:$0xff]
          %v4577 = vld [vmem:[#allocation9 + $0x358] sm:$0xff]
          %v4578 = vld [vmem:[#allocation9 + $0x360] sm:$0xff]
          %v4579 = vld [vmem:[#allocation9 + $0x368] sm:$0xff]
          %v4580 = vld [vmem:[#allocation9 + $0x370] sm:$0xff]
          %v4581 = vld [vmem:[#allocation9 + $0x378] sm:$0xff]
          %v4582 = vld [vmem:[#allocation9 + $0x380] sm:$0xff]
          %v4583 = vld [vmem:[#allocation9 + $0x388] sm:$0xff]
          %v4584 = vld [vmem:[#allocation9 + $0x390] sm:$0xff]
          %v4585 = vld [vmem:[#allocation9 + $0x398] sm:$0xff]
          %v4586 = vld [vmem:[#allocation9 + $0x3a0] sm:$0xff]
          %v4587 = vld [vmem:[#allocation9 + $0x3a8] sm:$0xff]
          %v4588 = vld [vmem:[#allocation9 + $0x3b0] sm:$0xff]
          %v4589 = vld [vmem:[#allocation9 + $0x3b8] sm:$0xff]
          %v4590 = vld [vmem:[#allocation9 + $0x3c0] sm:$0xff]
          %v4591 = vld [vmem:[#allocation9 + $0x3c8] sm:$0xff]
          %v4592 = vld [vmem:[#allocation9 + $0x3d0] sm:$0xff]
          %v4593 = vld [vmem:[#allocation9 + $0x3d8] sm:$0xff]
          %v4594 = vld [vmem:[#allocation9 + $0x3e0] sm:$0xff]
          %v4595 = vld [vmem:[#allocation9 + $0x3e8] sm:$0xff]
          %v4596 = vld [vmem:[#allocation9 + $0x3f0] sm:$0xff]
          %v4597 = vld [vmem:[#allocation9 + $0x3f8] sm:$0xff]
          %v4598 = vld [vmem:[#allocation9 + $0x400] sm:$0xff]
          %v4599 = vld [vmem:[#allocation9 + $0x408] sm:$0xff]
          %v4600 = vld [vmem:[#allocation9 + $0x410] sm:$0xff]
          %v4601 = vld [vmem:[#allocation9 + $0x418] sm:$0xff]
          %v4602 = vld [vmem:[#allocation9 + $0x420] sm:$0xff]
          %v4603 = vld [vmem:[#allocation9 + $0x428] sm:$0xff]
          %v4604 = vld [vmem:[#allocation9 + $0x430] sm:$0xff]
          %v4605 = vld [vmem:[#allocation9 + $0x438] sm:$0xff]
          %v4606 = vld [vmem:[#allocation9 + $0x440] sm:$0xff]
          %v4607 = vld [vmem:[#allocation9 + $0x448] sm:$0xff]
          %v4608 = vld [vmem:[#allocation9 + $0x450] sm:$0xff]
          %v4609 = vld [vmem:[#allocation9 + $0x458] sm:$0xff]
          %v4610 = vld [vmem:[#allocation9 + $0x460] sm:$0xff]
          %v4611 = vld [vmem:[#allocation9 + $0x468] sm:$0xff]
          %v4612 = vld [vmem:[#allocation9 + $0x470] sm:$0xff]
          %v4613 = vld [vmem:[#allocation9 + $0x478] sm:$0xff]
          %v4614 = vld [vmem:[#allocation9 + $0x480] sm:$0xff]
          %v4615 = vld [vmem:[#allocation9 + $0x488] sm:$0xff]
          %v4616 = vld [vmem:[#allocation9 + $0x490] sm:$0xff]
          %v4617 = vld [vmem:[#allocation9 + $0x498] sm:$0xff]
          %v4618 = vld [vmem:[#allocation9 + $0x4a0] sm:$0xff]
          %v4619 = vld [vmem:[#allocation9 + $0x4a8] sm:$0xff]
          %v4620 = vld [vmem:[#allocation9 + $0x4b0] sm:$0xff]
          %v4621 = vld [vmem:[#allocation9 + $0x4b8] sm:$0xff]
          %v4622 = vld [vmem:[#allocation9 + $0x4c0] sm:$0xff]
          %v4623 = vld [vmem:[#allocation9 + $0x4c8] sm:$0xff]
          %v4624 = vld [vmem:[#allocation9 + $0x4d0] sm:$0xff]
          %v4625 = vld [vmem:[#allocation9 + $0x4d8] sm:$0xff]
          %v4626 = vld [vmem:[#allocation9 + $0x4e0] sm:$0xff]
          %v4627 = vld [vmem:[#allocation9 + $0x4e8] sm:$0xff]
          %v4628 = vld [vmem:[#allocation9 + $0x4f0] sm:$0xff]
          %v4629 = vld [vmem:[#allocation9 + $0x4f8] sm:$0xff]
          %v4630 = vld [vmem:[#allocation9 + $0x500] sm:$0xff]
          %v4631 = vld [vmem:[#allocation9 + $0x508] sm:$0xff]
          %v4632 = vld [vmem:[#allocation9 + $0x510] sm:$0xff]
          %v4633 = vld [vmem:[#allocation9 + $0x518] sm:$0xff]
          %v4634 = vld [vmem:[#allocation9 + $0x520] sm:$0xff]
          %v4635 = vld [vmem:[#allocation9 + $0x528] sm:$0xff]
          %v4636 = vld [vmem:[#allocation9 + $0x530] sm:$0xff]
          %v4637 = vld [vmem:[#allocation9 + $0x538] sm:$0xff]
          %v4638 = vld [vmem:[#allocation9 + $0x540] sm:$0xff]
          %v4639 = vld [vmem:[#allocation9 + $0x548] sm:$0xff]
          %v4640 = vld [vmem:[#allocation9 + $0x550] sm:$0xff]
          %v4641 = vld [vmem:[#allocation9 + $0x558] sm:$0xff]
          %v4642 = vld [vmem:[#allocation9 + $0x560] sm:$0xff]
          %v4643 = vld [vmem:[#allocation9 + $0x568] sm:$0xff]
          %v4644 = vld [vmem:[#allocation9 + $0x570] sm:$0xff]
          %v4645 = vld [vmem:[#allocation9 + $0x578] sm:$0xff]
          %v4646 = vld [vmem:[#allocation9 + $0x580] sm:$0xff]
          %v4647 = vld [vmem:[#allocation9 + $0x588] sm:$0xff]
          %v4648 = vld [vmem:[#allocation9 + $0x590] sm:$0xff]
          %v4649 = vld [vmem:[#allocation9 + $0x598] sm:$0xff]
          %v4650 = vld [vmem:[#allocation9 + $0x5a0] sm:$0xff]
          %v4651 = vld [vmem:[#allocation9 + $0x5a8] sm:$0xff]
          %v4652 = vld [vmem:[#allocation9 + $0x5b0] sm:$0xff]
          %v4653 = vld [vmem:[#allocation9 + $0x5b8] sm:$0xff]
          %v4654 = vld [vmem:[#allocation9 + $0x5c0] sm:$0xff]
          %v4655 = vld [vmem:[#allocation9 + $0x5c8] sm:$0xff]
          %v4656 = vld [vmem:[#allocation9 + $0x5d0] sm:$0xff]
          %v4657 = vld [vmem:[#allocation9 + $0x5d8] sm:$0xff]
          %v4658 = vld [vmem:[#allocation9 + $0x5e0] sm:$0xff]
          %v4659 = vld [vmem:[#allocation9 + $0x5e8] sm:$0xff]
          %v4660 = vld [vmem:[#allocation9 + $0x5f0] sm:$0xff]
          %v4661 = vld [vmem:[#allocation9 + $0x5f8] sm:$0xff]
          %v4662 = vld [vmem:[#allocation9 + $0x600] sm:$0xff]
          %v4663 = vld [vmem:[#allocation9 + $0x608] sm:$0xff]
          %v4664 = vld [vmem:[#allocation9 + $0x610] sm:$0xff]
          %v4665 = vld [vmem:[#allocation9 + $0x618] sm:$0xff]
          %v4666 = vld [vmem:[#allocation9 + $0x620] sm:$0xff]
          %v4667 = vld [vmem:[#allocation9 + $0x628] sm:$0xff]
          %v4668 = vld [vmem:[#allocation9 + $0x630] sm:$0xff]
          %v4669 = vld [vmem:[#allocation9 + $0x638] sm:$0xff]
          %v4670 = vld [vmem:[#allocation9 + $0x640] sm:$0xff]
          %v4671 = vld [vmem:[#allocation9 + $0x648] sm:$0xff]
          %v4672 = vld [vmem:[#allocation9 + $0x650] sm:$0xff]
          %v4673 = vld [vmem:[#allocation9 + $0x658] sm:$0xff]
          %v4674 = vld [vmem:[#allocation9 + $0x660] sm:$0xff]
          %v4675 = vld [vmem:[#allocation9 + $0x668] sm:$0xff]
          %v4676 = vld [vmem:[#allocation9 + $0x670] sm:$0xff]
          %v4677 = vld [vmem:[#allocation9 + $0x678] sm:$0xff]
          %v4678 = vld [vmem:[#allocation9 + $0x680] sm:$0xff]
          %v4679 = vld [vmem:[#allocation9 + $0x688] sm:$0xff]
          %v4680 = vld [vmem:[#allocation9 + $0x690] sm:$0xff]
          %v4681 = vld [vmem:[#allocation9 + $0x698] sm:$0xff]
          %v4682 = vld [vmem:[#allocation9 + $0x6a0] sm:$0xff]
          %v4683 = vld [vmem:[#allocation9 + $0x6a8] sm:$0xff]
          %v4684 = vld [vmem:[#allocation9 + $0x6b0] sm:$0xff]
          %v4685 = vld [vmem:[#allocation9 + $0x6b8] sm:$0xff]
          %v4686 = vld [vmem:[#allocation9 + $0x6c0] sm:$0xff]
          %v4687 = vld [vmem:[#allocation9 + $0x6c8] sm:$0xff]
          %v4688 = vld [vmem:[#allocation9 + $0x6d0] sm:$0xff]
          %v4689 = vld [vmem:[#allocation9 + $0x6d8] sm:$0xff]
          %v4690 = vld [vmem:[#allocation9 + $0x6e0] sm:$0xff]
          %v4691 = vld [vmem:[#allocation9 + $0x6e8] sm:$0xff]
          %v4692 = vld [vmem:[#allocation9 + $0x6f0] sm:$0xff]
          %v4693 = vld [vmem:[#allocation9 + $0x6f8] sm:$0xff]
          %v4694 = vld [vmem:[#allocation9 + $0x700] sm:$0xff]
          %v4695 = vld [vmem:[#allocation9 + $0x708] sm:$0xff]
          %v4696 = vld [vmem:[#allocation9 + $0x710] sm:$0xff]
          %v4697 = vld [vmem:[#allocation9 + $0x718] sm:$0xff]
          %v4698 = vld [vmem:[#allocation9 + $0x720] sm:$0xff]
          %v4699 = vld [vmem:[#allocation9 + $0x728] sm:$0xff]
          %v4700 = vld [vmem:[#allocation9 + $0x730] sm:$0xff]
          %v4701 = vld [vmem:[#allocation9 + $0x738] sm:$0xff]
          %v4702 = vld [vmem:[#allocation9 + $0x740] sm:$0xff]
          %v4703 = vld [vmem:[#allocation9 + $0x748] sm:$0xff]
          %v4704 = vld [vmem:[#allocation9 + $0x750] sm:$0xff]
          %v4705 = vld [vmem:[#allocation9 + $0x758] sm:$0xff]
          %v4706 = vld [vmem:[#allocation9 + $0x760] sm:$0xff]
          %v4707 = vld [vmem:[#allocation9 + $0x768] sm:$0xff]
          %v4708 = vld [vmem:[#allocation9 + $0x770] sm:$0xff]
          %v4709 = vld [vmem:[#allocation9 + $0x778] sm:$0xff]
          %v4710 = vld [vmem:[#allocation9 + $0x780] sm:$0xff]
          %v4711 = vld [vmem:[#allocation9 + $0x788] sm:$0xff]
          %v4712 = vld [vmem:[#allocation9 + $0x790] sm:$0xff]
          %v4713 = vld [vmem:[#allocation9 + $0x798] sm:$0xff]
          %v4714 = vld [vmem:[#allocation9 + $0x7a0] sm:$0xff]
          %v4715 = vld [vmem:[#allocation9 + $0x7a8] sm:$0xff]
          %v4716 = vld [vmem:[#allocation9 + $0x7b0] sm:$0xff]
          %v4717 = vld [vmem:[#allocation9 + $0x7b8] sm:$0xff]
          %v4718 = vld [vmem:[#allocation9 + $0x7c0] sm:$0xff]
          %v4719 = vld [vmem:[#allocation9 + $0x7c8] sm:$0xff]
          %v4720 = vld [vmem:[#allocation9 + $0x7d0] sm:$0xff]
          %v4721 = vld [vmem:[#allocation9 + $0x7d8] sm:$0xff]
          %v4722 = vld [vmem:[#allocation9 + $0x7e0] sm:$0xff]
          %v4723 = vld [vmem:[#allocation9 + $0x7e8] sm:$0xff]
          %v4724 = vld [vmem:[#allocation9 + $0x7f0] sm:$0xff]
          %v4725 = vld [vmem:[#allocation9 + $0x7f8] sm:$0xff]
          %v4726 = vld [vmem:[#allocation9 + $0x800] sm:$0xff]
          %v4727 = vld [vmem:[#allocation9 + $0x808] sm:$0xff]
          %v4728 = vld [vmem:[#allocation9 + $0x810] sm:$0xff]
          %v4729 = vld [vmem:[#allocation9 + $0x818] sm:$0xff]
          %v4730 = vld [vmem:[#allocation9 + $0x820] sm:$0xff]
          %v4731 = vld [vmem:[#allocation9 + $0x828] sm:$0xff]
          %v4732 = vld [vmem:[#allocation9 + $0x830] sm:$0xff]
          %v4733 = vld [vmem:[#allocation9 + $0x838] sm:$0xff]
          %v4734 = vld [vmem:[#allocation9 + $0x840] sm:$0xff]
          %v4735 = vld [vmem:[#allocation9 + $0x848] sm:$0xff]
          %v4736 = vld [vmem:[#allocation9 + $0x850] sm:$0xff]
          %v4737 = vld [vmem:[#allocation9 + $0x858] sm:$0xff]
          %v4738 = vld [vmem:[#allocation9 + $0x860] sm:$0xff]
          %v4739 = vld [vmem:[#allocation9 + $0x868] sm:$0xff]
          %v4740 = vld [vmem:[#allocation9 + $0x870] sm:$0xff]
          %v4741 = vld [vmem:[#allocation9 + $0x878] sm:$0xff]
          %v4742 = vld [vmem:[#allocation9 + $0x880] sm:$0xff]
          %v4743 = vld [vmem:[#allocation9 + $0x888] sm:$0xff]
          %v4744 = vld [vmem:[#allocation9 + $0x890] sm:$0xff]
          %v4745 = vld [vmem:[#allocation9 + $0x898] sm:$0xff]
          %v4746 = vld [vmem:[#allocation9 + $0x8a0] sm:$0xff]
          %v4747 = vld [vmem:[#allocation9 + $0x8a8] sm:$0xff]
          %v4748 = vld [vmem:[#allocation9 + $0x8b0] sm:$0xff]
          %v4749 = vld [vmem:[#allocation9 + $0x8b8] sm:$0xff]
          %v4750 = vld [vmem:[#allocation9 + $0x8c0] sm:$0xff]
          %v4751 = vld [vmem:[#allocation9 + $0x8c8] sm:$0xff]
          %v4752 = vld [vmem:[#allocation9 + $0x8d0] sm:$0xff]
          %v4753 = vld [vmem:[#allocation9 + $0x8d8] sm:$0xff]
          %v4754 = vld [vmem:[#allocation9 + $0x8e0] sm:$0xff]
          %v4755 = vld [vmem:[#allocation9 + $0x8e8] sm:$0xff]
          %v4756 = vld [vmem:[#allocation9 + $0x8f0] sm:$0xff]
          %v4757 = vld [vmem:[#allocation9 + $0x8f8] sm:$0xff]
          %v4758 = vld [vmem:[#allocation9 + $0x900] sm:$0xff]
          %v4759 = vld [vmem:[#allocation9 + $0x908] sm:$0xff]
          %v4760 = vld [vmem:[#allocation9 + $0x910] sm:$0xff]
          %v4761 = vld [vmem:[#allocation9 + $0x918] sm:$0xff]
          %v4762 = vld [vmem:[#allocation9 + $0x920] sm:$0xff]
          %v4763 = vld [vmem:[#allocation9 + $0x928] sm:$0xff]
          %v4764 = vld [vmem:[#allocation9 + $0x930] sm:$0xff]
          %v4765 = vld [vmem:[#allocation9 + $0x938] sm:$0xff]
          %v4766 = vld [vmem:[#allocation9 + $0x940] sm:$0xff]
          %v4767 = vld [vmem:[#allocation9 + $0x948] sm:$0xff]
          %v4768 = vld [vmem:[#allocation9 + $0x950] sm:$0xff]
          %v4769 = vld [vmem:[#allocation9 + $0x958] sm:$0xff]
          %v4770 = vld [vmem:[#allocation9 + $0x960] sm:$0xff]
          %v4771 = vld [vmem:[#allocation9 + $0x968] sm:$0xff]
          %v4772 = vld [vmem:[#allocation9 + $0x970] sm:$0xff]
          %v4773 = vld [vmem:[#allocation9 + $0x978] sm:$0xff]
          %v4774 = vld [vmem:[#allocation9 + $0x980] sm:$0xff]
          %v4775 = vld [vmem:[#allocation9 + $0x988] sm:$0xff]
          %v4776 = vld [vmem:[#allocation9 + $0x990] sm:$0xff]
          %v4777 = vld [vmem:[#allocation9 + $0x998] sm:$0xff]
          %v4778 = vld [vmem:[#allocation9 + $0x9a0] sm:$0xff]
          %v4779 = vld [vmem:[#allocation9 + $0x9a8] sm:$0xff]
          %v4780 = vld [vmem:[#allocation9 + $0x9b0] sm:$0xff]
          %v4781 = vld [vmem:[#allocation9 + $0x9b8] sm:$0xff]
          %v4782 = vld [vmem:[#allocation9 + $0x9c0] sm:$0xff]
          %v4783 = vld [vmem:[#allocation9 + $0x9c8] sm:$0xff]
          %v4784 = vld [vmem:[#allocation9 + $0x9d0] sm:$0xff]
          %v4785 = vld [vmem:[#allocation9 + $0x9d8] sm:$0xff]
          %v4786 = vld [vmem:[#allocation9 + $0x9e0] sm:$0xff]
          %v4787 = vld [vmem:[#allocation9 + $0x9e8] sm:$0xff]
          %v4788 = vld [vmem:[#allocation9 + $0x9f0] sm:$0xff]
          %v4789 = vld [vmem:[#allocation9 + $0x9f8] sm:$0xff]
          %v4790 = vld [vmem:[#allocation9 + $0xa00] sm:$0xff]
          %v4791 = vld [vmem:[#allocation9 + $0xa08] sm:$0xff]
          %v4792 = vld [vmem:[#allocation9 + $0xa10] sm:$0xff]
          %v4793 = vld [vmem:[#allocation9 + $0xa18] sm:$0xff]
          %v4794 = vld [vmem:[#allocation9 + $0xa20] sm:$0xff]
          %v4795 = vld [vmem:[#allocation9 + $0xa28] sm:$0xff]
          %v4796 = vld [vmem:[#allocation9 + $0xa30] sm:$0xff]
          %v4797 = vld [vmem:[#allocation9 + $0xa38] sm:$0xff]
          %v4798 = vld [vmem:[#allocation9 + $0xa40] sm:$0xff]
          %v4799 = vld [vmem:[#allocation9 + $0xa48] sm:$0xff]
          %v4800 = vld [vmem:[#allocation9 + $0xa50] sm:$0xff]
          %v4801 = vld [vmem:[#allocation9 + $0xa58] sm:$0xff]
          %v4802 = vld [vmem:[#allocation9 + $0xa60] sm:$0xff]
          %v4803 = vld [vmem:[#allocation9 + $0xa68] sm:$0xff]
          %v4804 = vld [vmem:[#allocation9 + $0xa70] sm:$0xff]
          %v4805 = vld [vmem:[#allocation9 + $0xa78] sm:$0xff]
          %v4806 = vld [vmem:[#allocation9 + $0xa80] sm:$0xff]
          %v4807 = vld [vmem:[#allocation9 + $0xa88] sm:$0xff]
          %v4808 = vld [vmem:[#allocation9 + $0xa90] sm:$0xff]
          %v4809 = vld [vmem:[#allocation9 + $0xa98] sm:$0xff]
          %v4810 = vld [vmem:[#allocation9 + $0xaa0] sm:$0xff]
          %v4811 = vld [vmem:[#allocation9 + $0xaa8] sm:$0xff]
          %v4812 = vld [vmem:[#allocation9 + $0xab0] sm:$0xff]
          %v4813 = vld [vmem:[#allocation9 + $0xab8] sm:$0xff]
          %v4814 = vld [vmem:[#allocation9 + $0xac0] sm:$0xff]
          %v4815 = vld [vmem:[#allocation9 + $0xac8] sm:$0xff]
          %v4816 = vld [vmem:[#allocation9 + $0xad0] sm:$0xff]
          %v4817 = vld [vmem:[#allocation9 + $0xad8] sm:$0xff]
          %v4818 = vld [vmem:[#allocation9 + $0xae0] sm:$0xff]
          %v4819 = vld [vmem:[#allocation9 + $0xae8] sm:$0xff]
          %v4820 = vld [vmem:[#allocation9 + $0xaf0] sm:$0xff]
          %v4821 = vld [vmem:[#allocation9 + $0xaf8] sm:$0xff]
          %v4822 = vld [vmem:[#allocation9 + $0xb00] sm:$0xff]
          %v4823 = vld [vmem:[#allocation9 + $0xb08] sm:$0xff]
          %v4824 = vld [vmem:[#allocation9 + $0xb10] sm:$0xff]
          %v4825 = vld [vmem:[#allocation9 + $0xb18] sm:$0xff]
          %v4826 = vld [vmem:[#allocation9 + $0xb20] sm:$0xff]
          %v4827 = vld [vmem:[#allocation9 + $0xb28] sm:$0xff]
          %v4828 = vld [vmem:[#allocation9 + $0xb30] sm:$0xff]
          %v4829 = vld [vmem:[#allocation9 + $0xb38] sm:$0xff]
          %v4830 = vld [vmem:[#allocation9 + $0xb40] sm:$0xff]
          %v4831 = vld [vmem:[#allocation9 + $0xb48] sm:$0xff]
          %v4832 = vld [vmem:[#allocation9 + $0xb50] sm:$0xff]
          %v4833 = vld [vmem:[#allocation9 + $0xb58] sm:$0xff]
          %v4834 = vld [vmem:[#allocation9 + $0xb60] sm:$0xff]
          %v4835 = vld [vmem:[#allocation9 + $0xb68] sm:$0xff]
          %v4836 = vld [vmem:[#allocation9 + $0xb70] sm:$0xff]
          %v4837 = vld [vmem:[#allocation9 + $0xb78] sm:$0xff]
          %v4838 = vld [vmem:[#allocation9 + $0xb80] sm:$0xff]
          %v4839 = vld [vmem:[#allocation9 + $0xb88] sm:$0xff]
          %v4840 = vld [vmem:[#allocation9 + $0xb90] sm:$0xff]
          %v4841 = vld [vmem:[#allocation9 + $0xb98] sm:$0xff]
          %v4842 = vld [vmem:[#allocation9 + $0xba0] sm:$0xff]
          %v4843 = vld [vmem:[#allocation9 + $0xba8] sm:$0xff]
          %v4844 = vld [vmem:[#allocation9 + $0xbb0] sm:$0xff]
          %v4845 = vld [vmem:[#allocation9 + $0xbb8] sm:$0xff]
          %v4846 = vld [vmem:[#allocation9 + $0xbc0] sm:$0xff]
          %v4847 = vld [vmem:[#allocation9 + $0xbc8] sm:$0xff]
          %v4848 = vld [vmem:[#allocation9 + $0xbd0] sm:$0xff]
          %v4849 = vld [vmem:[#allocation9 + $0xbd8] sm:$0xff]
          %v4850 = vld [vmem:[#allocation9 + $0xbe0] sm:$0xff]
          %v4851 = vld [vmem:[#allocation9 + $0xbe8] sm:$0xff]
          %v4852 = vld [vmem:[#allocation9 + $0xbf0] sm:$0xff]
          %v4853 = vld [vmem:[#allocation9 + $0xbf8] sm:$0xff]
          %v4854 = vld [vmem:[#allocation9 + $0xc00] sm:$0xff]
          %v4855 = vld [vmem:[#allocation9 + $0xc08] sm:$0xff]
          %v4856 = vld [vmem:[#allocation9 + $0xc10] sm:$0xff]
          %v4857 = vld [vmem:[#allocation9 + $0xc18] sm:$0xff]
          %v4858 = vld [vmem:[#allocation9 + $0xc20] sm:$0xff]
          %v4859 = vld [vmem:[#allocation9 + $0xc28] sm:$0xff]
          %v4860 = vld [vmem:[#allocation9 + $0xc30] sm:$0xff]
          %v4861 = vld [vmem:[#allocation9 + $0xc38] sm:$0xff]
          %v4862 = vld [vmem:[#allocation9 + $0xc40] sm:$0xff]
          %v4863 = vld [vmem:[#allocation9 + $0xc48] sm:$0xff]
          %v4864 = vld [vmem:[#allocation9 + $0xc50] sm:$0xff]
          %v4865 = vld [vmem:[#allocation9 + $0xc58] sm:$0xff]
          %v4866 = vld [vmem:[#allocation9 + $0xc60] sm:$0xff]
          %v4867 = vld [vmem:[#allocation9 + $0xc68] sm:$0xff]
          %v4868 = vld [vmem:[#allocation9 + $0xc70] sm:$0xff]
          %v4869 = vld [vmem:[#allocation9 + $0xc78] sm:$0xff]
          %v4870 = vld [vmem:[#allocation9 + $0xc80] sm:$0xff]
          %v4871 = vld [vmem:[#allocation9 + $0xc88] sm:$0xff]
          %v4872 = vld [vmem:[#allocation9 + $0xc90] sm:$0xff]
          %v4873 = vld [vmem:[#allocation9 + $0xc98] sm:$0xff]
          %v4874 = vld [vmem:[#allocation9 + $0xca0] sm:$0xff]
          %v4875 = vld [vmem:[#allocation9 + $0xca8] sm:$0xff]
          %v4876 = vld [vmem:[#allocation9 + $0xcb0] sm:$0xff]
          %v4877 = vld [vmem:[#allocation9 + $0xcb8] sm:$0xff]
          %v4878 = vld [vmem:[#allocation9 + $0xcc0] sm:$0xff]
          %v4879 = vld [vmem:[#allocation9 + $0xcc8] sm:$0xff]
          %v4880 = vld [vmem:[#allocation9 + $0xcd0] sm:$0xff]
          %v4881 = vld [vmem:[#allocation9 + $0xcd8] sm:$0xff]
          %v4882 = vld [vmem:[#allocation9 + $0xce0] sm:$0xff]
          %v4883 = vld [vmem:[#allocation9 + $0xce8] sm:$0xff]
          %v4884 = vld [vmem:[#allocation9 + $0xcf0] sm:$0xff]
          %v4885 = vld [vmem:[#allocation9 + $0xcf8] sm:$0xff]
          %v4886 = vld [vmem:[#allocation9 + $0xd00] sm:$0xff]
          %v4887 = vld [vmem:[#allocation9 + $0xd08] sm:$0xff]
          %v4888 = vld [vmem:[#allocation9 + $0xd10] sm:$0xff]
          %v4889 = vld [vmem:[#allocation9 + $0xd18] sm:$0xff]
          %v4890 = vld [vmem:[#allocation9 + $0xd20] sm:$0xff]
          %v4891 = vld [vmem:[#allocation9 + $0xd28] sm:$0xff]
          %v4892 = vld [vmem:[#allocation9 + $0xd30] sm:$0xff]
          %v4893 = vld [vmem:[#allocation9 + $0xd38] sm:$0xff]
          %v4894 = vld [vmem:[#allocation9 + $0xd40] sm:$0xff]
          %v4895 = vld [vmem:[#allocation9 + $0xd48] sm:$0xff]
          %v4896 = vld [vmem:[#allocation9 + $0xd50] sm:$0xff]
          %v4897 = vld [vmem:[#allocation9 + $0xd58] sm:$0xff]
          %v4898 = vld [vmem:[#allocation9 + $0xd60] sm:$0xff]
          %v4899 = vld [vmem:[#allocation9 + $0xd68] sm:$0xff]
          %v4900 = vld [vmem:[#allocation9 + $0xd70] sm:$0xff]
          %v4901 = vld [vmem:[#allocation9 + $0xd78] sm:$0xff]
          %v4902 = vld [vmem:[#allocation9 + $0xd80] sm:$0xff]
          %v4903 = vld [vmem:[#allocation9 + $0xd88] sm:$0xff]
          %v4904 = vld [vmem:[#allocation9 + $0xd90] sm:$0xff]
          %v4905 = vld [vmem:[#allocation9 + $0xd98] sm:$0xff]
          %v4906 = vld [vmem:[#allocation9 + $0xda0] sm:$0xff]
          %v4907 = vld [vmem:[#allocation9 + $0xda8] sm:$0xff]
          %v4908 = vld [vmem:[#allocation9 + $0xdb0] sm:$0xff]
          %v4909 = vld [vmem:[#allocation9 + $0xdb8] sm:$0xff]
          %v4910 = vld [vmem:[#allocation9 + $0xdc0] sm:$0xff]
          %v4911 = vld [vmem:[#allocation9 + $0xdc8] sm:$0xff]
          %v4912 = vld [vmem:[#allocation9 + $0xdd0] sm:$0xff]
          %v4913 = vld [vmem:[#allocation9 + $0xdd8] sm:$0xff]
          %v4914 = vld [vmem:[#allocation9 + $0xde0] sm:$0xff]
          %v4915 = vld [vmem:[#allocation9 + $0xde8] sm:$0xff]
          %v4916 = vld [vmem:[#allocation9 + $0xdf0] sm:$0xff]
          %v4917 = vld [vmem:[#allocation9 + $0xdf8] sm:$0xff]
          %v4918 = vld [vmem:[#allocation9 + $0xe00] sm:$0xff]
          %v4919 = vld [vmem:[#allocation9 + $0xe08] sm:$0xff]
          %v4920 = vld [vmem:[#allocation9 + $0xe10] sm:$0xff]
          %v4921 = vld [vmem:[#allocation9 + $0xe18] sm:$0xff]
          %v4922 = vld [vmem:[#allocation9 + $0xe20] sm:$0xff]
          %v4923 = vld [vmem:[#allocation9 + $0xe28] sm:$0xff]
          %v4924 = vld [vmem:[#allocation9 + $0xe30] sm:$0xff]
          %v4925 = vld [vmem:[#allocation9 + $0xe38] sm:$0xff]
          %v4926 = vld [vmem:[#allocation9 + $0xe40] sm:$0xff]
          %v4927 = vld [vmem:[#allocation9 + $0xe48] sm:$0xff]
          %v4928 = vld [vmem:[#allocation9 + $0xe50] sm:$0xff]
          %v4929 = vld [vmem:[#allocation9 + $0xe58] sm:$0xff]
          %v4930 = vld [vmem:[#allocation9 + $0xe60] sm:$0xff]
          %v4931 = vld [vmem:[#allocation9 + $0xe68] sm:$0xff]
          %v4932 = vld [vmem:[#allocation9 + $0xe70] sm:$0xff]
          %v4933 = vld [vmem:[#allocation9 + $0xe78] sm:$0xff]
          %v4934 = vld [vmem:[#allocation9 + $0xe80] sm:$0xff]
          %v4935 = vld [vmem:[#allocation9 + $0xe88] sm:$0xff]
          %v4936 = vld [vmem:[#allocation9 + $0xe90] sm:$0xff]
          %v4937 = vld [vmem:[#allocation9 + $0xe98] sm:$0xff]
          %v4938 = vld [vmem:[#allocation9 + $0xea0] sm:$0xff]
          %v4939 = vld [vmem:[#allocation9 + $0xea8] sm:$0xff]
          %v4940 = vld [vmem:[#allocation9 + $0xeb0] sm:$0xff]
          %v4941 = vld [vmem:[#allocation9 + $0xeb8] sm:$0xff]
          %v4942 = vld [vmem:[#allocation9 + $0xec0] sm:$0xff]
          %v4943 = vld [vmem:[#allocation9 + $0xec8] sm:$0xff]
          %v4944 = vld [vmem:[#allocation9 + $0xed0] sm:$0xff]
          %v4945 = vld [vmem:[#allocation9 + $0xed8] sm:$0xff]
          %v4946 = vld [vmem:[#allocation9 + $0xee0] sm:$0xff]
          %v4947 = vld [vmem:[#allocation9 + $0xee8] sm:$0xff]
          %v4948 = vld [vmem:[#allocation9 + $0xef0] sm:$0xff]
          %v4949 = vld [vmem:[#allocation9 + $0xef8] sm:$0xff]
          %v4950 = vld [vmem:[#allocation9 + $0xf00] sm:$0xff]
          %v4951 = vld [vmem:[#allocation9 + $0xf08] sm:$0xff]
          %v4952 = vld [vmem:[#allocation9 + $0xf10] sm:$0xff]
          %v4953 = vld [vmem:[#allocation9 + $0xf18] sm:$0xff]
          %v4954 = vld [vmem:[#allocation9 + $0xf20] sm:$0xff]
          %v4955 = vld [vmem:[#allocation9 + $0xf28] sm:$0xff]
          %v4956 = vld [vmem:[#allocation9 + $0xf30] sm:$0xff]
          %v4957 = vld [vmem:[#allocation9 + $0xf38] sm:$0xff]
          %v4958 = vld [vmem:[#allocation9 + $0xf40] sm:$0xff]
          %v4959 = vld [vmem:[#allocation9 + $0xf48] sm:$0xff]
          %v4960 = vld [vmem:[#allocation9 + $0xf50] sm:$0xff]
          %v4961 = vld [vmem:[#allocation9 + $0xf58] sm:$0xff]
          %v4962 = vld [vmem:[#allocation9 + $0xf60] sm:$0xff]
          %v4963 = vld [vmem:[#allocation9 + $0xf68] sm:$0xff]
          %v4964 = vld [vmem:[#allocation9 + $0xf70] sm:$0xff]
          %v4965 = vld [vmem:[#allocation9 + $0xf78] sm:$0xff]
          %v4966 = vld [vmem:[#allocation9 + $0xf80] sm:$0xff]
          %v4967 = vld [vmem:[#allocation9 + $0xf88] sm:$0xff]
          %v4968 = vld [vmem:[#allocation9 + $0xf90] sm:$0xff]
          %v4969 = vld [vmem:[#allocation9 + $0xf98] sm:$0xff]
          %v4970 = vld [vmem:[#allocation9 + $0xfa0] sm:$0xff]
          %v4971 = vld [vmem:[#allocation9 + $0xfa8] sm:$0xff]
          %v4972 = vld [vmem:[#allocation9 + $0xfb0] sm:$0xff]
          %v4973 = vld [vmem:[#allocation9 + $0xfb8] sm:$0xff]
          %v4974 = vld [vmem:[#allocation9 + $0xfc0] sm:$0xff]
          %v4975 = vld [vmem:[#allocation9 + $0xfc8] sm:$0xff]
          %v4976 = vld [vmem:[#allocation9 + $0xfd0] sm:$0xff]
          %v4977 = vld [vmem:[#allocation9 + $0xfd8] sm:$0xff]
          %v4978 = vld [vmem:[#allocation9 + $0xfe0] sm:$0xff]
          %v4979 = vld [vmem:[#allocation9 + $0xfe8] sm:$0xff]
          %v4980 = vld [vmem:[#allocation9 + $0xff0] sm:$0xff]
          %v4981 = vld [vmem:[#allocation9 + $0xff8] sm:$0xff]
          %v4982 = vld [vmem:[#allocation9 + $0x1000] sm:$0xff]
          %v4983 = vld [vmem:[#allocation9 + $0x1008] sm:$0xff]
          %v4984 = vld [vmem:[#allocation9 + $0x1010] sm:$0xff]
          %v4985 = vld [vmem:[#allocation9 + $0x1018] sm:$0xff]
          %v4986 = vld [vmem:[#allocation9 + $0x1020] sm:$0xff]
          %v4987 = vld [vmem:[#allocation9 + $0x1028] sm:$0xff]
          %v4988 = vld [vmem:[#allocation9 + $0x1030] sm:$0xff]
          %v4989 = vld [vmem:[#allocation9 + $0x1038] sm:$0xff]
          %v4990 = vld [vmem:[#allocation9 + $0x1040] sm:$0xff]
          %v4991 = vld [vmem:[#allocation9 + $0x1048] sm:$0xff]
          %v4992 = vld [vmem:[#allocation9 + $0x1050] sm:$0xff]
          %v4993 = vld [vmem:[#allocation9 + $0x1058] sm:$0xff]
          %v4994 = vld [vmem:[#allocation9 + $0x1060] sm:$0xff]
          %v4995 = vld [vmem:[#allocation9 + $0x1068] sm:$0xff]
          %v4996 = vld [vmem:[#allocation9 + $0x1070] sm:$0xff]
          %v4997 = vld [vmem:[#allocation9 + $0x1078] sm:$0xff]
          %v4998 = vld [vmem:[#allocation9 + $0x1080] sm:$0xff]
          %v4999 = vld [vmem:[#allocation9 + $0x1088] sm:$0xff]
          %v5000 = vld [vmem:[#allocation9 + $0x1090] sm:$0xff]
          %v5001 = vld [vmem:[#allocation9 + $0x1098] sm:$0xff]
          %v5002 = vld [vmem:[#allocation9 + $0x10a0] sm:$0xff]
          %v5003 = vld [vmem:[#allocation9 + $0x10a8] sm:$0xff]
          %v5004 = vld [vmem:[#allocation9 + $0x10b0] sm:$0xff]
          %v5005 = vld [vmem:[#allocation9 + $0x10b8] sm:$0xff]
          %v5006 = vld [vmem:[#allocation9 + $0x10c0] sm:$0xff]
          %v5007 = vld [vmem:[#allocation9 + $0x10c8] sm:$0xff]
          %v5008 = vld [vmem:[#allocation9 + $0x10d0] sm:$0xff]
          %v5009 = vld [vmem:[#allocation9 + $0x10d8] sm:$0xff]
          %v5010 = vld [vmem:[#allocation9 + $0x10e0] sm:$0xff]
          %v5011 = vld [vmem:[#allocation9 + $0x10e8] sm:$0xff]
          %v5012 = vld [vmem:[#allocation9 + $0x10f0] sm:$0xff]
          %v5013 = vld [vmem:[#allocation9 + $0x10f8] sm:$0xff]
          %v5014 = vld [vmem:[#allocation9 + $0x1100] sm:$0xff]
          %v5015 = vld [vmem:[#allocation9 + $0x1108] sm:$0xff]
          %v5016 = vld [vmem:[#allocation9 + $0x1110] sm:$0xff]
          %v5017 = vld [vmem:[#allocation9 + $0x1118] sm:$0xff]
          %v5018 = vld [vmem:[#allocation9 + $0x1120] sm:$0xff]
          %v5019 = vld [vmem:[#allocation9 + $0x1128] sm:$0xff]
          %v5020 = vld [vmem:[#allocation9 + $0x1130] sm:$0xff]
          %v5021 = vld [vmem:[#allocation9 + $0x1138] sm:$0xff]
          %v5022 = vld [vmem:[#allocation9 + $0x1140] sm:$0xff]
          %v5023 = vld [vmem:[#allocation9 + $0x1148] sm:$0xff]
          %v5024 = vld [vmem:[#allocation9 + $0x1150] sm:$0xff]
          %v5025 = vld [vmem:[#allocation9 + $0x1158] sm:$0xff]
          %v5026 = vld [vmem:[#allocation9 + $0x1160] sm:$0xff]
          %v5027 = vld [vmem:[#allocation9 + $0x1168] sm:$0xff]
          %v5028 = vld [vmem:[#allocation9 + $0x1170] sm:$0xff]
          %v5029 = vld [vmem:[#allocation9 + $0x1178] sm:$0xff]
          %v5030 = vld [vmem:[#allocation9 + $0x1180] sm:$0xff]
          %v5031 = vld [vmem:[#allocation9 + $0x1188] sm:$0xff]
          %v5032 = vld [vmem:[#allocation9 + $0x1190] sm:$0xff]
          %v5033 = vld [vmem:[#allocation9 + $0x1198] sm:$0xff]
          %v5034 = vld [vmem:[#allocation9 + $0x11a0] sm:$0xff]
          %v5035 = vld [vmem:[#allocation9 + $0x11a8] sm:$0xff]
          %v5036 = vld [vmem:[#allocation9 + $0x11b0] sm:$0xff]
          %v5037 = vld [vmem:[#allocation9 + $0x11b8] sm:$0xff]
          %v5038 = vld [vmem:[#allocation9 + $0x11c0] sm:$0xff]
          %v5039 = vld [vmem:[#allocation9 + $0x11c8] sm:$0xff]
          %v5040 = vld [vmem:[#allocation9 + $0x11d0] sm:$0xff]
          %v5041 = vld [vmem:[#allocation9 + $0x11d8] sm:$0xff]
          %v5042 = vld [vmem:[#allocation9 + $0x11e0] sm:$0xff]
          %v5043 = vld [vmem:[#allocation9 + $0x11e8] sm:$0xff]
          %v5044 = vld [vmem:[#allocation9 + $0x11f0] sm:$0xff]
          %v5045 = vld [vmem:[#allocation9 + $0x11f8] sm:$0xff]
          %v5046 = vld [vmem:[#allocation9 + $0x1200] sm:$0xff]
          %v5047 = vld [vmem:[#allocation9 + $0x1208] sm:$0xff]
          %v5048 = vld [vmem:[#allocation9 + $0x1210] sm:$0xff]
          %v5049 = vld [vmem:[#allocation9 + $0x1218] sm:$0xff]
          %v5050 = vld [vmem:[#allocation9 + $0x1220] sm:$0xff]
          %v5051 = vld [vmem:[#allocation9 + $0x1228] sm:$0xff]
          %v5052 = vld [vmem:[#allocation9 + $0x1230] sm:$0xff]
          %v5053 = vld [vmem:[#allocation9 + $0x1238] sm:$0xff]
          %v5054 = vld [vmem:[#allocation9 + $0x1240] sm:$0xff]
          %v5055 = vld [vmem:[#allocation9 + $0x1248] sm:$0xff]
          %v5056 = vld [vmem:[#allocation9 + $0x1250] sm:$0xff]
          %v5057 = vld [vmem:[#allocation9 + $0x1258] sm:$0xff]
          %v5058 = vld [vmem:[#allocation9 + $0x1260] sm:$0xff]
          %v5059 = vld [vmem:[#allocation9 + $0x1268] sm:$0xff]
          %v5060 = vld [vmem:[#allocation9 + $0x1270] sm:$0xff]
          %v5061 = vld [vmem:[#allocation9 + $0x1278] sm:$0xff]
          %v5062 = vld [vmem:[#allocation9 + $0x1280] sm:$0xff]
          %v5063 = vld [vmem:[#allocation9 + $0x1288] sm:$0xff]
          %v5064 = vld [vmem:[#allocation9 + $0x1290] sm:$0xff]
          %v5065 = vld [vmem:[#allocation9 + $0x1298] sm:$0xff]
          %v5066 = vld [vmem:[#allocation9 + $0x12a0] sm:$0xff]
          %v5067 = vld [vmem:[#allocation9 + $0x12a8] sm:$0xff]
          %v5068 = vld [vmem:[#allocation9 + $0x12b0] sm:$0xff]
          %v5069 = vld [vmem:[#allocation9 + $0x12b8] sm:$0xff]
          %v5070 = vld [vmem:[#allocation9 + $0x12c0] sm:$0xff]
          %v5071 = vld [vmem:[#allocation9 + $0x12c8] sm:$0xff]
          %v5072 = vld [vmem:[#allocation9 + $0x12d0] sm:$0xff]
          %v5073 = vld [vmem:[#allocation9 + $0x12d8] sm:$0xff]
          %v5074 = vld [vmem:[#allocation9 + $0x12e0] sm:$0xff]
          %v5075 = vld [vmem:[#allocation9 + $0x12e8] sm:$0xff]
          %v5076 = vld [vmem:[#allocation9 + $0x12f0] sm:$0xff]
          %v5077 = vld [vmem:[#allocation9 + $0x12f8] sm:$0xff]
          %v5078 = vld [vmem:[#allocation9 + $0x1300] sm:$0xff]
          %v5079 = vld [vmem:[#allocation9 + $0x1308] sm:$0xff]
          %v5080 = vld [vmem:[#allocation9 + $0x1310] sm:$0xff]
          %v5081 = vld [vmem:[#allocation9 + $0x1318] sm:$0xff]
          %v5082 = vld [vmem:[#allocation9 + $0x1320] sm:$0xff]
          %v5083 = vld [vmem:[#allocation9 + $0x1328] sm:$0xff]
          %v5084 = vld [vmem:[#allocation9 + $0x1330] sm:$0xff]
          %v5085 = vld [vmem:[#allocation9 + $0x1338] sm:$0xff]
          %v5086 = vld [vmem:[#allocation9 + $0x1340] sm:$0xff]
          %v5087 = vld [vmem:[#allocation9 + $0x1348] sm:$0xff]
          %v5088 = vld [vmem:[#allocation9 + $0x1350] sm:$0xff]
          %v5089 = vld [vmem:[#allocation9 + $0x1358] sm:$0xff]
          %v5090 = vld [vmem:[#allocation9 + $0x1360] sm:$0xff]
          %v5091 = vld [vmem:[#allocation9 + $0x1368] sm:$0xff]
          %v5092 = vld [vmem:[#allocation9 + $0x1370] sm:$0xff]
          %v5093 = vld [vmem:[#allocation9 + $0x1378] sm:$0xff]
          %v5094 = vld [vmem:[#allocation9 + $0x1380] sm:$0xff]
          %v5095 = vld [vmem:[#allocation9 + $0x1388] sm:$0xff]
          %v5096 = vld [vmem:[#allocation9 + $0x1390] sm:$0xff]
          %v5097 = vld [vmem:[#allocation9 + $0x1398] sm:$0xff]
          %v5098 = vld [vmem:[#allocation9 + $0x13a0] sm:$0xff]
          %v5099 = vld [vmem:[#allocation9 + $0x13a8] sm:$0xff]
          %v5100 = vld [vmem:[#allocation9 + $0x13b0] sm:$0xff]
          %v5101 = vld [vmem:[#allocation9 + $0x13b8] sm:$0xff]
          %v5102 = vld [vmem:[#allocation9 + $0x13c0] sm:$0xff]
          %v5103 = vld [vmem:[#allocation9 + $0x13c8] sm:$0xff]
          %v5104 = vld [vmem:[#allocation9 + $0x13d0] sm:$0xff]
          %v5105 = vld [vmem:[#allocation9 + $0x13d8] sm:$0xff]
          %v5106 = vld [vmem:[#allocation9 + $0x13e0] sm:$0xff]
          %v5107 = vld [vmem:[#allocation9 + $0x13e8] sm:$0xff]
          %v5108 = vld [vmem:[#allocation9 + $0x13f0] sm:$0xff]
          %v5109 = vld [vmem:[#allocation9 + $0x13f8] sm:$0xff]
          %v5110 = vld [vmem:[#allocation9 + $0x1400] sm:$0xff]
          %v5111 = vld [vmem:[#allocation9 + $0x1408] sm:$0xff]
          %v5112 = vld [vmem:[#allocation9 + $0x1410] sm:$0xff]
          %v5113 = vld [vmem:[#allocation9 + $0x1418] sm:$0xff]
          %v5114 = vld [vmem:[#allocation9 + $0x1420] sm:$0xff]
          %v5115 = vld [vmem:[#allocation9 + $0x1428] sm:$0xff]
          %v5116 = vld [vmem:[#allocation9 + $0x1430] sm:$0xff]
          %v5117 = vld [vmem:[#allocation9 + $0x1438] sm:$0xff]
          %v5118 = vld [vmem:[#allocation9 + $0x1440] sm:$0xff]
          %v5119 = vld [vmem:[#allocation9 + $0x1448] sm:$0xff]
          %v5120 = vld [vmem:[#allocation9 + $0x1450] sm:$0xff]
          %v5121 = vld [vmem:[#allocation9 + $0x1458] sm:$0xff]
          %v5122 = vld [vmem:[#allocation9 + $0x1460] sm:$0xff]
          %v5123 = vld [vmem:[#allocation9 + $0x1468] sm:$0xff]
          %v5124 = vld [vmem:[#allocation9 + $0x1470] sm:$0xff]
          %v5125 = vld [vmem:[#allocation9 + $0x1478] sm:$0xff]
          %v5126 = vld [vmem:[#allocation9 + $0x1480] sm:$0xff]
          %v5127 = vld [vmem:[#allocation9 + $0x1488] sm:$0xff]
          %v5128 = vld [vmem:[#allocation9 + $0x1490] sm:$0xff]
          %v5129 = vld [vmem:[#allocation9 + $0x1498] sm:$0xff]
          %v5130 = vld [vmem:[#allocation9 + $0x14a0] sm:$0xff]
          %v5131 = vld [vmem:[#allocation9 + $0x14a8] sm:$0xff]
          %v5132 = vld [vmem:[#allocation9 + $0x14b0] sm:$0xff]
          %v5133 = vld [vmem:[#allocation9 + $0x14b8] sm:$0xff]
          %v5134 = vld [vmem:[#allocation9 + $0x14c0] sm:$0xff]
          %v5135 = vld [vmem:[#allocation9 + $0x14c8] sm:$0xff]
          %v5136 = vld [vmem:[#allocation9 + $0x14d0] sm:$0xff]
          %v5137 = vld [vmem:[#allocation9 + $0x14d8] sm:$0xff]
          %v5138 = vld [vmem:[#allocation9 + $0x14e0] sm:$0xff]
          %v5139 = vld [vmem:[#allocation9 + $0x14e8] sm:$0xff]
          %v5140 = vld [vmem:[#allocation9 + $0x14f0] sm:$0xff]
          %v5141 = vld [vmem:[#allocation9 + $0x14f8] sm:$0xff]
          %v5142 = vld [vmem:[#allocation9 + $0x1500] sm:$0xff]
          %v5143 = vld [vmem:[#allocation9 + $0x1508] sm:$0xff]
          %v5144 = vld [vmem:[#allocation9 + $0x1510] sm:$0xff]
          %v5145 = vld [vmem:[#allocation9 + $0x1518] sm:$0xff]
          %v5146 = vld [vmem:[#allocation9 + $0x1520] sm:$0xff]
          %v5147 = vld [vmem:[#allocation9 + $0x1528] sm:$0xff]
          %v5148 = vld [vmem:[#allocation9 + $0x1530] sm:$0xff]
          %v5149 = vld [vmem:[#allocation9 + $0x1538] sm:$0xff]
          %v5150 = vld [vmem:[#allocation9 + $0x1540] sm:$0xff]
          %v5151 = vld [vmem:[#allocation9 + $0x1548] sm:$0xff]
          %v5152 = vld [vmem:[#allocation9 + $0x1550] sm:$0xff]
          %v5153 = vld [vmem:[#allocation9 + $0x1558] sm:$0xff]
          %v5154 = vld [vmem:[#allocation9 + $0x1560] sm:$0xff]
          %v5155 = vld [vmem:[#allocation9 + $0x1568] sm:$0xff]
          %v5156 = vld [vmem:[#allocation9 + $0x1570] sm:$0xff]
          %v5157 = vld [vmem:[#allocation9 + $0x1578] sm:$0xff]
          %v5158 = vld [vmem:[#allocation9 + $0x1580] sm:$0xff]
          %v5159 = vld [vmem:[#allocation9 + $0x1588] sm:$0xff]
          %v5160 = vld [vmem:[#allocation9 + $0x1590] sm:$0xff]
          %v5161 = vld [vmem:[#allocation9 + $0x1598] sm:$0xff]
          %v5162 = vld [vmem:[#allocation9 + $0x15a0] sm:$0xff]
          %v5163 = vld [vmem:[#allocation9 + $0x15a8] sm:$0xff]
          %v5164 = vld [vmem:[#allocation9 + $0x15b0] sm:$0xff]
          %v5165 = vld [vmem:[#allocation9 + $0x15b8] sm:$0xff]
          %v5166 = vld [vmem:[#allocation9 + $0x15c0] sm:$0xff]
          %v5167 = vld [vmem:[#allocation9 + $0x15c8] sm:$0xff]
          %v5168 = vld [vmem:[#allocation9 + $0x15d0] sm:$0xff]
          %v5169 = vld [vmem:[#allocation9 + $0x15d8] sm:$0xff]
          %v5170 = vld [vmem:[#allocation9 + $0x15e0] sm:$0xff]
          %v5171 = vld [vmem:[#allocation9 + $0x15e8] sm:$0xff]
          %v5172 = vld [vmem:[#allocation9 + $0x15f0] sm:$0xff]
          %v5173 = vld [vmem:[#allocation9 + $0x15f8] sm:$0xff]
          %v5174 = vld [vmem:[#allocation9 + $0x1600] sm:$0xff]
          %v5175 = vld [vmem:[#allocation9 + $0x1608] sm:$0xff]
          %v5176 = vld [vmem:[#allocation9 + $0x1610] sm:$0xff]
          %v5177 = vld [vmem:[#allocation9 + $0x1618] sm:$0xff]
          %v5178 = vld [vmem:[#allocation9 + $0x1620] sm:$0xff]
          %v5179 = vld [vmem:[#allocation9 + $0x1628] sm:$0xff]
          %v5180 = vld [vmem:[#allocation9 + $0x1630] sm:$0xff]
          %v5181 = vld [vmem:[#allocation9 + $0x1638] sm:$0xff]
          %v5182 = vld [vmem:[#allocation9 + $0x1640] sm:$0xff]
          %v5183 = vld [vmem:[#allocation9 + $0x1648] sm:$0xff]
          %v5184 = vld [vmem:[#allocation9 + $0x1650] sm:$0xff]
          %v5185 = vld [vmem:[#allocation9 + $0x1658] sm:$0xff]
          %v5186 = vld [vmem:[#allocation9 + $0x1660] sm:$0xff]
          %v5187 = vld [vmem:[#allocation9 + $0x1668] sm:$0xff]
          %v5188 = vld [vmem:[#allocation9 + $0x1670] sm:$0xff]
          %v5189 = vld [vmem:[#allocation9 + $0x1678] sm:$0xff]
          %v5190 = vld [vmem:[#allocation9 + $0x1680] sm:$0xff]
          %v5191 = vld [vmem:[#allocation9 + $0x1688] sm:$0xff]
          %v5192 = vld [vmem:[#allocation9 + $0x1690] sm:$0xff]
          %v5193 = vld [vmem:[#allocation9 + $0x1698] sm:$0xff]
          %v5194 = vld [vmem:[#allocation9 + $0x16a0] sm:$0xff]
          %v5195 = vld [vmem:[#allocation9 + $0x16a8] sm:$0xff]
          %v5196 = vld [vmem:[#allocation9 + $0x16b0] sm:$0xff]
          %v5197 = vld [vmem:[#allocation9 + $0x16b8] sm:$0xff]
          %v5198 = vld [vmem:[#allocation9 + $0x16c0] sm:$0xff]
          %v5199 = vld [vmem:[#allocation9 + $0x16c8] sm:$0xff]
          %v5200 = vld [vmem:[#allocation9 + $0x16d0] sm:$0xff]
          %v5201 = vld [vmem:[#allocation9 + $0x16d8] sm:$0xff]
          %v5202 = vld [vmem:[#allocation9 + $0x16e0] sm:$0xff]
          %v5203 = vld [vmem:[#allocation9 + $0x16e8] sm:$0xff]
          %v5204 = vld [vmem:[#allocation9 + $0x16f0] sm:$0xff]
          %v5205 = vld [vmem:[#allocation9 + $0x16f8] sm:$0xff]
          %v5206 = vld [vmem:[#allocation9 + $0x1700] sm:$0xff]
          %v5207 = vld [vmem:[#allocation9 + $0x1708] sm:$0xff]
          %v5208 = vld [vmem:[#allocation9 + $0x1710] sm:$0xff]
          %v5209 = vld [vmem:[#allocation9 + $0x1718] sm:$0xff]
          %v5210 = vld [vmem:[#allocation9 + $0x1720] sm:$0xff]
          %v5211 = vld [vmem:[#allocation9 + $0x1728] sm:$0xff]
          %v5212 = vld [vmem:[#allocation9 + $0x1730] sm:$0xff]
          %v5213 = vld [vmem:[#allocation9 + $0x1738] sm:$0xff]
          %v5214 = vld [vmem:[#allocation9 + $0x1740] sm:$0xff]
          %v5215 = vld [vmem:[#allocation9 + $0x1748] sm:$0xff]
          %v5216 = vld [vmem:[#allocation9 + $0x1750] sm:$0xff]
          %v5217 = vld [vmem:[#allocation9 + $0x1758] sm:$0xff]
          %v5218 = vld [vmem:[#allocation9 + $0x1760] sm:$0xff]
          %v5219 = vld [vmem:[#allocation9 + $0x1768] sm:$0xff]
          %v5220 = vld [vmem:[#allocation9 + $0x1770] sm:$0xff]
          %v5221 = vld [vmem:[#allocation9 + $0x1778] sm:$0xff]
          %v5222 = vld [vmem:[#allocation9 + $0x1780] sm:$0xff]
          %v5223 = vld [vmem:[#allocation9 + $0x1788] sm:$0xff]
          %v5224 = vld [vmem:[#allocation9 + $0x1790] sm:$0xff]
          %v5225 = vld [vmem:[#allocation9 + $0x1798] sm:$0xff]
          %v5226 = vld [vmem:[#allocation9 + $0x17a0] sm:$0xff]
          %v5227 = vld [vmem:[#allocation9 + $0x17a8] sm:$0xff]
          %v5228 = vld [vmem:[#allocation9 + $0x17b0] sm:$0xff]
          %v5229 = vld [vmem:[#allocation9 + $0x17b8] sm:$0xff]
          %v5230 = vld [vmem:[#allocation9 + $0x17c0] sm:$0xff]
          %v5231 = vld [vmem:[#allocation9 + $0x17c8] sm:$0xff]
          %v5232 = vld [vmem:[#allocation9 + $0x17d0] sm:$0xff]
          %v5233 = vld [vmem:[#allocation9 + $0x17d8] sm:$0xff]
          %v5234 = vld [vmem:[#allocation9 + $0x17e0] sm:$0xff]
          %v5235 = vld [vmem:[#allocation9 + $0x17e8] sm:$0xff]
          %v5236 = vld [vmem:[#allocation9 + $0x17f0] sm:$0xff]
          %v5237 = vld [vmem:[#allocation9 + $0x17f8] sm:$0xff]
          %v5238 = vld [vmem:[#allocation9 + $0x1800] sm:$0xff]
          %v5239 = vld [vmem:[#allocation9 + $0x1808] sm:$0xff]
          %v5240 = vld [vmem:[#allocation9 + $0x1810] sm:$0xff]
          %v5241 = vld [vmem:[#allocation9 + $0x1818] sm:$0xff]
          %v5242 = vld [vmem:[#allocation9 + $0x1820] sm:$0xff]
          %v5243 = vld [vmem:[#allocation9 + $0x1828] sm:$0xff]
          %v5244 = vld [vmem:[#allocation9 + $0x1830] sm:$0xff]
          %v5245 = vld [vmem:[#allocation9 + $0x1838] sm:$0xff]
          %v5246 = vld [vmem:[#allocation9 + $0x1840] sm:$0xff]
          %v5247 = vld [vmem:[#allocation9 + $0x1848] sm:$0xff]
          %v5248 = vld [vmem:[#allocation9 + $0x1850] sm:$0xff]
          %v5249 = vld [vmem:[#allocation9 + $0x1858] sm:$0xff]
          %v5250 = vld [vmem:[#allocation9 + $0x1860] sm:$0xff]
          %v5251 = vld [vmem:[#allocation9 + $0x1868] sm:$0xff]
          %v5252 = vld [vmem:[#allocation9 + $0x1870] sm:$0xff]
          %v5253 = vld [vmem:[#allocation9 + $0x1878] sm:$0xff]
          %v5254 = vld [vmem:[#allocation9 + $0x1880] sm:$0xff]
          %v5255 = vld [vmem:[#allocation9 + $0x1888] sm:$0xff]
          %v5256 = vld [vmem:[#allocation9 + $0x1890] sm:$0xff]
          %v5257 = vld [vmem:[#allocation9 + $0x1898] sm:$0xff]
          %v5258 = vld [vmem:[#allocation9 + $0x18a0] sm:$0xff]
          %v5259 = vld [vmem:[#allocation9 + $0x18a8] sm:$0xff]
          %v5260 = vld [vmem:[#allocation9 + $0x18b0] sm:$0xff]
          %v5261 = vld [vmem:[#allocation9 + $0x18b8] sm:$0xff]
          %v5262 = vld [vmem:[#allocation9 + $0x18c0] sm:$0xff]
          %v5263 = vld [vmem:[#allocation9 + $0x18c8] sm:$0xff]
          %v5264 = vld [vmem:[#allocation9 + $0x18d0] sm:$0xff]
          %v5265 = vld [vmem:[#allocation9 + $0x18d8] sm:$0xff]
          %v5266 = vld [vmem:[#allocation9 + $0x18e0] sm:$0xff]
          %v5267 = vld [vmem:[#allocation9 + $0x18e8] sm:$0xff]
          %v5268 = vld [vmem:[#allocation9 + $0x18f0] sm:$0xff]
          %v5269 = vld [vmem:[#allocation9 + $0x18f8] sm:$0xff]
          %v5270 = vld [vmem:[#allocation9 + $0x1900] sm:$0xff]
          %v5271 = vld [vmem:[#allocation9 + $0x1908] sm:$0xff]
          %v5272 = vld [vmem:[#allocation9 + $0x1910] sm:$0xff]
          %v5273 = vld [vmem:[#allocation9 + $0x1918] sm:$0xff]
          %v5274 = vld [vmem:[#allocation9 + $0x1920] sm:$0xff]
          %v5275 = vld [vmem:[#allocation9 + $0x1928] sm:$0xff]
          %v5276 = vld [vmem:[#allocation9 + $0x1930] sm:$0xff]
          %v5277 = vld [vmem:[#allocation9 + $0x1938] sm:$0xff]
          %v5278 = vld [vmem:[#allocation9 + $0x1940] sm:$0xff]
          %v5279 = vld [vmem:[#allocation9 + $0x1948] sm:$0xff]
          %v5280 = vld [vmem:[#allocation9 + $0x1950] sm:$0xff]
          %v5281 = vld [vmem:[#allocation9 + $0x1958] sm:$0xff]
          %v5282 = vld [vmem:[#allocation9 + $0x1960] sm:$0xff]
          %v5283 = vld [vmem:[#allocation9 + $0x1968] sm:$0xff]
          %v5284 = vld [vmem:[#allocation9 + $0x1970] sm:$0xff]
          %v5285 = vld [vmem:[#allocation9 + $0x1978] sm:$0xff]
          %v5286 = vld [vmem:[#allocation9 + $0x1980] sm:$0xff]
          %v5287 = vld [vmem:[#allocation9 + $0x1988] sm:$0xff]
          %v5288 = vld [vmem:[#allocation9 + $0x1990] sm:$0xff]
          %v5289 = vld [vmem:[#allocation9 + $0x1998] sm:$0xff]
          %v5290 = vld [vmem:[#allocation9 + $0x19a0] sm:$0xff]
          %v5291 = vld [vmem:[#allocation9 + $0x19a8] sm:$0xff]
          %v5292 = vld [vmem:[#allocation9 + $0x19b0] sm:$0xff]
          %v5293 = vld [vmem:[#allocation9 + $0x19b8] sm:$0xff]
          %v5294 = vld [vmem:[#allocation9 + $0x19c0] sm:$0xff]
          %v5295 = vld [vmem:[#allocation9 + $0x19c8] sm:$0xff]
          %v5296 = vld [vmem:[#allocation9 + $0x19d0] sm:$0xff]
          %v5297 = vld [vmem:[#allocation9 + $0x19d8] sm:$0xff]
          %v5298 = vld [vmem:[#allocation9 + $0x19e0] sm:$0xff]
          %v5299 = vld [vmem:[#allocation9 + $0x19e8] sm:$0xff]
          %v5300 = vld [vmem:[#allocation9 + $0x19f0] sm:$0xff]
          %v5301 = vld [vmem:[#allocation9 + $0x19f8] sm:$0xff]
          %v5302 = vld [vmem:[#allocation9 + $0x1a00] sm:$0xff]
          %v5303 = vld [vmem:[#allocation9 + $0x1a08] sm:$0xff]
          %v5304 = vld [vmem:[#allocation9 + $0x1a10] sm:$0xff]
          %v5305 = vld [vmem:[#allocation9 + $0x1a18] sm:$0xff]
          %v5306 = vld [vmem:[#allocation9 + $0x1a20] sm:$0xff]
          %v5307 = vld [vmem:[#allocation9 + $0x1a28] sm:$0xff]
          %v5308 = vld [vmem:[#allocation9 + $0x1a30] sm:$0xff]
          %v5309 = vld [vmem:[#allocation9 + $0x1a38] sm:$0xff]
          %v5310 = vld [vmem:[#allocation9 + $0x1a40] sm:$0xff]
          %v5311 = vld [vmem:[#allocation9 + $0x1a48] sm:$0xff]
          %v5312 = vld [vmem:[#allocation9 + $0x1a50] sm:$0xff]
          %v5313 = vld [vmem:[#allocation9 + $0x1a58] sm:$0xff]
          %v5314 = vld [vmem:[#allocation9 + $0x1a60] sm:$0xff]
          %v5315 = vld [vmem:[#allocation9 + $0x1a68] sm:$0xff]
          %v5316 = vld [vmem:[#allocation9 + $0x1a70] sm:$0xff]
          %v5317 = vld [vmem:[#allocation9 + $0x1a78] sm:$0xff]
          %v5318 = vld [vmem:[#allocation9 + $0x1a80] sm:$0xff]
          %v5319 = vld [vmem:[#allocation9 + $0x1a88] sm:$0xff]
          %v5320 = vld [vmem:[#allocation9 + $0x1a90] sm:$0xff]
          %v5321 = vld [vmem:[#allocation9 + $0x1a98] sm:$0xff]
          %v5322 = vld [vmem:[#allocation9 + $0x1aa0] sm:$0xff]
          %v5323 = vld [vmem:[#allocation9 + $0x1aa8] sm:$0xff]
          %v5324 = vld [vmem:[#allocation9 + $0x1ab0] sm:$0xff]
          %v5325 = vld [vmem:[#allocation9 + $0x1ab8] sm:$0xff]
          %v5326 = vld [vmem:[#allocation9 + $0x1ac0] sm:$0xff]
          %v5327 = vld [vmem:[#allocation9 + $0x1ac8] sm:$0xff]
          %v5328 = vld [vmem:[#allocation9 + $0x1ad0] sm:$0xff]
          %v5329 = vld [vmem:[#allocation9 + $0x1ad8] sm:$0xff]
          %v5330 = vld [vmem:[#allocation9 + $0x1ae0] sm:$0xff]
          %v5331 = vld [vmem:[#allocation9 + $0x1ae8] sm:$0xff]
          %v5332 = vld [vmem:[#allocation9 + $0x1af0] sm:$0xff]
          %v5333 = vld [vmem:[#allocation9 + $0x1af8] sm:$0xff]
          %v5334 = vld [vmem:[#allocation9 + $0x1b00] sm:$0xff]
          %v5335 = vld [vmem:[#allocation9 + $0x1b08] sm:$0xff]
          %v5336 = vld [vmem:[#allocation9 + $0x1b10] sm:$0xff]
          %v5337 = vld [vmem:[#allocation9 + $0x1b18] sm:$0xff]
          %v5338 = vld [vmem:[#allocation9 + $0x1b20] sm:$0xff]
          %v5339 = vld [vmem:[#allocation9 + $0x1b28] sm:$0xff]
          %v5340 = vld [vmem:[#allocation9 + $0x1b30] sm:$0xff]
          %v5341 = vld [vmem:[#allocation9 + $0x1b38] sm:$0xff]
          %v5342 = vld [vmem:[#allocation9 + $0x1b40] sm:$0xff]
          %v5343 = vld [vmem:[#allocation9 + $0x1b48] sm:$0xff]
          %v5344 = vld [vmem:[#allocation9 + $0x1b50] sm:$0xff]
          %v5345 = vld [vmem:[#allocation9 + $0x1b58] sm:$0xff]
          %v5346 = vld [vmem:[#allocation9 + $0x1b60] sm:$0xff]
          %v5347 = vld [vmem:[#allocation9 + $0x1b68] sm:$0xff]
          %v5348 = vld [vmem:[#allocation9 + $0x1b70] sm:$0xff]
          %v5349 = vld [vmem:[#allocation9 + $0x1b78] sm:$0xff]
          %v5350 = vld [vmem:[#allocation9 + $0x1b80] sm:$0xff]
          %v5351 = vld [vmem:[#allocation9 + $0x1b88] sm:$0xff]
          %v5352 = vld [vmem:[#allocation9 + $0x1b90] sm:$0xff]
          %v5353 = vld [vmem:[#allocation9 + $0x1b98] sm:$0xff]
          %v5354 = vld [vmem:[#allocation9 + $0x1ba0] sm:$0xff]
          %v5355 = vld [vmem:[#allocation9 + $0x1ba8] sm:$0xff]
          %v5356 = vld [vmem:[#allocation9 + $0x1bb0] sm:$0xff]
          %v5357 = vld [vmem:[#allocation9 + $0x1bb8] sm:$0xff]
          %v5358 = vld [vmem:[#allocation9 + $0x1bc0] sm:$0xff]
          %v5359 = vld [vmem:[#allocation9 + $0x1bc8] sm:$0xff]
          %v5360 = vld [vmem:[#allocation9 + $0x1bd0] sm:$0xff]
          %v5361 = vld [vmem:[#allocation9 + $0x1bd8] sm:$0xff]
          %v5362 = vld [vmem:[#allocation9 + $0x1be0] sm:$0xff]
          %v5363 = vld [vmem:[#allocation9 + $0x1be8] sm:$0xff]
          %v5364 = vld [vmem:[#allocation9 + $0x1bf0] sm:$0xff]
          %v5365 = vld [vmem:[#allocation9 + $0x1bf8] sm:$0xff]
          %v5366 = vld [vmem:[#allocation9 + $0x1c00] sm:$0xff]
          %v5367 = vld [vmem:[#allocation9 + $0x1c08] sm:$0xff]
          %v5368 = vld [vmem:[#allocation9 + $0x1c10] sm:$0xff]
          %v5369 = vld [vmem:[#allocation9 + $0x1c18] sm:$0xff]
          %v5370 = vld [vmem:[#allocation9 + $0x1c20] sm:$0xff]
          %v5371 = vld [vmem:[#allocation9 + $0x1c28] sm:$0xff]
          %v5372 = vld [vmem:[#allocation9 + $0x1c30] sm:$0xff]
          %v5373 = vld [vmem:[#allocation9 + $0x1c38] sm:$0xff]
          %v5374 = vld [vmem:[#allocation9 + $0x1c40] sm:$0xff]
          %v5375 = vld [vmem:[#allocation9 + $0x1c48] sm:$0xff]
          %v5376 = vld [vmem:[#allocation9 + $0x1c50] sm:$0xff]
          %v5377 = vld [vmem:[#allocation9 + $0x1c58] sm:$0xff]
          %v5378 = vld [vmem:[#allocation9 + $0x1c60] sm:$0xff]
          %v5379 = vld [vmem:[#allocation9 + $0x1c68] sm:$0xff]
          %v5380 = vld [vmem:[#allocation9 + $0x1c70] sm:$0xff]
          %v5381 = vld [vmem:[#allocation9 + $0x1c78] sm:$0xff]
          %v5382 = vld [vmem:[#allocation9 + $0x1c80] sm:$0xff]
          %v5383 = vld [vmem:[#allocation9 + $0x1c88] sm:$0xff]
          %v5384 = vld [vmem:[#allocation9 + $0x1c90] sm:$0xff]
          %v5385 = vld [vmem:[#allocation9 + $0x1c98] sm:$0xff]
          %v5386 = vld [vmem:[#allocation9 + $0x1ca0] sm:$0xff]
          %v5387 = vld [vmem:[#allocation9 + $0x1ca8] sm:$0xff]
          %v5388 = vld [vmem:[#allocation9 + $0x1cb0] sm:$0xff]
          %v5389 = vld [vmem:[#allocation9 + $0x1cb8] sm:$0xff]
          %v5390 = vld [vmem:[#allocation9 + $0x1cc0] sm:$0xff]
          %v5391 = vld [vmem:[#allocation9 + $0x1cc8] sm:$0xff]
          %v5392 = vld [vmem:[#allocation9 + $0x1cd0] sm:$0xff]
          %v5393 = vld [vmem:[#allocation9 + $0x1cd8] sm:$0xff]
          %v5394 = vld [vmem:[#allocation9 + $0x1ce0] sm:$0xff]
          %v5395 = vld [vmem:[#allocation9 + $0x1ce8] sm:$0xff]
          %v5396 = vld [vmem:[#allocation9 + $0x1cf0] sm:$0xff]
          %v5397 = vld [vmem:[#allocation9 + $0x1cf8] sm:$0xff]
          %v5398 = vld [vmem:[#allocation9 + $0x1d00] sm:$0xff]
          %v5399 = vld [vmem:[#allocation9 + $0x1d08] sm:$0xff]
          %v5400 = vld [vmem:[#allocation9 + $0x1d10] sm:$0xff]
          %v5401 = vld [vmem:[#allocation9 + $0x1d18] sm:$0xff]
          %v5402 = vld [vmem:[#allocation9 + $0x1d20] sm:$0xff]
          %v5403 = vld [vmem:[#allocation9 + $0x1d28] sm:$0xff]
          %v5404 = vld [vmem:[#allocation9 + $0x1d30] sm:$0xff]
          %v5405 = vld [vmem:[#allocation9 + $0x1d38] sm:$0xff]
          %v5406 = vld [vmem:[#allocation9 + $0x1d40] sm:$0xff]
          %v5407 = vld [vmem:[#allocation9 + $0x1d48] sm:$0xff]
          %v5408 = vld [vmem:[#allocation9 + $0x1d50] sm:$0xff]
          %v5409 = vld [vmem:[#allocation9 + $0x1d58] sm:$0xff]
          %v5410 = vld [vmem:[#allocation9 + $0x1d60] sm:$0xff]
          %v5411 = vld [vmem:[#allocation9 + $0x1d68] sm:$0xff]
          %v5412 = vld [vmem:[#allocation9 + $0x1d70] sm:$0xff]
          %v5413 = vld [vmem:[#allocation9 + $0x1d78] sm:$0xff]
          %v5414 = vld [vmem:[#allocation9 + $0x1d80] sm:$0xff]
          %v5415 = vld [vmem:[#allocation9 + $0x1d88] sm:$0xff]
          %v5416 = vld [vmem:[#allocation9 + $0x1d90] sm:$0xff]
          %v5417 = vld [vmem:[#allocation9 + $0x1d98] sm:$0xff]
          %v5418 = vld [vmem:[#allocation9 + $0x1da0] sm:$0xff]
          %v5419 = vld [vmem:[#allocation9 + $0x1da8] sm:$0xff]
          %v5420 = vld [vmem:[#allocation9 + $0x1db0] sm:$0xff]
          %v5421 = vld [vmem:[#allocation9 + $0x1db8] sm:$0xff]
          %v5422 = vld [vmem:[#allocation9 + $0x1dc0] sm:$0xff]
          %v5423 = vld [vmem:[#allocation9 + $0x1dc8] sm:$0xff]
          %v5424 = vld [vmem:[#allocation9 + $0x1dd0] sm:$0xff]
          %v5425 = vld [vmem:[#allocation9 + $0x1dd8] sm:$0xff]
          %v5426 = vld [vmem:[#allocation9 + $0x1de0] sm:$0xff]
          %v5427 = vld [vmem:[#allocation9 + $0x1de8] sm:$0xff]
          %v5428 = vld [vmem:[#allocation9 + $0x1df0] sm:$0xff]
          %v5429 = vld [vmem:[#allocation9 + $0x1df8] sm:$0xff]
          %v5430 = vld [vmem:[#allocation9 + $0x1e00] sm:$0xff]
          %v5431 = vld [vmem:[#allocation9 + $0x1e08] sm:$0xff]
          %v5432 = vld [vmem:[#allocation9 + $0x1e10] sm:$0xff]
          %v5433 = vld [vmem:[#allocation9 + $0x1e18] sm:$0xff]
          %v5434 = vld [vmem:[#allocation9 + $0x1e20] sm:$0xff]
          %v5435 = vld [vmem:[#allocation9 + $0x1e28] sm:$0xff]
          %v5436 = vld [vmem:[#allocation9 + $0x1e30] sm:$0xff]
          %v5437 = vld [vmem:[#allocation9 + $0x1e38] sm:$0xff]
          %v5438 = vld [vmem:[#allocation9 + $0x1e40] sm:$0xff]
          %v5439 = vld [vmem:[#allocation9 + $0x1e48] sm:$0xff]
          %v5440 = vld [vmem:[#allocation9 + $0x1e50] sm:$0xff]
          %v5441 = vld [vmem:[#allocation9 + $0x1e58] sm:$0xff]
          %v5442 = vld [vmem:[#allocation9 + $0x1e60] sm:$0xff]
          %v5443 = vld [vmem:[#allocation9 + $0x1e68] sm:$0xff]
          %v5444 = vld [vmem:[#allocation9 + $0x1e70] sm:$0xff]
          %v5445 = vld [vmem:[#allocation9 + $0x1e78] sm:$0xff]
          %v5446 = vld [vmem:[#allocation9 + $0x1e80] sm:$0xff]
          %v5447 = vld [vmem:[#allocation9 + $0x1e88] sm:$0xff]
          %v5448 = vld [vmem:[#allocation9 + $0x1e90] sm:$0xff]
          %v5449 = vld [vmem:[#allocation9 + $0x1e98] sm:$0xff]
          %v5450 = vld [vmem:[#allocation9 + $0x1ea0] sm:$0xff]
          %v5451 = vld [vmem:[#allocation9 + $0x1ea8] sm:$0xff]
          %v5452 = vld [vmem:[#allocation9 + $0x1eb0] sm:$0xff]
          %v5453 = vld [vmem:[#allocation9 + $0x1eb8] sm:$0xff]
          %v5454 = vld [vmem:[#allocation9 + $0x1ec0] sm:$0xff]
          %v5455 = vld [vmem:[#allocation9 + $0x1ec8] sm:$0xff]
          %v5456 = vld [vmem:[#allocation9 + $0x1ed0] sm:$0xff]
          %v5457 = vld [vmem:[#allocation9 + $0x1ed8] sm:$0xff]
          %v5458 = vld [vmem:[#allocation9 + $0x1ee0] sm:$0xff]
          %v5459 = vld [vmem:[#allocation9 + $0x1ee8] sm:$0xff]
          %v5460 = vld [vmem:[#allocation9 + $0x1ef0] sm:$0xff]
          %v5461 = vld [vmem:[#allocation9 + $0x1ef8] sm:$0xff]
          %v5462 = vld [vmem:[#allocation9 + $0x1f00] sm:$0xff]
          %v5463 = vld [vmem:[#allocation9 + $0x1f08] sm:$0xff]
          %v5464 = vld [vmem:[#allocation9 + $0x1f10] sm:$0xff]
          %v5465 = vld [vmem:[#allocation9 + $0x1f18] sm:$0xff]
          %v5466 = vld [vmem:[#allocation9 + $0x1f20] sm:$0xff]
          %v5467 = vld [vmem:[#allocation9 + $0x1f28] sm:$0xff]
          %v5468 = vld [vmem:[#allocation9 + $0x1f30] sm:$0xff]
          %v5469 = vld [vmem:[#allocation9 + $0x1f38] sm:$0xff]
          %v5470 = vld [vmem:[#allocation9 + $0x1f40] sm:$0xff]
          %v5471 = vld [vmem:[#allocation9 + $0x1f48] sm:$0xff]
          %v5472 = vld [vmem:[#allocation9 + $0x1f50] sm:$0xff]
          %v5473 = vld [vmem:[#allocation9 + $0x1f58] sm:$0xff]
          %v5474 = vld [vmem:[#allocation9 + $0x1f60] sm:$0xff]
          %v5475 = vld [vmem:[#allocation9 + $0x1f68] sm:$0xff]
          %v5476 = vld [vmem:[#allocation9 + $0x1f70] sm:$0xff]
          %v5477 = vld [vmem:[#allocation9 + $0x1f78] sm:$0xff]
          %v5478 = vld [vmem:[#allocation9 + $0x1f80] sm:$0xff]
          %v5479 = vld [vmem:[#allocation9 + $0x1f88] sm:$0xff]
          %v5480 = vld [vmem:[#allocation9 + $0x1f90] sm:$0xff]
          %v5481 = vld [vmem:[#allocation9 + $0x1f98] sm:$0xff]
          %v5482 = vld [vmem:[#allocation9 + $0x1fa0] sm:$0xff]
          %v5483 = vld [vmem:[#allocation9 + $0x1fa8] sm:$0xff]
          %v5484 = vld [vmem:[#allocation9 + $0x1fb0] sm:$0xff]
          %v5485 = vld [vmem:[#allocation9 + $0x1fb8] sm:$0xff]
          %v5486 = vld [vmem:[#allocation9 + $0x1fc0] sm:$0xff]
          %v5487 = vld [vmem:[#allocation9 + $0x1fc8] sm:$0xff]
          %v5488 = vld [vmem:[#allocation9 + $0x1fd0] sm:$0xff]
          %v5489 = vld [vmem:[#allocation9 + $0x1fd8] sm:$0xff]
          %v5490 = vld [vmem:[#allocation9 + $0x1fe0] sm:$0xff]
          %v5491 = vld [vmem:[#allocation9 + $0x1fe8] sm:$0xff]
          %v5492 = vld [vmem:[#allocation9 + $0x1ff0] sm:$0xff]
          %v5493 = vld [vmem:[#allocation9 + $0x1ff8] sm:$0xff]
          %v5494 = vld [vmem:[#allocation11] sm:$0xff]
          %v5496 = vlaneseq
          %v5497 = vshrl.u32 %v5496, 7
          %v5498 = vsub.s32 0, %v5497
          %v5499 = vrot.slane %v5494, %v5498
          %v5500 = vlaneseq
          %v5501 = vshrl.u32 %v5500, 7
          %v5502 = vsub.s32 1, %v5501
          %v5503 = vrot.slane %v5494, %v5502
          %v5504 = vlaneseq
          %v5505 = vshrl.u32 %v5504, 7
          %v5506 = vsub.s32 2, %v5505
          %v5507 = vrot.slane %v5494, %v5506
          %v5508 = vlaneseq
          %v5509 = vshrl.u32 %v5508, 7
          %v5510 = vsub.s32 3, %v5509
          %v5511 = vrot.slane %v5494, %v5510
          %v5512 = vlaneseq
          %v5513 = vshrl.u32 %v5512, 7
          %v5514 = vsub.s32 4, %v5513
          %v5515 = vrot.slane %v5494, %v5514
          %v5516 = vlaneseq
          %v5517 = vshrl.u32 %v5516, 7
          %v5518 = vsub.s32 5, %v5517
          %v5519 = vrot.slane %v5494, %v5518
          %v5520 = vlaneseq
          %v5521 = vshrl.u32 %v5520, 7
          %v5522 = vsub.s32 6, %v5521
          %v5523 = vrot.slane %v5494, %v5522
          %v5524 = vlaneseq
          %v5525 = vshrl.u32 %v5524, 7
          %v5526 = vsub.s32 7, %v5525
          %v5527 = vrot.slane %v5494, %v5526
          %v6560 = vunpack.c.l.b16 %v4470
          %v6561 = vunpack.c.h.b16 %v4470
          %v6562 = vunpack.c.l.b16 %v4471
          %v6563 = vunpack.c.h.b16 %v4471
          %v6564 = vunpack.c.l.b16 %v4472
          %v6565 = vunpack.c.h.b16 %v4472
          %v6566 = vunpack.c.l.b16 %v4473
          %v6567 = vunpack.c.h.b16 %v4473
          %v6568 = vunpack.c.l.b16 %v4474
          %v6569 = vunpack.c.h.b16 %v4474
          %v6570 = vunpack.c.l.b16 %v4475
          %v6571 = vunpack.c.h.b16 %v4475
          %v6572 = vunpack.c.l.b16 %v4476
          %v6573 = vunpack.c.h.b16 %v4476
          %v6574 = vunpack.c.l.b16 %v4477
          %v6575 = vunpack.c.h.b16 %v4477
          %v6576 = vunpack.c.l.b16 %v4478
          %v6577 = vunpack.c.h.b16 %v4478
          %v6578 = vunpack.c.l.b16 %v4479
          %v6579 = vunpack.c.h.b16 %v4479
          %v6580 = vunpack.c.l.b16 %v4480
          %v6581 = vunpack.c.h.b16 %v4480
          %v6582 = vunpack.c.l.b16 %v4481
          %v6583 = vunpack.c.h.b16 %v4481
          %v6584 = vunpack.c.l.b16 %v4482
          %v6585 = vunpack.c.h.b16 %v4482
          %v6586 = vunpack.c.l.b16 %v4483
          %v6587 = vunpack.c.h.b16 %v4483
          %v6588 = vunpack.c.l.b16 %v4484
          %v6589 = vunpack.c.h.b16 %v4484
          %v6590 = vunpack.c.l.b16 %v4485
          %v6591 = vunpack.c.h.b16 %v4485
          %v6592 = vunpack.c.l.b16 %v4486
          %v6593 = vunpack.c.h.b16 %v4486
          %v6594 = vunpack.c.l.b16 %v4487
          %v6595 = vunpack.c.h.b16 %v4487
          %v6596 = vunpack.c.l.b16 %v4488
          %v6597 = vunpack.c.h.b16 %v4488
          %v6598 = vunpack.c.l.b16 %v4489
          %v6599 = vunpack.c.h.b16 %v4489
          %v6600 = vunpack.c.l.b16 %v4490
          %v6601 = vunpack.c.h.b16 %v4490
          %v6602 = vunpack.c.l.b16 %v4491
          %v6603 = vunpack.c.h.b16 %v4491
          %v6604 = vunpack.c.l.b16 %v4492
          %v6605 = vunpack.c.h.b16 %v4492
          %v6606 = vunpack.c.l.b16 %v4493
          %v6607 = vunpack.c.h.b16 %v4493
          %v6608 = vunpack.c.l.b16 %v4494
          %v6609 = vunpack.c.h.b16 %v4494
          %v6610 = vunpack.c.l.b16 %v4495
          %v6611 = vunpack.c.h.b16 %v4495
          %v6612 = vunpack.c.l.b16 %v4496
          %v6613 = vunpack.c.h.b16 %v4496
          %v6614 = vunpack.c.l.b16 %v4497
          %v6615 = vunpack.c.h.b16 %v4497
          %v6616 = vunpack.c.l.b16 %v4498
          %v6617 = vunpack.c.h.b16 %v4498
          %v6618 = vunpack.c.l.b16 %v4499
          %v6619 = vunpack.c.h.b16 %v4499
          %v6620 = vunpack.c.l.b16 %v4500
          %v6621 = vunpack.c.h.b16 %v4500
          %v6622 = vunpack.c.l.b16 %v4501
          %v6623 = vunpack.c.h.b16 %v4501
          %v6624 = vunpack.c.l.b16 %v4502
          %v6625 = vunpack.c.h.b16 %v4502
          %v6626 = vunpack.c.l.b16 %v4503
          %v6627 = vunpack.c.h.b16 %v4503
          %v6628 = vunpack.c.l.b16 %v4504
          %v6629 = vunpack.c.h.b16 %v4504
          %v6630 = vunpack.c.l.b16 %v4505
          %v6631 = vunpack.c.h.b16 %v4505
          %v6632 = vunpack.c.l.b16 %v4506
          %v6633 = vunpack.c.h.b16 %v4506
          %v6634 = vunpack.c.l.b16 %v4507
          %v6635 = vunpack.c.h.b16 %v4507
          %v6636 = vunpack.c.l.b16 %v4508
          %v6637 = vunpack.c.h.b16 %v4508
          %v6638 = vunpack.c.l.b16 %v4509
          %v6639 = vunpack.c.h.b16 %v4509
          %v6640 = vunpack.c.l.b16 %v4510
          %v6641 = vunpack.c.h.b16 %v4510
          %v6642 = vunpack.c.l.b16 %v4511
          %v6643 = vunpack.c.h.b16 %v4511
          %v6644 = vunpack.c.l.b16 %v4512
          %v6645 = vunpack.c.h.b16 %v4512
          %v6646 = vunpack.c.l.b16 %v4513
          %v6647 = vunpack.c.h.b16 %v4513
          %v6648 = vunpack.c.l.b16 %v4514
          %v6649 = vunpack.c.h.b16 %v4514
          %v6650 = vunpack.c.l.b16 %v4515
          %v6651 = vunpack.c.h.b16 %v4515
          %v6652 = vunpack.c.l.b16 %v4516
          %v6653 = vunpack.c.h.b16 %v4516
          %v6654 = vunpack.c.l.b16 %v4517
          %v6655 = vunpack.c.h.b16 %v4517
          %v6656 = vunpack.c.l.b16 %v4518
          %v6657 = vunpack.c.h.b16 %v4518
          %v6658 = vunpack.c.l.b16 %v4519
          %v6659 = vunpack.c.h.b16 %v4519
          %v6660 = vunpack.c.l.b16 %v4520
          %v6661 = vunpack.c.h.b16 %v4520
          %v6662 = vunpack.c.l.b16 %v4521
          %v6663 = vunpack.c.h.b16 %v4521
          %v6664 = vunpack.c.l.b16 %v4522
          %v6665 = vunpack.c.h.b16 %v4522
          %v6666 = vunpack.c.l.b16 %v4523
          %v6667 = vunpack.c.h.b16 %v4523
          %v6668 = vunpack.c.l.b16 %v4524
          %v6669 = vunpack.c.h.b16 %v4524
          %v6670 = vunpack.c.l.b16 %v4525
          %v6671 = vunpack.c.h.b16 %v4525
          %v6672 = vunpack.c.l.b16 %v4526
          %v6673 = vunpack.c.h.b16 %v4526
          %v6674 = vunpack.c.l.b16 %v4527
          %v6675 = vunpack.c.h.b16 %v4527
          %v6676 = vunpack.c.l.b16 %v4528
          %v6677 = vunpack.c.h.b16 %v4528
          %v6678 = vunpack.c.l.b16 %v4529
          %v6679 = vunpack.c.h.b16 %v4529
          %v6680 = vunpack.c.l.b16 %v4530
          %v6681 = vunpack.c.h.b16 %v4530
          %v6682 = vunpack.c.l.b16 %v4531
          %v6683 = vunpack.c.h.b16 %v4531
          %v6684 = vunpack.c.l.b16 %v4532
          %v6685 = vunpack.c.h.b16 %v4532
          %v6686 = vunpack.c.l.b16 %v4533
          %v6687 = vunpack.c.h.b16 %v4533
          %v6688 = vunpack.c.l.b16 %v4534
          %v6689 = vunpack.c.h.b16 %v4534
          %v6690 = vunpack.c.l.b16 %v4535
          %v6691 = vunpack.c.h.b16 %v4535
          %v6692 = vunpack.c.l.b16 %v4536
          %v6693 = vunpack.c.h.b16 %v4536
          %v6694 = vunpack.c.l.b16 %v4537
          %v6695 = vunpack.c.h.b16 %v4537
          %v6696 = vunpack.c.l.b16 %v4538
          %v6697 = vunpack.c.h.b16 %v4538
          %v6698 = vunpack.c.l.b16 %v4539
          %v6699 = vunpack.c.h.b16 %v4539
          %v6700 = vunpack.c.l.b16 %v4540
          %v6701 = vunpack.c.h.b16 %v4540
          %v6702 = vunpack.c.l.b16 %v4541
          %v6703 = vunpack.c.h.b16 %v4541
          %v6704 = vunpack.c.l.b16 %v4542
          %v6705 = vunpack.c.h.b16 %v4542
          %v6706 = vunpack.c.l.b16 %v4543
          %v6707 = vunpack.c.h.b16 %v4543
          %v6708 = vunpack.c.l.b16 %v4544
          %v6709 = vunpack.c.h.b16 %v4544
          %v6710 = vunpack.c.l.b16 %v4545
          %v6711 = vunpack.c.h.b16 %v4545
          %v6712 = vunpack.c.l.b16 %v4546
          %v6713 = vunpack.c.h.b16 %v4546
          %v6714 = vunpack.c.l.b16 %v4547
          %v6715 = vunpack.c.h.b16 %v4547
          %v6716 = vunpack.c.l.b16 %v4548
          %v6717 = vunpack.c.h.b16 %v4548
          %v6718 = vunpack.c.l.b16 %v4549
          %v6719 = vunpack.c.h.b16 %v4549
          %v6720 = vunpack.c.l.b16 %v4550
          %v6721 = vunpack.c.h.b16 %v4550
          %v6722 = vunpack.c.l.b16 %v4551
          %v6723 = vunpack.c.h.b16 %v4551
          %v6724 = vunpack.c.l.b16 %v4552
          %v6725 = vunpack.c.h.b16 %v4552
          %v6726 = vunpack.c.l.b16 %v4553
          %v6727 = vunpack.c.h.b16 %v4553
          %v6728 = vunpack.c.l.b16 %v4554
          %v6729 = vunpack.c.h.b16 %v4554
          %v6730 = vunpack.c.l.b16 %v4555
          %v6731 = vunpack.c.h.b16 %v4555
          %v6732 = vunpack.c.l.b16 %v4556
          %v6733 = vunpack.c.h.b16 %v4556
          %v6734 = vunpack.c.l.b16 %v4557
          %v6735 = vunpack.c.h.b16 %v4557
          %v6736 = vunpack.c.l.b16 %v4558
          %v6737 = vunpack.c.h.b16 %v4558
          %v6738 = vunpack.c.l.b16 %v4559
          %v6739 = vunpack.c.h.b16 %v4559
          %v6740 = vunpack.c.l.b16 %v4560
          %v6741 = vunpack.c.h.b16 %v4560
          %v6742 = vunpack.c.l.b16 %v4561
          %v6743 = vunpack.c.h.b16 %v4561
          %v6744 = vunpack.c.l.b16 %v4562
          %v6745 = vunpack.c.h.b16 %v4562
          %v6746 = vunpack.c.l.b16 %v4563
          %v6747 = vunpack.c.h.b16 %v4563
          %v6748 = vunpack.c.l.b16 %v4564
          %v6749 = vunpack.c.h.b16 %v4564
          %v6750 = vunpack.c.l.b16 %v4565
          %v6751 = vunpack.c.h.b16 %v4565
          %v6752 = vunpack.c.l.b16 %v4566
          %v6753 = vunpack.c.h.b16 %v4566
          %v6754 = vunpack.c.l.b16 %v4567
          %v6755 = vunpack.c.h.b16 %v4567
          %v6756 = vunpack.c.l.b16 %v4568
          %v6757 = vunpack.c.h.b16 %v4568
          %v6758 = vunpack.c.l.b16 %v4569
          %v6759 = vunpack.c.h.b16 %v4569
          %v6760 = vunpack.c.l.b16 %v4570
          %v6761 = vunpack.c.h.b16 %v4570
          %v6762 = vunpack.c.l.b16 %v4571
          %v6763 = vunpack.c.h.b16 %v4571
          %v6764 = vunpack.c.l.b16 %v4572
          %v6765 = vunpack.c.h.b16 %v4572
          %v6766 = vunpack.c.l.b16 %v4573
          %v6767 = vunpack.c.h.b16 %v4573
          %v6768 = vunpack.c.l.b16 %v4574
          %v6769 = vunpack.c.h.b16 %v4574
          %v6770 = vunpack.c.l.b16 %v4575
          %v6771 = vunpack.c.h.b16 %v4575
          %v6772 = vunpack.c.l.b16 %v4576
          %v6773 = vunpack.c.h.b16 %v4576
          %v6774 = vunpack.c.l.b16 %v4577
          %v6775 = vunpack.c.h.b16 %v4577
          %v6776 = vunpack.c.l.b16 %v4578
          %v6777 = vunpack.c.h.b16 %v4578
          %v6778 = vunpack.c.l.b16 %v4579
          %v6779 = vunpack.c.h.b16 %v4579
          %v6780 = vunpack.c.l.b16 %v4580
          %v6781 = vunpack.c.h.b16 %v4580
          %v6782 = vunpack.c.l.b16 %v4581
          %v6783 = vunpack.c.h.b16 %v4581
          %v6784 = vunpack.c.l.b16 %v4582
          %v6785 = vunpack.c.h.b16 %v4582
          %v6786 = vunpack.c.l.b16 %v4583
          %v6787 = vunpack.c.h.b16 %v4583
          %v6788 = vunpack.c.l.b16 %v4584
          %v6789 = vunpack.c.h.b16 %v4584
          %v6790 = vunpack.c.l.b16 %v4585
          %v6791 = vunpack.c.h.b16 %v4585
          %v6792 = vunpack.c.l.b16 %v4586
          %v6793 = vunpack.c.h.b16 %v4586
          %v6794 = vunpack.c.l.b16 %v4587
          %v6795 = vunpack.c.h.b16 %v4587
          %v6796 = vunpack.c.l.b16 %v4588
          %v6797 = vunpack.c.h.b16 %v4588
          %v6798 = vunpack.c.l.b16 %v4589
          %v6799 = vunpack.c.h.b16 %v4589
          %v6800 = vunpack.c.l.b16 %v4590
          %v6801 = vunpack.c.h.b16 %v4590
          %v6802 = vunpack.c.l.b16 %v4591
          %v6803 = vunpack.c.h.b16 %v4591
          %v6804 = vunpack.c.l.b16 %v4592
          %v6805 = vunpack.c.h.b16 %v4592
          %v6806 = vunpack.c.l.b16 %v4593
          %v6807 = vunpack.c.h.b16 %v4593
          %v6808 = vunpack.c.l.b16 %v4594
          %v6809 = vunpack.c.h.b16 %v4594
          %v6810 = vunpack.c.l.b16 %v4595
          %v6811 = vunpack.c.h.b16 %v4595
          %v6812 = vunpack.c.l.b16 %v4596
          %v6813 = vunpack.c.h.b16 %v4596
          %v6814 = vunpack.c.l.b16 %v4597
          %v6815 = vunpack.c.h.b16 %v4597
          %v6816 = vunpack.c.l.b16 %v4598
          %v6817 = vunpack.c.h.b16 %v4598
          %v6818 = vunpack.c.l.b16 %v4599
          %v6819 = vunpack.c.h.b16 %v4599
          %v6820 = vunpack.c.l.b16 %v4600
          %v6821 = vunpack.c.h.b16 %v4600
          %v6822 = vunpack.c.l.b16 %v4601
          %v6823 = vunpack.c.h.b16 %v4601
          %v6824 = vunpack.c.l.b16 %v4602
          %v6825 = vunpack.c.h.b16 %v4602
          %v6826 = vunpack.c.l.b16 %v4603
          %v6827 = vunpack.c.h.b16 %v4603
          %v6828 = vunpack.c.l.b16 %v4604
          %v6829 = vunpack.c.h.b16 %v4604
          %v6830 = vunpack.c.l.b16 %v4605
          %v6831 = vunpack.c.h.b16 %v4605
          %v6832 = vunpack.c.l.b16 %v4606
          %v6833 = vunpack.c.h.b16 %v4606
          %v6834 = vunpack.c.l.b16 %v4607
          %v6835 = vunpack.c.h.b16 %v4607
          %v6836 = vunpack.c.l.b16 %v4608
          %v6837 = vunpack.c.h.b16 %v4608
          %v6838 = vunpack.c.l.b16 %v4609
          %v6839 = vunpack.c.h.b16 %v4609
          %v6840 = vunpack.c.l.b16 %v4610
          %v6841 = vunpack.c.h.b16 %v4610
          %v6842 = vunpack.c.l.b16 %v4611
          %v6843 = vunpack.c.h.b16 %v4611
          %v6844 = vunpack.c.l.b16 %v4612
          %v6845 = vunpack.c.h.b16 %v4612
          %v6846 = vunpack.c.l.b16 %v4613
          %v6847 = vunpack.c.h.b16 %v4613
          %v6848 = vunpack.c.l.b16 %v4614
          %v6849 = vunpack.c.h.b16 %v4614
          %v6850 = vunpack.c.l.b16 %v4615
          %v6851 = vunpack.c.h.b16 %v4615
          %v6852 = vunpack.c.l.b16 %v4616
          %v6853 = vunpack.c.h.b16 %v4616
          %v6854 = vunpack.c.l.b16 %v4617
          %v6855 = vunpack.c.h.b16 %v4617
          %v6856 = vunpack.c.l.b16 %v4618
          %v6857 = vunpack.c.h.b16 %v4618
          %v6858 = vunpack.c.l.b16 %v4619
          %v6859 = vunpack.c.h.b16 %v4619
          %v6860 = vunpack.c.l.b16 %v4620
          %v6861 = vunpack.c.h.b16 %v4620
          %v6862 = vunpack.c.l.b16 %v4621
          %v6863 = vunpack.c.h.b16 %v4621
          %v6864 = vunpack.c.l.b16 %v4622
          %v6865 = vunpack.c.h.b16 %v4622
          %v6866 = vunpack.c.l.b16 %v4623
          %v6867 = vunpack.c.h.b16 %v4623
          %v6868 = vunpack.c.l.b16 %v4624
          %v6869 = vunpack.c.h.b16 %v4624
          %v6870 = vunpack.c.l.b16 %v4625
          %v6871 = vunpack.c.h.b16 %v4625
          %v6872 = vunpack.c.l.b16 %v4626
          %v6873 = vunpack.c.h.b16 %v4626
          %v6874 = vunpack.c.l.b16 %v4627
          %v6875 = vunpack.c.h.b16 %v4627
          %v6876 = vunpack.c.l.b16 %v4628
          %v6877 = vunpack.c.h.b16 %v4628
          %v6878 = vunpack.c.l.b16 %v4629
          %v6879 = vunpack.c.h.b16 %v4629
          %v6880 = vunpack.c.l.b16 %v4630
          %v6881 = vunpack.c.h.b16 %v4630
          %v6882 = vunpack.c.l.b16 %v4631
          %v6883 = vunpack.c.h.b16 %v4631
          %v6884 = vunpack.c.l.b16 %v4632
          %v6885 = vunpack.c.h.b16 %v4632
          %v6886 = vunpack.c.l.b16 %v4633
          %v6887 = vunpack.c.h.b16 %v4633
          %v6888 = vunpack.c.l.b16 %v4634
          %v6889 = vunpack.c.h.b16 %v4634
          %v6890 = vunpack.c.l.b16 %v4635
          %v6891 = vunpack.c.h.b16 %v4635
          %v6892 = vunpack.c.l.b16 %v4636
          %v6893 = vunpack.c.h.b16 %v4636
          %v6894 = vunpack.c.l.b16 %v4637
          %v6895 = vunpack.c.h.b16 %v4637
          %v6896 = vunpack.c.l.b16 %v4638
          %v6897 = vunpack.c.h.b16 %v4638
          %v6898 = vunpack.c.l.b16 %v4639
          %v6899 = vunpack.c.h.b16 %v4639
          %v6900 = vunpack.c.l.b16 %v4640
          %v6901 = vunpack.c.h.b16 %v4640
          %v6902 = vunpack.c.l.b16 %v4641
          %v6903 = vunpack.c.h.b16 %v4641
          %v6904 = vunpack.c.l.b16 %v4642
          %v6905 = vunpack.c.h.b16 %v4642
          %v6906 = vunpack.c.l.b16 %v4643
          %v6907 = vunpack.c.h.b16 %v4643
          %v6908 = vunpack.c.l.b16 %v4644
          %v6909 = vunpack.c.h.b16 %v4644
          %v6910 = vunpack.c.l.b16 %v4645
          %v6911 = vunpack.c.h.b16 %v4645
          %v6912 = vunpack.c.l.b16 %v4646
          %v6913 = vunpack.c.h.b16 %v4646
          %v6914 = vunpack.c.l.b16 %v4647
          %v6915 = vunpack.c.h.b16 %v4647
          %v6916 = vunpack.c.l.b16 %v4648
          %v6917 = vunpack.c.h.b16 %v4648
          %v6918 = vunpack.c.l.b16 %v4649
          %v6919 = vunpack.c.h.b16 %v4649
          %v6920 = vunpack.c.l.b16 %v4650
          %v6921 = vunpack.c.h.b16 %v4650
          %v6922 = vunpack.c.l.b16 %v4651
          %v6923 = vunpack.c.h.b16 %v4651
          %v6924 = vunpack.c.l.b16 %v4652
          %v6925 = vunpack.c.h.b16 %v4652
          %v6926 = vunpack.c.l.b16 %v4653
          %v6927 = vunpack.c.h.b16 %v4653
          %v6928 = vunpack.c.l.b16 %v4654
          %v6929 = vunpack.c.h.b16 %v4654
          %v6930 = vunpack.c.l.b16 %v4655
          %v6931 = vunpack.c.h.b16 %v4655
          %v6932 = vunpack.c.l.b16 %v4656
          %v6933 = vunpack.c.h.b16 %v4656
          %v6934 = vunpack.c.l.b16 %v4657
          %v6935 = vunpack.c.h.b16 %v4657
          %v6936 = vunpack.c.l.b16 %v4658
          %v6937 = vunpack.c.h.b16 %v4658
          %v6938 = vunpack.c.l.b16 %v4659
          %v6939 = vunpack.c.h.b16 %v4659
          %v6940 = vunpack.c.l.b16 %v4660
          %v6941 = vunpack.c.h.b16 %v4660
          %v6942 = vunpack.c.l.b16 %v4661
          %v6943 = vunpack.c.h.b16 %v4661
          %v6944 = vunpack.c.l.b16 %v4662
          %v6945 = vunpack.c.h.b16 %v4662
          %v6946 = vunpack.c.l.b16 %v4663
          %v6947 = vunpack.c.h.b16 %v4663
          %v6948 = vunpack.c.l.b16 %v4664
          %v6949 = vunpack.c.h.b16 %v4664
          %v6950 = vunpack.c.l.b16 %v4665
          %v6951 = vunpack.c.h.b16 %v4665
          %v6952 = vunpack.c.l.b16 %v4666
          %v6953 = vunpack.c.h.b16 %v4666
          %v6954 = vunpack.c.l.b16 %v4667
          %v6955 = vunpack.c.h.b16 %v4667
          %v6956 = vunpack.c.l.b16 %v4668
          %v6957 = vunpack.c.h.b16 %v4668
          %v6958 = vunpack.c.l.b16 %v4669
          %v6959 = vunpack.c.h.b16 %v4669
          %v6960 = vunpack.c.l.b16 %v4670
          %v6961 = vunpack.c.h.b16 %v4670
          %v6962 = vunpack.c.l.b16 %v4671
          %v6963 = vunpack.c.h.b16 %v4671
          %v6964 = vunpack.c.l.b16 %v4672
          %v6965 = vunpack.c.h.b16 %v4672
          %v6966 = vunpack.c.l.b16 %v4673
          %v6967 = vunpack.c.h.b16 %v4673
          %v6968 = vunpack.c.l.b16 %v4674
          %v6969 = vunpack.c.h.b16 %v4674
          %v6970 = vunpack.c.l.b16 %v4675
          %v6971 = vunpack.c.h.b16 %v4675
          %v6972 = vunpack.c.l.b16 %v4676
          %v6973 = vunpack.c.h.b16 %v4676
          %v6974 = vunpack.c.l.b16 %v4677
          %v6975 = vunpack.c.h.b16 %v4677
          %v6976 = vunpack.c.l.b16 %v4678
          %v6977 = vunpack.c.h.b16 %v4678
          %v6978 = vunpack.c.l.b16 %v4679
          %v6979 = vunpack.c.h.b16 %v4679
          %v6980 = vunpack.c.l.b16 %v4680
          %v6981 = vunpack.c.h.b16 %v4680
          %v6982 = vunpack.c.l.b16 %v4681
          %v6983 = vunpack.c.h.b16 %v4681
          %v6984 = vunpack.c.l.b16 %v4682
          %v6985 = vunpack.c.h.b16 %v4682
          %v6986 = vunpack.c.l.b16 %v4683
          %v6987 = vunpack.c.h.b16 %v4683
          %v6988 = vunpack.c.l.b16 %v4684
          %v6989 = vunpack.c.h.b16 %v4684
          %v6990 = vunpack.c.l.b16 %v4685
          %v6991 = vunpack.c.h.b16 %v4685
          %v6992 = vunpack.c.l.b16 %v4686
          %v6993 = vunpack.c.h.b16 %v4686
          %v6994 = vunpack.c.l.b16 %v4687
          %v6995 = vunpack.c.h.b16 %v4687
          %v6996 = vunpack.c.l.b16 %v4688
          %v6997 = vunpack.c.h.b16 %v4688
          %v6998 = vunpack.c.l.b16 %v4689
          %v6999 = vunpack.c.h.b16 %v4689
          %v7000 = vunpack.c.l.b16 %v4690
          %v7001 = vunpack.c.h.b16 %v4690
          %v7002 = vunpack.c.l.b16 %v4691
          %v7003 = vunpack.c.h.b16 %v4691
          %v7004 = vunpack.c.l.b16 %v4692
          %v7005 = vunpack.c.h.b16 %v4692
          %v7006 = vunpack.c.l.b16 %v4693
          %v7007 = vunpack.c.h.b16 %v4693
          %v7008 = vunpack.c.l.b16 %v4694
          %v7009 = vunpack.c.h.b16 %v4694
          %v7010 = vunpack.c.l.b16 %v4695
          %v7011 = vunpack.c.h.b16 %v4695
          %v7012 = vunpack.c.l.b16 %v4696
          %v7013 = vunpack.c.h.b16 %v4696
          %v7014 = vunpack.c.l.b16 %v4697
          %v7015 = vunpack.c.h.b16 %v4697
          %v7016 = vunpack.c.l.b16 %v4698
          %v7017 = vunpack.c.h.b16 %v4698
          %v7018 = vunpack.c.l.b16 %v4699
          %v7019 = vunpack.c.h.b16 %v4699
          %v7020 = vunpack.c.l.b16 %v4700
          %v7021 = vunpack.c.h.b16 %v4700
          %v7022 = vunpack.c.l.b16 %v4701
          %v7023 = vunpack.c.h.b16 %v4701
          %v7024 = vunpack.c.l.b16 %v4702
          %v7025 = vunpack.c.h.b16 %v4702
          %v7026 = vunpack.c.l.b16 %v4703
          %v7027 = vunpack.c.h.b16 %v4703
          %v7028 = vunpack.c.l.b16 %v4704
          %v7029 = vunpack.c.h.b16 %v4704
          %v7030 = vunpack.c.l.b16 %v4705
          %v7031 = vunpack.c.h.b16 %v4705
          %v7032 = vunpack.c.l.b16 %v4706
          %v7033 = vunpack.c.h.b16 %v4706
          %v7034 = vunpack.c.l.b16 %v4707
          %v7035 = vunpack.c.h.b16 %v4707
          %v7036 = vunpack.c.l.b16 %v4708
          %v7037 = vunpack.c.h.b16 %v4708
          %v7038 = vunpack.c.l.b16 %v4709
          %v7039 = vunpack.c.h.b16 %v4709
          %v7040 = vunpack.c.l.b16 %v4710
          %v7041 = vunpack.c.h.b16 %v4710
          %v7042 = vunpack.c.l.b16 %v4711
          %v7043 = vunpack.c.h.b16 %v4711
          %v7044 = vunpack.c.l.b16 %v4712
          %v7045 = vunpack.c.h.b16 %v4712
          %v7046 = vunpack.c.l.b16 %v4713
          %v7047 = vunpack.c.h.b16 %v4713
          %v7048 = vunpack.c.l.b16 %v4714
          %v7049 = vunpack.c.h.b16 %v4714
          %v7050 = vunpack.c.l.b16 %v4715
          %v7051 = vunpack.c.h.b16 %v4715
          %v7052 = vunpack.c.l.b16 %v4716
          %v7053 = vunpack.c.h.b16 %v4716
          %v7054 = vunpack.c.l.b16 %v4717
          %v7055 = vunpack.c.h.b16 %v4717
          %v7056 = vunpack.c.l.b16 %v4718
          %v7057 = vunpack.c.h.b16 %v4718
          %v7058 = vunpack.c.l.b16 %v4719
          %v7059 = vunpack.c.h.b16 %v4719
          %v7060 = vunpack.c.l.b16 %v4720
          %v7061 = vunpack.c.h.b16 %v4720
          %v7062 = vunpack.c.l.b16 %v4721
          %v7063 = vunpack.c.h.b16 %v4721
          %v7064 = vunpack.c.l.b16 %v4722
          %v7065 = vunpack.c.h.b16 %v4722
          %v7066 = vunpack.c.l.b16 %v4723
          %v7067 = vunpack.c.h.b16 %v4723
          %v7068 = vunpack.c.l.b16 %v4724
          %v7069 = vunpack.c.h.b16 %v4724
          %v7070 = vunpack.c.l.b16 %v4725
          %v7071 = vunpack.c.h.b16 %v4725
          %v7072 = vunpack.c.l.b16 %v4726
          %v7073 = vunpack.c.h.b16 %v4726
          %v7074 = vunpack.c.l.b16 %v4727
          %v7075 = vunpack.c.h.b16 %v4727
          %v7076 = vunpack.c.l.b16 %v4728
          %v7077 = vunpack.c.h.b16 %v4728
          %v7078 = vunpack.c.l.b16 %v4729
          %v7079 = vunpack.c.h.b16 %v4729
          %v7080 = vunpack.c.l.b16 %v4730
          %v7081 = vunpack.c.h.b16 %v4730
          %v7082 = vunpack.c.l.b16 %v4731
          %v7083 = vunpack.c.h.b16 %v4731
          %v7084 = vunpack.c.l.b16 %v4732
          %v7085 = vunpack.c.h.b16 %v4732
          %v7086 = vunpack.c.l.b16 %v4733
          %v7087 = vunpack.c.h.b16 %v4733
          %v7088 = vunpack.c.l.b16 %v4734
          %v7089 = vunpack.c.h.b16 %v4734
          %v7090 = vunpack.c.l.b16 %v4735
          %v7091 = vunpack.c.h.b16 %v4735
          %v7092 = vunpack.c.l.b16 %v4736
          %v7093 = vunpack.c.h.b16 %v4736
          %v7094 = vunpack.c.l.b16 %v4737
          %v7095 = vunpack.c.h.b16 %v4737
          %v7096 = vunpack.c.l.b16 %v4738
          %v7097 = vunpack.c.h.b16 %v4738
          %v7098 = vunpack.c.l.b16 %v4739
          %v7099 = vunpack.c.h.b16 %v4739
          %v7100 = vunpack.c.l.b16 %v4740
          %v7101 = vunpack.c.h.b16 %v4740
          %v7102 = vunpack.c.l.b16 %v4741
          %v7103 = vunpack.c.h.b16 %v4741
          %v7104 = vunpack.c.l.b16 %v4742
          %v7105 = vunpack.c.h.b16 %v4742
          %v7106 = vunpack.c.l.b16 %v4743
          %v7107 = vunpack.c.h.b16 %v4743
          %v7108 = vunpack.c.l.b16 %v4744
          %v7109 = vunpack.c.h.b16 %v4744
          %v7110 = vunpack.c.l.b16 %v4745
          %v7111 = vunpack.c.h.b16 %v4745
          %v7112 = vunpack.c.l.b16 %v4746
          %v7113 = vunpack.c.h.b16 %v4746
          %v7114 = vunpack.c.l.b16 %v4747
          %v7115 = vunpack.c.h.b16 %v4747
          %v7116 = vunpack.c.l.b16 %v4748
          %v7117 = vunpack.c.h.b16 %v4748
          %v7118 = vunpack.c.l.b16 %v4749
          %v7119 = vunpack.c.h.b16 %v4749
          %v7120 = vunpack.c.l.b16 %v4750
          %v7121 = vunpack.c.h.b16 %v4750
          %v7122 = vunpack.c.l.b16 %v4751
          %v7123 = vunpack.c.h.b16 %v4751
          %v7124 = vunpack.c.l.b16 %v4752
          %v7125 = vunpack.c.h.b16 %v4752
          %v7126 = vunpack.c.l.b16 %v4753
          %v7127 = vunpack.c.h.b16 %v4753
          %v7128 = vunpack.c.l.b16 %v4754
          %v7129 = vunpack.c.h.b16 %v4754
          %v7130 = vunpack.c.l.b16 %v4755
          %v7131 = vunpack.c.h.b16 %v4755
          %v7132 = vunpack.c.l.b16 %v4756
          %v7133 = vunpack.c.h.b16 %v4756
          %v7134 = vunpack.c.l.b16 %v4757
          %v7135 = vunpack.c.h.b16 %v4757
          %v7136 = vunpack.c.l.b16 %v4758
          %v7137 = vunpack.c.h.b16 %v4758
          %v7138 = vunpack.c.l.b16 %v4759
          %v7139 = vunpack.c.h.b16 %v4759
          %v7140 = vunpack.c.l.b16 %v4760
          %v7141 = vunpack.c.h.b16 %v4760
          %v7142 = vunpack.c.l.b16 %v4761
          %v7143 = vunpack.c.h.b16 %v4761
          %v7144 = vunpack.c.l.b16 %v4762
          %v7145 = vunpack.c.h.b16 %v4762
          %v7146 = vunpack.c.l.b16 %v4763
          %v7147 = vunpack.c.h.b16 %v4763
          %v7148 = vunpack.c.l.b16 %v4764
          %v7149 = vunpack.c.h.b16 %v4764
          %v7150 = vunpack.c.l.b16 %v4765
          %v7151 = vunpack.c.h.b16 %v4765
          %v7152 = vunpack.c.l.b16 %v4766
          %v7153 = vunpack.c.h.b16 %v4766
          %v7154 = vunpack.c.l.b16 %v4767
          %v7155 = vunpack.c.h.b16 %v4767
          %v7156 = vunpack.c.l.b16 %v4768
          %v7157 = vunpack.c.h.b16 %v4768
          %v7158 = vunpack.c.l.b16 %v4769
          %v7159 = vunpack.c.h.b16 %v4769
          %v7160 = vunpack.c.l.b16 %v4770
          %v7161 = vunpack.c.h.b16 %v4770
          %v7162 = vunpack.c.l.b16 %v4771
          %v7163 = vunpack.c.h.b16 %v4771
          %v7164 = vunpack.c.l.b16 %v4772
          %v7165 = vunpack.c.h.b16 %v4772
          %v7166 = vunpack.c.l.b16 %v4773
          %v7167 = vunpack.c.h.b16 %v4773
          %v7168 = vunpack.c.l.b16 %v4774
          %v7169 = vunpack.c.h.b16 %v4774
          %v7170 = vunpack.c.l.b16 %v4775
          %v7171 = vunpack.c.h.b16 %v4775
          %v7172 = vunpack.c.l.b16 %v4776
          %v7173 = vunpack.c.h.b16 %v4776
          %v7174 = vunpack.c.l.b16 %v4777
          %v7175 = vunpack.c.h.b16 %v4777
          %v7176 = vunpack.c.l.b16 %v4778
          %v7177 = vunpack.c.h.b16 %v4778
          %v7178 = vunpack.c.l.b16 %v4779
          %v7179 = vunpack.c.h.b16 %v4779
          %v7180 = vunpack.c.l.b16 %v4780
          %v7181 = vunpack.c.h.b16 %v4780
          %v7182 = vunpack.c.l.b16 %v4781
          %v7183 = vunpack.c.h.b16 %v4781
          %v7184 = vunpack.c.l.b16 %v4782
          %v7185 = vunpack.c.h.b16 %v4782
          %v7186 = vunpack.c.l.b16 %v4783
          %v7187 = vunpack.c.h.b16 %v4783
          %v7188 = vunpack.c.l.b16 %v4784
          %v7189 = vunpack.c.h.b16 %v4784
          %v7190 = vunpack.c.l.b16 %v4785
          %v7191 = vunpack.c.h.b16 %v4785
          %v7192 = vunpack.c.l.b16 %v4786
          %v7193 = vunpack.c.h.b16 %v4786
          %v7194 = vunpack.c.l.b16 %v4787
          %v7195 = vunpack.c.h.b16 %v4787
          %v7196 = vunpack.c.l.b16 %v4788
          %v7197 = vunpack.c.h.b16 %v4788
          %v7198 = vunpack.c.l.b16 %v4789
          %v7199 = vunpack.c.h.b16 %v4789
          %v7200 = vunpack.c.l.b16 %v4790
          %v7201 = vunpack.c.h.b16 %v4790
          %v7202 = vunpack.c.l.b16 %v4791
          %v7203 = vunpack.c.h.b16 %v4791
          %v7204 = vunpack.c.l.b16 %v4792
          %v7205 = vunpack.c.h.b16 %v4792
          %v7206 = vunpack.c.l.b16 %v4793
          %v7207 = vunpack.c.h.b16 %v4793
          %v7208 = vunpack.c.l.b16 %v4794
          %v7209 = vunpack.c.h.b16 %v4794
          %v7210 = vunpack.c.l.b16 %v4795
          %v7211 = vunpack.c.h.b16 %v4795
          %v7212 = vunpack.c.l.b16 %v4796
          %v7213 = vunpack.c.h.b16 %v4796
          %v7214 = vunpack.c.l.b16 %v4797
          %v7215 = vunpack.c.h.b16 %v4797
          %v7216 = vunpack.c.l.b16 %v4798
          %v7217 = vunpack.c.h.b16 %v4798
          %v7218 = vunpack.c.l.b16 %v4799
          %v7219 = vunpack.c.h.b16 %v4799
          %v7220 = vunpack.c.l.b16 %v4800
          %v7221 = vunpack.c.h.b16 %v4800
          %v7222 = vunpack.c.l.b16 %v4801
          %v7223 = vunpack.c.h.b16 %v4801
          %v7224 = vunpack.c.l.b16 %v4802
          %v7225 = vunpack.c.h.b16 %v4802
          %v7226 = vunpack.c.l.b16 %v4803
          %v7227 = vunpack.c.h.b16 %v4803
          %v7228 = vunpack.c.l.b16 %v4804
          %v7229 = vunpack.c.h.b16 %v4804
          %v7230 = vunpack.c.l.b16 %v4805
          %v7231 = vunpack.c.h.b16 %v4805
          %v7232 = vunpack.c.l.b16 %v4806
          %v7233 = vunpack.c.h.b16 %v4806
          %v7234 = vunpack.c.l.b16 %v4807
          %v7235 = vunpack.c.h.b16 %v4807
          %v7236 = vunpack.c.l.b16 %v4808
          %v7237 = vunpack.c.h.b16 %v4808
          %v7238 = vunpack.c.l.b16 %v4809
          %v7239 = vunpack.c.h.b16 %v4809
          %v7240 = vunpack.c.l.b16 %v4810
          %v7241 = vunpack.c.h.b16 %v4810
          %v7242 = vunpack.c.l.b16 %v4811
          %v7243 = vunpack.c.h.b16 %v4811
          %v7244 = vunpack.c.l.b16 %v4812
          %v7245 = vunpack.c.h.b16 %v4812
          %v7246 = vunpack.c.l.b16 %v4813
          %v7247 = vunpack.c.h.b16 %v4813
          %v7248 = vunpack.c.l.b16 %v4814
          %v7249 = vunpack.c.h.b16 %v4814
          %v7250 = vunpack.c.l.b16 %v4815
          %v7251 = vunpack.c.h.b16 %v4815
          %v7252 = vunpack.c.l.b16 %v4816
          %v7253 = vunpack.c.h.b16 %v4816
          %v7254 = vunpack.c.l.b16 %v4817
          %v7255 = vunpack.c.h.b16 %v4817
          %v7256 = vunpack.c.l.b16 %v4818
          %v7257 = vunpack.c.h.b16 %v4818
          %v7258 = vunpack.c.l.b16 %v4819
          %v7259 = vunpack.c.h.b16 %v4819
          %v7260 = vunpack.c.l.b16 %v4820
          %v7261 = vunpack.c.h.b16 %v4820
          %v7262 = vunpack.c.l.b16 %v4821
          %v7263 = vunpack.c.h.b16 %v4821
          %v7264 = vunpack.c.l.b16 %v4822
          %v7265 = vunpack.c.h.b16 %v4822
          %v7266 = vunpack.c.l.b16 %v4823
          %v7267 = vunpack.c.h.b16 %v4823
          %v7268 = vunpack.c.l.b16 %v4824
          %v7269 = vunpack.c.h.b16 %v4824
          %v7270 = vunpack.c.l.b16 %v4825
          %v7271 = vunpack.c.h.b16 %v4825
          %v7272 = vunpack.c.l.b16 %v4826
          %v7273 = vunpack.c.h.b16 %v4826
          %v7274 = vunpack.c.l.b16 %v4827
          %v7275 = vunpack.c.h.b16 %v4827
          %v7276 = vunpack.c.l.b16 %v4828
          %v7277 = vunpack.c.h.b16 %v4828
          %v7278 = vunpack.c.l.b16 %v4829
          %v7279 = vunpack.c.h.b16 %v4829
          %v7280 = vunpack.c.l.b16 %v4830
          %v7281 = vunpack.c.h.b16 %v4830
          %v7282 = vunpack.c.l.b16 %v4831
          %v7283 = vunpack.c.h.b16 %v4831
          %v7284 = vunpack.c.l.b16 %v4832
          %v7285 = vunpack.c.h.b16 %v4832
          %v7286 = vunpack.c.l.b16 %v4833
          %v7287 = vunpack.c.h.b16 %v4833
          %v7288 = vunpack.c.l.b16 %v4834
          %v7289 = vunpack.c.h.b16 %v4834
          %v7290 = vunpack.c.l.b16 %v4835
          %v7291 = vunpack.c.h.b16 %v4835
          %v7292 = vunpack.c.l.b16 %v4836
          %v7293 = vunpack.c.h.b16 %v4836
          %v7294 = vunpack.c.l.b16 %v4837
          %v7295 = vunpack.c.h.b16 %v4837
          %v7296 = vunpack.c.l.b16 %v4838
          %v7297 = vunpack.c.h.b16 %v4838
          %v7298 = vunpack.c.l.b16 %v4839
          %v7299 = vunpack.c.h.b16 %v4839
          %v7300 = vunpack.c.l.b16 %v4840
          %v7301 = vunpack.c.h.b16 %v4840
          %v7302 = vunpack.c.l.b16 %v4841
          %v7303 = vunpack.c.h.b16 %v4841
          %v7304 = vunpack.c.l.b16 %v4842
          %v7305 = vunpack.c.h.b16 %v4842
          %v7306 = vunpack.c.l.b16 %v4843
          %v7307 = vunpack.c.h.b16 %v4843
          %v7308 = vunpack.c.l.b16 %v4844
          %v7309 = vunpack.c.h.b16 %v4844
          %v7310 = vunpack.c.l.b16 %v4845
          %v7311 = vunpack.c.h.b16 %v4845
          %v7312 = vunpack.c.l.b16 %v4846
          %v7313 = vunpack.c.h.b16 %v4846
          %v7314 = vunpack.c.l.b16 %v4847
          %v7315 = vunpack.c.h.b16 %v4847
          %v7316 = vunpack.c.l.b16 %v4848
          %v7317 = vunpack.c.h.b16 %v4848
          %v7318 = vunpack.c.l.b16 %v4849
          %v7319 = vunpack.c.h.b16 %v4849
          %v7320 = vunpack.c.l.b16 %v4850
          %v7321 = vunpack.c.h.b16 %v4850
          %v7322 = vunpack.c.l.b16 %v4851
          %v7323 = vunpack.c.h.b16 %v4851
          %v7324 = vunpack.c.l.b16 %v4852
          %v7325 = vunpack.c.h.b16 %v4852
          %v7326 = vunpack.c.l.b16 %v4853
          %v7327 = vunpack.c.h.b16 %v4853
          %v7328 = vunpack.c.l.b16 %v4854
          %v7329 = vunpack.c.h.b16 %v4854
          %v7330 = vunpack.c.l.b16 %v4855
          %v7331 = vunpack.c.h.b16 %v4855
          %v7332 = vunpack.c.l.b16 %v4856
          %v7333 = vunpack.c.h.b16 %v4856
          %v7334 = vunpack.c.l.b16 %v4857
          %v7335 = vunpack.c.h.b16 %v4857
          %v7336 = vunpack.c.l.b16 %v4858
          %v7337 = vunpack.c.h.b16 %v4858
          %v7338 = vunpack.c.l.b16 %v4859
          %v7339 = vunpack.c.h.b16 %v4859
          %v7340 = vunpack.c.l.b16 %v4860
          %v7341 = vunpack.c.h.b16 %v4860
          %v7342 = vunpack.c.l.b16 %v4861
          %v7343 = vunpack.c.h.b16 %v4861
          %v7344 = vunpack.c.l.b16 %v4862
          %v7345 = vunpack.c.h.b16 %v4862
          %v7346 = vunpack.c.l.b16 %v4863
          %v7347 = vunpack.c.h.b16 %v4863
          %v7348 = vunpack.c.l.b16 %v4864
          %v7349 = vunpack.c.h.b16 %v4864
          %v7350 = vunpack.c.l.b16 %v4865
          %v7351 = vunpack.c.h.b16 %v4865
          %v7352 = vunpack.c.l.b16 %v4866
          %v7353 = vunpack.c.h.b16 %v4866
          %v7354 = vunpack.c.l.b16 %v4867
          %v7355 = vunpack.c.h.b16 %v4867
          %v7356 = vunpack.c.l.b16 %v4868
          %v7357 = vunpack.c.h.b16 %v4868
          %v7358 = vunpack.c.l.b16 %v4869
          %v7359 = vunpack.c.h.b16 %v4869
          %v7360 = vunpack.c.l.b16 %v4870
          %v7361 = vunpack.c.h.b16 %v4870
          %v7362 = vunpack.c.l.b16 %v4871
          %v7363 = vunpack.c.h.b16 %v4871
          %v7364 = vunpack.c.l.b16 %v4872
          %v7365 = vunpack.c.h.b16 %v4872
          %v7366 = vunpack.c.l.b16 %v4873
          %v7367 = vunpack.c.h.b16 %v4873
          %v7368 = vunpack.c.l.b16 %v4874
          %v7369 = vunpack.c.h.b16 %v4874
          %v7370 = vunpack.c.l.b16 %v4875
          %v7371 = vunpack.c.h.b16 %v4875
          %v7372 = vunpack.c.l.b16 %v4876
          %v7373 = vunpack.c.h.b16 %v4876
          %v7374 = vunpack.c.l.b16 %v4877
          %v7375 = vunpack.c.h.b16 %v4877
          %v7376 = vunpack.c.l.b16 %v4878
          %v7377 = vunpack.c.h.b16 %v4878
          %v7378 = vunpack.c.l.b16 %v4879
          %v7379 = vunpack.c.h.b16 %v4879
          %v7380 = vunpack.c.l.b16 %v4880
          %v7381 = vunpack.c.h.b16 %v4880
          %v7382 = vunpack.c.l.b16 %v4881
          %v7383 = vunpack.c.h.b16 %v4881
          %v7384 = vunpack.c.l.b16 %v4882
          %v7385 = vunpack.c.h.b16 %v4882
          %v7386 = vunpack.c.l.b16 %v4883
          %v7387 = vunpack.c.h.b16 %v4883
          %v7388 = vunpack.c.l.b16 %v4884
          %v7389 = vunpack.c.h.b16 %v4884
          %v7390 = vunpack.c.l.b16 %v4885
          %v7391 = vunpack.c.h.b16 %v4885
          %v7392 = vunpack.c.l.b16 %v4886
          %v7393 = vunpack.c.h.b16 %v4886
          %v7394 = vunpack.c.l.b16 %v4887
          %v7395 = vunpack.c.h.b16 %v4887
          %v7396 = vunpack.c.l.b16 %v4888
          %v7397 = vunpack.c.h.b16 %v4888
          %v7398 = vunpack.c.l.b16 %v4889
          %v7399 = vunpack.c.h.b16 %v4889
          %v7400 = vunpack.c.l.b16 %v4890
          %v7401 = vunpack.c.h.b16 %v4890
          %v7402 = vunpack.c.l.b16 %v4891
          %v7403 = vunpack.c.h.b16 %v4891
          %v7404 = vunpack.c.l.b16 %v4892
          %v7405 = vunpack.c.h.b16 %v4892
          %v7406 = vunpack.c.l.b16 %v4893
          %v7407 = vunpack.c.h.b16 %v4893
          %v7408 = vunpack.c.l.b16 %v4894
          %v7409 = vunpack.c.h.b16 %v4894
          %v7410 = vunpack.c.l.b16 %v4895
          %v7411 = vunpack.c.h.b16 %v4895
          %v7412 = vunpack.c.l.b16 %v4896
          %v7413 = vunpack.c.h.b16 %v4896
          %v7414 = vunpack.c.l.b16 %v4897
          %v7415 = vunpack.c.h.b16 %v4897
          %v7416 = vunpack.c.l.b16 %v4898
          %v7417 = vunpack.c.h.b16 %v4898
          %v7418 = vunpack.c.l.b16 %v4899
          %v7419 = vunpack.c.h.b16 %v4899
          %v7420 = vunpack.c.l.b16 %v4900
          %v7421 = vunpack.c.h.b16 %v4900
          %v7422 = vunpack.c.l.b16 %v4901
          %v7423 = vunpack.c.h.b16 %v4901
          %v7424 = vunpack.c.l.b16 %v4902
          %v7425 = vunpack.c.h.b16 %v4902
          %v7426 = vunpack.c.l.b16 %v4903
          %v7427 = vunpack.c.h.b16 %v4903
          %v7428 = vunpack.c.l.b16 %v4904
          %v7429 = vunpack.c.h.b16 %v4904
          %v7430 = vunpack.c.l.b16 %v4905
          %v7431 = vunpack.c.h.b16 %v4905
          %v7432 = vunpack.c.l.b16 %v4906
          %v7433 = vunpack.c.h.b16 %v4906
          %v7434 = vunpack.c.l.b16 %v4907
          %v7435 = vunpack.c.h.b16 %v4907
          %v7436 = vunpack.c.l.b16 %v4908
          %v7437 = vunpack.c.h.b16 %v4908
          %v7438 = vunpack.c.l.b16 %v4909
          %v7439 = vunpack.c.h.b16 %v4909
          %v7440 = vunpack.c.l.b16 %v4910
          %v7441 = vunpack.c.h.b16 %v4910
          %v7442 = vunpack.c.l.b16 %v4911
          %v7443 = vunpack.c.h.b16 %v4911
          %v7444 = vunpack.c.l.b16 %v4912
          %v7445 = vunpack.c.h.b16 %v4912
          %v7446 = vunpack.c.l.b16 %v4913
          %v7447 = vunpack.c.h.b16 %v4913
          %v7448 = vunpack.c.l.b16 %v4914
          %v7449 = vunpack.c.h.b16 %v4914
          %v7450 = vunpack.c.l.b16 %v4915
          %v7451 = vunpack.c.h.b16 %v4915
          %v7452 = vunpack.c.l.b16 %v4916
          %v7453 = vunpack.c.h.b16 %v4916
          %v7454 = vunpack.c.l.b16 %v4917
          %v7455 = vunpack.c.h.b16 %v4917
          %v7456 = vunpack.c.l.b16 %v4918
          %v7457 = vunpack.c.h.b16 %v4918
          %v7458 = vunpack.c.l.b16 %v4919
          %v7459 = vunpack.c.h.b16 %v4919
          %v7460 = vunpack.c.l.b16 %v4920
          %v7461 = vunpack.c.h.b16 %v4920
          %v7462 = vunpack.c.l.b16 %v4921
          %v7463 = vunpack.c.h.b16 %v4921
          %v7464 = vunpack.c.l.b16 %v4922
          %v7465 = vunpack.c.h.b16 %v4922
          %v7466 = vunpack.c.l.b16 %v4923
          %v7467 = vunpack.c.h.b16 %v4923
          %v7468 = vunpack.c.l.b16 %v4924
          %v7469 = vunpack.c.h.b16 %v4924
          %v7470 = vunpack.c.l.b16 %v4925
          %v7471 = vunpack.c.h.b16 %v4925
          %v7472 = vunpack.c.l.b16 %v4926
          %v7473 = vunpack.c.h.b16 %v4926
          %v7474 = vunpack.c.l.b16 %v4927
          %v7475 = vunpack.c.h.b16 %v4927
          %v7476 = vunpack.c.l.b16 %v4928
          %v7477 = vunpack.c.h.b16 %v4928
          %v7478 = vunpack.c.l.b16 %v4929
          %v7479 = vunpack.c.h.b16 %v4929
          %v7480 = vunpack.c.l.b16 %v4930
          %v7481 = vunpack.c.h.b16 %v4930
          %v7482 = vunpack.c.l.b16 %v4931
          %v7483 = vunpack.c.h.b16 %v4931
          %v7484 = vunpack.c.l.b16 %v4932
          %v7485 = vunpack.c.h.b16 %v4932
          %v7486 = vunpack.c.l.b16 %v4933
          %v7487 = vunpack.c.h.b16 %v4933
          %v7488 = vunpack.c.l.b16 %v4934
          %v7489 = vunpack.c.h.b16 %v4934
          %v7490 = vunpack.c.l.b16 %v4935
          %v7491 = vunpack.c.h.b16 %v4935
          %v7492 = vunpack.c.l.b16 %v4936
          %v7493 = vunpack.c.h.b16 %v4936
          %v7494 = vunpack.c.l.b16 %v4937
          %v7495 = vunpack.c.h.b16 %v4937
          %v7496 = vunpack.c.l.b16 %v4938
          %v7497 = vunpack.c.h.b16 %v4938
          %v7498 = vunpack.c.l.b16 %v4939
          %v7499 = vunpack.c.h.b16 %v4939
          %v7500 = vunpack.c.l.b16 %v4940
          %v7501 = vunpack.c.h.b16 %v4940
          %v7502 = vunpack.c.l.b16 %v4941
          %v7503 = vunpack.c.h.b16 %v4941
          %v7504 = vunpack.c.l.b16 %v4942
          %v7505 = vunpack.c.h.b16 %v4942
          %v7506 = vunpack.c.l.b16 %v4943
          %v7507 = vunpack.c.h.b16 %v4943
          %v7508 = vunpack.c.l.b16 %v4944
          %v7509 = vunpack.c.h.b16 %v4944
          %v7510 = vunpack.c.l.b16 %v4945
          %v7511 = vunpack.c.h.b16 %v4945
          %v7512 = vunpack.c.l.b16 %v4946
          %v7513 = vunpack.c.h.b16 %v4946
          %v7514 = vunpack.c.l.b16 %v4947
          %v7515 = vunpack.c.h.b16 %v4947
          %v7516 = vunpack.c.l.b16 %v4948
          %v7517 = vunpack.c.h.b16 %v4948
          %v7518 = vunpack.c.l.b16 %v4949
          %v7519 = vunpack.c.h.b16 %v4949
          %v7520 = vunpack.c.l.b16 %v4950
          %v7521 = vunpack.c.h.b16 %v4950
          %v7522 = vunpack.c.l.b16 %v4951
          %v7523 = vunpack.c.h.b16 %v4951
          %v7524 = vunpack.c.l.b16 %v4952
          %v7525 = vunpack.c.h.b16 %v4952
          %v7526 = vunpack.c.l.b16 %v4953
          %v7527 = vunpack.c.h.b16 %v4953
          %v7528 = vunpack.c.l.b16 %v4954
          %v7529 = vunpack.c.h.b16 %v4954
          %v7530 = vunpack.c.l.b16 %v4955
          %v7531 = vunpack.c.h.b16 %v4955
          %v7532 = vunpack.c.l.b16 %v4956
          %v7533 = vunpack.c.h.b16 %v4956
          %v7534 = vunpack.c.l.b16 %v4957
          %v7535 = vunpack.c.h.b16 %v4957
          %v7536 = vunpack.c.l.b16 %v4958
          %v7537 = vunpack.c.h.b16 %v4958
          %v7538 = vunpack.c.l.b16 %v4959
          %v7539 = vunpack.c.h.b16 %v4959
          %v7540 = vunpack.c.l.b16 %v4960
          %v7541 = vunpack.c.h.b16 %v4960
          %v7542 = vunpack.c.l.b16 %v4961
          %v7543 = vunpack.c.h.b16 %v4961
          %v7544 = vunpack.c.l.b16 %v4962
          %v7545 = vunpack.c.h.b16 %v4962
          %v7546 = vunpack.c.l.b16 %v4963
          %v7547 = vunpack.c.h.b16 %v4963
          %v7548 = vunpack.c.l.b16 %v4964
          %v7549 = vunpack.c.h.b16 %v4964
          %v7550 = vunpack.c.l.b16 %v4965
          %v7551 = vunpack.c.h.b16 %v4965
          %v7552 = vunpack.c.l.b16 %v4966
          %v7553 = vunpack.c.h.b16 %v4966
          %v7554 = vunpack.c.l.b16 %v4967
          %v7555 = vunpack.c.h.b16 %v4967
          %v7556 = vunpack.c.l.b16 %v4968
          %v7557 = vunpack.c.h.b16 %v4968
          %v7558 = vunpack.c.l.b16 %v4969
          %v7559 = vunpack.c.h.b16 %v4969
          %v7560 = vunpack.c.l.b16 %v4970
          %v7561 = vunpack.c.h.b16 %v4970
          %v7562 = vunpack.c.l.b16 %v4971
          %v7563 = vunpack.c.h.b16 %v4971
          %v7564 = vunpack.c.l.b16 %v4972
          %v7565 = vunpack.c.h.b16 %v4972
          %v7566 = vunpack.c.l.b16 %v4973
          %v7567 = vunpack.c.h.b16 %v4973
          %v7568 = vunpack.c.l.b16 %v4974
          %v7569 = vunpack.c.h.b16 %v4974
          %v7570 = vunpack.c.l.b16 %v4975
          %v7571 = vunpack.c.h.b16 %v4975
          %v7572 = vunpack.c.l.b16 %v4976
          %v7573 = vunpack.c.h.b16 %v4976
          %v7574 = vunpack.c.l.b16 %v4977
          %v7575 = vunpack.c.h.b16 %v4977
          %v7576 = vunpack.c.l.b16 %v4978
          %v7577 = vunpack.c.h.b16 %v4978
          %v7578 = vunpack.c.l.b16 %v4979
          %v7579 = vunpack.c.h.b16 %v4979
          %v7580 = vunpack.c.l.b16 %v4980
          %v7581 = vunpack.c.h.b16 %v4980
          %v7582 = vunpack.c.l.b16 %v4981
          %v7583 = vunpack.c.h.b16 %v4981
          %v7584 = vunpack.c.l.b16 %v4982
          %v7585 = vunpack.c.h.b16 %v4982
          %v7586 = vunpack.c.l.b16 %v4983
          %v7587 = vunpack.c.h.b16 %v4983
          %v7588 = vunpack.c.l.b16 %v4984
          %v7589 = vunpack.c.h.b16 %v4984
          %v7590 = vunpack.c.l.b16 %v4985
          %v7591 = vunpack.c.h.b16 %v4985
          %v7592 = vunpack.c.l.b16 %v4986
          %v7593 = vunpack.c.h.b16 %v4986
          %v7594 = vunpack.c.l.b16 %v4987
          %v7595 = vunpack.c.h.b16 %v4987
          %v7596 = vunpack.c.l.b16 %v4988
          %v7597 = vunpack.c.h.b16 %v4988
          %v7598 = vunpack.c.l.b16 %v4989
          %v7599 = vunpack.c.h.b16 %v4989
          %v7600 = vunpack.c.l.b16 %v4990
          %v7601 = vunpack.c.h.b16 %v4990
          %v7602 = vunpack.c.l.b16 %v4991
          %v7603 = vunpack.c.h.b16 %v4991
          %v7604 = vunpack.c.l.b16 %v4992
          %v7605 = vunpack.c.h.b16 %v4992
          %v7606 = vunpack.c.l.b16 %v4993
          %v7607 = vunpack.c.h.b16 %v4993
          %v7608 = vunpack.c.l.b16 %v4994
          %v7609 = vunpack.c.h.b16 %v4994
          %v7610 = vunpack.c.l.b16 %v4995
          %v7611 = vunpack.c.h.b16 %v4995
          %v7612 = vunpack.c.l.b16 %v4996
          %v7613 = vunpack.c.h.b16 %v4996
          %v7614 = vunpack.c.l.b16 %v4997
          %v7615 = vunpack.c.h.b16 %v4997
          %v7616 = vunpack.c.l.b16 %v4998
          %v7617 = vunpack.c.h.b16 %v4998
          %v7618 = vunpack.c.l.b16 %v4999
          %v7619 = vunpack.c.h.b16 %v4999
          %v7620 = vunpack.c.l.b16 %v5000
          %v7621 = vunpack.c.h.b16 %v5000
          %v7622 = vunpack.c.l.b16 %v5001
          %v7623 = vunpack.c.h.b16 %v5001
          %v7624 = vunpack.c.l.b16 %v5002
          %v7625 = vunpack.c.h.b16 %v5002
          %v7626 = vunpack.c.l.b16 %v5003
          %v7627 = vunpack.c.h.b16 %v5003
          %v7628 = vunpack.c.l.b16 %v5004
          %v7629 = vunpack.c.h.b16 %v5004
          %v7630 = vunpack.c.l.b16 %v5005
          %v7631 = vunpack.c.h.b16 %v5005
          %v7632 = vunpack.c.l.b16 %v5006
          %v7633 = vunpack.c.h.b16 %v5006
          %v7634 = vunpack.c.l.b16 %v5007
          %v7635 = vunpack.c.h.b16 %v5007
          %v7636 = vunpack.c.l.b16 %v5008
          %v7637 = vunpack.c.h.b16 %v5008
          %v7638 = vunpack.c.l.b16 %v5009
          %v7639 = vunpack.c.h.b16 %v5009
          %v7640 = vunpack.c.l.b16 %v5010
          %v7641 = vunpack.c.h.b16 %v5010
          %v7642 = vunpack.c.l.b16 %v5011
          %v7643 = vunpack.c.h.b16 %v5011
          %v7644 = vunpack.c.l.b16 %v5012
          %v7645 = vunpack.c.h.b16 %v5012
          %v7646 = vunpack.c.l.b16 %v5013
          %v7647 = vunpack.c.h.b16 %v5013
          %v7648 = vunpack.c.l.b16 %v5014
          %v7649 = vunpack.c.h.b16 %v5014
          %v7650 = vunpack.c.l.b16 %v5015
          %v7651 = vunpack.c.h.b16 %v5015
          %v7652 = vunpack.c.l.b16 %v5016
          %v7653 = vunpack.c.h.b16 %v5016
          %v7654 = vunpack.c.l.b16 %v5017
          %v7655 = vunpack.c.h.b16 %v5017
          %v7656 = vunpack.c.l.b16 %v5018
          %v7657 = vunpack.c.h.b16 %v5018
          %v7658 = vunpack.c.l.b16 %v5019
          %v7659 = vunpack.c.h.b16 %v5019
          %v7660 = vunpack.c.l.b16 %v5020
          %v7661 = vunpack.c.h.b16 %v5020
          %v7662 = vunpack.c.l.b16 %v5021
          %v7663 = vunpack.c.h.b16 %v5021
          %v7664 = vunpack.c.l.b16 %v5022
          %v7665 = vunpack.c.h.b16 %v5022
          %v7666 = vunpack.c.l.b16 %v5023
          %v7667 = vunpack.c.h.b16 %v5023
          %v7668 = vunpack.c.l.b16 %v5024
          %v7669 = vunpack.c.h.b16 %v5024
          %v7670 = vunpack.c.l.b16 %v5025
          %v7671 = vunpack.c.h.b16 %v5025
          %v7672 = vunpack.c.l.b16 %v5026
          %v7673 = vunpack.c.h.b16 %v5026
          %v7674 = vunpack.c.l.b16 %v5027
          %v7675 = vunpack.c.h.b16 %v5027
          %v7676 = vunpack.c.l.b16 %v5028
          %v7677 = vunpack.c.h.b16 %v5028
          %v7678 = vunpack.c.l.b16 %v5029
          %v7679 = vunpack.c.h.b16 %v5029
          %v7680 = vunpack.c.l.b16 %v5030
          %v7681 = vunpack.c.h.b16 %v5030
          %v7682 = vunpack.c.l.b16 %v5031
          %v7683 = vunpack.c.h.b16 %v5031
          %v7684 = vunpack.c.l.b16 %v5032
          %v7685 = vunpack.c.h.b16 %v5032
          %v7686 = vunpack.c.l.b16 %v5033
          %v7687 = vunpack.c.h.b16 %v5033
          %v7688 = vunpack.c.l.b16 %v5034
          %v7689 = vunpack.c.h.b16 %v5034
          %v7690 = vunpack.c.l.b16 %v5035
          %v7691 = vunpack.c.h.b16 %v5035
          %v7692 = vunpack.c.l.b16 %v5036
          %v7693 = vunpack.c.h.b16 %v5036
          %v7694 = vunpack.c.l.b16 %v5037
          %v7695 = vunpack.c.h.b16 %v5037
          %v7696 = vunpack.c.l.b16 %v5038
          %v7697 = vunpack.c.h.b16 %v5038
          %v7698 = vunpack.c.l.b16 %v5039
          %v7699 = vunpack.c.h.b16 %v5039
          %v7700 = vunpack.c.l.b16 %v5040
          %v7701 = vunpack.c.h.b16 %v5040
          %v7702 = vunpack.c.l.b16 %v5041
          %v7703 = vunpack.c.h.b16 %v5041
          %v7704 = vunpack.c.l.b16 %v5042
          %v7705 = vunpack.c.h.b16 %v5042
          %v7706 = vunpack.c.l.b16 %v5043
          %v7707 = vunpack.c.h.b16 %v5043
          %v7708 = vunpack.c.l.b16 %v5044
          %v7709 = vunpack.c.h.b16 %v5044
          %v7710 = vunpack.c.l.b16 %v5045
          %v7711 = vunpack.c.h.b16 %v5045
          %v7712 = vunpack.c.l.b16 %v5046
          %v7713 = vunpack.c.h.b16 %v5046
          %v7714 = vunpack.c.l.b16 %v5047
          %v7715 = vunpack.c.h.b16 %v5047
          %v7716 = vunpack.c.l.b16 %v5048
          %v7717 = vunpack.c.h.b16 %v5048
          %v7718 = vunpack.c.l.b16 %v5049
          %v7719 = vunpack.c.h.b16 %v5049
          %v7720 = vunpack.c.l.b16 %v5050
          %v7721 = vunpack.c.h.b16 %v5050
          %v7722 = vunpack.c.l.b16 %v5051
          %v7723 = vunpack.c.h.b16 %v5051
          %v7724 = vunpack.c.l.b16 %v5052
          %v7725 = vunpack.c.h.b16 %v5052
          %v7726 = vunpack.c.l.b16 %v5053
          %v7727 = vunpack.c.h.b16 %v5053
          %v7728 = vunpack.c.l.b16 %v5054
          %v7729 = vunpack.c.h.b16 %v5054
          %v7730 = vunpack.c.l.b16 %v5055
          %v7731 = vunpack.c.h.b16 %v5055
          %v7732 = vunpack.c.l.b16 %v5056
          %v7733 = vunpack.c.h.b16 %v5056
          %v7734 = vunpack.c.l.b16 %v5057
          %v7735 = vunpack.c.h.b16 %v5057
          %v7736 = vunpack.c.l.b16 %v5058
          %v7737 = vunpack.c.h.b16 %v5058
          %v7738 = vunpack.c.l.b16 %v5059
          %v7739 = vunpack.c.h.b16 %v5059
          %v7740 = vunpack.c.l.b16 %v5060
          %v7741 = vunpack.c.h.b16 %v5060
          %v7742 = vunpack.c.l.b16 %v5061
          %v7743 = vunpack.c.h.b16 %v5061
          %v7744 = vunpack.c.l.b16 %v5062
          %v7745 = vunpack.c.h.b16 %v5062
          %v7746 = vunpack.c.l.b16 %v5063
          %v7747 = vunpack.c.h.b16 %v5063
          %v7748 = vunpack.c.l.b16 %v5064
          %v7749 = vunpack.c.h.b16 %v5064
          %v7750 = vunpack.c.l.b16 %v5065
          %v7751 = vunpack.c.h.b16 %v5065
          %v7752 = vunpack.c.l.b16 %v5066
          %v7753 = vunpack.c.h.b16 %v5066
          %v7754 = vunpack.c.l.b16 %v5067
          %v7755 = vunpack.c.h.b16 %v5067
          %v7756 = vunpack.c.l.b16 %v5068
          %v7757 = vunpack.c.h.b16 %v5068
          %v7758 = vunpack.c.l.b16 %v5069
          %v7759 = vunpack.c.h.b16 %v5069
          %v7760 = vunpack.c.l.b16 %v5070
          %v7761 = vunpack.c.h.b16 %v5070
          %v7762 = vunpack.c.l.b16 %v5071
          %v7763 = vunpack.c.h.b16 %v5071
          %v7764 = vunpack.c.l.b16 %v5072
          %v7765 = vunpack.c.h.b16 %v5072
          %v7766 = vunpack.c.l.b16 %v5073
          %v7767 = vunpack.c.h.b16 %v5073
          %v7768 = vunpack.c.l.b16 %v5074
          %v7769 = vunpack.c.h.b16 %v5074
          %v7770 = vunpack.c.l.b16 %v5075
          %v7771 = vunpack.c.h.b16 %v5075
          %v7772 = vunpack.c.l.b16 %v5076
          %v7773 = vunpack.c.h.b16 %v5076
          %v7774 = vunpack.c.l.b16 %v5077
          %v7775 = vunpack.c.h.b16 %v5077
          %v7776 = vunpack.c.l.b16 %v5078
          %v7777 = vunpack.c.h.b16 %v5078
          %v7778 = vunpack.c.l.b16 %v5079
          %v7779 = vunpack.c.h.b16 %v5079
          %v7780 = vunpack.c.l.b16 %v5080
          %v7781 = vunpack.c.h.b16 %v5080
          %v7782 = vunpack.c.l.b16 %v5081
          %v7783 = vunpack.c.h.b16 %v5081
          %v7784 = vunpack.c.l.b16 %v5082
          %v7785 = vunpack.c.h.b16 %v5082
          %v7786 = vunpack.c.l.b16 %v5083
          %v7787 = vunpack.c.h.b16 %v5083
          %v7788 = vunpack.c.l.b16 %v5084
          %v7789 = vunpack.c.h.b16 %v5084
          %v7790 = vunpack.c.l.b16 %v5085
          %v7791 = vunpack.c.h.b16 %v5085
          %v7792 = vunpack.c.l.b16 %v5086
          %v7793 = vunpack.c.h.b16 %v5086
          %v7794 = vunpack.c.l.b16 %v5087
          %v7795 = vunpack.c.h.b16 %v5087
          %v7796 = vunpack.c.l.b16 %v5088
          %v7797 = vunpack.c.h.b16 %v5088
          %v7798 = vunpack.c.l.b16 %v5089
          %v7799 = vunpack.c.h.b16 %v5089
          %v7800 = vunpack.c.l.b16 %v5090
          %v7801 = vunpack.c.h.b16 %v5090
          %v7802 = vunpack.c.l.b16 %v5091
          %v7803 = vunpack.c.h.b16 %v5091
          %v7804 = vunpack.c.l.b16 %v5092
          %v7805 = vunpack.c.h.b16 %v5092
          %v7806 = vunpack.c.l.b16 %v5093
          %v7807 = vunpack.c.h.b16 %v5093
          %v7808 = vunpack.c.l.b16 %v5094
          %v7809 = vunpack.c.h.b16 %v5094
          %v7810 = vunpack.c.l.b16 %v5095
          %v7811 = vunpack.c.h.b16 %v5095
          %v7812 = vunpack.c.l.b16 %v5096
          %v7813 = vunpack.c.h.b16 %v5096
          %v7814 = vunpack.c.l.b16 %v5097
          %v7815 = vunpack.c.h.b16 %v5097
          %v7816 = vunpack.c.l.b16 %v5098
          %v7817 = vunpack.c.h.b16 %v5098
          %v7818 = vunpack.c.l.b16 %v5099
          %v7819 = vunpack.c.h.b16 %v5099
          %v7820 = vunpack.c.l.b16 %v5100
          %v7821 = vunpack.c.h.b16 %v5100
          %v7822 = vunpack.c.l.b16 %v5101
          %v7823 = vunpack.c.h.b16 %v5101
          %v7824 = vunpack.c.l.b16 %v5102
          %v7825 = vunpack.c.h.b16 %v5102
          %v7826 = vunpack.c.l.b16 %v5103
          %v7827 = vunpack.c.h.b16 %v5103
          %v7828 = vunpack.c.l.b16 %v5104
          %v7829 = vunpack.c.h.b16 %v5104
          %v7830 = vunpack.c.l.b16 %v5105
          %v7831 = vunpack.c.h.b16 %v5105
          %v7832 = vunpack.c.l.b16 %v5106
          %v7833 = vunpack.c.h.b16 %v5106
          %v7834 = vunpack.c.l.b16 %v5107
          %v7835 = vunpack.c.h.b16 %v5107
          %v7836 = vunpack.c.l.b16 %v5108
          %v7837 = vunpack.c.h.b16 %v5108
          %v7838 = vunpack.c.l.b16 %v5109
          %v7839 = vunpack.c.h.b16 %v5109
          %v7840 = vunpack.c.l.b16 %v5110
          %v7841 = vunpack.c.h.b16 %v5110
          %v7842 = vunpack.c.l.b16 %v5111
          %v7843 = vunpack.c.h.b16 %v5111
          %v7844 = vunpack.c.l.b16 %v5112
          %v7845 = vunpack.c.h.b16 %v5112
          %v7846 = vunpack.c.l.b16 %v5113
          %v7847 = vunpack.c.h.b16 %v5113
          %v7848 = vunpack.c.l.b16 %v5114
          %v7849 = vunpack.c.h.b16 %v5114
          %v7850 = vunpack.c.l.b16 %v5115
          %v7851 = vunpack.c.h.b16 %v5115
          %v7852 = vunpack.c.l.b16 %v5116
          %v7853 = vunpack.c.h.b16 %v5116
          %v7854 = vunpack.c.l.b16 %v5117
          %v7855 = vunpack.c.h.b16 %v5117
          %v7856 = vunpack.c.l.b16 %v5118
          %v7857 = vunpack.c.h.b16 %v5118
          %v7858 = vunpack.c.l.b16 %v5119
          %v7859 = vunpack.c.h.b16 %v5119
          %v7860 = vunpack.c.l.b16 %v5120
          %v7861 = vunpack.c.h.b16 %v5120
          %v7862 = vunpack.c.l.b16 %v5121
          %v7863 = vunpack.c.h.b16 %v5121
          %v7864 = vunpack.c.l.b16 %v5122
          %v7865 = vunpack.c.h.b16 %v5122
          %v7866 = vunpack.c.l.b16 %v5123
          %v7867 = vunpack.c.h.b16 %v5123
          %v7868 = vunpack.c.l.b16 %v5124
          %v7869 = vunpack.c.h.b16 %v5124
          %v7870 = vunpack.c.l.b16 %v5125
          %v7871 = vunpack.c.h.b16 %v5125
          %v7872 = vunpack.c.l.b16 %v5126
          %v7873 = vunpack.c.h.b16 %v5126
          %v7874 = vunpack.c.l.b16 %v5127
          %v7875 = vunpack.c.h.b16 %v5127
          %v7876 = vunpack.c.l.b16 %v5128
          %v7877 = vunpack.c.h.b16 %v5128
          %v7878 = vunpack.c.l.b16 %v5129
          %v7879 = vunpack.c.h.b16 %v5129
          %v7880 = vunpack.c.l.b16 %v5130
          %v7881 = vunpack.c.h.b16 %v5130
          %v7882 = vunpack.c.l.b16 %v5131
          %v7883 = vunpack.c.h.b16 %v5131
          %v7884 = vunpack.c.l.b16 %v5132
          %v7885 = vunpack.c.h.b16 %v5132
          %v7886 = vunpack.c.l.b16 %v5133
          %v7887 = vunpack.c.h.b16 %v5133
          %v7888 = vunpack.c.l.b16 %v5134
          %v7889 = vunpack.c.h.b16 %v5134
          %v7890 = vunpack.c.l.b16 %v5135
          %v7891 = vunpack.c.h.b16 %v5135
          %v7892 = vunpack.c.l.b16 %v5136
          %v7893 = vunpack.c.h.b16 %v5136
          %v7894 = vunpack.c.l.b16 %v5137
          %v7895 = vunpack.c.h.b16 %v5137
          %v7896 = vunpack.c.l.b16 %v5138
          %v7897 = vunpack.c.h.b16 %v5138
          %v7898 = vunpack.c.l.b16 %v5139
          %v7899 = vunpack.c.h.b16 %v5139
          %v7900 = vunpack.c.l.b16 %v5140
          %v7901 = vunpack.c.h.b16 %v5140
          %v7902 = vunpack.c.l.b16 %v5141
          %v7903 = vunpack.c.h.b16 %v5141
          %v7904 = vunpack.c.l.b16 %v5142
          %v7905 = vunpack.c.h.b16 %v5142
          %v7906 = vunpack.c.l.b16 %v5143
          %v7907 = vunpack.c.h.b16 %v5143
          %v7908 = vunpack.c.l.b16 %v5144
          %v7909 = vunpack.c.h.b16 %v5144
          %v7910 = vunpack.c.l.b16 %v5145
          %v7911 = vunpack.c.h.b16 %v5145
          %v7912 = vunpack.c.l.b16 %v5146
          %v7913 = vunpack.c.h.b16 %v5146
          %v7914 = vunpack.c.l.b16 %v5147
          %v7915 = vunpack.c.h.b16 %v5147
          %v7916 = vunpack.c.l.b16 %v5148
          %v7917 = vunpack.c.h.b16 %v5148
          %v7918 = vunpack.c.l.b16 %v5149
          %v7919 = vunpack.c.h.b16 %v5149
          %v7920 = vunpack.c.l.b16 %v5150
          %v7921 = vunpack.c.h.b16 %v5150
          %v7922 = vunpack.c.l.b16 %v5151
          %v7923 = vunpack.c.h.b16 %v5151
          %v7924 = vunpack.c.l.b16 %v5152
          %v7925 = vunpack.c.h.b16 %v5152
          %v7926 = vunpack.c.l.b16 %v5153
          %v7927 = vunpack.c.h.b16 %v5153
          %v7928 = vunpack.c.l.b16 %v5154
          %v7929 = vunpack.c.h.b16 %v5154
          %v7930 = vunpack.c.l.b16 %v5155
          %v7931 = vunpack.c.h.b16 %v5155
          %v7932 = vunpack.c.l.b16 %v5156
          %v7933 = vunpack.c.h.b16 %v5156
          %v7934 = vunpack.c.l.b16 %v5157
          %v7935 = vunpack.c.h.b16 %v5157
          %v7936 = vunpack.c.l.b16 %v5158
          %v7937 = vunpack.c.h.b16 %v5158
          %v7938 = vunpack.c.l.b16 %v5159
          %v7939 = vunpack.c.h.b16 %v5159
          %v7940 = vunpack.c.l.b16 %v5160
          %v7941 = vunpack.c.h.b16 %v5160
          %v7942 = vunpack.c.l.b16 %v5161
          %v7943 = vunpack.c.h.b16 %v5161
          %v7944 = vunpack.c.l.b16 %v5162
          %v7945 = vunpack.c.h.b16 %v5162
          %v7946 = vunpack.c.l.b16 %v5163
          %v7947 = vunpack.c.h.b16 %v5163
          %v7948 = vunpack.c.l.b16 %v5164
          %v7949 = vunpack.c.h.b16 %v5164
          %v7950 = vunpack.c.l.b16 %v5165
          %v7951 = vunpack.c.h.b16 %v5165
          %v7952 = vunpack.c.l.b16 %v5166
          %v7953 = vunpack.c.h.b16 %v5166
          %v7954 = vunpack.c.l.b16 %v5167
          %v7955 = vunpack.c.h.b16 %v5167
          %v7956 = vunpack.c.l.b16 %v5168
          %v7957 = vunpack.c.h.b16 %v5168
          %v7958 = vunpack.c.l.b16 %v5169
          %v7959 = vunpack.c.h.b16 %v5169
          %v7960 = vunpack.c.l.b16 %v5170
          %v7961 = vunpack.c.h.b16 %v5170
          %v7962 = vunpack.c.l.b16 %v5171
          %v7963 = vunpack.c.h.b16 %v5171
          %v7964 = vunpack.c.l.b16 %v5172
          %v7965 = vunpack.c.h.b16 %v5172
          %v7966 = vunpack.c.l.b16 %v5173
          %v7967 = vunpack.c.h.b16 %v5173
          %v7968 = vunpack.c.l.b16 %v5174
          %v7969 = vunpack.c.h.b16 %v5174
          %v7970 = vunpack.c.l.b16 %v5175
          %v7971 = vunpack.c.h.b16 %v5175
          %v7972 = vunpack.c.l.b16 %v5176
          %v7973 = vunpack.c.h.b16 %v5176
          %v7974 = vunpack.c.l.b16 %v5177
          %v7975 = vunpack.c.h.b16 %v5177
          %v7976 = vunpack.c.l.b16 %v5178
          %v7977 = vunpack.c.h.b16 %v5178
          %v7978 = vunpack.c.l.b16 %v5179
          %v7979 = vunpack.c.h.b16 %v5179
          %v7980 = vunpack.c.l.b16 %v5180
          %v7981 = vunpack.c.h.b16 %v5180
          %v7982 = vunpack.c.l.b16 %v5181
          %v7983 = vunpack.c.h.b16 %v5181
          %v7984 = vunpack.c.l.b16 %v5182
          %v7985 = vunpack.c.h.b16 %v5182
          %v7986 = vunpack.c.l.b16 %v5183
          %v7987 = vunpack.c.h.b16 %v5183
          %v7988 = vunpack.c.l.b16 %v5184
          %v7989 = vunpack.c.h.b16 %v5184
          %v7990 = vunpack.c.l.b16 %v5185
          %v7991 = vunpack.c.h.b16 %v5185
          %v7992 = vunpack.c.l.b16 %v5186
          %v7993 = vunpack.c.h.b16 %v5186
          %v7994 = vunpack.c.l.b16 %v5187
          %v7995 = vunpack.c.h.b16 %v5187
          %v7996 = vunpack.c.l.b16 %v5188
          %v7997 = vunpack.c.h.b16 %v5188
          %v7998 = vunpack.c.l.b16 %v5189
          %v7999 = vunpack.c.h.b16 %v5189
          %v8000 = vunpack.c.l.b16 %v5190
          %v8001 = vunpack.c.h.b16 %v5190
          %v8002 = vunpack.c.l.b16 %v5191
          %v8003 = vunpack.c.h.b16 %v5191
          %v8004 = vunpack.c.l.b16 %v5192
          %v8005 = vunpack.c.h.b16 %v5192
          %v8006 = vunpack.c.l.b16 %v5193
          %v8007 = vunpack.c.h.b16 %v5193
          %v8008 = vunpack.c.l.b16 %v5194
          %v8009 = vunpack.c.h.b16 %v5194
          %v8010 = vunpack.c.l.b16 %v5195
          %v8011 = vunpack.c.h.b16 %v5195
          %v8012 = vunpack.c.l.b16 %v5196
          %v8013 = vunpack.c.h.b16 %v5196
          %v8014 = vunpack.c.l.b16 %v5197
          %v8015 = vunpack.c.h.b16 %v5197
          %v8016 = vunpack.c.l.b16 %v5198
          %v8017 = vunpack.c.h.b16 %v5198
          %v8018 = vunpack.c.l.b16 %v5199
          %v8019 = vunpack.c.h.b16 %v5199
          %v8020 = vunpack.c.l.b16 %v5200
          %v8021 = vunpack.c.h.b16 %v5200
          %v8022 = vunpack.c.l.b16 %v5201
          %v8023 = vunpack.c.h.b16 %v5201
          %v8024 = vunpack.c.l.b16 %v5202
          %v8025 = vunpack.c.h.b16 %v5202
          %v8026 = vunpack.c.l.b16 %v5203
          %v8027 = vunpack.c.h.b16 %v5203
          %v8028 = vunpack.c.l.b16 %v5204
          %v8029 = vunpack.c.h.b16 %v5204
          %v8030 = vunpack.c.l.b16 %v5205
          %v8031 = vunpack.c.h.b16 %v5205
          %v8032 = vunpack.c.l.b16 %v5206
          %v8033 = vunpack.c.h.b16 %v5206
          %v8034 = vunpack.c.l.b16 %v5207
          %v8035 = vunpack.c.h.b16 %v5207
          %v8036 = vunpack.c.l.b16 %v5208
          %v8037 = vunpack.c.h.b16 %v5208
          %v8038 = vunpack.c.l.b16 %v5209
          %v8039 = vunpack.c.h.b16 %v5209
          %v8040 = vunpack.c.l.b16 %v5210
          %v8041 = vunpack.c.h.b16 %v5210
          %v8042 = vunpack.c.l.b16 %v5211
          %v8043 = vunpack.c.h.b16 %v5211
          %v8044 = vunpack.c.l.b16 %v5212
          %v8045 = vunpack.c.h.b16 %v5212
          %v8046 = vunpack.c.l.b16 %v5213
          %v8047 = vunpack.c.h.b16 %v5213
          %v8048 = vunpack.c.l.b16 %v5214
          %v8049 = vunpack.c.h.b16 %v5214
          %v8050 = vunpack.c.l.b16 %v5215
          %v8051 = vunpack.c.h.b16 %v5215
          %v8052 = vunpack.c.l.b16 %v5216
          %v8053 = vunpack.c.h.b16 %v5216
          %v8054 = vunpack.c.l.b16 %v5217
          %v8055 = vunpack.c.h.b16 %v5217
          %v8056 = vunpack.c.l.b16 %v5218
          %v8057 = vunpack.c.h.b16 %v5218
          %v8058 = vunpack.c.l.b16 %v5219
          %v8059 = vunpack.c.h.b16 %v5219
          %v8060 = vunpack.c.l.b16 %v5220
          %v8061 = vunpack.c.h.b16 %v5220
          %v8062 = vunpack.c.l.b16 %v5221
          %v8063 = vunpack.c.h.b16 %v5221
          %v8064 = vunpack.c.l.b16 %v5222
          %v8065 = vunpack.c.h.b16 %v5222
          %v8066 = vunpack.c.l.b16 %v5223
          %v8067 = vunpack.c.h.b16 %v5223
          %v8068 = vunpack.c.l.b16 %v5224
          %v8069 = vunpack.c.h.b16 %v5224
          %v8070 = vunpack.c.l.b16 %v5225
          %v8071 = vunpack.c.h.b16 %v5225
          %v8072 = vunpack.c.l.b16 %v5226
          %v8073 = vunpack.c.h.b16 %v5226
          %v8074 = vunpack.c.l.b16 %v5227
          %v8075 = vunpack.c.h.b16 %v5227
          %v8076 = vunpack.c.l.b16 %v5228
          %v8077 = vunpack.c.h.b16 %v5228
          %v8078 = vunpack.c.l.b16 %v5229
          %v8079 = vunpack.c.h.b16 %v5229
          %v8080 = vunpack.c.l.b16 %v5230
          %v8081 = vunpack.c.h.b16 %v5230
          %v8082 = vunpack.c.l.b16 %v5231
          %v8083 = vunpack.c.h.b16 %v5231
          %v8084 = vunpack.c.l.b16 %v5232
          %v8085 = vunpack.c.h.b16 %v5232
          %v8086 = vunpack.c.l.b16 %v5233
          %v8087 = vunpack.c.h.b16 %v5233
          %v8088 = vunpack.c.l.b16 %v5234
          %v8089 = vunpack.c.h.b16 %v5234
          %v8090 = vunpack.c.l.b16 %v5235
          %v8091 = vunpack.c.h.b16 %v5235
          %v8092 = vunpack.c.l.b16 %v5236
          %v8093 = vunpack.c.h.b16 %v5236
          %v8094 = vunpack.c.l.b16 %v5237
          %v8095 = vunpack.c.h.b16 %v5237
          %v8096 = vunpack.c.l.b16 %v5238
          %v8097 = vunpack.c.h.b16 %v5238
          %v8098 = vunpack.c.l.b16 %v5239
          %v8099 = vunpack.c.h.b16 %v5239
          %v8100 = vunpack.c.l.b16 %v5240
          %v8101 = vunpack.c.h.b16 %v5240
          %v8102 = vunpack.c.l.b16 %v5241
          %v8103 = vunpack.c.h.b16 %v5241
          %v8104 = vunpack.c.l.b16 %v5242
          %v8105 = vunpack.c.h.b16 %v5242
          %v8106 = vunpack.c.l.b16 %v5243
          %v8107 = vunpack.c.h.b16 %v5243
          %v8108 = vunpack.c.l.b16 %v5244
          %v8109 = vunpack.c.h.b16 %v5244
          %v8110 = vunpack.c.l.b16 %v5245
          %v8111 = vunpack.c.h.b16 %v5245
          %v8112 = vunpack.c.l.b16 %v5246
          %v8113 = vunpack.c.h.b16 %v5246
          %v8114 = vunpack.c.l.b16 %v5247
          %v8115 = vunpack.c.h.b16 %v5247
          %v8116 = vunpack.c.l.b16 %v5248
          %v8117 = vunpack.c.h.b16 %v5248
          %v8118 = vunpack.c.l.b16 %v5249
          %v8119 = vunpack.c.h.b16 %v5249
          %v8120 = vunpack.c.l.b16 %v5250
          %v8121 = vunpack.c.h.b16 %v5250
          %v8122 = vunpack.c.l.b16 %v5251
          %v8123 = vunpack.c.h.b16 %v5251
          %v8124 = vunpack.c.l.b16 %v5252
          %v8125 = vunpack.c.h.b16 %v5252
          %v8126 = vunpack.c.l.b16 %v5253
          %v8127 = vunpack.c.h.b16 %v5253
          %v8128 = vunpack.c.l.b16 %v5254
          %v8129 = vunpack.c.h.b16 %v5254
          %v8130 = vunpack.c.l.b16 %v5255
          %v8131 = vunpack.c.h.b16 %v5255
          %v8132 = vunpack.c.l.b16 %v5256
          %v8133 = vunpack.c.h.b16 %v5256
          %v8134 = vunpack.c.l.b16 %v5257
          %v8135 = vunpack.c.h.b16 %v5257
          %v8136 = vunpack.c.l.b16 %v5258
          %v8137 = vunpack.c.h.b16 %v5258
          %v8138 = vunpack.c.l.b16 %v5259
          %v8139 = vunpack.c.h.b16 %v5259
          %v8140 = vunpack.c.l.b16 %v5260
          %v8141 = vunpack.c.h.b16 %v5260
          %v8142 = vunpack.c.l.b16 %v5261
          %v8143 = vunpack.c.h.b16 %v5261
          %v8144 = vunpack.c.l.b16 %v5262
          %v8145 = vunpack.c.h.b16 %v5262
          %v8146 = vunpack.c.l.b16 %v5263
          %v8147 = vunpack.c.h.b16 %v5263
          %v8148 = vunpack.c.l.b16 %v5264
          %v8149 = vunpack.c.h.b16 %v5264
          %v8150 = vunpack.c.l.b16 %v5265
          %v8151 = vunpack.c.h.b16 %v5265
          %v8152 = vunpack.c.l.b16 %v5266
          %v8153 = vunpack.c.h.b16 %v5266
          %v8154 = vunpack.c.l.b16 %v5267
          %v8155 = vunpack.c.h.b16 %v5267
          %v8156 = vunpack.c.l.b16 %v5268
          %v8157 = vunpack.c.h.b16 %v5268
          %v8158 = vunpack.c.l.b16 %v5269
          %v8159 = vunpack.c.h.b16 %v5269
          %v8160 = vunpack.c.l.b16 %v5270
          %v8161 = vunpack.c.h.b16 %v5270
          %v8162 = vunpack.c.l.b16 %v5271
          %v8163 = vunpack.c.h.b16 %v5271
          %v8164 = vunpack.c.l.b16 %v5272
          %v8165 = vunpack.c.h.b16 %v5272
          %v8166 = vunpack.c.l.b16 %v5273
          %v8167 = vunpack.c.h.b16 %v5273
          %v8168 = vunpack.c.l.b16 %v5274
          %v8169 = vunpack.c.h.b16 %v5274
          %v8170 = vunpack.c.l.b16 %v5275
          %v8171 = vunpack.c.h.b16 %v5275
          %v8172 = vunpack.c.l.b16 %v5276
          %v8173 = vunpack.c.h.b16 %v5276
          %v8174 = vunpack.c.l.b16 %v5277
          %v8175 = vunpack.c.h.b16 %v5277
          %v8176 = vunpack.c.l.b16 %v5278
          %v8177 = vunpack.c.h.b16 %v5278
          %v8178 = vunpack.c.l.b16 %v5279
          %v8179 = vunpack.c.h.b16 %v5279
          %v8180 = vunpack.c.l.b16 %v5280
          %v8181 = vunpack.c.h.b16 %v5280
          %v8182 = vunpack.c.l.b16 %v5281
          %v8183 = vunpack.c.h.b16 %v5281
          %v8184 = vunpack.c.l.b16 %v5282
          %v8185 = vunpack.c.h.b16 %v5282
          %v8186 = vunpack.c.l.b16 %v5283
          %v8187 = vunpack.c.h.b16 %v5283
          %v8188 = vunpack.c.l.b16 %v5284
          %v8189 = vunpack.c.h.b16 %v5284
          %v8190 = vunpack.c.l.b16 %v5285
          %v8191 = vunpack.c.h.b16 %v5285
          %v8192 = vunpack.c.l.b16 %v5286
          %v8193 = vunpack.c.h.b16 %v5286
          %v8194 = vunpack.c.l.b16 %v5287
          %v8195 = vunpack.c.h.b16 %v5287
          %v8196 = vunpack.c.l.b16 %v5288
          %v8197 = vunpack.c.h.b16 %v5288
          %v8198 = vunpack.c.l.b16 %v5289
          %v8199 = vunpack.c.h.b16 %v5289
          %v8200 = vunpack.c.l.b16 %v5290
          %v8201 = vunpack.c.h.b16 %v5290
          %v8202 = vunpack.c.l.b16 %v5291
          %v8203 = vunpack.c.h.b16 %v5291
          %v8204 = vunpack.c.l.b16 %v5292
          %v8205 = vunpack.c.h.b16 %v5292
          %v8206 = vunpack.c.l.b16 %v5293
          %v8207 = vunpack.c.h.b16 %v5293
          %v8208 = vunpack.c.l.b16 %v5294
          %v8209 = vunpack.c.h.b16 %v5294
          %v8210 = vunpack.c.l.b16 %v5295
          %v8211 = vunpack.c.h.b16 %v5295
          %v8212 = vunpack.c.l.b16 %v5296
          %v8213 = vunpack.c.h.b16 %v5296
          %v8214 = vunpack.c.l.b16 %v5297
          %v8215 = vunpack.c.h.b16 %v5297
          %v8216 = vunpack.c.l.b16 %v5298
          %v8217 = vunpack.c.h.b16 %v5298
          %v8218 = vunpack.c.l.b16 %v5299
          %v8219 = vunpack.c.h.b16 %v5299
          %v8220 = vunpack.c.l.b16 %v5300
          %v8221 = vunpack.c.h.b16 %v5300
          %v8222 = vunpack.c.l.b16 %v5301
          %v8223 = vunpack.c.h.b16 %v5301
          %v8224 = vunpack.c.l.b16 %v5302
          %v8225 = vunpack.c.h.b16 %v5302
          %v8226 = vunpack.c.l.b16 %v5303
          %v8227 = vunpack.c.h.b16 %v5303
          %v8228 = vunpack.c.l.b16 %v5304
          %v8229 = vunpack.c.h.b16 %v5304
          %v8230 = vunpack.c.l.b16 %v5305
          %v8231 = vunpack.c.h.b16 %v5305
          %v8232 = vunpack.c.l.b16 %v5306
          %v8233 = vunpack.c.h.b16 %v5306
          %v8234 = vunpack.c.l.b16 %v5307
          %v8235 = vunpack.c.h.b16 %v5307
          %v8236 = vunpack.c.l.b16 %v5308
          %v8237 = vunpack.c.h.b16 %v5308
          %v8238 = vunpack.c.l.b16 %v5309
          %v8239 = vunpack.c.h.b16 %v5309
          %v8240 = vunpack.c.l.b16 %v5310
          %v8241 = vunpack.c.h.b16 %v5310
          %v8242 = vunpack.c.l.b16 %v5311
          %v8243 = vunpack.c.h.b16 %v5311
          %v8244 = vunpack.c.l.b16 %v5312
          %v8245 = vunpack.c.h.b16 %v5312
          %v8246 = vunpack.c.l.b16 %v5313
          %v8247 = vunpack.c.h.b16 %v5313
          %v8248 = vunpack.c.l.b16 %v5314
          %v8249 = vunpack.c.h.b16 %v5314
          %v8250 = vunpack.c.l.b16 %v5315
          %v8251 = vunpack.c.h.b16 %v5315
          %v8252 = vunpack.c.l.b16 %v5316
          %v8253 = vunpack.c.h.b16 %v5316
          %v8254 = vunpack.c.l.b16 %v5317
          %v8255 = vunpack.c.h.b16 %v5317
          %v8256 = vunpack.c.l.b16 %v5318
          %v8257 = vunpack.c.h.b16 %v5318
          %v8258 = vunpack.c.l.b16 %v5319
          %v8259 = vunpack.c.h.b16 %v5319
          %v8260 = vunpack.c.l.b16 %v5320
          %v8261 = vunpack.c.h.b16 %v5320
          %v8262 = vunpack.c.l.b16 %v5321
          %v8263 = vunpack.c.h.b16 %v5321
          %v8264 = vunpack.c.l.b16 %v5322
          %v8265 = vunpack.c.h.b16 %v5322
          %v8266 = vunpack.c.l.b16 %v5323
          %v8267 = vunpack.c.h.b16 %v5323
          %v8268 = vunpack.c.l.b16 %v5324
          %v8269 = vunpack.c.h.b16 %v5324
          %v8270 = vunpack.c.l.b16 %v5325
          %v8271 = vunpack.c.h.b16 %v5325
          %v8272 = vunpack.c.l.b16 %v5326
          %v8273 = vunpack.c.h.b16 %v5326
          %v8274 = vunpack.c.l.b16 %v5327
          %v8275 = vunpack.c.h.b16 %v5327
          %v8276 = vunpack.c.l.b16 %v5328
          %v8277 = vunpack.c.h.b16 %v5328
          %v8278 = vunpack.c.l.b16 %v5329
          %v8279 = vunpack.c.h.b16 %v5329
          %v8280 = vunpack.c.l.b16 %v5330
          %v8281 = vunpack.c.h.b16 %v5330
          %v8282 = vunpack.c.l.b16 %v5331
          %v8283 = vunpack.c.h.b16 %v5331
          %v8284 = vunpack.c.l.b16 %v5332
          %v8285 = vunpack.c.h.b16 %v5332
          %v8286 = vunpack.c.l.b16 %v5333
          %v8287 = vunpack.c.h.b16 %v5333
          %v8288 = vunpack.c.l.b16 %v5334
          %v8289 = vunpack.c.h.b16 %v5334
          %v8290 = vunpack.c.l.b16 %v5335
          %v8291 = vunpack.c.h.b16 %v5335
          %v8292 = vunpack.c.l.b16 %v5336
          %v8293 = vunpack.c.h.b16 %v5336
          %v8294 = vunpack.c.l.b16 %v5337
          %v8295 = vunpack.c.h.b16 %v5337
          %v8296 = vunpack.c.l.b16 %v5338
          %v8297 = vunpack.c.h.b16 %v5338
          %v8298 = vunpack.c.l.b16 %v5339
          %v8299 = vunpack.c.h.b16 %v5339
          %v8300 = vunpack.c.l.b16 %v5340
          %v8301 = vunpack.c.h.b16 %v5340
          %v8302 = vunpack.c.l.b16 %v5341
          %v8303 = vunpack.c.h.b16 %v5341
          %v8304 = vunpack.c.l.b16 %v5342
          %v8305 = vunpack.c.h.b16 %v5342
          %v8306 = vunpack.c.l.b16 %v5343
          %v8307 = vunpack.c.h.b16 %v5343
          %v8308 = vunpack.c.l.b16 %v5344
          %v8309 = vunpack.c.h.b16 %v5344
          %v8310 = vunpack.c.l.b16 %v5345
          %v8311 = vunpack.c.h.b16 %v5345
          %v8312 = vunpack.c.l.b16 %v5346
          %v8313 = vunpack.c.h.b16 %v5346
          %v8314 = vunpack.c.l.b16 %v5347
          %v8315 = vunpack.c.h.b16 %v5347
          %v8316 = vunpack.c.l.b16 %v5348
          %v8317 = vunpack.c.h.b16 %v5348
          %v8318 = vunpack.c.l.b16 %v5349
          %v8319 = vunpack.c.h.b16 %v5349
          %v8320 = vunpack.c.l.b16 %v5350
          %v8321 = vunpack.c.h.b16 %v5350
          %v8322 = vunpack.c.l.b16 %v5351
          %v8323 = vunpack.c.h.b16 %v5351
          %v8324 = vunpack.c.l.b16 %v5352
          %v8325 = vunpack.c.h.b16 %v5352
          %v8326 = vunpack.c.l.b16 %v5353
          %v8327 = vunpack.c.h.b16 %v5353
          %v8328 = vunpack.c.l.b16 %v5354
          %v8329 = vunpack.c.h.b16 %v5354
          %v8330 = vunpack.c.l.b16 %v5355
          %v8331 = vunpack.c.h.b16 %v5355
          %v8332 = vunpack.c.l.b16 %v5356
          %v8333 = vunpack.c.h.b16 %v5356
          %v8334 = vunpack.c.l.b16 %v5357
          %v8335 = vunpack.c.h.b16 %v5357
          %v8336 = vunpack.c.l.b16 %v5358
          %v8337 = vunpack.c.h.b16 %v5358
          %v8338 = vunpack.c.l.b16 %v5359
          %v8339 = vunpack.c.h.b16 %v5359
          %v8340 = vunpack.c.l.b16 %v5360
          %v8341 = vunpack.c.h.b16 %v5360
          %v8342 = vunpack.c.l.b16 %v5361
          %v8343 = vunpack.c.h.b16 %v5361
          %v8344 = vunpack.c.l.b16 %v5362
          %v8345 = vunpack.c.h.b16 %v5362
          %v8346 = vunpack.c.l.b16 %v5363
          %v8347 = vunpack.c.h.b16 %v5363
          %v8348 = vunpack.c.l.b16 %v5364
          %v8349 = vunpack.c.h.b16 %v5364
          %v8350 = vunpack.c.l.b16 %v5365
          %v8351 = vunpack.c.h.b16 %v5365
          %v8352 = vunpack.c.l.b16 %v5366
          %v8353 = vunpack.c.h.b16 %v5366
          %v8354 = vunpack.c.l.b16 %v5367
          %v8355 = vunpack.c.h.b16 %v5367
          %v8356 = vunpack.c.l.b16 %v5368
          %v8357 = vunpack.c.h.b16 %v5368
          %v8358 = vunpack.c.l.b16 %v5369
          %v8359 = vunpack.c.h.b16 %v5369
          %v8360 = vunpack.c.l.b16 %v5370
          %v8361 = vunpack.c.h.b16 %v5370
          %v8362 = vunpack.c.l.b16 %v5371
          %v8363 = vunpack.c.h.b16 %v5371
          %v8364 = vunpack.c.l.b16 %v5372
          %v8365 = vunpack.c.h.b16 %v5372
          %v8366 = vunpack.c.l.b16 %v5373
          %v8367 = vunpack.c.h.b16 %v5373
          %v8368 = vunpack.c.l.b16 %v5374
          %v8369 = vunpack.c.h.b16 %v5374
          %v8370 = vunpack.c.l.b16 %v5375
          %v8371 = vunpack.c.h.b16 %v5375
          %v8372 = vunpack.c.l.b16 %v5376
          %v8373 = vunpack.c.h.b16 %v5376
          %v8374 = vunpack.c.l.b16 %v5377
          %v8375 = vunpack.c.h.b16 %v5377
          %v8376 = vunpack.c.l.b16 %v5378
          %v8377 = vunpack.c.h.b16 %v5378
          %v8378 = vunpack.c.l.b16 %v5379
          %v8379 = vunpack.c.h.b16 %v5379
          %v8380 = vunpack.c.l.b16 %v5380
          %v8381 = vunpack.c.h.b16 %v5380
          %v8382 = vunpack.c.l.b16 %v5381
          %v8383 = vunpack.c.h.b16 %v5381
          %v8384 = vunpack.c.l.b16 %v5382
          %v8385 = vunpack.c.h.b16 %v5382
          %v8386 = vunpack.c.l.b16 %v5383
          %v8387 = vunpack.c.h.b16 %v5383
          %v8388 = vunpack.c.l.b16 %v5384
          %v8389 = vunpack.c.h.b16 %v5384
          %v8390 = vunpack.c.l.b16 %v5385
          %v8391 = vunpack.c.h.b16 %v5385
          %v8392 = vunpack.c.l.b16 %v5386
          %v8393 = vunpack.c.h.b16 %v5386
          %v8394 = vunpack.c.l.b16 %v5387
          %v8395 = vunpack.c.h.b16 %v5387
          %v8396 = vunpack.c.l.b16 %v5388
          %v8397 = vunpack.c.h.b16 %v5388
          %v8398 = vunpack.c.l.b16 %v5389
          %v8399 = vunpack.c.h.b16 %v5389
          %v8400 = vunpack.c.l.b16 %v5390
          %v8401 = vunpack.c.h.b16 %v5390
          %v8402 = vunpack.c.l.b16 %v5391
          %v8403 = vunpack.c.h.b16 %v5391
          %v8404 = vunpack.c.l.b16 %v5392
          %v8405 = vunpack.c.h.b16 %v5392
          %v8406 = vunpack.c.l.b16 %v5393
          %v8407 = vunpack.c.h.b16 %v5393
          %v8408 = vunpack.c.l.b16 %v5394
          %v8409 = vunpack.c.h.b16 %v5394
          %v8410 = vunpack.c.l.b16 %v5395
          %v8411 = vunpack.c.h.b16 %v5395
          %v8412 = vunpack.c.l.b16 %v5396
          %v8413 = vunpack.c.h.b16 %v5396
          %v8414 = vunpack.c.l.b16 %v5397
          %v8415 = vunpack.c.h.b16 %v5397
          %v8416 = vunpack.c.l.b16 %v5398
          %v8417 = vunpack.c.h.b16 %v5398
          %v8418 = vunpack.c.l.b16 %v5399
          %v8419 = vunpack.c.h.b16 %v5399
          %v8420 = vunpack.c.l.b16 %v5400
          %v8421 = vunpack.c.h.b16 %v5400
          %v8422 = vunpack.c.l.b16 %v5401
          %v8423 = vunpack.c.h.b16 %v5401
          %v8424 = vunpack.c.l.b16 %v5402
          %v8425 = vunpack.c.h.b16 %v5402
          %v8426 = vunpack.c.l.b16 %v5403
          %v8427 = vunpack.c.h.b16 %v5403
          %v8428 = vunpack.c.l.b16 %v5404
          %v8429 = vunpack.c.h.b16 %v5404
          %v8430 = vunpack.c.l.b16 %v5405
          %v8431 = vunpack.c.h.b16 %v5405
          %v8432 = vunpack.c.l.b16 %v5406
          %v8433 = vunpack.c.h.b16 %v5406
          %v8434 = vunpack.c.l.b16 %v5407
          %v8435 = vunpack.c.h.b16 %v5407
          %v8436 = vunpack.c.l.b16 %v5408
          %v8437 = vunpack.c.h.b16 %v5408
          %v8438 = vunpack.c.l.b16 %v5409
          %v8439 = vunpack.c.h.b16 %v5409
          %v8440 = vunpack.c.l.b16 %v5410
          %v8441 = vunpack.c.h.b16 %v5410
          %v8442 = vunpack.c.l.b16 %v5411
          %v8443 = vunpack.c.h.b16 %v5411
          %v8444 = vunpack.c.l.b16 %v5412
          %v8445 = vunpack.c.h.b16 %v5412
          %v8446 = vunpack.c.l.b16 %v5413
          %v8447 = vunpack.c.h.b16 %v5413
          %v8448 = vunpack.c.l.b16 %v5414
          %v8449 = vunpack.c.h.b16 %v5414
          %v8450 = vunpack.c.l.b16 %v5415
          %v8451 = vunpack.c.h.b16 %v5415
          %v8452 = vunpack.c.l.b16 %v5416
          %v8453 = vunpack.c.h.b16 %v5416
          %v8454 = vunpack.c.l.b16 %v5417
          %v8455 = vunpack.c.h.b16 %v5417
          %v8456 = vunpack.c.l.b16 %v5418
          %v8457 = vunpack.c.h.b16 %v5418
          %v8458 = vunpack.c.l.b16 %v5419
          %v8459 = vunpack.c.h.b16 %v5419
          %v8460 = vunpack.c.l.b16 %v5420
          %v8461 = vunpack.c.h.b16 %v5420
          %v8462 = vunpack.c.l.b16 %v5421
          %v8463 = vunpack.c.h.b16 %v5421
          %v8464 = vunpack.c.l.b16 %v5422
          %v8465 = vunpack.c.h.b16 %v5422
          %v8466 = vunpack.c.l.b16 %v5423
          %v8467 = vunpack.c.h.b16 %v5423
          %v8468 = vunpack.c.l.b16 %v5424
          %v8469 = vunpack.c.h.b16 %v5424
          %v8470 = vunpack.c.l.b16 %v5425
          %v8471 = vunpack.c.h.b16 %v5425
          %v8472 = vunpack.c.l.b16 %v5426
          %v8473 = vunpack.c.h.b16 %v5426
          %v8474 = vunpack.c.l.b16 %v5427
          %v8475 = vunpack.c.h.b16 %v5427
          %v8476 = vunpack.c.l.b16 %v5428
          %v8477 = vunpack.c.h.b16 %v5428
          %v8478 = vunpack.c.l.b16 %v5429
          %v8479 = vunpack.c.h.b16 %v5429
          %v8480 = vunpack.c.l.b16 %v5430
          %v8481 = vunpack.c.h.b16 %v5430
          %v8482 = vunpack.c.l.b16 %v5431
          %v8483 = vunpack.c.h.b16 %v5431
          %v8484 = vunpack.c.l.b16 %v5432
          %v8485 = vunpack.c.h.b16 %v5432
          %v8486 = vunpack.c.l.b16 %v5433
          %v8487 = vunpack.c.h.b16 %v5433
          %v8488 = vunpack.c.l.b16 %v5434
          %v8489 = vunpack.c.h.b16 %v5434
          %v8490 = vunpack.c.l.b16 %v5435
          %v8491 = vunpack.c.h.b16 %v5435
          %v8492 = vunpack.c.l.b16 %v5436
          %v8493 = vunpack.c.h.b16 %v5436
          %v8494 = vunpack.c.l.b16 %v5437
          %v8495 = vunpack.c.h.b16 %v5437
          %v8496 = vunpack.c.l.b16 %v5438
          %v8497 = vunpack.c.h.b16 %v5438
          %v8498 = vunpack.c.l.b16 %v5439
          %v8499 = vunpack.c.h.b16 %v5439
          %v8500 = vunpack.c.l.b16 %v5440
          %v8501 = vunpack.c.h.b16 %v5440
          %v8502 = vunpack.c.l.b16 %v5441
          %v8503 = vunpack.c.h.b16 %v5441
          %v8504 = vunpack.c.l.b16 %v5442
          %v8505 = vunpack.c.h.b16 %v5442
          %v8506 = vunpack.c.l.b16 %v5443
          %v8507 = vunpack.c.h.b16 %v5443
          %v8508 = vunpack.c.l.b16 %v5444
          %v8509 = vunpack.c.h.b16 %v5444
          %v8510 = vunpack.c.l.b16 %v5445
          %v8511 = vunpack.c.h.b16 %v5445
          %v8512 = vunpack.c.l.b16 %v5446
          %v8513 = vunpack.c.h.b16 %v5446
          %v8514 = vunpack.c.l.b16 %v5447
          %v8515 = vunpack.c.h.b16 %v5447
          %v8516 = vunpack.c.l.b16 %v5448
          %v8517 = vunpack.c.h.b16 %v5448
          %v8518 = vunpack.c.l.b16 %v5449
          %v8519 = vunpack.c.h.b16 %v5449
          %v8520 = vunpack.c.l.b16 %v5450
          %v8521 = vunpack.c.h.b16 %v5450
          %v8522 = vunpack.c.l.b16 %v5451
          %v8523 = vunpack.c.h.b16 %v5451
          %v8524 = vunpack.c.l.b16 %v5452
          %v8525 = vunpack.c.h.b16 %v5452
          %v8526 = vunpack.c.l.b16 %v5453
          %v8527 = vunpack.c.h.b16 %v5453
          %v8528 = vunpack.c.l.b16 %v5454
          %v8529 = vunpack.c.h.b16 %v5454
          %v8530 = vunpack.c.l.b16 %v5455
          %v8531 = vunpack.c.h.b16 %v5455
          %v8532 = vunpack.c.l.b16 %v5456
          %v8533 = vunpack.c.h.b16 %v5456
          %v8534 = vunpack.c.l.b16 %v5457
          %v8535 = vunpack.c.h.b16 %v5457
          %v8536 = vunpack.c.l.b16 %v5458
          %v8537 = vunpack.c.h.b16 %v5458
          %v8538 = vunpack.c.l.b16 %v5459
          %v8539 = vunpack.c.h.b16 %v5459
          %v8540 = vunpack.c.l.b16 %v5460
          %v8541 = vunpack.c.h.b16 %v5460
          %v8542 = vunpack.c.l.b16 %v5461
          %v8543 = vunpack.c.h.b16 %v5461
          %v8544 = vunpack.c.l.b16 %v5462
          %v8545 = vunpack.c.h.b16 %v5462
          %v8546 = vunpack.c.l.b16 %v5463
          %v8547 = vunpack.c.h.b16 %v5463
          %v8548 = vunpack.c.l.b16 %v5464
          %v8549 = vunpack.c.h.b16 %v5464
          %v8550 = vunpack.c.l.b16 %v5465
          %v8551 = vunpack.c.h.b16 %v5465
          %v8552 = vunpack.c.l.b16 %v5466
          %v8553 = vunpack.c.h.b16 %v5466
          %v8554 = vunpack.c.l.b16 %v5467
          %v8555 = vunpack.c.h.b16 %v5467
          %v8556 = vunpack.c.l.b16 %v5468
          %v8557 = vunpack.c.h.b16 %v5468
          %v8558 = vunpack.c.l.b16 %v5469
          %v8559 = vunpack.c.h.b16 %v5469
          %v8560 = vunpack.c.l.b16 %v5470
          %v8561 = vunpack.c.h.b16 %v5470
          %v8562 = vunpack.c.l.b16 %v5471
          %v8563 = vunpack.c.h.b16 %v5471
          %v8564 = vunpack.c.l.b16 %v5472
          %v8565 = vunpack.c.h.b16 %v5472
          %v8566 = vunpack.c.l.b16 %v5473
          %v8567 = vunpack.c.h.b16 %v5473
          %v8568 = vunpack.c.l.b16 %v5474
          %v8569 = vunpack.c.h.b16 %v5474
          %v8570 = vunpack.c.l.b16 %v5475
          %v8571 = vunpack.c.h.b16 %v5475
          %v8572 = vunpack.c.l.b16 %v5476
          %v8573 = vunpack.c.h.b16 %v5476
          %v8574 = vunpack.c.l.b16 %v5477
          %v8575 = vunpack.c.h.b16 %v5477
          %v8576 = vunpack.c.l.b16 %v5478
          %v8577 = vunpack.c.h.b16 %v5478
          %v8578 = vunpack.c.l.b16 %v5479
          %v8579 = vunpack.c.h.b16 %v5479
          %v8580 = vunpack.c.l.b16 %v5480
          %v8581 = vunpack.c.h.b16 %v5480
          %v8582 = vunpack.c.l.b16 %v5481
          %v8583 = vunpack.c.h.b16 %v5481
          %v8584 = vunpack.c.l.b16 %v5482
          %v8585 = vunpack.c.h.b16 %v5482
          %v8586 = vunpack.c.l.b16 %v5483
          %v8587 = vunpack.c.h.b16 %v5483
          %v8588 = vunpack.c.l.b16 %v5484
          %v8589 = vunpack.c.h.b16 %v5484
          %v8590 = vunpack.c.l.b16 %v5485
          %v8591 = vunpack.c.h.b16 %v5485
          %v8592 = vunpack.c.l.b16 %v5486
          %v8593 = vunpack.c.h.b16 %v5486
          %v8594 = vunpack.c.l.b16 %v5487
          %v8595 = vunpack.c.h.b16 %v5487
          %v8596 = vunpack.c.l.b16 %v5488
          %v8597 = vunpack.c.h.b16 %v5488
          %v8598 = vunpack.c.l.b16 %v5489
          %v8599 = vunpack.c.h.b16 %v5489
          %v8600 = vunpack.c.l.b16 %v5490
          %v8601 = vunpack.c.h.b16 %v5490
          %v8602 = vunpack.c.l.b16 %v5491
          %v8603 = vunpack.c.h.b16 %v5491
          %v8604 = vunpack.c.l.b16 %v5492
          %v8605 = vunpack.c.h.b16 %v5492
          %v8606 = vunpack.c.l.b16 %v5493
          %v8607 = vunpack.c.h.b16 %v5493
          %v8608 = vpack.c.b16 %v6568, %v6560
          %v8609 = vpack.c.b16 %v6569, %v6561
          %v8610 = vpack.c.b16 %v6570, %v6562
          %v8611 = vpack.c.b16 %v6571, %v6563
          %v8612 = vpack.c.b16 %v6572, %v6564
          %v8613 = vpack.c.b16 %v6573, %v6565
          %v8614 = vpack.c.b16 %v6574, %v6566
          %v8615 = vpack.c.b16 %v6575, %v6567
          %v8616 = vpack.c.b16 %v6584, %v6576
          %v8617 = vpack.c.b16 %v6585, %v6577
          %v8618 = vpack.c.b16 %v6586, %v6578
          %v8619 = vpack.c.b16 %v6587, %v6579
          %v8620 = vpack.c.b16 %v6588, %v6580
          %v8621 = vpack.c.b16 %v6589, %v6581
          %v8622 = vpack.c.b16 %v6590, %v6582
          %v8623 = vpack.c.b16 %v6591, %v6583
          %v8624 = vpack.c.b16 %v6600, %v6592
          %v8625 = vpack.c.b16 %v6601, %v6593
          %v8626 = vpack.c.b16 %v6602, %v6594
          %v8627 = vpack.c.b16 %v6603, %v6595
          %v8628 = vpack.c.b16 %v6604, %v6596
          %v8629 = vpack.c.b16 %v6605, %v6597
          %v8630 = vpack.c.b16 %v6606, %v6598
          %v8631 = vpack.c.b16 %v6607, %v6599
          %v8632 = vpack.c.b16 %v6616, %v6608
          %v8633 = vpack.c.b16 %v6617, %v6609
          %v8634 = vpack.c.b16 %v6618, %v6610
          %v8635 = vpack.c.b16 %v6619, %v6611
          %v8636 = vpack.c.b16 %v6620, %v6612
          %v8637 = vpack.c.b16 %v6621, %v6613
          %v8638 = vpack.c.b16 %v6622, %v6614
          %v8639 = vpack.c.b16 %v6623, %v6615
          %v8640 = vpack.c.b16 %v6632, %v6624
          %v8641 = vpack.c.b16 %v6633, %v6625
          %v8642 = vpack.c.b16 %v6634, %v6626
          %v8643 = vpack.c.b16 %v6635, %v6627
          %v8644 = vpack.c.b16 %v6636, %v6628
          %v8645 = vpack.c.b16 %v6637, %v6629
          %v8646 = vpack.c.b16 %v6638, %v6630
          %v8647 = vpack.c.b16 %v6639, %v6631
          %v8648 = vpack.c.b16 %v6648, %v6640
          %v8649 = vpack.c.b16 %v6649, %v6641
          %v8650 = vpack.c.b16 %v6650, %v6642
          %v8651 = vpack.c.b16 %v6651, %v6643
          %v8652 = vpack.c.b16 %v6652, %v6644
          %v8653 = vpack.c.b16 %v6653, %v6645
          %v8654 = vpack.c.b16 %v6654, %v6646
          %v8655 = vpack.c.b16 %v6655, %v6647
          %v8656 = vpack.c.b16 %v6664, %v6656
          %v8657 = vpack.c.b16 %v6665, %v6657
          %v8658 = vpack.c.b16 %v6666, %v6658
          %v8659 = vpack.c.b16 %v6667, %v6659
          %v8660 = vpack.c.b16 %v6668, %v6660
          %v8661 = vpack.c.b16 %v6669, %v6661
          %v8662 = vpack.c.b16 %v6670, %v6662
          %v8663 = vpack.c.b16 %v6671, %v6663
          %v8664 = vpack.c.b16 %v6680, %v6672
          %v8665 = vpack.c.b16 %v6681, %v6673
          %v8666 = vpack.c.b16 %v6682, %v6674
          %v8667 = vpack.c.b16 %v6683, %v6675
          %v8668 = vpack.c.b16 %v6684, %v6676
          %v8669 = vpack.c.b16 %v6685, %v6677
          %v8670 = vpack.c.b16 %v6686, %v6678
          %v8671 = vpack.c.b16 %v6687, %v6679
          %v8672 = vpack.c.b16 %v6696, %v6688
          %v8673 = vpack.c.b16 %v6697, %v6689
          %v8674 = vpack.c.b16 %v6698, %v6690
          %v8675 = vpack.c.b16 %v6699, %v6691
          %v8676 = vpack.c.b16 %v6700, %v6692
          %v8677 = vpack.c.b16 %v6701, %v6693
          %v8678 = vpack.c.b16 %v6702, %v6694
          %v8679 = vpack.c.b16 %v6703, %v6695
          %v8680 = vpack.c.b16 %v6712, %v6704
          %v8681 = vpack.c.b16 %v6713, %v6705
          %v8682 = vpack.c.b16 %v6714, %v6706
          %v8683 = vpack.c.b16 %v6715, %v6707
          %v8684 = vpack.c.b16 %v6716, %v6708
          %v8685 = vpack.c.b16 %v6717, %v6709
          %v8686 = vpack.c.b16 %v6718, %v6710
          %v8687 = vpack.c.b16 %v6719, %v6711
          %v8688 = vpack.c.b16 %v6728, %v6720
          %v8689 = vpack.c.b16 %v6729, %v6721
          %v8690 = vpack.c.b16 %v6730, %v6722
          %v8691 = vpack.c.b16 %v6731, %v6723
          %v8692 = vpack.c.b16 %v6732, %v6724
          %v8693 = vpack.c.b16 %v6733, %v6725
          %v8694 = vpack.c.b16 %v6734, %v6726
          %v8695 = vpack.c.b16 %v6735, %v6727
          %v8696 = vpack.c.b16 %v6744, %v6736
          %v8697 = vpack.c.b16 %v6745, %v6737
          %v8698 = vpack.c.b16 %v6746, %v6738
          %v8699 = vpack.c.b16 %v6747, %v6739
          %v8700 = vpack.c.b16 %v6748, %v6740
          %v8701 = vpack.c.b16 %v6749, %v6741
          %v8702 = vpack.c.b16 %v6750, %v6742
          %v8703 = vpack.c.b16 %v6751, %v6743
          %v8704 = vpack.c.b16 %v6760, %v6752
          %v8705 = vpack.c.b16 %v6761, %v6753
          %v8706 = vpack.c.b16 %v6762, %v6754
          %v8707 = vpack.c.b16 %v6763, %v6755
          %v8708 = vpack.c.b16 %v6764, %v6756
          %v8709 = vpack.c.b16 %v6765, %v6757
          %v8710 = vpack.c.b16 %v6766, %v6758
          %v8711 = vpack.c.b16 %v6767, %v6759
          %v8712 = vpack.c.b16 %v6776, %v6768
          %v8713 = vpack.c.b16 %v6777, %v6769
          %v8714 = vpack.c.b16 %v6778, %v6770
          %v8715 = vpack.c.b16 %v6779, %v6771
          %v8716 = vpack.c.b16 %v6780, %v6772
          %v8717 = vpack.c.b16 %v6781, %v6773
          %v8718 = vpack.c.b16 %v6782, %v6774
          %v8719 = vpack.c.b16 %v6783, %v6775
          %v8720 = vpack.c.b16 %v6792, %v6784
          %v8721 = vpack.c.b16 %v6793, %v6785
          %v8722 = vpack.c.b16 %v6794, %v6786
          %v8723 = vpack.c.b16 %v6795, %v6787
          %v8724 = vpack.c.b16 %v6796, %v6788
          %v8725 = vpack.c.b16 %v6797, %v6789
          %v8726 = vpack.c.b16 %v6798, %v6790
          %v8727 = vpack.c.b16 %v6799, %v6791
          %v8728 = vpack.c.b16 %v6808, %v6800
          %v8729 = vpack.c.b16 %v6809, %v6801
          %v8730 = vpack.c.b16 %v6810, %v6802
          %v8731 = vpack.c.b16 %v6811, %v6803
          %v8732 = vpack.c.b16 %v6812, %v6804
          %v8733 = vpack.c.b16 %v6813, %v6805
          %v8734 = vpack.c.b16 %v6814, %v6806
          %v8735 = vpack.c.b16 %v6815, %v6807
          %v8736 = vpack.c.b16 %v6824, %v6816
          %v8737 = vpack.c.b16 %v6825, %v6817
          %v8738 = vpack.c.b16 %v6826, %v6818
          %v8739 = vpack.c.b16 %v6827, %v6819
          %v8740 = vpack.c.b16 %v6828, %v6820
          %v8741 = vpack.c.b16 %v6829, %v6821
          %v8742 = vpack.c.b16 %v6830, %v6822
          %v8743 = vpack.c.b16 %v6831, %v6823
          %v8744 = vpack.c.b16 %v6840, %v6832
          %v8745 = vpack.c.b16 %v6841, %v6833
          %v8746 = vpack.c.b16 %v6842, %v6834
          %v8747 = vpack.c.b16 %v6843, %v6835
          %v8748 = vpack.c.b16 %v6844, %v6836
          %v8749 = vpack.c.b16 %v6845, %v6837
          %v8750 = vpack.c.b16 %v6846, %v6838
          %v8751 = vpack.c.b16 %v6847, %v6839
          %v8752 = vpack.c.b16 %v6856, %v6848
          %v8753 = vpack.c.b16 %v6857, %v6849
          %v8754 = vpack.c.b16 %v6858, %v6850
          %v8755 = vpack.c.b16 %v6859, %v6851
          %v8756 = vpack.c.b16 %v6860, %v6852
          %v8757 = vpack.c.b16 %v6861, %v6853
          %v8758 = vpack.c.b16 %v6862, %v6854
          %v8759 = vpack.c.b16 %v6863, %v6855
          %v8760 = vpack.c.b16 %v6872, %v6864
          %v8761 = vpack.c.b16 %v6873, %v6865
          %v8762 = vpack.c.b16 %v6874, %v6866
          %v8763 = vpack.c.b16 %v6875, %v6867
          %v8764 = vpack.c.b16 %v6876, %v6868
          %v8765 = vpack.c.b16 %v6877, %v6869
          %v8766 = vpack.c.b16 %v6878, %v6870
          %v8767 = vpack.c.b16 %v6879, %v6871
          %v8768 = vpack.c.b16 %v6888, %v6880
          %v8769 = vpack.c.b16 %v6889, %v6881
          %v8770 = vpack.c.b16 %v6890, %v6882
          %v8771 = vpack.c.b16 %v6891, %v6883
          %v8772 = vpack.c.b16 %v6892, %v6884
          %v8773 = vpack.c.b16 %v6893, %v6885
          %v8774 = vpack.c.b16 %v6894, %v6886
          %v8775 = vpack.c.b16 %v6895, %v6887
          %v8776 = vpack.c.b16 %v6904, %v6896
          %v8777 = vpack.c.b16 %v6905, %v6897
          %v8778 = vpack.c.b16 %v6906, %v6898
          %v8779 = vpack.c.b16 %v6907, %v6899
          %v8780 = vpack.c.b16 %v6908, %v6900
          %v8781 = vpack.c.b16 %v6909, %v6901
          %v8782 = vpack.c.b16 %v6910, %v6902
          %v8783 = vpack.c.b16 %v6911, %v6903
          %v8784 = vpack.c.b16 %v6920, %v6912
          %v8785 = vpack.c.b16 %v6921, %v6913
          %v8786 = vpack.c.b16 %v6922, %v6914
          %v8787 = vpack.c.b16 %v6923, %v6915
          %v8788 = vpack.c.b16 %v6924, %v6916
          %v8789 = vpack.c.b16 %v6925, %v6917
          %v8790 = vpack.c.b16 %v6926, %v6918
          %v8791 = vpack.c.b16 %v6927, %v6919
          %v8792 = vpack.c.b16 %v6936, %v6928
          %v8793 = vpack.c.b16 %v6937, %v6929
          %v8794 = vpack.c.b16 %v6938, %v6930
          %v8795 = vpack.c.b16 %v6939, %v6931
          %v8796 = vpack.c.b16 %v6940, %v6932
          %v8797 = vpack.c.b16 %v6941, %v6933
          %v8798 = vpack.c.b16 %v6942, %v6934
          %v8799 = vpack.c.b16 %v6943, %v6935
          %v8800 = vpack.c.b16 %v6952, %v6944
          %v8801 = vpack.c.b16 %v6953, %v6945
          %v8802 = vpack.c.b16 %v6954, %v6946
          %v8803 = vpack.c.b16 %v6955, %v6947
          %v8804 = vpack.c.b16 %v6956, %v6948
          %v8805 = vpack.c.b16 %v6957, %v6949
          %v8806 = vpack.c.b16 %v6958, %v6950
          %v8807 = vpack.c.b16 %v6959, %v6951
          %v8808 = vpack.c.b16 %v6968, %v6960
          %v8809 = vpack.c.b16 %v6969, %v6961
          %v8810 = vpack.c.b16 %v6970, %v6962
          %v8811 = vpack.c.b16 %v6971, %v6963
          %v8812 = vpack.c.b16 %v6972, %v6964
          %v8813 = vpack.c.b16 %v6973, %v6965
          %v8814 = vpack.c.b16 %v6974, %v6966
          %v8815 = vpack.c.b16 %v6975, %v6967
          %v8816 = vpack.c.b16 %v6984, %v6976
          %v8817 = vpack.c.b16 %v6985, %v6977
          %v8818 = vpack.c.b16 %v6986, %v6978
          %v8819 = vpack.c.b16 %v6987, %v6979
          %v8820 = vpack.c.b16 %v6988, %v6980
          %v8821 = vpack.c.b16 %v6989, %v6981
          %v8822 = vpack.c.b16 %v6990, %v6982
          %v8823 = vpack.c.b16 %v6991, %v6983
          %v8824 = vpack.c.b16 %v7000, %v6992
          %v8825 = vpack.c.b16 %v7001, %v6993
          %v8826 = vpack.c.b16 %v7002, %v6994
          %v8827 = vpack.c.b16 %v7003, %v6995
          %v8828 = vpack.c.b16 %v7004, %v6996
          %v8829 = vpack.c.b16 %v7005, %v6997
          %v8830 = vpack.c.b16 %v7006, %v6998
          %v8831 = vpack.c.b16 %v7007, %v6999
          %v8832 = vpack.c.b16 %v7016, %v7008
          %v8833 = vpack.c.b16 %v7017, %v7009
          %v8834 = vpack.c.b16 %v7018, %v7010
          %v8835 = vpack.c.b16 %v7019, %v7011
          %v8836 = vpack.c.b16 %v7020, %v7012
          %v8837 = vpack.c.b16 %v7021, %v7013
          %v8838 = vpack.c.b16 %v7022, %v7014
          %v8839 = vpack.c.b16 %v7023, %v7015
          %v8840 = vpack.c.b16 %v7032, %v7024
          %v8841 = vpack.c.b16 %v7033, %v7025
          %v8842 = vpack.c.b16 %v7034, %v7026
          %v8843 = vpack.c.b16 %v7035, %v7027
          %v8844 = vpack.c.b16 %v7036, %v7028
          %v8845 = vpack.c.b16 %v7037, %v7029
          %v8846 = vpack.c.b16 %v7038, %v7030
          %v8847 = vpack.c.b16 %v7039, %v7031
          %v8848 = vpack.c.b16 %v7048, %v7040
          %v8849 = vpack.c.b16 %v7049, %v7041
          %v8850 = vpack.c.b16 %v7050, %v7042
          %v8851 = vpack.c.b16 %v7051, %v7043
          %v8852 = vpack.c.b16 %v7052, %v7044
          %v8853 = vpack.c.b16 %v7053, %v7045
          %v8854 = vpack.c.b16 %v7054, %v7046
          %v8855 = vpack.c.b16 %v7055, %v7047
          %v8856 = vpack.c.b16 %v7064, %v7056
          %v8857 = vpack.c.b16 %v7065, %v7057
          %v8858 = vpack.c.b16 %v7066, %v7058
          %v8859 = vpack.c.b16 %v7067, %v7059
          %v8860 = vpack.c.b16 %v7068, %v7060
          %v8861 = vpack.c.b16 %v7069, %v7061
          %v8862 = vpack.c.b16 %v7070, %v7062
          %v8863 = vpack.c.b16 %v7071, %v7063
          %v8864 = vpack.c.b16 %v7080, %v7072
          %v8865 = vpack.c.b16 %v7081, %v7073
          %v8866 = vpack.c.b16 %v7082, %v7074
          %v8867 = vpack.c.b16 %v7083, %v7075
          %v8868 = vpack.c.b16 %v7084, %v7076
          %v8869 = vpack.c.b16 %v7085, %v7077
          %v8870 = vpack.c.b16 %v7086, %v7078
          %v8871 = vpack.c.b16 %v7087, %v7079
          %v8872 = vpack.c.b16 %v7096, %v7088
          %v8873 = vpack.c.b16 %v7097, %v7089
          %v8874 = vpack.c.b16 %v7098, %v7090
          %v8875 = vpack.c.b16 %v7099, %v7091
          %v8876 = vpack.c.b16 %v7100, %v7092
          %v8877 = vpack.c.b16 %v7101, %v7093
          %v8878 = vpack.c.b16 %v7102, %v7094
          %v8879 = vpack.c.b16 %v7103, %v7095
          %v8880 = vpack.c.b16 %v7112, %v7104
          %v8881 = vpack.c.b16 %v7113, %v7105
          %v8882 = vpack.c.b16 %v7114, %v7106
          %v8883 = vpack.c.b16 %v7115, %v7107
          %v8884 = vpack.c.b16 %v7116, %v7108
          %v8885 = vpack.c.b16 %v7117, %v7109
          %v8886 = vpack.c.b16 %v7118, %v7110
          %v8887 = vpack.c.b16 %v7119, %v7111
          %v8888 = vpack.c.b16 %v7128, %v7120
          %v8889 = vpack.c.b16 %v7129, %v7121
          %v8890 = vpack.c.b16 %v7130, %v7122
          %v8891 = vpack.c.b16 %v7131, %v7123
          %v8892 = vpack.c.b16 %v7132, %v7124
          %v8893 = vpack.c.b16 %v7133, %v7125
          %v8894 = vpack.c.b16 %v7134, %v7126
          %v8895 = vpack.c.b16 %v7135, %v7127
          %v8896 = vpack.c.b16 %v7144, %v7136
          %v8897 = vpack.c.b16 %v7145, %v7137
          %v8898 = vpack.c.b16 %v7146, %v7138
          %v8899 = vpack.c.b16 %v7147, %v7139
          %v8900 = vpack.c.b16 %v7148, %v7140
          %v8901 = vpack.c.b16 %v7149, %v7141
          %v8902 = vpack.c.b16 %v7150, %v7142
          %v8903 = vpack.c.b16 %v7151, %v7143
          %v8904 = vpack.c.b16 %v7160, %v7152
          %v8905 = vpack.c.b16 %v7161, %v7153
          %v8906 = vpack.c.b16 %v7162, %v7154
          %v8907 = vpack.c.b16 %v7163, %v7155
          %v8908 = vpack.c.b16 %v7164, %v7156
          %v8909 = vpack.c.b16 %v7165, %v7157
          %v8910 = vpack.c.b16 %v7166, %v7158
          %v8911 = vpack.c.b16 %v7167, %v7159
          %v8912 = vpack.c.b16 %v7176, %v7168
          %v8913 = vpack.c.b16 %v7177, %v7169
          %v8914 = vpack.c.b16 %v7178, %v7170
          %v8915 = vpack.c.b16 %v7179, %v7171
          %v8916 = vpack.c.b16 %v7180, %v7172
          %v8917 = vpack.c.b16 %v7181, %v7173
          %v8918 = vpack.c.b16 %v7182, %v7174
          %v8919 = vpack.c.b16 %v7183, %v7175
          %v8920 = vpack.c.b16 %v7192, %v7184
          %v8921 = vpack.c.b16 %v7193, %v7185
          %v8922 = vpack.c.b16 %v7194, %v7186
          %v8923 = vpack.c.b16 %v7195, %v7187
          %v8924 = vpack.c.b16 %v7196, %v7188
          %v8925 = vpack.c.b16 %v7197, %v7189
          %v8926 = vpack.c.b16 %v7198, %v7190
          %v8927 = vpack.c.b16 %v7199, %v7191
          %v8928 = vpack.c.b16 %v7208, %v7200
          %v8929 = vpack.c.b16 %v7209, %v7201
          %v8930 = vpack.c.b16 %v7210, %v7202
          %v8931 = vpack.c.b16 %v7211, %v7203
          %v8932 = vpack.c.b16 %v7212, %v7204
          %v8933 = vpack.c.b16 %v7213, %v7205
          %v8934 = vpack.c.b16 %v7214, %v7206
          %v8935 = vpack.c.b16 %v7215, %v7207
          %v8936 = vpack.c.b16 %v7224, %v7216
          %v8937 = vpack.c.b16 %v7225, %v7217
          %v8938 = vpack.c.b16 %v7226, %v7218
          %v8939 = vpack.c.b16 %v7227, %v7219
          %v8940 = vpack.c.b16 %v7228, %v7220
          %v8941 = vpack.c.b16 %v7229, %v7221
          %v8942 = vpack.c.b16 %v7230, %v7222
          %v8943 = vpack.c.b16 %v7231, %v7223
          %v8944 = vpack.c.b16 %v7240, %v7232
          %v8945 = vpack.c.b16 %v7241, %v7233
          %v8946 = vpack.c.b16 %v7242, %v7234
          %v8947 = vpack.c.b16 %v7243, %v7235
          %v8948 = vpack.c.b16 %v7244, %v7236
          %v8949 = vpack.c.b16 %v7245, %v7237
          %v8950 = vpack.c.b16 %v7246, %v7238
          %v8951 = vpack.c.b16 %v7247, %v7239
          %v8952 = vpack.c.b16 %v7256, %v7248
          %v8953 = vpack.c.b16 %v7257, %v7249
          %v8954 = vpack.c.b16 %v7258, %v7250
          %v8955 = vpack.c.b16 %v7259, %v7251
          %v8956 = vpack.c.b16 %v7260, %v7252
          %v8957 = vpack.c.b16 %v7261, %v7253
          %v8958 = vpack.c.b16 %v7262, %v7254
          %v8959 = vpack.c.b16 %v7263, %v7255
          %v8960 = vpack.c.b16 %v7272, %v7264
          %v8961 = vpack.c.b16 %v7273, %v7265
          %v8962 = vpack.c.b16 %v7274, %v7266
          %v8963 = vpack.c.b16 %v7275, %v7267
          %v8964 = vpack.c.b16 %v7276, %v7268
          %v8965 = vpack.c.b16 %v7277, %v7269
          %v8966 = vpack.c.b16 %v7278, %v7270
          %v8967 = vpack.c.b16 %v7279, %v7271
          %v8968 = vpack.c.b16 %v7288, %v7280
          %v8969 = vpack.c.b16 %v7289, %v7281
          %v8970 = vpack.c.b16 %v7290, %v7282
          %v8971 = vpack.c.b16 %v7291, %v7283
          %v8972 = vpack.c.b16 %v7292, %v7284
          %v8973 = vpack.c.b16 %v7293, %v7285
          %v8974 = vpack.c.b16 %v7294, %v7286
          %v8975 = vpack.c.b16 %v7295, %v7287
          %v8976 = vpack.c.b16 %v7304, %v7296
          %v8977 = vpack.c.b16 %v7305, %v7297
          %v8978 = vpack.c.b16 %v7306, %v7298
          %v8979 = vpack.c.b16 %v7307, %v7299
          %v8980 = vpack.c.b16 %v7308, %v7300
          %v8981 = vpack.c.b16 %v7309, %v7301
          %v8982 = vpack.c.b16 %v7310, %v7302
          %v8983 = vpack.c.b16 %v7311, %v7303
          %v8984 = vpack.c.b16 %v7320, %v7312
          %v8985 = vpack.c.b16 %v7321, %v7313
          %v8986 = vpack.c.b16 %v7322, %v7314
          %v8987 = vpack.c.b16 %v7323, %v7315
          %v8988 = vpack.c.b16 %v7324, %v7316
          %v8989 = vpack.c.b16 %v7325, %v7317
          %v8990 = vpack.c.b16 %v7326, %v7318
          %v8991 = vpack.c.b16 %v7327, %v7319
          %v8992 = vpack.c.b16 %v7336, %v7328
          %v8993 = vpack.c.b16 %v7337, %v7329
          %v8994 = vpack.c.b16 %v7338, %v7330
          %v8995 = vpack.c.b16 %v7339, %v7331
          %v8996 = vpack.c.b16 %v7340, %v7332
          %v8997 = vpack.c.b16 %v7341, %v7333
          %v8998 = vpack.c.b16 %v7342, %v7334
          %v8999 = vpack.c.b16 %v7343, %v7335
          %v9000 = vpack.c.b16 %v7352, %v7344
          %v9001 = vpack.c.b16 %v7353, %v7345
          %v9002 = vpack.c.b16 %v7354, %v7346
          %v9003 = vpack.c.b16 %v7355, %v7347
          %v9004 = vpack.c.b16 %v7356, %v7348
          %v9005 = vpack.c.b16 %v7357, %v7349
          %v9006 = vpack.c.b16 %v7358, %v7350
          %v9007 = vpack.c.b16 %v7359, %v7351
          %v9008 = vpack.c.b16 %v7368, %v7360
          %v9009 = vpack.c.b16 %v7369, %v7361
          %v9010 = vpack.c.b16 %v7370, %v7362
          %v9011 = vpack.c.b16 %v7371, %v7363
          %v9012 = vpack.c.b16 %v7372, %v7364
          %v9013 = vpack.c.b16 %v7373, %v7365
          %v9014 = vpack.c.b16 %v7374, %v7366
          %v9015 = vpack.c.b16 %v7375, %v7367
          %v9016 = vpack.c.b16 %v7384, %v7376
          %v9017 = vpack.c.b16 %v7385, %v7377
          %v9018 = vpack.c.b16 %v7386, %v7378
          %v9019 = vpack.c.b16 %v7387, %v7379
          %v9020 = vpack.c.b16 %v7388, %v7380
          %v9021 = vpack.c.b16 %v7389, %v7381
          %v9022 = vpack.c.b16 %v7390, %v7382
          %v9023 = vpack.c.b16 %v7391, %v7383
          %v9024 = vpack.c.b16 %v7400, %v7392
          %v9025 = vpack.c.b16 %v7401, %v7393
          %v9026 = vpack.c.b16 %v7402, %v7394
          %v9027 = vpack.c.b16 %v7403, %v7395
          %v9028 = vpack.c.b16 %v7404, %v7396
          %v9029 = vpack.c.b16 %v7405, %v7397
          %v9030 = vpack.c.b16 %v7406, %v7398
          %v9031 = vpack.c.b16 %v7407, %v7399
          %v9032 = vpack.c.b16 %v7416, %v7408
          %v9033 = vpack.c.b16 %v7417, %v7409
          %v9034 = vpack.c.b16 %v7418, %v7410
          %v9035 = vpack.c.b16 %v7419, %v7411
          %v9036 = vpack.c.b16 %v7420, %v7412
          %v9037 = vpack.c.b16 %v7421, %v7413
          %v9038 = vpack.c.b16 %v7422, %v7414
          %v9039 = vpack.c.b16 %v7423, %v7415
          %v9040 = vpack.c.b16 %v7432, %v7424
          %v9041 = vpack.c.b16 %v7433, %v7425
          %v9042 = vpack.c.b16 %v7434, %v7426
          %v9043 = vpack.c.b16 %v7435, %v7427
          %v9044 = vpack.c.b16 %v7436, %v7428
          %v9045 = vpack.c.b16 %v7437, %v7429
          %v9046 = vpack.c.b16 %v7438, %v7430
          %v9047 = vpack.c.b16 %v7439, %v7431
          %v9048 = vpack.c.b16 %v7448, %v7440
          %v9049 = vpack.c.b16 %v7449, %v7441
          %v9050 = vpack.c.b16 %v7450, %v7442
          %v9051 = vpack.c.b16 %v7451, %v7443
          %v9052 = vpack.c.b16 %v7452, %v7444
          %v9053 = vpack.c.b16 %v7453, %v7445
          %v9054 = vpack.c.b16 %v7454, %v7446
          %v9055 = vpack.c.b16 %v7455, %v7447
          %v9056 = vpack.c.b16 %v7464, %v7456
          %v9057 = vpack.c.b16 %v7465, %v7457
          %v9058 = vpack.c.b16 %v7466, %v7458
          %v9059 = vpack.c.b16 %v7467, %v7459
          %v9060 = vpack.c.b16 %v7468, %v7460
          %v9061 = vpack.c.b16 %v7469, %v7461
          %v9062 = vpack.c.b16 %v7470, %v7462
          %v9063 = vpack.c.b16 %v7471, %v7463
          %v9064 = vpack.c.b16 %v7480, %v7472
          %v9065 = vpack.c.b16 %v7481, %v7473
          %v9066 = vpack.c.b16 %v7482, %v7474
          %v9067 = vpack.c.b16 %v7483, %v7475
          %v9068 = vpack.c.b16 %v7484, %v7476
          %v9069 = vpack.c.b16 %v7485, %v7477
          %v9070 = vpack.c.b16 %v7486, %v7478
          %v9071 = vpack.c.b16 %v7487, %v7479
          %v9072 = vpack.c.b16 %v7496, %v7488
          %v9073 = vpack.c.b16 %v7497, %v7489
          %v9074 = vpack.c.b16 %v7498, %v7490
          %v9075 = vpack.c.b16 %v7499, %v7491
          %v9076 = vpack.c.b16 %v7500, %v7492
          %v9077 = vpack.c.b16 %v7501, %v7493
          %v9078 = vpack.c.b16 %v7502, %v7494
          %v9079 = vpack.c.b16 %v7503, %v7495
          %v9080 = vpack.c.b16 %v7512, %v7504
          %v9081 = vpack.c.b16 %v7513, %v7505
          %v9082 = vpack.c.b16 %v7514, %v7506
          %v9083 = vpack.c.b16 %v7515, %v7507
          %v9084 = vpack.c.b16 %v7516, %v7508
          %v9085 = vpack.c.b16 %v7517, %v7509
          %v9086 = vpack.c.b16 %v7518, %v7510
          %v9087 = vpack.c.b16 %v7519, %v7511
          %v9088 = vpack.c.b16 %v7528, %v7520
          %v9089 = vpack.c.b16 %v7529, %v7521
          %v9090 = vpack.c.b16 %v7530, %v7522
          %v9091 = vpack.c.b16 %v7531, %v7523
          %v9092 = vpack.c.b16 %v7532, %v7524
          %v9093 = vpack.c.b16 %v7533, %v7525
          %v9094 = vpack.c.b16 %v7534, %v7526
          %v9095 = vpack.c.b16 %v7535, %v7527
          %v9096 = vpack.c.b16 %v7544, %v7536
          %v9097 = vpack.c.b16 %v7545, %v7537
          %v9098 = vpack.c.b16 %v7546, %v7538
          %v9099 = vpack.c.b16 %v7547, %v7539
          %v9100 = vpack.c.b16 %v7548, %v7540
          %v9101 = vpack.c.b16 %v7549, %v7541
          %v9102 = vpack.c.b16 %v7550, %v7542
          %v9103 = vpack.c.b16 %v7551, %v7543
          %v9104 = vpack.c.b16 %v7560, %v7552
          %v9105 = vpack.c.b16 %v7561, %v7553
          %v9106 = vpack.c.b16 %v7562, %v7554
          %v9107 = vpack.c.b16 %v7563, %v7555
          %v9108 = vpack.c.b16 %v7564, %v7556
          %v9109 = vpack.c.b16 %v7565, %v7557
          %v9110 = vpack.c.b16 %v7566, %v7558
          %v9111 = vpack.c.b16 %v7567, %v7559
          %v9112 = vpack.c.b16 %v7576, %v7568
          %v9113 = vpack.c.b16 %v7577, %v7569
          %v9114 = vpack.c.b16 %v7578, %v7570
          %v9115 = vpack.c.b16 %v7579, %v7571
          %v9116 = vpack.c.b16 %v7580, %v7572
          %v9117 = vpack.c.b16 %v7581, %v7573
          %v9118 = vpack.c.b16 %v7582, %v7574
          %v9119 = vpack.c.b16 %v7583, %v7575
          %v9120 = vpack.c.b16 %v7592, %v7584
          %v9121 = vpack.c.b16 %v7593, %v7585
          %v9122 = vpack.c.b16 %v7594, %v7586
          %v9123 = vpack.c.b16 %v7595, %v7587
          %v9124 = vpack.c.b16 %v7596, %v7588
          %v9125 = vpack.c.b16 %v7597, %v7589
          %v9126 = vpack.c.b16 %v7598, %v7590
          %v9127 = vpack.c.b16 %v7599, %v7591
          %v9128 = vpack.c.b16 %v7608, %v7600
          %v9129 = vpack.c.b16 %v7609, %v7601
          %v9130 = vpack.c.b16 %v7610, %v7602
          %v9131 = vpack.c.b16 %v7611, %v7603
          %v9132 = vpack.c.b16 %v7612, %v7604
          %v9133 = vpack.c.b16 %v7613, %v7605
          %v9134 = vpack.c.b16 %v7614, %v7606
          %v9135 = vpack.c.b16 %v7615, %v7607
          %v9136 = vpack.c.b16 %v7624, %v7616
          %v9137 = vpack.c.b16 %v7625, %v7617
          %v9138 = vpack.c.b16 %v7626, %v7618
          %v9139 = vpack.c.b16 %v7627, %v7619
          %v9140 = vpack.c.b16 %v7628, %v7620
          %v9141 = vpack.c.b16 %v7629, %v7621
          %v9142 = vpack.c.b16 %v7630, %v7622
          %v9143 = vpack.c.b16 %v7631, %v7623
          %v9144 = vpack.c.b16 %v7640, %v7632
          %v9145 = vpack.c.b16 %v7641, %v7633
          %v9146 = vpack.c.b16 %v7642, %v7634
          %v9147 = vpack.c.b16 %v7643, %v7635
          %v9148 = vpack.c.b16 %v7644, %v7636
          %v9149 = vpack.c.b16 %v7645, %v7637
          %v9150 = vpack.c.b16 %v7646, %v7638
          %v9151 = vpack.c.b16 %v7647, %v7639
          %v9152 = vpack.c.b16 %v7656, %v7648
          %v9153 = vpack.c.b16 %v7657, %v7649
          %v9154 = vpack.c.b16 %v7658, %v7650
          %v9155 = vpack.c.b16 %v7659, %v7651
          %v9156 = vpack.c.b16 %v7660, %v7652
          %v9157 = vpack.c.b16 %v7661, %v7653
          %v9158 = vpack.c.b16 %v7662, %v7654
          %v9159 = vpack.c.b16 %v7663, %v7655
          %v9160 = vpack.c.b16 %v7672, %v7664
          %v9161 = vpack.c.b16 %v7673, %v7665
          %v9162 = vpack.c.b16 %v7674, %v7666
          %v9163 = vpack.c.b16 %v7675, %v7667
          %v9164 = vpack.c.b16 %v7676, %v7668
          %v9165 = vpack.c.b16 %v7677, %v7669
          %v9166 = vpack.c.b16 %v7678, %v7670
          %v9167 = vpack.c.b16 %v7679, %v7671
          %v9168 = vpack.c.b16 %v7688, %v7680
          %v9169 = vpack.c.b16 %v7689, %v7681
          %v9170 = vpack.c.b16 %v7690, %v7682
          %v9171 = vpack.c.b16 %v7691, %v7683
          %v9172 = vpack.c.b16 %v7692, %v7684
          %v9173 = vpack.c.b16 %v7693, %v7685
          %v9174 = vpack.c.b16 %v7694, %v7686
          %v9175 = vpack.c.b16 %v7695, %v7687
          %v9176 = vpack.c.b16 %v7704, %v7696
          %v9177 = vpack.c.b16 %v7705, %v7697
          %v9178 = vpack.c.b16 %v7706, %v7698
          %v9179 = vpack.c.b16 %v7707, %v7699
          %v9180 = vpack.c.b16 %v7708, %v7700
          %v9181 = vpack.c.b16 %v7709, %v7701
          %v9182 = vpack.c.b16 %v7710, %v7702
          %v9183 = vpack.c.b16 %v7711, %v7703
          %v9184 = vpack.c.b16 %v7720, %v7712
          %v9185 = vpack.c.b16 %v7721, %v7713
          %v9186 = vpack.c.b16 %v7722, %v7714
          %v9187 = vpack.c.b16 %v7723, %v7715
          %v9188 = vpack.c.b16 %v7724, %v7716
          %v9189 = vpack.c.b16 %v7725, %v7717
          %v9190 = vpack.c.b16 %v7726, %v7718
          %v9191 = vpack.c.b16 %v7727, %v7719
          %v9192 = vpack.c.b16 %v7736, %v7728
          %v9193 = vpack.c.b16 %v7737, %v7729
          %v9194 = vpack.c.b16 %v7738, %v7730
          %v9195 = vpack.c.b16 %v7739, %v7731
          %v9196 = vpack.c.b16 %v7740, %v7732
          %v9197 = vpack.c.b16 %v7741, %v7733
          %v9198 = vpack.c.b16 %v7742, %v7734
          %v9199 = vpack.c.b16 %v7743, %v7735
          %v9200 = vpack.c.b16 %v7752, %v7744
          %v9201 = vpack.c.b16 %v7753, %v7745
          %v9202 = vpack.c.b16 %v7754, %v7746
          %v9203 = vpack.c.b16 %v7755, %v7747
          %v9204 = vpack.c.b16 %v7756, %v7748
          %v9205 = vpack.c.b16 %v7757, %v7749
          %v9206 = vpack.c.b16 %v7758, %v7750
          %v9207 = vpack.c.b16 %v7759, %v7751
          %v9208 = vpack.c.b16 %v7768, %v7760
          %v9209 = vpack.c.b16 %v7769, %v7761
          %v9210 = vpack.c.b16 %v7770, %v7762
          %v9211 = vpack.c.b16 %v7771, %v7763
          %v9212 = vpack.c.b16 %v7772, %v7764
          %v9213 = vpack.c.b16 %v7773, %v7765
          %v9214 = vpack.c.b16 %v7774, %v7766
          %v9215 = vpack.c.b16 %v7775, %v7767
          %v9216 = vpack.c.b16 %v7784, %v7776
          %v9217 = vpack.c.b16 %v7785, %v7777
          %v9218 = vpack.c.b16 %v7786, %v7778
          %v9219 = vpack.c.b16 %v7787, %v7779
          %v9220 = vpack.c.b16 %v7788, %v7780
          %v9221 = vpack.c.b16 %v7789, %v7781
          %v9222 = vpack.c.b16 %v7790, %v7782
          %v9223 = vpack.c.b16 %v7791, %v7783
          %v9224 = vpack.c.b16 %v7800, %v7792
          %v9225 = vpack.c.b16 %v7801, %v7793
          %v9226 = vpack.c.b16 %v7802, %v7794
          %v9227 = vpack.c.b16 %v7803, %v7795
          %v9228 = vpack.c.b16 %v7804, %v7796
          %v9229 = vpack.c.b16 %v7805, %v7797
          %v9230 = vpack.c.b16 %v7806, %v7798
          %v9231 = vpack.c.b16 %v7807, %v7799
          %v9232 = vpack.c.b16 %v7816, %v7808
          %v9233 = vpack.c.b16 %v7817, %v7809
          %v9234 = vpack.c.b16 %v7818, %v7810
          %v9235 = vpack.c.b16 %v7819, %v7811
          %v9236 = vpack.c.b16 %v7820, %v7812
          %v9237 = vpack.c.b16 %v7821, %v7813
          %v9238 = vpack.c.b16 %v7822, %v7814
          %v9239 = vpack.c.b16 %v7823, %v7815
          %v9240 = vpack.c.b16 %v7832, %v7824
          %v9241 = vpack.c.b16 %v7833, %v7825
          %v9242 = vpack.c.b16 %v7834, %v7826
          %v9243 = vpack.c.b16 %v7835, %v7827
          %v9244 = vpack.c.b16 %v7836, %v7828
          %v9245 = vpack.c.b16 %v7837, %v7829
          %v9246 = vpack.c.b16 %v7838, %v7830
          %v9247 = vpack.c.b16 %v7839, %v7831
          %v9248 = vpack.c.b16 %v7848, %v7840
          %v9249 = vpack.c.b16 %v7849, %v7841
          %v9250 = vpack.c.b16 %v7850, %v7842
          %v9251 = vpack.c.b16 %v7851, %v7843
          %v9252 = vpack.c.b16 %v7852, %v7844
          %v9253 = vpack.c.b16 %v7853, %v7845
          %v9254 = vpack.c.b16 %v7854, %v7846
          %v9255 = vpack.c.b16 %v7855, %v7847
          %v9256 = vpack.c.b16 %v7864, %v7856
          %v9257 = vpack.c.b16 %v7865, %v7857
          %v9258 = vpack.c.b16 %v7866, %v7858
          %v9259 = vpack.c.b16 %v7867, %v7859
          %v9260 = vpack.c.b16 %v7868, %v7860
          %v9261 = vpack.c.b16 %v7869, %v7861
          %v9262 = vpack.c.b16 %v7870, %v7862
          %v9263 = vpack.c.b16 %v7871, %v7863
          %v9264 = vpack.c.b16 %v7880, %v7872
          %v9265 = vpack.c.b16 %v7881, %v7873
          %v9266 = vpack.c.b16 %v7882, %v7874
          %v9267 = vpack.c.b16 %v7883, %v7875
          %v9268 = vpack.c.b16 %v7884, %v7876
          %v9269 = vpack.c.b16 %v7885, %v7877
          %v9270 = vpack.c.b16 %v7886, %v7878
          %v9271 = vpack.c.b16 %v7887, %v7879
          %v9272 = vpack.c.b16 %v7896, %v7888
          %v9273 = vpack.c.b16 %v7897, %v7889
          %v9274 = vpack.c.b16 %v7898, %v7890
          %v9275 = vpack.c.b16 %v7899, %v7891
          %v9276 = vpack.c.b16 %v7900, %v7892
          %v9277 = vpack.c.b16 %v7901, %v7893
          %v9278 = vpack.c.b16 %v7902, %v7894
          %v9279 = vpack.c.b16 %v7903, %v7895
          %v9280 = vpack.c.b16 %v7912, %v7904
          %v9281 = vpack.c.b16 %v7913, %v7905
          %v9282 = vpack.c.b16 %v7914, %v7906
          %v9283 = vpack.c.b16 %v7915, %v7907
          %v9284 = vpack.c.b16 %v7916, %v7908
          %v9285 = vpack.c.b16 %v7917, %v7909
          %v9286 = vpack.c.b16 %v7918, %v7910
          %v9287 = vpack.c.b16 %v7919, %v7911
          %v9288 = vpack.c.b16 %v7928, %v7920
          %v9289 = vpack.c.b16 %v7929, %v7921
          %v9290 = vpack.c.b16 %v7930, %v7922
          %v9291 = vpack.c.b16 %v7931, %v7923
          %v9292 = vpack.c.b16 %v7932, %v7924
          %v9293 = vpack.c.b16 %v7933, %v7925
          %v9294 = vpack.c.b16 %v7934, %v7926
          %v9295 = vpack.c.b16 %v7935, %v7927
          %v9296 = vpack.c.b16 %v7944, %v7936
          %v9297 = vpack.c.b16 %v7945, %v7937
          %v9298 = vpack.c.b16 %v7946, %v7938
          %v9299 = vpack.c.b16 %v7947, %v7939
          %v9300 = vpack.c.b16 %v7948, %v7940
          %v9301 = vpack.c.b16 %v7949, %v7941
          %v9302 = vpack.c.b16 %v7950, %v7942
          %v9303 = vpack.c.b16 %v7951, %v7943
          %v9304 = vpack.c.b16 %v7960, %v7952
          %v9305 = vpack.c.b16 %v7961, %v7953
          %v9306 = vpack.c.b16 %v7962, %v7954
          %v9307 = vpack.c.b16 %v7963, %v7955
          %v9308 = vpack.c.b16 %v7964, %v7956
          %v9309 = vpack.c.b16 %v7965, %v7957
          %v9310 = vpack.c.b16 %v7966, %v7958
          %v9311 = vpack.c.b16 %v7967, %v7959
          %v9312 = vpack.c.b16 %v7976, %v7968
          %v9313 = vpack.c.b16 %v7977, %v7969
          %v9314 = vpack.c.b16 %v7978, %v7970
          %v9315 = vpack.c.b16 %v7979, %v7971
          %v9316 = vpack.c.b16 %v7980, %v7972
          %v9317 = vpack.c.b16 %v7981, %v7973
          %v9318 = vpack.c.b16 %v7982, %v7974
          %v9319 = vpack.c.b16 %v7983, %v7975
          %v9320 = vpack.c.b16 %v7992, %v7984
          %v9321 = vpack.c.b16 %v7993, %v7985
          %v9322 = vpack.c.b16 %v7994, %v7986
          %v9323 = vpack.c.b16 %v7995, %v7987
          %v9324 = vpack.c.b16 %v7996, %v7988
          %v9325 = vpack.c.b16 %v7997, %v7989
          %v9326 = vpack.c.b16 %v7998, %v7990
          %v9327 = vpack.c.b16 %v7999, %v7991
          %v9328 = vpack.c.b16 %v8008, %v8000
          %v9329 = vpack.c.b16 %v8009, %v8001
          %v9330 = vpack.c.b16 %v8010, %v8002
          %v9331 = vpack.c.b16 %v8011, %v8003
          %v9332 = vpack.c.b16 %v8012, %v8004
          %v9333 = vpack.c.b16 %v8013, %v8005
          %v9334 = vpack.c.b16 %v8014, %v8006
          %v9335 = vpack.c.b16 %v8015, %v8007
          %v9336 = vpack.c.b16 %v8024, %v8016
          %v9337 = vpack.c.b16 %v8025, %v8017
          %v9338 = vpack.c.b16 %v8026, %v8018
          %v9339 = vpack.c.b16 %v8027, %v8019
          %v9340 = vpack.c.b16 %v8028, %v8020
          %v9341 = vpack.c.b16 %v8029, %v8021
          %v9342 = vpack.c.b16 %v8030, %v8022
          %v9343 = vpack.c.b16 %v8031, %v8023
          %v9344 = vpack.c.b16 %v8040, %v8032
          %v9345 = vpack.c.b16 %v8041, %v8033
          %v9346 = vpack.c.b16 %v8042, %v8034
          %v9347 = vpack.c.b16 %v8043, %v8035
          %v9348 = vpack.c.b16 %v8044, %v8036
          %v9349 = vpack.c.b16 %v8045, %v8037
          %v9350 = vpack.c.b16 %v8046, %v8038
          %v9351 = vpack.c.b16 %v8047, %v8039
          %v9352 = vpack.c.b16 %v8056, %v8048
          %v9353 = vpack.c.b16 %v8057, %v8049
          %v9354 = vpack.c.b16 %v8058, %v8050
          %v9355 = vpack.c.b16 %v8059, %v8051
          %v9356 = vpack.c.b16 %v8060, %v8052
          %v9357 = vpack.c.b16 %v8061, %v8053
          %v9358 = vpack.c.b16 %v8062, %v8054
          %v9359 = vpack.c.b16 %v8063, %v8055
          %v9360 = vpack.c.b16 %v8072, %v8064
          %v9361 = vpack.c.b16 %v8073, %v8065
          %v9362 = vpack.c.b16 %v8074, %v8066
          %v9363 = vpack.c.b16 %v8075, %v8067
          %v9364 = vpack.c.b16 %v8076, %v8068
          %v9365 = vpack.c.b16 %v8077, %v8069
          %v9366 = vpack.c.b16 %v8078, %v8070
          %v9367 = vpack.c.b16 %v8079, %v8071
          %v9368 = vpack.c.b16 %v8088, %v8080
          %v9369 = vpack.c.b16 %v8089, %v8081
          %v9370 = vpack.c.b16 %v8090, %v8082
          %v9371 = vpack.c.b16 %v8091, %v8083
          %v9372 = vpack.c.b16 %v8092, %v8084
          %v9373 = vpack.c.b16 %v8093, %v8085
          %v9374 = vpack.c.b16 %v8094, %v8086
          %v9375 = vpack.c.b16 %v8095, %v8087
          %v9376 = vpack.c.b16 %v8104, %v8096
          %v9377 = vpack.c.b16 %v8105, %v8097
          %v9378 = vpack.c.b16 %v8106, %v8098
          %v9379 = vpack.c.b16 %v8107, %v8099
          %v9380 = vpack.c.b16 %v8108, %v8100
          %v9381 = vpack.c.b16 %v8109, %v8101
          %v9382 = vpack.c.b16 %v8110, %v8102
          %v9383 = vpack.c.b16 %v8111, %v8103
          %v9384 = vpack.c.b16 %v8120, %v8112
          %v9385 = vpack.c.b16 %v8121, %v8113
          %v9386 = vpack.c.b16 %v8122, %v8114
          %v9387 = vpack.c.b16 %v8123, %v8115
          %v9388 = vpack.c.b16 %v8124, %v8116
          %v9389 = vpack.c.b16 %v8125, %v8117
          %v9390 = vpack.c.b16 %v8126, %v8118
          %v9391 = vpack.c.b16 %v8127, %v8119
          %v9392 = vpack.c.b16 %v8136, %v8128
          %v9393 = vpack.c.b16 %v8137, %v8129
          %v9394 = vpack.c.b16 %v8138, %v8130
          %v9395 = vpack.c.b16 %v8139, %v8131
          %v9396 = vpack.c.b16 %v8140, %v8132
          %v9397 = vpack.c.b16 %v8141, %v8133
          %v9398 = vpack.c.b16 %v8142, %v8134
          %v9399 = vpack.c.b16 %v8143, %v8135
          %v9400 = vpack.c.b16 %v8152, %v8144
          %v9401 = vpack.c.b16 %v8153, %v8145
          %v9402 = vpack.c.b16 %v8154, %v8146
          %v9403 = vpack.c.b16 %v8155, %v8147
          %v9404 = vpack.c.b16 %v8156, %v8148
          %v9405 = vpack.c.b16 %v8157, %v8149
          %v9406 = vpack.c.b16 %v8158, %v8150
          %v9407 = vpack.c.b16 %v8159, %v8151
          %v9408 = vpack.c.b16 %v8168, %v8160
          %v9409 = vpack.c.b16 %v8169, %v8161
          %v9410 = vpack.c.b16 %v8170, %v8162
          %v9411 = vpack.c.b16 %v8171, %v8163
          %v9412 = vpack.c.b16 %v8172, %v8164
          %v9413 = vpack.c.b16 %v8173, %v8165
          %v9414 = vpack.c.b16 %v8174, %v8166
          %v9415 = vpack.c.b16 %v8175, %v8167
          %v9416 = vpack.c.b16 %v8184, %v8176
          %v9417 = vpack.c.b16 %v8185, %v8177
          %v9418 = vpack.c.b16 %v8186, %v8178
          %v9419 = vpack.c.b16 %v8187, %v8179
          %v9420 = vpack.c.b16 %v8188, %v8180
          %v9421 = vpack.c.b16 %v8189, %v8181
          %v9422 = vpack.c.b16 %v8190, %v8182
          %v9423 = vpack.c.b16 %v8191, %v8183
          %v9424 = vpack.c.b16 %v8200, %v8192
          %v9425 = vpack.c.b16 %v8201, %v8193
          %v9426 = vpack.c.b16 %v8202, %v8194
          %v9427 = vpack.c.b16 %v8203, %v8195
          %v9428 = vpack.c.b16 %v8204, %v8196
          %v9429 = vpack.c.b16 %v8205, %v8197
          %v9430 = vpack.c.b16 %v8206, %v8198
          %v9431 = vpack.c.b16 %v8207, %v8199
          %v9432 = vpack.c.b16 %v8216, %v8208
          %v9433 = vpack.c.b16 %v8217, %v8209
          %v9434 = vpack.c.b16 %v8218, %v8210
          %v9435 = vpack.c.b16 %v8219, %v8211
          %v9436 = vpack.c.b16 %v8220, %v8212
          %v9437 = vpack.c.b16 %v8221, %v8213
          %v9438 = vpack.c.b16 %v8222, %v8214
          %v9439 = vpack.c.b16 %v8223, %v8215
          %v9440 = vpack.c.b16 %v8232, %v8224
          %v9441 = vpack.c.b16 %v8233, %v8225
          %v9442 = vpack.c.b16 %v8234, %v8226
          %v9443 = vpack.c.b16 %v8235, %v8227
          %v9444 = vpack.c.b16 %v8236, %v8228
          %v9445 = vpack.c.b16 %v8237, %v8229
          %v9446 = vpack.c.b16 %v8238, %v8230
          %v9447 = vpack.c.b16 %v8239, %v8231
          %v9448 = vpack.c.b16 %v8248, %v8240
          %v9449 = vpack.c.b16 %v8249, %v8241
          %v9450 = vpack.c.b16 %v8250, %v8242
          %v9451 = vpack.c.b16 %v8251, %v8243
          %v9452 = vpack.c.b16 %v8252, %v8244
          %v9453 = vpack.c.b16 %v8253, %v8245
          %v9454 = vpack.c.b16 %v8254, %v8246
          %v9455 = vpack.c.b16 %v8255, %v8247
          %v9456 = vpack.c.b16 %v8264, %v8256
          %v9457 = vpack.c.b16 %v8265, %v8257
          %v9458 = vpack.c.b16 %v8266, %v8258
          %v9459 = vpack.c.b16 %v8267, %v8259
          %v9460 = vpack.c.b16 %v8268, %v8260
          %v9461 = vpack.c.b16 %v8269, %v8261
          %v9462 = vpack.c.b16 %v8270, %v8262
          %v9463 = vpack.c.b16 %v8271, %v8263
          %v9464 = vpack.c.b16 %v8280, %v8272
          %v9465 = vpack.c.b16 %v8281, %v8273
          %v9466 = vpack.c.b16 %v8282, %v8274
          %v9467 = vpack.c.b16 %v8283, %v8275
          %v9468 = vpack.c.b16 %v8284, %v8276
          %v9469 = vpack.c.b16 %v8285, %v8277
          %v9470 = vpack.c.b16 %v8286, %v8278
          %v9471 = vpack.c.b16 %v8287, %v8279
          %v9472 = vpack.c.b16 %v8296, %v8288
          %v9473 = vpack.c.b16 %v8297, %v8289
          %v9474 = vpack.c.b16 %v8298, %v8290
          %v9475 = vpack.c.b16 %v8299, %v8291
          %v9476 = vpack.c.b16 %v8300, %v8292
          %v9477 = vpack.c.b16 %v8301, %v8293
          %v9478 = vpack.c.b16 %v8302, %v8294
          %v9479 = vpack.c.b16 %v8303, %v8295
          %v9480 = vpack.c.b16 %v8312, %v8304
          %v9481 = vpack.c.b16 %v8313, %v8305
          %v9482 = vpack.c.b16 %v8314, %v8306
          %v9483 = vpack.c.b16 %v8315, %v8307
          %v9484 = vpack.c.b16 %v8316, %v8308
          %v9485 = vpack.c.b16 %v8317, %v8309
          %v9486 = vpack.c.b16 %v8318, %v8310
          %v9487 = vpack.c.b16 %v8319, %v8311
          %v9488 = vpack.c.b16 %v8328, %v8320
          %v9489 = vpack.c.b16 %v8329, %v8321
          %v9490 = vpack.c.b16 %v8330, %v8322
          %v9491 = vpack.c.b16 %v8331, %v8323
          %v9492 = vpack.c.b16 %v8332, %v8324
          %v9493 = vpack.c.b16 %v8333, %v8325
          %v9494 = vpack.c.b16 %v8334, %v8326
          %v9495 = vpack.c.b16 %v8335, %v8327
          %v9496 = vpack.c.b16 %v8344, %v8336
          %v9497 = vpack.c.b16 %v8345, %v8337
          %v9498 = vpack.c.b16 %v8346, %v8338
          %v9499 = vpack.c.b16 %v8347, %v8339
          %v9500 = vpack.c.b16 %v8348, %v8340
          %v9501 = vpack.c.b16 %v8349, %v8341
          %v9502 = vpack.c.b16 %v8350, %v8342
          %v9503 = vpack.c.b16 %v8351, %v8343
          %v9504 = vpack.c.b16 %v8360, %v8352
          %v9505 = vpack.c.b16 %v8361, %v8353
          %v9506 = vpack.c.b16 %v8362, %v8354
          %v9507 = vpack.c.b16 %v8363, %v8355
          %v9508 = vpack.c.b16 %v8364, %v8356
          %v9509 = vpack.c.b16 %v8365, %v8357
          %v9510 = vpack.c.b16 %v8366, %v8358
          %v9511 = vpack.c.b16 %v8367, %v8359
          %v9512 = vpack.c.b16 %v8376, %v8368
          %v9513 = vpack.c.b16 %v8377, %v8369
          %v9514 = vpack.c.b16 %v8378, %v8370
          %v9515 = vpack.c.b16 %v8379, %v8371
          %v9516 = vpack.c.b16 %v8380, %v8372
          %v9517 = vpack.c.b16 %v8381, %v8373
          %v9518 = vpack.c.b16 %v8382, %v8374
          %v9519 = vpack.c.b16 %v8383, %v8375
          %v9520 = vpack.c.b16 %v8392, %v8384
          %v9521 = vpack.c.b16 %v8393, %v8385
          %v9522 = vpack.c.b16 %v8394, %v8386
          %v9523 = vpack.c.b16 %v8395, %v8387
          %v9524 = vpack.c.b16 %v8396, %v8388
          %v9525 = vpack.c.b16 %v8397, %v8389
          %v9526 = vpack.c.b16 %v8398, %v8390
          %v9527 = vpack.c.b16 %v8399, %v8391
          %v9528 = vpack.c.b16 %v8408, %v8400
          %v9529 = vpack.c.b16 %v8409, %v8401
          %v9530 = vpack.c.b16 %v8410, %v8402
          %v9531 = vpack.c.b16 %v8411, %v8403
          %v9532 = vpack.c.b16 %v8412, %v8404
          %v9533 = vpack.c.b16 %v8413, %v8405
          %v9534 = vpack.c.b16 %v8414, %v8406
          %v9535 = vpack.c.b16 %v8415, %v8407
          %v9536 = vpack.c.b16 %v8424, %v8416
          %v9537 = vpack.c.b16 %v8425, %v8417
          %v9538 = vpack.c.b16 %v8426, %v8418
          %v9539 = vpack.c.b16 %v8427, %v8419
          %v9540 = vpack.c.b16 %v8428, %v8420
          %v9541 = vpack.c.b16 %v8429, %v8421
          %v9542 = vpack.c.b16 %v8430, %v8422
          %v9543 = vpack.c.b16 %v8431, %v8423
          %v9544 = vpack.c.b16 %v8440, %v8432
          %v9545 = vpack.c.b16 %v8441, %v8433
          %v9546 = vpack.c.b16 %v8442, %v8434
          %v9547 = vpack.c.b16 %v8443, %v8435
          %v9548 = vpack.c.b16 %v8444, %v8436
          %v9549 = vpack.c.b16 %v8445, %v8437
          %v9550 = vpack.c.b16 %v8446, %v8438
          %v9551 = vpack.c.b16 %v8447, %v8439
          %v9552 = vpack.c.b16 %v8456, %v8448
          %v9553 = vpack.c.b16 %v8457, %v8449
          %v9554 = vpack.c.b16 %v8458, %v8450
          %v9555 = vpack.c.b16 %v8459, %v8451
          %v9556 = vpack.c.b16 %v8460, %v8452
          %v9557 = vpack.c.b16 %v8461, %v8453
          %v9558 = vpack.c.b16 %v8462, %v8454
          %v9559 = vpack.c.b16 %v8463, %v8455
          %v9560 = vpack.c.b16 %v8472, %v8464
          %v9561 = vpack.c.b16 %v8473, %v8465
          %v9562 = vpack.c.b16 %v8474, %v8466
          %v9563 = vpack.c.b16 %v8475, %v8467
          %v9564 = vpack.c.b16 %v8476, %v8468
          %v9565 = vpack.c.b16 %v8477, %v8469
          %v9566 = vpack.c.b16 %v8478, %v8470
          %v9567 = vpack.c.b16 %v8479, %v8471
          %v9568 = vpack.c.b16 %v8488, %v8480
          %v9569 = vpack.c.b16 %v8489, %v8481
          %v9570 = vpack.c.b16 %v8490, %v8482
          %v9571 = vpack.c.b16 %v8491, %v8483
          %v9572 = vpack.c.b16 %v8492, %v8484
          %v9573 = vpack.c.b16 %v8493, %v8485
          %v9574 = vpack.c.b16 %v8494, %v8486
          %v9575 = vpack.c.b16 %v8495, %v8487
          %v9576 = vpack.c.b16 %v8504, %v8496
          %v9577 = vpack.c.b16 %v8505, %v8497
          %v9578 = vpack.c.b16 %v8506, %v8498
          %v9579 = vpack.c.b16 %v8507, %v8499
          %v9580 = vpack.c.b16 %v8508, %v8500
          %v9581 = vpack.c.b16 %v8509, %v8501
          %v9582 = vpack.c.b16 %v8510, %v8502
          %v9583 = vpack.c.b16 %v8511, %v8503
          %v9584 = vpack.c.b16 %v8520, %v8512
          %v9585 = vpack.c.b16 %v8521, %v8513
          %v9586 = vpack.c.b16 %v8522, %v8514
          %v9587 = vpack.c.b16 %v8523, %v8515
          %v9588 = vpack.c.b16 %v8524, %v8516
          %v9589 = vpack.c.b16 %v8525, %v8517
          %v9590 = vpack.c.b16 %v8526, %v8518
          %v9591 = vpack.c.b16 %v8527, %v8519
          %v9592 = vpack.c.b16 %v8536, %v8528
          %v9593 = vpack.c.b16 %v8537, %v8529
          %v9594 = vpack.c.b16 %v8538, %v8530
          %v9595 = vpack.c.b16 %v8539, %v8531
          %v9596 = vpack.c.b16 %v8540, %v8532
          %v9597 = vpack.c.b16 %v8541, %v8533
          %v9598 = vpack.c.b16 %v8542, %v8534
          %v9599 = vpack.c.b16 %v8543, %v8535
          %v9600 = vpack.c.b16 %v8552, %v8544
          %v9601 = vpack.c.b16 %v8553, %v8545
          %v9602 = vpack.c.b16 %v8554, %v8546
          %v9603 = vpack.c.b16 %v8555, %v8547
          %v9604 = vpack.c.b16 %v8556, %v8548
          %v9605 = vpack.c.b16 %v8557, %v8549
          %v9606 = vpack.c.b16 %v8558, %v8550
          %v9607 = vpack.c.b16 %v8559, %v8551
          %v9608 = vpack.c.b16 %v8568, %v8560
          %v9609 = vpack.c.b16 %v8569, %v8561
          %v9610 = vpack.c.b16 %v8570, %v8562
          %v9611 = vpack.c.b16 %v8571, %v8563
          %v9612 = vpack.c.b16 %v8572, %v8564
          %v9613 = vpack.c.b16 %v8573, %v8565
          %v9614 = vpack.c.b16 %v8574, %v8566
          %v9615 = vpack.c.b16 %v8575, %v8567
          %v9616 = vpack.c.b16 %v8584, %v8576
          %v9617 = vpack.c.b16 %v8585, %v8577
          %v9618 = vpack.c.b16 %v8586, %v8578
          %v9619 = vpack.c.b16 %v8587, %v8579
          %v9620 = vpack.c.b16 %v8588, %v8580
          %v9621 = vpack.c.b16 %v8589, %v8581
          %v9622 = vpack.c.b16 %v8590, %v8582
          %v9623 = vpack.c.b16 %v8591, %v8583
          %v9624 = vpack.c.b16 %v8600, %v8592
          %v9625 = vpack.c.b16 %v8601, %v8593
          %v9626 = vpack.c.b16 %v8602, %v8594
          %v9627 = vpack.c.b16 %v8603, %v8595
          %v9628 = vpack.c.b16 %v8604, %v8596
          %v9629 = vpack.c.b16 %v8605, %v8597
          %v9630 = vpack.c.b16 %v8606, %v8598
          %v9631 = vpack.c.b16 %v8607, %v8599
          %10656 = vmatprep.subr.bf16.mxu0 %v8665
          %10657 = vmatpush1.bf16.msra.mxu0 %v8664
          %10658 = vmatprep.subr.bf16.mxu0 %v8657
          %10659 = vmatpush1.bf16.msra.mxu0 %v8656
          %10660 = vmatprep.subr.bf16.mxu0 %v8649
          %10661 = vmatpush1.bf16.msra.mxu0 %v8648
          %10662 = vmatprep.subr.bf16.mxu0 %v8641
          %10663 = vmatpush1.bf16.msra.mxu0 %v8640
          %10664 = vmatprep.subr.bf16.mxu0 %v8633
          %10665 = vmatpush1.bf16.msra.mxu0 %v8632
          %10666 = vmatprep.subr.bf16.mxu0 %v8625
          %10667 = vmatpush1.bf16.msra.mxu0 %v8624
          %10668 = vmatprep.subr.bf16.mxu0 %v8617
          %10669 = vmatpush1.bf16.msra.mxu0 %v8616
          %10670 = vmatprep.subr.bf16.mxu0 %v8609
          %10671 = vmatpush1.bf16.msra.mxu0 %v8608
          %10672 = vmatprep.subr.bf16.mxu0 %v8729
          %10673 = vmatpush2.bf16.msra.mxu0 %v8728
          %10674 = vmatprep.subr.bf16.mxu0 %v8721
          %10675 = vmatpush2.bf16.msra.mxu0 %v8720
          %10676 = vmatprep.subr.bf16.mxu0 %v8713
          %10677 = vmatpush2.bf16.msra.mxu0 %v8712
          %10678 = vmatprep.subr.bf16.mxu0 %v8705
          %10679 = vmatpush2.bf16.msra.mxu0 %v8704
          %10680 = vmatprep.subr.bf16.mxu0 %v8697
          %10681 = vmatpush2.bf16.msra.mxu0 %v8696
          %10682 = vmatprep.subr.bf16.mxu0 %v8689
          %10683 = vmatpush2.bf16.msra.mxu0 %v8688
          %10684 = vmatprep.subr.bf16.mxu0 %v8681
          %10685 = vmatpush2.bf16.msra.mxu0 %v8680
          %10686 = vmatprep.subr.bf16.mxu0 %v8673
          %10687 = vmatpush2.bf16.msra.mxu0 %v8672
          %10688 = vmatprep.mubr.bf16.mxu0 %v4455
          %10689 = vmatmul.mubr.bf16.gmra.mxu0 %v4454
          %v10690 = vpop.f32.mrf.mxu0
          %v10691 = vadd.f32 %v5499, %v10690
          %v10692 = vpop.f32.mrf.mxu0
          %v10693 = vadd.f32 %v5503, %v10692
          %v10694 = vpop.f32.mrf.mxu0
          %v10695 = vpop.f32.mrf.mxu0
          %10696 = vdwg.mxu0
          %10697 = vmatprep.subr.bf16.mxu0 %v8793
          %10698 = vmatpush1.bf16.msra.mxu0 %v8792
          %10699 = vmatprep.subr.bf16.mxu0 %v8785
          %10700 = vmatpush1.bf16.msra.mxu0 %v8784
          %10701 = vmatprep.subr.bf16.mxu0 %v8777
          %10702 = vmatpush1.bf16.msra.mxu0 %v8776
          %10703 = vmatprep.subr.bf16.mxu0 %v8769
          %10704 = vmatpush1.bf16.msra.mxu0 %v8768
          %10705 = vmatprep.subr.bf16.mxu0 %v8761
          %10706 = vmatpush1.bf16.msra.mxu0 %v8760
          %10707 = vmatprep.subr.bf16.mxu0 %v8753
          %10708 = vmatpush1.bf16.msra.mxu0 %v8752
          %10709 = vmatprep.subr.bf16.mxu0 %v8745
          %10710 = vmatpush1.bf16.msra.mxu0 %v8744
          %10711 = vmatprep.subr.bf16.mxu0 %v8737
          %10712 = vmatpush1.bf16.msra.mxu0 %v8736
          %10713 = vmatprep.subr.bf16.mxu0 %v8857
          %10714 = vmatpush2.bf16.msra.mxu0 %v8856
          %10715 = vmatprep.subr.bf16.mxu0 %v8849
          %10716 = vmatpush2.bf16.msra.mxu0 %v8848
          %10717 = vmatprep.subr.bf16.mxu0 %v8841
          %10718 = vmatpush2.bf16.msra.mxu0 %v8840
          %10719 = vmatprep.subr.bf16.mxu0 %v8833
          %10720 = vmatpush2.bf16.msra.mxu0 %v8832
          %10721 = vmatprep.subr.bf16.mxu0 %v8825
          %10722 = vmatpush2.bf16.msra.mxu0 %v8824
          %10723 = vmatprep.subr.bf16.mxu0 %v8817
          %10724 = vmatpush2.bf16.msra.mxu0 %v8816
          %10725 = vmatprep.subr.bf16.mxu0 %v8809
          %10726 = vmatpush2.bf16.msra.mxu0 %v8808
          %10727 = vmatprep.subr.bf16.mxu0 %v8801
          %10728 = vmatpush2.bf16.msra.mxu0 %v8800
          %10729 = vmatprep.mubr.bf16.mxu0 %v4457
          %10730 = vmatmul.mubr.bf16.gmra.mxu0 %v4456
          %v10731 = vpop.f32.mrf.mxu0
          %v10732 = vadd.f32 %v10691, %v10731
          %v10733 = vpop.f32.mrf.mxu0
          %v10734 = vadd.f32 %v10693, %v10733
          %v10735 = vpop.f32.mrf.mxu0
          %v10736 = vpop.f32.mrf.mxu0
          %10737 = vdwg.mxu0
          %10738 = vmatprep.subr.bf16.mxu0 %v8921
          %10739 = vmatpush1.bf16.msra.mxu0 %v8920
          %10740 = vmatprep.subr.bf16.mxu0 %v8913
          %10741 = vmatpush1.bf16.msra.mxu0 %v8912
          %10742 = vmatprep.subr.bf16.mxu0 %v8905
          %10743 = vmatpush1.bf16.msra.mxu0 %v8904
          %10744 = vmatprep.subr.bf16.mxu0 %v8897
          %10745 = vmatpush1.bf16.msra.mxu0 %v8896
          %10746 = vmatprep.subr.bf16.mxu0 %v8889
          %10747 = vmatpush1.bf16.msra.mxu0 %v8888
          %10748 = vmatprep.subr.bf16.mxu0 %v8881
          %10749 = vmatpush1.bf16.msra.mxu0 %v8880
          %10750 = vmatprep.subr.bf16.mxu0 %v8873
          %10751 = vmatpush1.bf16.msra.mxu0 %v8872
          %10752 = vmatprep.subr.bf16.mxu0 %v8865
          %10753 = vmatpush1.bf16.msra.mxu0 %v8864
          %10754 = vmatprep.subr.bf16.mxu0 %v8985
          %10755 = vmatpush2.bf16.msra.mxu0 %v8984
          %10756 = vmatprep.subr.bf16.mxu0 %v8977
          %10757 = vmatpush2.bf16.msra.mxu0 %v8976
          %10758 = vmatprep.subr.bf16.mxu0 %v8969
          %10759 = vmatpush2.bf16.msra.mxu0 %v8968
          %10760 = vmatprep.subr.bf16.mxu0 %v8961
          %10761 = vmatpush2.bf16.msra.mxu0 %v8960
          %10762 = vmatprep.subr.bf16.mxu0 %v8953
          %10763 = vmatpush2.bf16.msra.mxu0 %v8952
          %10764 = vmatprep.subr.bf16.mxu0 %v8945
          %10765 = vmatpush2.bf16.msra.mxu0 %v8944
          %10766 = vmatprep.subr.bf16.mxu0 %v8937
          %10767 = vmatpush2.bf16.msra.mxu0 %v8936
          %10768 = vmatprep.subr.bf16.mxu0 %v8929
          %10769 = vmatpush2.bf16.msra.mxu0 %v8928
          %10770 = vmatprep.mubr.bf16.mxu0 %v4459
          %10771 = vmatmul.mubr.bf16.gmra.mxu0 %v4458
          %v10772 = vpop.f32.mrf.mxu0
          %v10773 = vadd.f32 %v10732, %v10772
          %v10774 = vpop.f32.mrf.mxu0
          %v10775 = vadd.f32 %v10734, %v10774
          %v10776 = vpop.f32.mrf.mxu0
          %v10777 = vpop.f32.mrf.mxu0
          %10778 = vdwg.mxu0
          %10779 = vmatprep.subr.bf16.mxu0 %v9049
          %10780 = vmatpush1.bf16.msra.mxu0 %v9048
          %10781 = vmatprep.subr.bf16.mxu0 %v9041
          %10782 = vmatpush1.bf16.msra.mxu0 %v9040
          %10783 = vmatprep.subr.bf16.mxu0 %v9033
          %10784 = vmatpush1.bf16.msra.mxu0 %v9032
          %10785 = vmatprep.subr.bf16.mxu0 %v9025
          %10786 = vmatpush1.bf16.msra.mxu0 %v9024
          %10787 = vmatprep.subr.bf16.mxu0 %v9017
          %10788 = vmatpush1.bf16.msra.mxu0 %v9016
          %10789 = vmatprep.subr.bf16.mxu0 %v9009
          %10790 = vmatpush1.bf16.msra.mxu0 %v9008
          %10791 = vmatprep.subr.bf16.mxu0 %v9001
          %10792 = vmatpush1.bf16.msra.mxu0 %v9000
          %10793 = vmatprep.subr.bf16.mxu0 %v8993
          %10794 = vmatpush1.bf16.msra.mxu0 %v8992
          %10795 = vmatprep.subr.bf16.mxu0 %v9113
          %10796 = vmatpush2.bf16.msra.mxu0 %v9112
          %10797 = vmatprep.subr.bf16.mxu0 %v9105
          %10798 = vmatpush2.bf16.msra.mxu0 %v9104
          %10799 = vmatprep.subr.bf16.mxu0 %v9097
          %10800 = vmatpush2.bf16.msra.mxu0 %v9096
          %10801 = vmatprep.subr.bf16.mxu0 %v9089
          %10802 = vmatpush2.bf16.msra.mxu0 %v9088
          %10803 = vmatprep.subr.bf16.mxu0 %v9081
          %10804 = vmatpush2.bf16.msra.mxu0 %v9080
          %10805 = vmatprep.subr.bf16.mxu0 %v9073
          %10806 = vmatpush2.bf16.msra.mxu0 %v9072
          %10807 = vmatprep.subr.bf16.mxu0 %v9065
          %10808 = vmatpush2.bf16.msra.mxu0 %v9064
          %10809 = vmatprep.subr.bf16.mxu0 %v9057
          %10810 = vmatpush2.bf16.msra.mxu0 %v9056
          %10811 = vmatprep.mubr.bf16.mxu0 %v4461
          %10812 = vmatmul.mubr.bf16.gmra.mxu0 %v4460
          %v10813 = vpop.f32.mrf.mxu0
          %v10814 = vadd.f32 %v10773, %v10813
          %v10815 = vpop.f32.mrf.mxu0
          %v10816 = vadd.f32 %v10775, %v10815
          %v10817 = vpop.f32.mrf.mxu0
          %v10818 = vpop.f32.mrf.mxu0
          %10819 = vdwg.mxu0
          %10820 = vmatprep.subr.bf16.mxu0 %v9177
          %10821 = vmatpush1.bf16.msra.mxu0 %v9176
          %10822 = vmatprep.subr.bf16.mxu0 %v9169
          %10823 = vmatpush1.bf16.msra.mxu0 %v9168
          %10824 = vmatprep.subr.bf16.mxu0 %v9161
          %10825 = vmatpush1.bf16.msra.mxu0 %v9160
          %10826 = vmatprep.subr.bf16.mxu0 %v9153
          %10827 = vmatpush1.bf16.msra.mxu0 %v9152
          %10828 = vmatprep.subr.bf16.mxu0 %v9145
          %10829 = vmatpush1.bf16.msra.mxu0 %v9144
          %10830 = vmatprep.subr.bf16.mxu0 %v9137
          %10831 = vmatpush1.bf16.msra.mxu0 %v9136
          %10832 = vmatprep.subr.bf16.mxu0 %v9129
          %10833 = vmatpush1.bf16.msra.mxu0 %v9128
          %10834 = vmatprep.subr.bf16.mxu0 %v9121
          %10835 = vmatpush1.bf16.msra.mxu0 %v9120
          %10836 = vmatprep.subr.bf16.mxu0 %v9241
          %10837 = vmatpush2.bf16.msra.mxu0 %v9240
          %10838 = vmatprep.subr.bf16.mxu0 %v9233
          %10839 = vmatpush2.bf16.msra.mxu0 %v9232
          %10840 = vmatprep.subr.bf16.mxu0 %v9225
          %10841 = vmatpush2.bf16.msra.mxu0 %v9224
          %10842 = vmatprep.subr.bf16.mxu0 %v9217
          %10843 = vmatpush2.bf16.msra.mxu0 %v9216
          %10844 = vmatprep.subr.bf16.mxu0 %v9209
          %10845 = vmatpush2.bf16.msra.mxu0 %v9208
          %10846 = vmatprep.subr.bf16.mxu0 %v9201
          %10847 = vmatpush2.bf16.msra.mxu0 %v9200
          %10848 = vmatprep.subr.bf16.mxu0 %v9193
          %10849 = vmatpush2.bf16.msra.mxu0 %v9192
          %10850 = vmatprep.subr.bf16.mxu0 %v9185
          %10851 = vmatpush2.bf16.msra.mxu0 %v9184
          %10852 = vmatprep.mubr.bf16.mxu0 %v4463
          %10853 = vmatmul.mubr.bf16.gmra.mxu0 %v4462
          %v10854 = vpop.f32.mrf.mxu0
          %v10855 = vadd.f32 %v10814, %v10854
          %v10856 = vpop.f32.mrf.mxu0
          %v10857 = vadd.f32 %v10816, %v10856
          %v10858 = vpop.f32.mrf.mxu0
          %v10859 = vpop.f32.mrf.mxu0
          %10860 = vdwg.mxu0
          %10861 = vmatprep.subr.bf16.mxu0 %v9305
          %10862 = vmatpush1.bf16.msra.mxu0 %v9304
          %10863 = vmatprep.subr.bf16.mxu0 %v9297
          %10864 = vmatpush1.bf16.msra.mxu0 %v9296
          %10865 = vmatprep.subr.bf16.mxu0 %v9289
          %10866 = vmatpush1.bf16.msra.mxu0 %v9288
          %10867 = vmatprep.subr.bf16.mxu0 %v9281
          %10868 = vmatpush1.bf16.msra.mxu0 %v9280
          %10869 = vmatprep.subr.bf16.mxu0 %v9273
          %10870 = vmatpush1.bf16.msra.mxu0 %v9272
          %10871 = vmatprep.subr.bf16.mxu0 %v9265
          %10872 = vmatpush1.bf16.msra.mxu0 %v9264
          %10873 = vmatprep.subr.bf16.mxu0 %v9257
          %10874 = vmatpush1.bf16.msra.mxu0 %v9256
          %10875 = vmatprep.subr.bf16.mxu0 %v9249
          %10876 = vmatpush1.bf16.msra.mxu0 %v9248
          %10877 = vmatprep.subr.bf16.mxu0 %v9369
          %10878 = vmatpush2.bf16.msra.mxu0 %v9368
          %10879 = vmatprep.subr.bf16.mxu0 %v9361
          %10880 = vmatpush2.bf16.msra.mxu0 %v9360
          %10881 = vmatprep.subr.bf16.mxu0 %v9353
          %10882 = vmatpush2.bf16.msra.mxu0 %v9352
          %10883 = vmatprep.subr.bf16.mxu0 %v9345
          %10884 = vmatpush2.bf16.msra.mxu0 %v9344
          %10885 = vmatprep.subr.bf16.mxu0 %v9337
          %10886 = vmatpush2.bf16.msra.mxu0 %v9336
          %10887 = vmatprep.subr.bf16.mxu0 %v9329
          %10888 = vmatpush2.bf16.msra.mxu0 %v9328
          %10889 = vmatprep.subr.bf16.mxu0 %v9321
          %10890 = vmatpush2.bf16.msra.mxu0 %v9320
          %10891 = vmatprep.subr.bf16.mxu0 %v9313
          %10892 = vmatpush2.bf16.msra.mxu0 %v9312
          %10893 = vmatprep.mubr.bf16.mxu0 %v4465
          %10894 = vmatmul.mubr.bf16.gmra.mxu0 %v4464
          %v10895 = vpop.f32.mrf.mxu0
          %v10896 = vadd.f32 %v10855, %v10895
          %v10897 = vpop.f32.mrf.mxu0
          %v10898 = vadd.f32 %v10857, %v10897
          %v10899 = vpop.f32.mrf.mxu0
          %v10900 = vpop.f32.mrf.mxu0
          %10901 = vdwg.mxu0
          %10902 = vmatprep.subr.bf16.mxu0 %v9433
          %10903 = vmatpush1.bf16.msra.mxu0 %v9432
          %10904 = vmatprep.subr.bf16.mxu0 %v9425
          %10905 = vmatpush1.bf16.msra.mxu0 %v9424
          %10906 = vmatprep.subr.bf16.mxu0 %v9417
          %10907 = vmatpush1.bf16.msra.mxu0 %v9416
          %10908 = vmatprep.subr.bf16.mxu0 %v9409
          %10909 = vmatpush1.bf16.msra.mxu0 %v9408
          %10910 = vmatprep.subr.bf16.mxu0 %v9401
          %10911 = vmatpush1.bf16.msra.mxu0 %v9400
          %10912 = vmatprep.subr.bf16.mxu0 %v9393
          %10913 = vmatpush1.bf16.msra.mxu0 %v9392
          %10914 = vmatprep.subr.bf16.mxu0 %v9385
          %10915 = vmatpush1.bf16.msra.mxu0 %v9384
          %10916 = vmatprep.subr.bf16.mxu0 %v9377
          %10917 = vmatpush1.bf16.msra.mxu0 %v9376
          %10918 = vmatprep.subr.bf16.mxu0 %v9497
          %10919 = vmatpush2.bf16.msra.mxu0 %v9496
          %10920 = vmatprep.subr.bf16.mxu0 %v9489
          %10921 = vmatpush2.bf16.msra.mxu0 %v9488
          %10922 = vmatprep.subr.bf16.mxu0 %v9481
          %10923 = vmatpush2.bf16.msra.mxu0 %v9480
          %10924 = vmatprep.subr.bf16.mxu0 %v9473
          %10925 = vmatpush2.bf16.msra.mxu0 %v9472
          %10926 = vmatprep.subr.bf16.mxu0 %v9465
          %10927 = vmatpush2.bf16.msra.mxu0 %v9464
          %10928 = vmatprep.subr.bf16.mxu0 %v9457
          %10929 = vmatpush2.bf16.msra.mxu0 %v9456
          %10930 = vmatprep.subr.bf16.mxu0 %v9449
          %10931 = vmatpush2.bf16.msra.mxu0 %v9448
          %10932 = vmatprep.subr.bf16.mxu0 %v9441
          %10933 = vmatpush2.bf16.msra.mxu0 %v9440
          %10934 = vmatprep.mubr.bf16.mxu0 %v4467
          %10935 = vmatmul.mubr.bf16.gmra.mxu0 %v4466
          %v10936 = vpop.f32.mrf.mxu0
          %v10937 = vadd.f32 %v10896, %v10936
          %v10938 = vpop.f32.mrf.mxu0
          %v10939 = vadd.f32 %v10898, %v10938
          %v10940 = vpop.f32.mrf.mxu0
          %v10941 = vpop.f32.mrf.mxu0
          %10942 = vdwg.mxu0
          %10943 = vmatprep.subr.bf16.mxu0 %v9561
          %10944 = vmatpush1.bf16.msra.mxu0 %v9560
          %10945 = vmatprep.subr.bf16.mxu0 %v9553
          %10946 = vmatpush1.bf16.msra.mxu0 %v9552
          %10947 = vmatprep.subr.bf16.mxu0 %v9545
          %10948 = vmatpush1.bf16.msra.mxu0 %v9544
          %10949 = vmatprep.subr.bf16.mxu0 %v9537
          %10950 = vmatpush1.bf16.msra.mxu0 %v9536
          %10951 = vmatprep.subr.bf16.mxu0 %v9529
          %10952 = vmatpush1.bf16.msra.mxu0 %v9528
          %10953 = vmatprep.subr.bf16.mxu0 %v9521
          %10954 = vmatpush1.bf16.msra.mxu0 %v9520
          %10955 = vmatprep.subr.bf16.mxu0 %v9513
          %10956 = vmatpush1.bf16.msra.mxu0 %v9512
          %10957 = vmatprep.subr.bf16.mxu0 %v9505
          %10958 = vmatpush1.bf16.msra.mxu0 %v9504
          %10959 = vmatprep.subr.bf16.mxu0 %v9625
          %10960 = vmatpush2.bf16.msra.mxu0 %v9624
          %10961 = vmatprep.subr.bf16.mxu0 %v9617
          %10962 = vmatpush2.bf16.msra.mxu0 %v9616
          %10963 = vmatprep.subr.bf16.mxu0 %v9609
          %10964 = vmatpush2.bf16.msra.mxu0 %v9608
          %10965 = vmatprep.subr.bf16.mxu0 %v9601
          %10966 = vmatpush2.bf16.msra.mxu0 %v9600
          %10967 = vmatprep.subr.bf16.mxu0 %v9593
          %10968 = vmatpush2.bf16.msra.mxu0 %v9592
          %10969 = vmatprep.subr.bf16.mxu0 %v9585
          %10970 = vmatpush2.bf16.msra.mxu0 %v9584
          %10971 = vmatprep.subr.bf16.mxu0 %v9577
          %10972 = vmatpush2.bf16.msra.mxu0 %v9576
          %10973 = vmatprep.subr.bf16.mxu0 %v9569
          %10974 = vmatpush2.bf16.msra.mxu0 %v9568
          %10975 = vmatprep.mubr.bf16.mxu0 %v4469
          %10976 = vmatmul.mubr.bf16.gmra.mxu0 %v4468
          %v10977 = vpop.f32.mrf.mxu0
          %v10978 = vadd.f32 %v10937, %v10977
          %v10979 = vpop.f32.mrf.mxu0
          %v10980 = vadd.f32 %v10939, %v10979
          %v10981 = vpop.f32.mrf.mxu0
          %v10982 = vpop.f32.mrf.mxu0
          %10983 = vdwg.mxu0
          %10984 = vmatprep.subr.bf16.mxu0 %v8667
          %10985 = vmatpush1.bf16.msra.mxu0 %v8666
          %10986 = vmatprep.subr.bf16.mxu0 %v8659
          %10987 = vmatpush1.bf16.msra.mxu0 %v8658
          %10988 = vmatprep.subr.bf16.mxu0 %v8651
          %10989 = vmatpush1.bf16.msra.mxu0 %v8650
          %10990 = vmatprep.subr.bf16.mxu0 %v8643
          %10991 = vmatpush1.bf16.msra.mxu0 %v8642
          %10992 = vmatprep.subr.bf16.mxu0 %v8635
          %10993 = vmatpush1.bf16.msra.mxu0 %v8634
          %10994 = vmatprep.subr.bf16.mxu0 %v8627
          %10995 = vmatpush1.bf16.msra.mxu0 %v8626
          %10996 = vmatprep.subr.bf16.mxu0 %v8619
          %10997 = vmatpush1.bf16.msra.mxu0 %v8618
          %10998 = vmatprep.subr.bf16.mxu0 %v8611
          %10999 = vmatpush1.bf16.msra.mxu0 %v8610
          %11000 = vmatprep.subr.bf16.mxu0 %v8731
          %11001 = vmatpush2.bf16.msra.mxu0 %v8730
          %11002 = vmatprep.subr.bf16.mxu0 %v8723
          %11003 = vmatpush2.bf16.msra.mxu0 %v8722
          %11004 = vmatprep.subr.bf16.mxu0 %v8715
          %11005 = vmatpush2.bf16.msra.mxu0 %v8714
          %11006 = vmatprep.subr.bf16.mxu0 %v8707
          %11007 = vmatpush2.bf16.msra.mxu0 %v8706
          %11008 = vmatprep.subr.bf16.mxu0 %v8699
          %11009 = vmatpush2.bf16.msra.mxu0 %v8698
          %11010 = vmatprep.subr.bf16.mxu0 %v8691
          %11011 = vmatpush2.bf16.msra.mxu0 %v8690
          %11012 = vmatprep.subr.bf16.mxu0 %v8683
          %11013 = vmatpush2.bf16.msra.mxu0 %v8682
          %11014 = vmatprep.subr.bf16.mxu0 %v8675
          %11015 = vmatpush2.bf16.msra.mxu0 %v8674
          %11016 = vmatprep.mubr.bf16.mxu0 %v4455
          %11017 = vmatmul.mubr.bf16.gmra.mxu0 %v4454
          %v11018 = vpop.f32.mrf.mxu0
          %v11019 = vadd.f32 %v5507, %v11018
          %v11020 = vpop.f32.mrf.mxu0
          %v11021 = vadd.f32 %v5511, %v11020
          %v11022 = vpop.f32.mrf.mxu0
          %v11023 = vpop.f32.mrf.mxu0
          %11024 = vdwg.mxu0
          %11025 = vmatprep.subr.bf16.mxu0 %v8795
          %11026 = vmatpush1.bf16.msra.mxu0 %v8794
          %11027 = vmatprep.subr.bf16.mxu0 %v8787
          %11028 = vmatpush1.bf16.msra.mxu0 %v8786
          %11029 = vmatprep.subr.bf16.mxu0 %v8779
          %11030 = vmatpush1.bf16.msra.mxu0 %v8778
          %11031 = vmatprep.subr.bf16.mxu0 %v8771
          %11032 = vmatpush1.bf16.msra.mxu0 %v8770
          %11033 = vmatprep.subr.bf16.mxu0 %v8763
          %11034 = vmatpush1.bf16.msra.mxu0 %v8762
          %11035 = vmatprep.subr.bf16.mxu0 %v8755
          %11036 = vmatpush1.bf16.msra.mxu0 %v8754
          %11037 = vmatprep.subr.bf16.mxu0 %v8747
          %11038 = vmatpush1.bf16.msra.mxu0 %v8746
          %11039 = vmatprep.subr.bf16.mxu0 %v8739
          %11040 = vmatpush1.bf16.msra.mxu0 %v8738
          %11041 = vmatprep.subr.bf16.mxu0 %v8859
          %11042 = vmatpush2.bf16.msra.mxu0 %v8858
          %11043 = vmatprep.subr.bf16.mxu0 %v8851
          %11044 = vmatpush2.bf16.msra.mxu0 %v8850
          %11045 = vmatprep.subr.bf16.mxu0 %v8843
          %11046 = vmatpush2.bf16.msra.mxu0 %v8842
          %11047 = vmatprep.subr.bf16.mxu0 %v8835
          %11048 = vmatpush2.bf16.msra.mxu0 %v8834
          %11049 = vmatprep.subr.bf16.mxu0 %v8827
          %11050 = vmatpush2.bf16.msra.mxu0 %v8826
          %11051 = vmatprep.subr.bf16.mxu0 %v8819
          %11052 = vmatpush2.bf16.msra.mxu0 %v8818
          %11053 = vmatprep.subr.bf16.mxu0 %v8811
          %11054 = vmatpush2.bf16.msra.mxu0 %v8810
          %11055 = vmatprep.subr.bf16.mxu0 %v8803
          %11056 = vmatpush2.bf16.msra.mxu0 %v8802
          %11057 = vmatprep.mubr.bf16.mxu0 %v4457
          %11058 = vmatmul.mubr.bf16.gmra.mxu0 %v4456
          %v11059 = vpop.f32.mrf.mxu0
          %v11060 = vadd.f32 %v11019, %v11059
          %v11061 = vpop.f32.mrf.mxu0
          %v11062 = vadd.f32 %v11021, %v11061
          %v11063 = vpop.f32.mrf.mxu0
          %v11064 = vpop.f32.mrf.mxu0
          %11065 = vdwg.mxu0
          %11066 = vmatprep.subr.bf16.mxu0 %v8923
          %11067 = vmatpush1.bf16.msra.mxu0 %v8922
          %11068 = vmatprep.subr.bf16.mxu0 %v8915
          %11069 = vmatpush1.bf16.msra.mxu0 %v8914
          %11070 = vmatprep.subr.bf16.mxu0 %v8907
          %11071 = vmatpush1.bf16.msra.mxu0 %v8906
          %11072 = vmatprep.subr.bf16.mxu0 %v8899
          %11073 = vmatpush1.bf16.msra.mxu0 %v8898
          %11074 = vmatprep.subr.bf16.mxu0 %v8891
          %11075 = vmatpush1.bf16.msra.mxu0 %v8890
          %11076 = vmatprep.subr.bf16.mxu0 %v8883
          %11077 = vmatpush1.bf16.msra.mxu0 %v8882
          %11078 = vmatprep.subr.bf16.mxu0 %v8875
          %11079 = vmatpush1.bf16.msra.mxu0 %v8874
          %11080 = vmatprep.subr.bf16.mxu0 %v8867
          %11081 = vmatpush1.bf16.msra.mxu0 %v8866
          %11082 = vmatprep.subr.bf16.mxu0 %v8987
          %11083 = vmatpush2.bf16.msra.mxu0 %v8986
          %11084 = vmatprep.subr.bf16.mxu0 %v8979
          %11085 = vmatpush2.bf16.msra.mxu0 %v8978
          %11086 = vmatprep.subr.bf16.mxu0 %v8971
          %11087 = vmatpush2.bf16.msra.mxu0 %v8970
          %11088 = vmatprep.subr.bf16.mxu0 %v8963
          %11089 = vmatpush2.bf16.msra.mxu0 %v8962
          %11090 = vmatprep.subr.bf16.mxu0 %v8955
          %11091 = vmatpush2.bf16.msra.mxu0 %v8954
          %11092 = vmatprep.subr.bf16.mxu0 %v8947
          %11093 = vmatpush2.bf16.msra.mxu0 %v8946
          %11094 = vmatprep.subr.bf16.mxu0 %v8939
          %11095 = vmatpush2.bf16.msra.mxu0 %v8938
          %11096 = vmatprep.subr.bf16.mxu0 %v8931
          %11097 = vmatpush2.bf16.msra.mxu0 %v8930
          %11098 = vmatprep.mubr.bf16.mxu0 %v4459
          %11099 = vmatmul.mubr.bf16.gmra.mxu0 %v4458
          %v11100 = vpop.f32.mrf.mxu0
          %v11101 = vadd.f32 %v11060, %v11100
          %v11102 = vpop.f32.mrf.mxu0
          %v11103 = vadd.f32 %v11062, %v11102
          %v11104 = vpop.f32.mrf.mxu0
          %v11105 = vpop.f32.mrf.mxu0
          %11106 = vdwg.mxu0
          %11107 = vmatprep.subr.bf16.mxu0 %v9051
          %11108 = vmatpush1.bf16.msra.mxu0 %v9050
          %11109 = vmatprep.subr.bf16.mxu0 %v9043
          %11110 = vmatpush1.bf16.msra.mxu0 %v9042
          %11111 = vmatprep.subr.bf16.mxu0 %v9035
          %11112 = vmatpush1.bf16.msra.mxu0 %v9034
          %11113 = vmatprep.subr.bf16.mxu0 %v9027
          %11114 = vmatpush1.bf16.msra.mxu0 %v9026
          %11115 = vmatprep.subr.bf16.mxu0 %v9019
          %11116 = vmatpush1.bf16.msra.mxu0 %v9018
          %11117 = vmatprep.subr.bf16.mxu0 %v9011
          %11118 = vmatpush1.bf16.msra.mxu0 %v9010
          %11119 = vmatprep.subr.bf16.mxu0 %v9003
          %11120 = vmatpush1.bf16.msra.mxu0 %v9002
          %11121 = vmatprep.subr.bf16.mxu0 %v8995
          %11122 = vmatpush1.bf16.msra.mxu0 %v8994
          %11123 = vmatprep.subr.bf16.mxu0 %v9115
          %11124 = vmatpush2.bf16.msra.mxu0 %v9114
          %11125 = vmatprep.subr.bf16.mxu0 %v9107
          %11126 = vmatpush2.bf16.msra.mxu0 %v9106
          %11127 = vmatprep.subr.bf16.mxu0 %v9099
          %11128 = vmatpush2.bf16.msra.mxu0 %v9098
          %11129 = vmatprep.subr.bf16.mxu0 %v9091
          %11130 = vmatpush2.bf16.msra.mxu0 %v9090
          %11131 = vmatprep.subr.bf16.mxu0 %v9083
          %11132 = vmatpush2.bf16.msra.mxu0 %v9082
          %11133 = vmatprep.subr.bf16.mxu0 %v9075
          %11134 = vmatpush2.bf16.msra.mxu0 %v9074
          %11135 = vmatprep.subr.bf16.mxu0 %v9067
          %11136 = vmatpush2.bf16.msra.mxu0 %v9066
          %11137 = vmatprep.subr.bf16.mxu0 %v9059
          %11138 = vmatpush2.bf16.msra.mxu0 %v9058
          %11139 = vmatprep.mubr.bf16.mxu0 %v4461
          %11140 = vmatmul.mubr.bf16.gmra.mxu0 %v4460
          %v11141 = vpop.f32.mrf.mxu0
          %v11142 = vadd.f32 %v11101, %v11141
          %v11143 = vpop.f32.mrf.mxu0
          %v11144 = vadd.f32 %v11103, %v11143
          %v11145 = vpop.f32.mrf.mxu0
          %v11146 = vpop.f32.mrf.mxu0
          %11147 = vdwg.mxu0
          %11148 = vmatprep.subr.bf16.mxu0 %v9179
          %11149 = vmatpush1.bf16.msra.mxu0 %v9178
          %11150 = vmatprep.subr.bf16.mxu0 %v9171
          %11151 = vmatpush1.bf16.msra.mxu0 %v9170
          %11152 = vmatprep.subr.bf16.mxu0 %v9163
          %11153 = vmatpush1.bf16.msra.mxu0 %v9162
          %11154 = vmatprep.subr.bf16.mxu0 %v9155
          %11155 = vmatpush1.bf16.msra.mxu0 %v9154
          %11156 = vmatprep.subr.bf16.mxu0 %v9147
          %11157 = vmatpush1.bf16.msra.mxu0 %v9146
          %11158 = vmatprep.subr.bf16.mxu0 %v9139
          %11159 = vmatpush1.bf16.msra.mxu0 %v9138
          %11160 = vmatprep.subr.bf16.mxu0 %v9131
          %11161 = vmatpush1.bf16.msra.mxu0 %v9130
          %11162 = vmatprep.subr.bf16.mxu0 %v9123
          %11163 = vmatpush1.bf16.msra.mxu0 %v9122
          %11164 = vmatprep.subr.bf16.mxu0 %v9243
          %11165 = vmatpush2.bf16.msra.mxu0 %v9242
          %11166 = vmatprep.subr.bf16.mxu0 %v9235
          %11167 = vmatpush2.bf16.msra.mxu0 %v9234
          %11168 = vmatprep.subr.bf16.mxu0 %v9227
          %11169 = vmatpush2.bf16.msra.mxu0 %v9226
          %11170 = vmatprep.subr.bf16.mxu0 %v9219
          %11171 = vmatpush2.bf16.msra.mxu0 %v9218
          %11172 = vmatprep.subr.bf16.mxu0 %v9211
          %11173 = vmatpush2.bf16.msra.mxu0 %v9210
          %11174 = vmatprep.subr.bf16.mxu0 %v9203
          %11175 = vmatpush2.bf16.msra.mxu0 %v9202
          %11176 = vmatprep.subr.bf16.mxu0 %v9195
          %11177 = vmatpush2.bf16.msra.mxu0 %v9194
          %11178 = vmatprep.subr.bf16.mxu0 %v9187
          %11179 = vmatpush2.bf16.msra.mxu0 %v9186
          %11180 = vmatprep.mubr.bf16.mxu0 %v4463
          %11181 = vmatmul.mubr.bf16.gmra.mxu0 %v4462
          %v11182 = vpop.f32.mrf.mxu0
          %v11183 = vadd.f32 %v11142, %v11182
          %v11184 = vpop.f32.mrf.mxu0
          %v11185 = vadd.f32 %v11144, %v11184
          %v11186 = vpop.f32.mrf.mxu0
          %v11187 = vpop.f32.mrf.mxu0
          %11188 = vdwg.mxu0
          %11189 = vmatprep.subr.bf16.mxu0 %v9307
          %11190 = vmatpush1.bf16.msra.mxu0 %v9306
          %11191 = vmatprep.subr.bf16.mxu0 %v9299
          %11192 = vmatpush1.bf16.msra.mxu0 %v9298
          %11193 = vmatprep.subr.bf16.mxu0 %v9291
          %11194 = vmatpush1.bf16.msra.mxu0 %v9290
          %11195 = vmatprep.subr.bf16.mxu0 %v9283
          %11196 = vmatpush1.bf16.msra.mxu0 %v9282
          %11197 = vmatprep.subr.bf16.mxu0 %v9275
          %11198 = vmatpush1.bf16.msra.mxu0 %v9274
          %11199 = vmatprep.subr.bf16.mxu0 %v9267
          %11200 = vmatpush1.bf16.msra.mxu0 %v9266
          %11201 = vmatprep.subr.bf16.mxu0 %v9259
          %11202 = vmatpush1.bf16.msra.mxu0 %v9258
          %11203 = vmatprep.subr.bf16.mxu0 %v9251
          %11204 = vmatpush1.bf16.msra.mxu0 %v9250
          %11205 = vmatprep.subr.bf16.mxu0 %v9371
          %11206 = vmatpush2.bf16.msra.mxu0 %v9370
          %11207 = vmatprep.subr.bf16.mxu0 %v9363
          %11208 = vmatpush2.bf16.msra.mxu0 %v9362
          %11209 = vmatprep.subr.bf16.mxu0 %v9355
          %11210 = vmatpush2.bf16.msra.mxu0 %v9354
          %11211 = vmatprep.subr.bf16.mxu0 %v9347
          %11212 = vmatpush2.bf16.msra.mxu0 %v9346
          %11213 = vmatprep.subr.bf16.mxu0 %v9339
          %11214 = vmatpush2.bf16.msra.mxu0 %v9338
          %11215 = vmatprep.subr.bf16.mxu0 %v9331
          %11216 = vmatpush2.bf16.msra.mxu0 %v9330
          %11217 = vmatprep.subr.bf16.mxu0 %v9323
          %11218 = vmatpush2.bf16.msra.mxu0 %v9322
          %11219 = vmatprep.subr.bf16.mxu0 %v9315
          %11220 = vmatpush2.bf16.msra.mxu0 %v9314
          %11221 = vmatprep.mubr.bf16.mxu0 %v4465
          %11222 = vmatmul.mubr.bf16.gmra.mxu0 %v4464
          %v11223 = vpop.f32.mrf.mxu0
          %v11224 = vadd.f32 %v11183, %v11223
          %v11225 = vpop.f32.mrf.mxu0
          %v11226 = vadd.f32 %v11185, %v11225
          %v11227 = vpop.f32.mrf.mxu0
          %v11228 = vpop.f32.mrf.mxu0
          %11229 = vdwg.mxu0
          %11230 = vmatprep.subr.bf16.mxu0 %v9435
          %11231 = vmatpush1.bf16.msra.mxu0 %v9434
          %11232 = vmatprep.subr.bf16.mxu0 %v9427
          %11233 = vmatpush1.bf16.msra.mxu0 %v9426
          %11234 = vmatprep.subr.bf16.mxu0 %v9419
          %11235 = vmatpush1.bf16.msra.mxu0 %v9418
          %11236 = vmatprep.subr.bf16.mxu0 %v9411
          %11237 = vmatpush1.bf16.msra.mxu0 %v9410
          %11238 = vmatprep.subr.bf16.mxu0 %v9403
          %11239 = vmatpush1.bf16.msra.mxu0 %v9402
          %11240 = vmatprep.subr.bf16.mxu0 %v9395
          %11241 = vmatpush1.bf16.msra.mxu0 %v9394
          %11242 = vmatprep.subr.bf16.mxu0 %v9387
          %11243 = vmatpush1.bf16.msra.mxu0 %v9386
          %11244 = vmatprep.subr.bf16.mxu0 %v9379
          %11245 = vmatpush1.bf16.msra.mxu0 %v9378
          %11246 = vmatprep.subr.bf16.mxu0 %v9499
          %11247 = vmatpush2.bf16.msra.mxu0 %v9498
          %11248 = vmatprep.subr.bf16.mxu0 %v9491
          %11249 = vmatpush2.bf16.msra.mxu0 %v9490
          %11250 = vmatprep.subr.bf16.mxu0 %v9483
          %11251 = vmatpush2.bf16.msra.mxu0 %v9482
          %11252 = vmatprep.subr.bf16.mxu0 %v9475
          %11253 = vmatpush2.bf16.msra.mxu0 %v9474
          %11254 = vmatprep.subr.bf16.mxu0 %v9467
          %11255 = vmatpush2.bf16.msra.mxu0 %v9466
          %11256 = vmatprep.subr.bf16.mxu0 %v9459
          %11257 = vmatpush2.bf16.msra.mxu0 %v9458
          %11258 = vmatprep.subr.bf16.mxu0 %v9451
          %11259 = vmatpush2.bf16.msra.mxu0 %v9450
          %11260 = vmatprep.subr.bf16.mxu0 %v9443
          %11261 = vmatpush2.bf16.msra.mxu0 %v9442
          %11262 = vmatprep.mubr.bf16.mxu0 %v4467
          %11263 = vmatmul.mubr.bf16.gmra.mxu0 %v4466
          %v11264 = vpop.f32.mrf.mxu0
          %v11265 = vadd.f32 %v11224, %v11264
          %v11266 = vpop.f32.mrf.mxu0
          %v11267 = vadd.f32 %v11226, %v11266
          %v11268 = vpop.f32.mrf.mxu0
          %v11269 = vpop.f32.mrf.mxu0
          %11270 = vdwg.mxu0
          %11271 = vmatprep.subr.bf16.mxu0 %v9563
          %11272 = vmatpush1.bf16.msra.mxu0 %v9562
          %11273 = vmatprep.subr.bf16.mxu0 %v9555
          %11274 = vmatpush1.bf16.msra.mxu0 %v9554
          %11275 = vmatprep.subr.bf16.mxu0 %v9547
          %11276 = vmatpush1.bf16.msra.mxu0 %v9546
          %11277 = vmatprep.subr.bf16.mxu0 %v9539
          %11278 = vmatpush1.bf16.msra.mxu0 %v9538
          %11279 = vmatprep.subr.bf16.mxu0 %v9531
          %11280 = vmatpush1.bf16.msra.mxu0 %v9530
          %11281 = vmatprep.subr.bf16.mxu0 %v9523
          %11282 = vmatpush1.bf16.msra.mxu0 %v9522
          %11283 = vmatprep.subr.bf16.mxu0 %v9515
          %11284 = vmatpush1.bf16.msra.mxu0 %v9514
          %11285 = vmatprep.subr.bf16.mxu0 %v9507
          %11286 = vmatpush1.bf16.msra.mxu0 %v9506
          %11287 = vmatprep.subr.bf16.mxu0 %v9627
          %11288 = vmatpush2.bf16.msra.mxu0 %v9626
          %11289 = vmatprep.subr.bf16.mxu0 %v9619
          %11290 = vmatpush2.bf16.msra.mxu0 %v9618
          %11291 = vmatprep.subr.bf16.mxu0 %v9611
          %11292 = vmatpush2.bf16.msra.mxu0 %v9610
          %11293 = vmatprep.subr.bf16.mxu0 %v9603
          %11294 = vmatpush2.bf16.msra.mxu0 %v9602
          %11295 = vmatprep.subr.bf16.mxu0 %v9595
          %11296 = vmatpush2.bf16.msra.mxu0 %v9594
          %11297 = vmatprep.subr.bf16.mxu0 %v9587
          %11298 = vmatpush2.bf16.msra.mxu0 %v9586
          %11299 = vmatprep.subr.bf16.mxu0 %v9579
          %11300 = vmatpush2.bf16.msra.mxu0 %v9578
          %11301 = vmatprep.subr.bf16.mxu0 %v9571
          %11302 = vmatpush2.bf16.msra.mxu0 %v9570
          %11303 = vmatprep.mubr.bf16.mxu0 %v4469
          %11304 = vmatmul.mubr.bf16.gmra.mxu0 %v4468
          %v11305 = vpop.f32.mrf.mxu0
          %v11306 = vadd.f32 %v11265, %v11305
          %v11307 = vpop.f32.mrf.mxu0
          %v11308 = vadd.f32 %v11267, %v11307
          %v11309 = vpop.f32.mrf.mxu0
          %v11310 = vpop.f32.mrf.mxu0
          %11311 = vdwg.mxu0
          %11312 = vmatprep.subr.bf16.mxu0 %v8669
          %11313 = vmatpush1.bf16.msra.mxu0 %v8668
          %11314 = vmatprep.subr.bf16.mxu0 %v8661
          %11315 = vmatpush1.bf16.msra.mxu0 %v8660
          %11316 = vmatprep.subr.bf16.mxu0 %v8653
          %11317 = vmatpush1.bf16.msra.mxu0 %v8652
          %11318 = vmatprep.subr.bf16.mxu0 %v8645
          %11319 = vmatpush1.bf16.msra.mxu0 %v8644
          %11320 = vmatprep.subr.bf16.mxu0 %v8637
          %11321 = vmatpush1.bf16.msra.mxu0 %v8636
          %11322 = vmatprep.subr.bf16.mxu0 %v8629
          %11323 = vmatpush1.bf16.msra.mxu0 %v8628
          %11324 = vmatprep.subr.bf16.mxu0 %v8621
          %11325 = vmatpush1.bf16.msra.mxu0 %v8620
          %11326 = vmatprep.subr.bf16.mxu0 %v8613
          %11327 = vmatpush1.bf16.msra.mxu0 %v8612
          %11328 = vmatprep.subr.bf16.mxu0 %v8733
          %11329 = vmatpush2.bf16.msra.mxu0 %v8732
          %11330 = vmatprep.subr.bf16.mxu0 %v8725
          %11331 = vmatpush2.bf16.msra.mxu0 %v8724
          %11332 = vmatprep.subr.bf16.mxu0 %v8717
          %11333 = vmatpush2.bf16.msra.mxu0 %v8716
          %11334 = vmatprep.subr.bf16.mxu0 %v8709
          %11335 = vmatpush2.bf16.msra.mxu0 %v8708
          %11336 = vmatprep.subr.bf16.mxu0 %v8701
          %11337 = vmatpush2.bf16.msra.mxu0 %v8700
          %11338 = vmatprep.subr.bf16.mxu0 %v8693
          %11339 = vmatpush2.bf16.msra.mxu0 %v8692
          %11340 = vmatprep.subr.bf16.mxu0 %v8685
          %11341 = vmatpush2.bf16.msra.mxu0 %v8684
          %11342 = vmatprep.subr.bf16.mxu0 %v8677
          %11343 = vmatpush2.bf16.msra.mxu0 %v8676
          %11344 = vmatprep.mubr.bf16.mxu0 %v4455
          %11345 = vmatmul.mubr.bf16.gmra.mxu0 %v4454
          %v11346 = vpop.f32.mrf.mxu0
          %v11347 = vadd.f32 %v5515, %v11346
          %v11348 = vpop.f32.mrf.mxu0
          %v11349 = vadd.f32 %v5519, %v11348
          %v11350 = vpop.f32.mrf.mxu0
          %v11351 = vpop.f32.mrf.mxu0
          %11352 = vdwg.mxu0
          %11353 = vmatprep.subr.bf16.mxu0 %v8797
          %11354 = vmatpush1.bf16.msra.mxu0 %v8796
          %11355 = vmatprep.subr.bf16.mxu0 %v8789
          %11356 = vmatpush1.bf16.msra.mxu0 %v8788
          %11357 = vmatprep.subr.bf16.mxu0 %v8781
          %11358 = vmatpush1.bf16.msra.mxu0 %v8780
          %11359 = vmatprep.subr.bf16.mxu0 %v8773
          %11360 = vmatpush1.bf16.msra.mxu0 %v8772
          %11361 = vmatprep.subr.bf16.mxu0 %v8765
          %11362 = vmatpush1.bf16.msra.mxu0 %v8764
          %11363 = vmatprep.subr.bf16.mxu0 %v8757
          %11364 = vmatpush1.bf16.msra.mxu0 %v8756
          %11365 = vmatprep.subr.bf16.mxu0 %v8749
          %11366 = vmatpush1.bf16.msra.mxu0 %v8748
          %11367 = vmatprep.subr.bf16.mxu0 %v8741
          %11368 = vmatpush1.bf16.msra.mxu0 %v8740
          %11369 = vmatprep.subr.bf16.mxu0 %v8861
          %11370 = vmatpush2.bf16.msra.mxu0 %v8860
          %11371 = vmatprep.subr.bf16.mxu0 %v8853
          %11372 = vmatpush2.bf16.msra.mxu0 %v8852
          %11373 = vmatprep.subr.bf16.mxu0 %v8845
          %11374 = vmatpush2.bf16.msra.mxu0 %v8844
          %11375 = vmatprep.subr.bf16.mxu0 %v8837
          %11376 = vmatpush2.bf16.msra.mxu0 %v8836
          %11377 = vmatprep.subr.bf16.mxu0 %v8829
          %11378 = vmatpush2.bf16.msra.mxu0 %v8828
          %11379 = vmatprep.subr.bf16.mxu0 %v8821
          %11380 = vmatpush2.bf16.msra.mxu0 %v8820
          %11381 = vmatprep.subr.bf16.mxu0 %v8813
          %11382 = vmatpush2.bf16.msra.mxu0 %v8812
          %11383 = vmatprep.subr.bf16.mxu0 %v8805
          %11384 = vmatpush2.bf16.msra.mxu0 %v8804
          %11385 = vmatprep.mubr.bf16.mxu0 %v4457
          %11386 = vmatmul.mubr.bf16.gmra.mxu0 %v4456
          %v11387 = vpop.f32.mrf.mxu0
          %v11388 = vadd.f32 %v11347, %v11387
          %v11389 = vpop.f32.mrf.mxu0
          %v11390 = vadd.f32 %v11349, %v11389
          %v11391 = vpop.f32.mrf.mxu0
          %v11392 = vpop.f32.mrf.mxu0
          %11393 = vdwg.mxu0
          %11394 = vmatprep.subr.bf16.mxu0 %v8925
          %11395 = vmatpush1.bf16.msra.mxu0 %v8924
          %11396 = vmatprep.subr.bf16.mxu0 %v8917
          %11397 = vmatpush1.bf16.msra.mxu0 %v8916
          %11398 = vmatprep.subr.bf16.mxu0 %v8909
          %11399 = vmatpush1.bf16.msra.mxu0 %v8908
          %11400 = vmatprep.subr.bf16.mxu0 %v8901
          %11401 = vmatpush1.bf16.msra.mxu0 %v8900
          %11402 = vmatprep.subr.bf16.mxu0 %v8893
          %11403 = vmatpush1.bf16.msra.mxu0 %v8892
          %11404 = vmatprep.subr.bf16.mxu0 %v8885
          %11405 = vmatpush1.bf16.msra.mxu0 %v8884
          %11406 = vmatprep.subr.bf16.mxu0 %v8877
          %11407 = vmatpush1.bf16.msra.mxu0 %v8876
          %11408 = vmatprep.subr.bf16.mxu0 %v8869
          %11409 = vmatpush1.bf16.msra.mxu0 %v8868
          %11410 = vmatprep.subr.bf16.mxu0 %v8989
          %11411 = vmatpush2.bf16.msra.mxu0 %v8988
          %11412 = vmatprep.subr.bf16.mxu0 %v8981
          %11413 = vmatpush2.bf16.msra.mxu0 %v8980
          %11414 = vmatprep.subr.bf16.mxu0 %v8973
          %11415 = vmatpush2.bf16.msra.mxu0 %v8972
          %11416 = vmatprep.subr.bf16.mxu0 %v8965
          %11417 = vmatpush2.bf16.msra.mxu0 %v8964
          %11418 = vmatprep.subr.bf16.mxu0 %v8957
          %11419 = vmatpush2.bf16.msra.mxu0 %v8956
          %11420 = vmatprep.subr.bf16.mxu0 %v8949
          %11421 = vmatpush2.bf16.msra.mxu0 %v8948
          %11422 = vmatprep.subr.bf16.mxu0 %v8941
          %11423 = vmatpush2.bf16.msra.mxu0 %v8940
          %11424 = vmatprep.subr.bf16.mxu0 %v8933
          %11425 = vmatpush2.bf16.msra.mxu0 %v8932
          %11426 = vmatprep.mubr.bf16.mxu0 %v4459
          %11427 = vmatmul.mubr.bf16.gmra.mxu0 %v4458
          %v11428 = vpop.f32.mrf.mxu0
          %v11429 = vadd.f32 %v11388, %v11428
          %v11430 = vpop.f32.mrf.mxu0
          %v11431 = vadd.f32 %v11390, %v11430
          %v11432 = vpop.f32.mrf.mxu0
          %v11433 = vpop.f32.mrf.mxu0
          %11434 = vdwg.mxu0
          %11435 = vmatprep.subr.bf16.mxu0 %v9053
          %11436 = vmatpush1.bf16.msra.mxu0 %v9052
          %11437 = vmatprep.subr.bf16.mxu0 %v9045
          %11438 = vmatpush1.bf16.msra.mxu0 %v9044
          %11439 = vmatprep.subr.bf16.mxu0 %v9037
          %11440 = vmatpush1.bf16.msra.mxu0 %v9036
          %11441 = vmatprep.subr.bf16.mxu0 %v9029
          %11442 = vmatpush1.bf16.msra.mxu0 %v9028
          %11443 = vmatprep.subr.bf16.mxu0 %v9021
          %11444 = vmatpush1.bf16.msra.mxu0 %v9020
          %11445 = vmatprep.subr.bf16.mxu0 %v9013
          %11446 = vmatpush1.bf16.msra.mxu0 %v9012
          %11447 = vmatprep.subr.bf16.mxu0 %v9005
          %11448 = vmatpush1.bf16.msra.mxu0 %v9004
          %11449 = vmatprep.subr.bf16.mxu0 %v8997
          %11450 = vmatpush1.bf16.msra.mxu0 %v8996
          %11451 = vmatprep.subr.bf16.mxu0 %v9117
          %11452 = vmatpush2.bf16.msra.mxu0 %v9116
          %11453 = vmatprep.subr.bf16.mxu0 %v9109
          %11454 = vmatpush2.bf16.msra.mxu0 %v9108
          %11455 = vmatprep.subr.bf16.mxu0 %v9101
          %11456 = vmatpush2.bf16.msra.mxu0 %v9100
          %11457 = vmatprep.subr.bf16.mxu0 %v9093
          %11458 = vmatpush2.bf16.msra.mxu0 %v9092
          %11459 = vmatprep.subr.bf16.mxu0 %v9085
          %11460 = vmatpush2.bf16.msra.mxu0 %v9084
          %11461 = vmatprep.subr.bf16.mxu0 %v9077
          %11462 = vmatpush2.bf16.msra.mxu0 %v9076
          %11463 = vmatprep.subr.bf16.mxu0 %v9069
          %11464 = vmatpush2.bf16.msra.mxu0 %v9068
          %11465 = vmatprep.subr.bf16.mxu0 %v9061
          %11466 = vmatpush2.bf16.msra.mxu0 %v9060
          %11467 = vmatprep.mubr.bf16.mxu0 %v4461
          %11468 = vmatmul.mubr.bf16.gmra.mxu0 %v4460
          %v11469 = vpop.f32.mrf.mxu0
          %v11470 = vadd.f32 %v11429, %v11469
          %v11471 = vpop.f32.mrf.mxu0
          %v11472 = vadd.f32 %v11431, %v11471
          %v11473 = vpop.f32.mrf.mxu0
          %v11474 = vpop.f32.mrf.mxu0
          %11475 = vdwg.mxu0
          %11476 = vmatprep.subr.bf16.mxu0 %v9181
          %11477 = vmatpush1.bf16.msra.mxu0 %v9180
          %11478 = vmatprep.subr.bf16.mxu0 %v9173
          %11479 = vmatpush1.bf16.msra.mxu0 %v9172
          %11480 = vmatprep.subr.bf16.mxu0 %v9165
          %11481 = vmatpush1.bf16.msra.mxu0 %v9164
          %11482 = vmatprep.subr.bf16.mxu0 %v9157
          %11483 = vmatpush1.bf16.msra.mxu0 %v9156
          %11484 = vmatprep.subr.bf16.mxu0 %v9149
          %11485 = vmatpush1.bf16.msra.mxu0 %v9148
          %11486 = vmatprep.subr.bf16.mxu0 %v9141
          %11487 = vmatpush1.bf16.msra.mxu0 %v9140
          %11488 = vmatprep.subr.bf16.mxu0 %v9133
          %11489 = vmatpush1.bf16.msra.mxu0 %v9132
          %11490 = vmatprep.subr.bf16.mxu0 %v9125
          %11491 = vmatpush1.bf16.msra.mxu0 %v9124
          %11492 = vmatprep.subr.bf16.mxu0 %v9245
          %11493 = vmatpush2.bf16.msra.mxu0 %v9244
          %11494 = vmatprep.subr.bf16.mxu0 %v9237
          %11495 = vmatpush2.bf16.msra.mxu0 %v9236
          %11496 = vmatprep.subr.bf16.mxu0 %v9229
          %11497 = vmatpush2.bf16.msra.mxu0 %v9228
          %11498 = vmatprep.subr.bf16.mxu0 %v9221
          %11499 = vmatpush2.bf16.msra.mxu0 %v9220
          %11500 = vmatprep.subr.bf16.mxu0 %v9213
          %11501 = vmatpush2.bf16.msra.mxu0 %v9212
          %11502 = vmatprep.subr.bf16.mxu0 %v9205
          %11503 = vmatpush2.bf16.msra.mxu0 %v9204
          %11504 = vmatprep.subr.bf16.mxu0 %v9197
          %11505 = vmatpush2.bf16.msra.mxu0 %v9196
          %11506 = vmatprep.subr.bf16.mxu0 %v9189
          %11507 = vmatpush2.bf16.msra.mxu0 %v9188
          %11508 = vmatprep.mubr.bf16.mxu0 %v4463
          %11509 = vmatmul.mubr.bf16.gmra.mxu0 %v4462
          %v11510 = vpop.f32.mrf.mxu0
          %v11511 = vadd.f32 %v11470, %v11510
          %v11512 = vpop.f32.mrf.mxu0
          %v11513 = vadd.f32 %v11472, %v11512
          %v11514 = vpop.f32.mrf.mxu0
          %v11515 = vpop.f32.mrf.mxu0
          %11516 = vdwg.mxu0
          %11517 = vmatprep.subr.bf16.mxu0 %v9309
          %11518 = vmatpush1.bf16.msra.mxu0 %v9308
          %11519 = vmatprep.subr.bf16.mxu0 %v9301
          %11520 = vmatpush1.bf16.msra.mxu0 %v9300
          %11521 = vmatprep.subr.bf16.mxu0 %v9293
          %11522 = vmatpush1.bf16.msra.mxu0 %v9292
          %11523 = vmatprep.subr.bf16.mxu0 %v9285
          %11524 = vmatpush1.bf16.msra.mxu0 %v9284
          %11525 = vmatprep.subr.bf16.mxu0 %v9277
          %11526 = vmatpush1.bf16.msra.mxu0 %v9276
          %11527 = vmatprep.subr.bf16.mxu0 %v9269
          %11528 = vmatpush1.bf16.msra.mxu0 %v9268
          %11529 = vmatprep.subr.bf16.mxu0 %v9261
          %11530 = vmatpush1.bf16.msra.mxu0 %v9260
          %11531 = vmatprep.subr.bf16.mxu0 %v9253
          %11532 = vmatpush1.bf16.msra.mxu0 %v9252
          %11533 = vmatprep.subr.bf16.mxu0 %v9373
          %11534 = vmatpush2.bf16.msra.mxu0 %v9372
          %11535 = vmatprep.subr.bf16.mxu0 %v9365
          %11536 = vmatpush2.bf16.msra.mxu0 %v9364
          %11537 = vmatprep.subr.bf16.mxu0 %v9357
          %11538 = vmatpush2.bf16.msra.mxu0 %v9356
          %11539 = vmatprep.subr.bf16.mxu0 %v9349
          %11540 = vmatpush2.bf16.msra.mxu0 %v9348
          %11541 = vmatprep.subr.bf16.mxu0 %v9341
          %11542 = vmatpush2.bf16.msra.mxu0 %v9340
          %11543 = vmatprep.subr.bf16.mxu0 %v9333
          %11544 = vmatpush2.bf16.msra.mxu0 %v9332
          %11545 = vmatprep.subr.bf16.mxu0 %v9325
          %11546 = vmatpush2.bf16.msra.mxu0 %v9324
          %11547 = vmatprep.subr.bf16.mxu0 %v9317
          %11548 = vmatpush2.bf16.msra.mxu0 %v9316
          %11549 = vmatprep.mubr.bf16.mxu0 %v4465
          %11550 = vmatmul.mubr.bf16.gmra.mxu0 %v4464
          %v11551 = vpop.f32.mrf.mxu0
          %v11552 = vadd.f32 %v11511, %v11551
          %v11553 = vpop.f32.mrf.mxu0
          %v11554 = vadd.f32 %v11513, %v11553
          %v11555 = vpop.f32.mrf.mxu0
          %v11556 = vpop.f32.mrf.mxu0
          %11557 = vdwg.mxu0
          %11558 = vmatprep.subr.bf16.mxu0 %v9437
          %11559 = vmatpush1.bf16.msra.mxu0 %v9436
          %11560 = vmatprep.subr.bf16.mxu0 %v9429
          %11561 = vmatpush1.bf16.msra.mxu0 %v9428
          %11562 = vmatprep.subr.bf16.mxu0 %v9421
          %11563 = vmatpush1.bf16.msra.mxu0 %v9420
          %11564 = vmatprep.subr.bf16.mxu0 %v9413
          %11565 = vmatpush1.bf16.msra.mxu0 %v9412
          %11566 = vmatprep.subr.bf16.mxu0 %v9405
          %11567 = vmatpush1.bf16.msra.mxu0 %v9404
          %11568 = vmatprep.subr.bf16.mxu0 %v9397
          %11569 = vmatpush1.bf16.msra.mxu0 %v9396
          %11570 = vmatprep.subr.bf16.mxu0 %v9389
          %11571 = vmatpush1.bf16.msra.mxu0 %v9388
          %11572 = vmatprep.subr.bf16.mxu0 %v9381
          %11573 = vmatpush1.bf16.msra.mxu0 %v9380
          %11574 = vmatprep.subr.bf16.mxu0 %v9501
          %11575 = vmatpush2.bf16.msra.mxu0 %v9500
          %11576 = vmatprep.subr.bf16.mxu0 %v9493
          %11577 = vmatpush2.bf16.msra.mxu0 %v9492
          %11578 = vmatprep.subr.bf16.mxu0 %v9485
          %11579 = vmatpush2.bf16.msra.mxu0 %v9484
          %11580 = vmatprep.subr.bf16.mxu0 %v9477
          %11581 = vmatpush2.bf16.msra.mxu0 %v9476
          %11582 = vmatprep.subr.bf16.mxu0 %v9469
          %11583 = vmatpush2.bf16.msra.mxu0 %v9468
          %11584 = vmatprep.subr.bf16.mxu0 %v9461
          %11585 = vmatpush2.bf16.msra.mxu0 %v9460
          %11586 = vmatprep.subr.bf16.mxu0 %v9453
          %11587 = vmatpush2.bf16.msra.mxu0 %v9452
          %11588 = vmatprep.subr.bf16.mxu0 %v9445
          %11589 = vmatpush2.bf16.msra.mxu0 %v9444
          %11590 = vmatprep.mubr.bf16.mxu0 %v4467
          %11591 = vmatmul.mubr.bf16.gmra.mxu0 %v4466
          %v11592 = vpop.f32.mrf.mxu0
          %v11593 = vadd.f32 %v11552, %v11592
          %v11594 = vpop.f32.mrf.mxu0
          %v11595 = vadd.f32 %v11554, %v11594
          %v11596 = vpop.f32.mrf.mxu0
          %v11597 = vpop.f32.mrf.mxu0
          %11598 = vdwg.mxu0
          %11599 = vmatprep.subr.bf16.mxu0 %v9565
          %11600 = vmatpush1.bf16.msra.mxu0 %v9564
          %11601 = vmatprep.subr.bf16.mxu0 %v9557
          %11602 = vmatpush1.bf16.msra.mxu0 %v9556
          %11603 = vmatprep.subr.bf16.mxu0 %v9549
          %11604 = vmatpush1.bf16.msra.mxu0 %v9548
          %11605 = vmatprep.subr.bf16.mxu0 %v9541
          %11606 = vmatpush1.bf16.msra.mxu0 %v9540
          %11607 = vmatprep.subr.bf16.mxu0 %v9533
          %11608 = vmatpush1.bf16.msra.mxu0 %v9532
          %11609 = vmatprep.subr.bf16.mxu0 %v9525
          %11610 = vmatpush1.bf16.msra.mxu0 %v9524
          %11611 = vmatprep.subr.bf16.mxu0 %v9517
          %11612 = vmatpush1.bf16.msra.mxu0 %v9516
          %11613 = vmatprep.subr.bf16.mxu0 %v9509
          %11614 = vmatpush1.bf16.msra.mxu0 %v9508
          %11615 = vmatprep.subr.bf16.mxu0 %v9629
          %11616 = vmatpush2.bf16.msra.mxu0 %v9628
          %11617 = vmatprep.subr.bf16.mxu0 %v9621
          %11618 = vmatpush2.bf16.msra.mxu0 %v9620
          %11619 = vmatprep.subr.bf16.mxu0 %v9613
          %11620 = vmatpush2.bf16.msra.mxu0 %v9612
          %11621 = vmatprep.subr.bf16.mxu0 %v9605
          %11622 = vmatpush2.bf16.msra.mxu0 %v9604
          %11623 = vmatprep.subr.bf16.mxu0 %v9597
          %11624 = vmatpush2.bf16.msra.mxu0 %v9596
          %11625 = vmatprep.subr.bf16.mxu0 %v9589
          %11626 = vmatpush2.bf16.msra.mxu0 %v9588
          %11627 = vmatprep.subr.bf16.mxu0 %v9581
          %11628 = vmatpush2.bf16.msra.mxu0 %v9580
          %11629 = vmatprep.subr.bf16.mxu0 %v9573
          %11630 = vmatpush2.bf16.msra.mxu0 %v9572
          %11631 = vmatprep.mubr.bf16.mxu0 %v4469
          %11632 = vmatmul.mubr.bf16.gmra.mxu0 %v4468
          %v11633 = vpop.f32.mrf.mxu0
          %v11634 = vadd.f32 %v11593, %v11633
          %v11635 = vpop.f32.mrf.mxu0
          %v11636 = vadd.f32 %v11595, %v11635
          %v11637 = vpop.f32.mrf.mxu0
          %v11638 = vpop.f32.mrf.mxu0
          %11639 = vdwg.mxu0
          %11640 = vmatprep.subr.bf16.mxu0 %v8671
          %11641 = vmatpush1.bf16.msra.mxu0 %v8670
          %11642 = vmatprep.subr.bf16.mxu0 %v8663
          %11643 = vmatpush1.bf16.msra.mxu0 %v8662
          %11644 = vmatprep.subr.bf16.mxu0 %v8655
          %11645 = vmatpush1.bf16.msra.mxu0 %v8654
          %11646 = vmatprep.subr.bf16.mxu0 %v8647
          %11647 = vmatpush1.bf16.msra.mxu0 %v8646
          %11648 = vmatprep.subr.bf16.mxu0 %v8639
          %11649 = vmatpush1.bf16.msra.mxu0 %v8638
          %11650 = vmatprep.subr.bf16.mxu0 %v8631
          %11651 = vmatpush1.bf16.msra.mxu0 %v8630
          %11652 = vmatprep.subr.bf16.mxu0 %v8623
          %11653 = vmatpush1.bf16.msra.mxu0 %v8622
          %11654 = vmatprep.subr.bf16.mxu0 %v8615
          %11655 = vmatpush1.bf16.msra.mxu0 %v8614
          %11656 = vmatprep.subr.bf16.mxu0 %v8735
          %11657 = vmatpush2.bf16.msra.mxu0 %v8734
          %11658 = vmatprep.subr.bf16.mxu0 %v8727
          %11659 = vmatpush2.bf16.msra.mxu0 %v8726
          %11660 = vmatprep.subr.bf16.mxu0 %v8719
          %11661 = vmatpush2.bf16.msra.mxu0 %v8718
          %11662 = vmatprep.subr.bf16.mxu0 %v8711
          %11663 = vmatpush2.bf16.msra.mxu0 %v8710
          %11664 = vmatprep.subr.bf16.mxu0 %v8703
          %11665 = vmatpush2.bf16.msra.mxu0 %v8702
          %11666 = vmatprep.subr.bf16.mxu0 %v8695
          %11667 = vmatpush2.bf16.msra.mxu0 %v8694
          %11668 = vmatprep.subr.bf16.mxu0 %v8687
          %11669 = vmatpush2.bf16.msra.mxu0 %v8686
          %11670 = vmatprep.subr.bf16.mxu0 %v8679
          %11671 = vmatpush2.bf16.msra.mxu0 %v8678
          %11672 = vmatprep.mubr.bf16.mxu0 %v4455
          %11673 = vmatmul.mubr.bf16.gmra.mxu0 %v4454
          %v11674 = vpop.f32.mrf.mxu0
          %v11675 = vadd.f32 %v5523, %v11674
          %v11676 = vpop.f32.mrf.mxu0
          %v11677 = vadd.f32 %v5527, %v11676
          %v11678 = vpop.f32.mrf.mxu0
          %v11679 = vpop.f32.mrf.mxu0
          %11680 = vdwg.mxu0
          %11681 = vmatprep.subr.bf16.mxu0 %v8799
          %11682 = vmatpush1.bf16.msra.mxu0 %v8798
          %11683 = vmatprep.subr.bf16.mxu0 %v8791
          %11684 = vmatpush1.bf16.msra.mxu0 %v8790
          %11685 = vmatprep.subr.bf16.mxu0 %v8783
          %11686 = vmatpush1.bf16.msra.mxu0 %v8782
          %11687 = vmatprep.subr.bf16.mxu0 %v8775
          %11688 = vmatpush1.bf16.msra.mxu0 %v8774
          %11689 = vmatprep.subr.bf16.mxu0 %v8767
          %11690 = vmatpush1.bf16.msra.mxu0 %v8766
          %11691 = vmatprep.subr.bf16.mxu0 %v8759
          %11692 = vmatpush1.bf16.msra.mxu0 %v8758
          %11693 = vmatprep.subr.bf16.mxu0 %v8751
          %11694 = vmatpush1.bf16.msra.mxu0 %v8750
          %11695 = vmatprep.subr.bf16.mxu0 %v8743
          %11696 = vmatpush1.bf16.msra.mxu0 %v8742
          %11697 = vmatprep.subr.bf16.mxu0 %v8863
          %11698 = vmatpush2.bf16.msra.mxu0 %v8862
          %11699 = vmatprep.subr.bf16.mxu0 %v8855
          %11700 = vmatpush2.bf16.msra.mxu0 %v8854
          %11701 = vmatprep.subr.bf16.mxu0 %v8847
          %11702 = vmatpush2.bf16.msra.mxu0 %v8846
          %11703 = vmatprep.subr.bf16.mxu0 %v8839
          %11704 = vmatpush2.bf16.msra.mxu0 %v8838
          %11705 = vmatprep.subr.bf16.mxu0 %v8831
          %11706 = vmatpush2.bf16.msra.mxu0 %v8830
          %11707 = vmatprep.subr.bf16.mxu0 %v8823
          %11708 = vmatpush2.bf16.msra.mxu0 %v8822
          %11709 = vmatprep.subr.bf16.mxu0 %v8815
          %11710 = vmatpush2.bf16.msra.mxu0 %v8814
          %11711 = vmatprep.subr.bf16.mxu0 %v8807
          %11712 = vmatpush2.bf16.msra.mxu0 %v8806
          %11713 = vmatprep.mubr.bf16.mxu0 %v4457
          %11714 = vmatmul.mubr.bf16.gmra.mxu0 %v4456
          %v11715 = vpop.f32.mrf.mxu0
          %v11716 = vadd.f32 %v11675, %v11715
          %v11717 = vpop.f32.mrf.mxu0
          %v11718 = vadd.f32 %v11677, %v11717
          %v11719 = vpop.f32.mrf.mxu0
          %v11720 = vpop.f32.mrf.mxu0
          %11721 = vdwg.mxu0
          %11722 = vmatprep.subr.bf16.mxu0 %v8927
          %11723 = vmatpush1.bf16.msra.mxu0 %v8926
          %11724 = vmatprep.subr.bf16.mxu0 %v8919
          %11725 = vmatpush1.bf16.msra.mxu0 %v8918
          %11726 = vmatprep.subr.bf16.mxu0 %v8911
          %11727 = vmatpush1.bf16.msra.mxu0 %v8910
          %11728 = vmatprep.subr.bf16.mxu0 %v8903
          %11729 = vmatpush1.bf16.msra.mxu0 %v8902
          %11730 = vmatprep.subr.bf16.mxu0 %v8895
          %11731 = vmatpush1.bf16.msra.mxu0 %v8894
          %11732 = vmatprep.subr.bf16.mxu0 %v8887
          %11733 = vmatpush1.bf16.msra.mxu0 %v8886
          %11734 = vmatprep.subr.bf16.mxu0 %v8879
          %11735 = vmatpush1.bf16.msra.mxu0 %v8878
          %11736 = vmatprep.subr.bf16.mxu0 %v8871
          %11737 = vmatpush1.bf16.msra.mxu0 %v8870
          %11738 = vmatprep.subr.bf16.mxu0 %v8991
          %11739 = vmatpush2.bf16.msra.mxu0 %v8990
          %11740 = vmatprep.subr.bf16.mxu0 %v8983
          %11741 = vmatpush2.bf16.msra.mxu0 %v8982
          %11742 = vmatprep.subr.bf16.mxu0 %v8975
          %11743 = vmatpush2.bf16.msra.mxu0 %v8974
          %11744 = vmatprep.subr.bf16.mxu0 %v8967
          %11745 = vmatpush2.bf16.msra.mxu0 %v8966
          %11746 = vmatprep.subr.bf16.mxu0 %v8959
          %11747 = vmatpush2.bf16.msra.mxu0 %v8958
          %11748 = vmatprep.subr.bf16.mxu0 %v8951
          %11749 = vmatpush2.bf16.msra.mxu0 %v8950
          %11750 = vmatprep.subr.bf16.mxu0 %v8943
          %11751 = vmatpush2.bf16.msra.mxu0 %v8942
          %11752 = vmatprep.subr.bf16.mxu0 %v8935
          %11753 = vmatpush2.bf16.msra.mxu0 %v8934
          %11754 = vmatprep.mubr.bf16.mxu0 %v4459
          %11755 = vmatmul.mubr.bf16.gmra.mxu0 %v4458
          %v11756 = vpop.f32.mrf.mxu0
          %v11757 = vadd.f32 %v11716, %v11756
          %v11758 = vpop.f32.mrf.mxu0
          %v11759 = vadd.f32 %v11718, %v11758
          %v11760 = vpop.f32.mrf.mxu0
          %v11761 = vpop.f32.mrf.mxu0
          %11762 = vdwg.mxu0
          %11763 = vmatprep.subr.bf16.mxu0 %v9055
          %11764 = vmatpush1.bf16.msra.mxu0 %v9054
          %11765 = vmatprep.subr.bf16.mxu0 %v9047
          %11766 = vmatpush1.bf16.msra.mxu0 %v9046
          %11767 = vmatprep.subr.bf16.mxu0 %v9039
          %11768 = vmatpush1.bf16.msra.mxu0 %v9038
          %11769 = vmatprep.subr.bf16.mxu0 %v9031
          %11770 = vmatpush1.bf16.msra.mxu0 %v9030
          %11771 = vmatprep.subr.bf16.mxu0 %v9023
          %11772 = vmatpush1.bf16.msra.mxu0 %v9022
          %11773 = vmatprep.subr.bf16.mxu0 %v9015
          %11774 = vmatpush1.bf16.msra.mxu0 %v9014
          %11775 = vmatprep.subr.bf16.mxu0 %v9007
          %11776 = vmatpush1.bf16.msra.mxu0 %v9006
          %11777 = vmatprep.subr.bf16.mxu0 %v8999
          %11778 = vmatpush1.bf16.msra.mxu0 %v8998
          %11779 = vmatprep.subr.bf16.mxu0 %v9119
          %11780 = vmatpush2.bf16.msra.mxu0 %v9118
          %11781 = vmatprep.subr.bf16.mxu0 %v9111
          %11782 = vmatpush2.bf16.msra.mxu0 %v9110
          %11783 = vmatprep.subr.bf16.mxu0 %v9103
          %11784 = vmatpush2.bf16.msra.mxu0 %v9102
          %11785 = vmatprep.subr.bf16.mxu0 %v9095
          %11786 = vmatpush2.bf16.msra.mxu0 %v9094
          %11787 = vmatprep.subr.bf16.mxu0 %v9087
          %11788 = vmatpush2.bf16.msra.mxu0 %v9086
          %11789 = vmatprep.subr.bf16.mxu0 %v9079
          %11790 = vmatpush2.bf16.msra.mxu0 %v9078
          %11791 = vmatprep.subr.bf16.mxu0 %v9071
          %11792 = vmatpush2.bf16.msra.mxu0 %v9070
          %11793 = vmatprep.subr.bf16.mxu0 %v9063
          %11794 = vmatpush2.bf16.msra.mxu0 %v9062
          %11795 = vmatprep.mubr.bf16.mxu0 %v4461
          %11796 = vmatmul.mubr.bf16.gmra.mxu0 %v4460
          %v11797 = vpop.f32.mrf.mxu0
          %v11798 = vadd.f32 %v11757, %v11797
          %v11799 = vpop.f32.mrf.mxu0
          %v11800 = vadd.f32 %v11759, %v11799
          %v11801 = vpop.f32.mrf.mxu0
          %v11802 = vpop.f32.mrf.mxu0
          %11803 = vdwg.mxu0
          %11804 = vmatprep.subr.bf16.mxu0 %v9183
          %11805 = vmatpush1.bf16.msra.mxu0 %v9182
          %11806 = vmatprep.subr.bf16.mxu0 %v9175
          %11807 = vmatpush1.bf16.msra.mxu0 %v9174
          %11808 = vmatprep.subr.bf16.mxu0 %v9167
          %11809 = vmatpush1.bf16.msra.mxu0 %v9166
          %11810 = vmatprep.subr.bf16.mxu0 %v9159
          %11811 = vmatpush1.bf16.msra.mxu0 %v9158
          %11812 = vmatprep.subr.bf16.mxu0 %v9151
          %11813 = vmatpush1.bf16.msra.mxu0 %v9150
          %11814 = vmatprep.subr.bf16.mxu0 %v9143
          %11815 = vmatpush1.bf16.msra.mxu0 %v9142
          %11816 = vmatprep.subr.bf16.mxu0 %v9135
          %11817 = vmatpush1.bf16.msra.mxu0 %v9134
          %11818 = vmatprep.subr.bf16.mxu0 %v9127
          %11819 = vmatpush1.bf16.msra.mxu0 %v9126
          %11820 = vmatprep.subr.bf16.mxu0 %v9247
          %11821 = vmatpush2.bf16.msra.mxu0 %v9246
          %11822 = vmatprep.subr.bf16.mxu0 %v9239
          %11823 = vmatpush2.bf16.msra.mxu0 %v9238
          %11824 = vmatprep.subr.bf16.mxu0 %v9231
          %11825 = vmatpush2.bf16.msra.mxu0 %v9230
          %11826 = vmatprep.subr.bf16.mxu0 %v9223
          %11827 = vmatpush2.bf16.msra.mxu0 %v9222
          %11828 = vmatprep.subr.bf16.mxu0 %v9215
          %11829 = vmatpush2.bf16.msra.mxu0 %v9214
          %11830 = vmatprep.subr.bf16.mxu0 %v9207
          %11831 = vmatpush2.bf16.msra.mxu0 %v9206
          %11832 = vmatprep.subr.bf16.mxu0 %v9199
          %11833 = vmatpush2.bf16.msra.mxu0 %v9198
          %11834 = vmatprep.subr.bf16.mxu0 %v9191
          %11835 = vmatpush2.bf16.msra.mxu0 %v9190
          %11836 = vmatprep.mubr.bf16.mxu0 %v4463
          %11837 = vmatmul.mubr.bf16.gmra.mxu0 %v4462
          %v11838 = vpop.f32.mrf.mxu0
          %v11839 = vadd.f32 %v11798, %v11838
          %v11840 = vpop.f32.mrf.mxu0
          %v11841 = vadd.f32 %v11800, %v11840
          %v11842 = vpop.f32.mrf.mxu0
          %v11843 = vpop.f32.mrf.mxu0
          %11844 = vdwg.mxu0
          %11845 = vmatprep.subr.bf16.mxu0 %v9311
          %11846 = vmatpush1.bf16.msra.mxu0 %v9310
          %11847 = vmatprep.subr.bf16.mxu0 %v9303
          %11848 = vmatpush1.bf16.msra.mxu0 %v9302
          %11849 = vmatprep.subr.bf16.mxu0 %v9295
          %11850 = vmatpush1.bf16.msra.mxu0 %v9294
          %11851 = vmatprep.subr.bf16.mxu0 %v9287
          %11852 = vmatpush1.bf16.msra.mxu0 %v9286
          %11853 = vmatprep.subr.bf16.mxu0 %v9279
          %11854 = vmatpush1.bf16.msra.mxu0 %v9278
          %11855 = vmatprep.subr.bf16.mxu0 %v9271
          %11856 = vmatpush1.bf16.msra.mxu0 %v9270
          %11857 = vmatprep.subr.bf16.mxu0 %v9263
          %11858 = vmatpush1.bf16.msra.mxu0 %v9262
          %11859 = vmatprep.subr.bf16.mxu0 %v9255
          %11860 = vmatpush1.bf16.msra.mxu0 %v9254
          %11861 = vmatprep.subr.bf16.mxu0 %v9375
          %11862 = vmatpush2.bf16.msra.mxu0 %v9374
          %11863 = vmatprep.subr.bf16.mxu0 %v9367
          %11864 = vmatpush2.bf16.msra.mxu0 %v9366
          %11865 = vmatprep.subr.bf16.mxu0 %v9359
          %11866 = vmatpush2.bf16.msra.mxu0 %v9358
          %11867 = vmatprep.subr.bf16.mxu0 %v9351
          %11868 = vmatpush2.bf16.msra.mxu0 %v9350
          %11869 = vmatprep.subr.bf16.mxu0 %v9343
          %11870 = vmatpush2.bf16.msra.mxu0 %v9342
          %11871 = vmatprep.subr.bf16.mxu0 %v9335
          %11872 = vmatpush2.bf16.msra.mxu0 %v9334
          %11873 = vmatprep.subr.bf16.mxu0 %v9327
          %11874 = vmatpush2.bf16.msra.mxu0 %v9326
          %11875 = vmatprep.subr.bf16.mxu0 %v9319
          %11876 = vmatpush2.bf16.msra.mxu0 %v9318
          %11877 = vmatprep.mubr.bf16.mxu0 %v4465
          %11878 = vmatmul.mubr.bf16.gmra.mxu0 %v4464
          %v11879 = vpop.f32.mrf.mxu0
          %v11880 = vadd.f32 %v11839, %v11879
          %v11881 = vpop.f32.mrf.mxu0
          %v11882 = vadd.f32 %v11841, %v11881
          %v11883 = vpop.f32.mrf.mxu0
          %v11884 = vpop.f32.mrf.mxu0
          %11885 = vdwg.mxu0
          %11886 = vmatprep.subr.bf16.mxu0 %v9439
          %11887 = vmatpush1.bf16.msra.mxu0 %v9438
          %11888 = vmatprep.subr.bf16.mxu0 %v9431
          %11889 = vmatpush1.bf16.msra.mxu0 %v9430
          %11890 = vmatprep.subr.bf16.mxu0 %v9423
          %11891 = vmatpush1.bf16.msra.mxu0 %v9422
          %11892 = vmatprep.subr.bf16.mxu0 %v9415
          %11893 = vmatpush1.bf16.msra.mxu0 %v9414
          %11894 = vmatprep.subr.bf16.mxu0 %v9407
          %11895 = vmatpush1.bf16.msra.mxu0 %v9406
          %11896 = vmatprep.subr.bf16.mxu0 %v9399
          %11897 = vmatpush1.bf16.msra.mxu0 %v9398
          %11898 = vmatprep.subr.bf16.mxu0 %v9391
          %11899 = vmatpush1.bf16.msra.mxu0 %v9390
          %11900 = vmatprep.subr.bf16.mxu0 %v9383
          %11901 = vmatpush1.bf16.msra.mxu0 %v9382
          %11902 = vmatprep.subr.bf16.mxu0 %v9503
          %11903 = vmatpush2.bf16.msra.mxu0 %v9502
          %11904 = vmatprep.subr.bf16.mxu0 %v9495
          %11905 = vmatpush2.bf16.msra.mxu0 %v9494
          %11906 = vmatprep.subr.bf16.mxu0 %v9487
          %11907 = vmatpush2.bf16.msra.mxu0 %v9486
          %11908 = vmatprep.subr.bf16.mxu0 %v9479
          %11909 = vmatpush2.bf16.msra.mxu0 %v9478
          %11910 = vmatprep.subr.bf16.mxu0 %v9471
          %11911 = vmatpush2.bf16.msra.mxu0 %v9470
          %11912 = vmatprep.subr.bf16.mxu0 %v9463
          %11913 = vmatpush2.bf16.msra.mxu0 %v9462
          %11914 = vmatprep.subr.bf16.mxu0 %v9455
          %11915 = vmatpush2.bf16.msra.mxu0 %v9454
          %11916 = vmatprep.subr.bf16.mxu0 %v9447
          %11917 = vmatpush2.bf16.msra.mxu0 %v9446
          %11918 = vmatprep.mubr.bf16.mxu0 %v4467
          %11919 = vmatmul.mubr.bf16.gmra.mxu0 %v4466
          %v11920 = vpop.f32.mrf.mxu0
          %v11921 = vadd.f32 %v11880, %v11920
          %v11922 = vpop.f32.mrf.mxu0
          %v11923 = vadd.f32 %v11882, %v11922
          %v11924 = vpop.f32.mrf.mxu0
          %v11925 = vpop.f32.mrf.mxu0
          %11926 = vdwg.mxu0
          %11927 = vmatprep.subr.bf16.mxu0 %v9567
          %11928 = vmatpush1.bf16.msra.mxu0 %v9566
          %11929 = vmatprep.subr.bf16.mxu0 %v9559
          %11930 = vmatpush1.bf16.msra.mxu0 %v9558
          %11931 = vmatprep.subr.bf16.mxu0 %v9551
          %11932 = vmatpush1.bf16.msra.mxu0 %v9550
          %11933 = vmatprep.subr.bf16.mxu0 %v9543
          %11934 = vmatpush1.bf16.msra.mxu0 %v9542
          %11935 = vmatprep.subr.bf16.mxu0 %v9535
          %11936 = vmatpush1.bf16.msra.mxu0 %v9534
          %11937 = vmatprep.subr.bf16.mxu0 %v9527
          %11938 = vmatpush1.bf16.msra.mxu0 %v9526
          %11939 = vmatprep.subr.bf16.mxu0 %v9519
          %11940 = vmatpush1.bf16.msra.mxu0 %v9518
          %11941 = vmatprep.subr.bf16.mxu0 %v9511
          %11942 = vmatpush1.bf16.msra.mxu0 %v9510
          %11943 = vmatprep.subr.bf16.mxu0 %v9631
          %11944 = vmatpush2.bf16.msra.mxu0 %v9630
          %11945 = vmatprep.subr.bf16.mxu0 %v9623
          %11946 = vmatpush2.bf16.msra.mxu0 %v9622
          %11947 = vmatprep.subr.bf16.mxu0 %v9615
          %11948 = vmatpush2.bf16.msra.mxu0 %v9614
          %11949 = vmatprep.subr.bf16.mxu0 %v9607
          %11950 = vmatpush2.bf16.msra.mxu0 %v9606
          %11951 = vmatprep.subr.bf16.mxu0 %v9599
          %11952 = vmatpush2.bf16.msra.mxu0 %v9598
          %11953 = vmatprep.subr.bf16.mxu0 %v9591
          %11954 = vmatpush2.bf16.msra.mxu0 %v9590
          %11955 = vmatprep.subr.bf16.mxu0 %v9583
          %11956 = vmatpush2.bf16.msra.mxu0 %v9582
          %11957 = vmatprep.subr.bf16.mxu0 %v9575
          %11958 = vmatpush2.bf16.msra.mxu0 %v9574
          %11959 = vmatprep.mubr.bf16.mxu0 %v4469
          %11960 = vmatmul.mubr.bf16.gmra.mxu0 %v4468
          %v11961 = vpop.f32.mrf.mxu0
          %v11962 = vadd.f32 %v11921, %v11961
          %v11963 = vpop.f32.mrf.mxu0
          %v11964 = vadd.f32 %v11923, %v11963
          %v11965 = vpop.f32.mrf.mxu0
          %v11966 = vpop.f32.mrf.mxu0
          %11967 = vdwg.mxu0
          %v11968 = vmul.f32 %v10978, 0.2
          %v11969 = vmul.f32 %v10980, 0.2
          %v11970 = vmul.f32 %v11306, 0.2
          %v11971 = vmul.f32 %v11308, 0.2
          %v11972 = vmul.f32 %v11634, 0.2
          %v11973 = vmul.f32 %v11636, 0.2
          %v11974 = vmul.f32 %v11962, 0.2
          %v11975 = vmul.f32 %v11964, 0.2
          %v11976 = vmax.f32 %v10978, %v11968
          %v11977 = vmax.f32 %v10980, %v11969
          %v11978 = vmax.f32 %v11306, %v11970
          %v11979 = vmax.f32 %v11308, %v11971
          %v11980 = vmax.f32 %v11634, %v11972
          %v11981 = vmax.f32 %v11636, %v11973
          %v11982 = vmax.f32 %v11962, %v11974
          %v11983 = vmax.f32 %v11964, %v11975
          %v11984 = vpack.c.bf16 %v11976, %v11976
          %v11985 = vpack.c.bf16 %v11977, %v11977
          %v11986 = vpack.c.bf16 %v11978, %v11978
          %v11987 = vpack.c.bf16 %v11979, %v11979
          %v11988 = vpack.c.bf16 %v11980, %v11980
          %v11989 = vpack.c.bf16 %v11981, %v11981
          %v11990 = vpack.c.bf16 %v11982, %v11982
          %v11991 = vpack.c.bf16 %v11983, %v11983
          %v11992 = vld [vmem:[#allocation12] sm:$0xf]
          %v11993 = vld [vmem:[#allocation12 + $0x4] sm:$0xf]
          %v11994 = vld [vmem:[#allocation12 + $0x8] sm:$0xf]
          %v11995 = vld [vmem:[#allocation12 + $0xc] sm:$0xf]
          %v11996 = vld [vmem:[#allocation12 + $0x10] sm:$0xf]
          %v11997 = vld [vmem:[#allocation12 + $0x14] sm:$0xf]
          %v11998 = vld [vmem:[#allocation12 + $0x18] sm:$0xf]
          %v11999 = vld [vmem:[#allocation12 + $0x1c] sm:$0xf]
          %v12000 = vld [vmem:[#allocation12 + $0x20] sm:$0xf]
          %v12001 = vld [vmem:[#allocation12 + $0x24] sm:$0xf]
          %v12002 = vld [vmem:[#allocation12 + $0x28] sm:$0xf]
          %v12003 = vld [vmem:[#allocation12 + $0x2c] sm:$0xf]
          %v12004 = vld [vmem:[#allocation12 + $0x30] sm:$0xf]
          %v12005 = vld [vmem:[#allocation12 + $0x34] sm:$0xf]
          %v12006 = vld [vmem:[#allocation12 + $0x38] sm:$0xf]
          %v12007 = vld [vmem:[#allocation12 + $0x3c] sm:$0xf]
          %v12008 = vld [vmem:[#allocation12 + $0x40] sm:$0xf]
          %v12009 = vld [vmem:[#allocation12 + $0x44] sm:$0xf]
          %v12010 = vld [vmem:[#allocation12 + $0x48] sm:$0xf]
          %v12011 = vld [vmem:[#allocation12 + $0x4c] sm:$0xf]
          %v12012 = vld [vmem:[#allocation12 + $0x50] sm:$0xf]
          %v12013 = vld [vmem:[#allocation12 + $0x54] sm:$0xf]
          %v12014 = vld [vmem:[#allocation12 + $0x58] sm:$0xf]
          %v12015 = vld [vmem:[#allocation12 + $0x5c] sm:$0xf]
          %v12016 = vld [vmem:[#allocation12 + $0x60] sm:$0xf]
          %v12017 = vld [vmem:[#allocation12 + $0x64] sm:$0xf]
          %v12018 = vld [vmem:[#allocation12 + $0x68] sm:$0xf]
          %v12019 = vld [vmem:[#allocation12 + $0x6c] sm:$0xf]
          %v12020 = vld [vmem:[#allocation12 + $0x70] sm:$0xf]
          %v12021 = vld [vmem:[#allocation12 + $0x74] sm:$0xf]
          %v12022 = vld [vmem:[#allocation12 + $0x78] sm:$0xf]
          %v12023 = vld [vmem:[#allocation12 + $0x7c] sm:$0xf]
          %v12024 = vld [vmem:[#allocation12 + $0x80] sm:$0xf]
          %v12025 = vld [vmem:[#allocation12 + $0x84] sm:$0xf]
          %v12026 = vld [vmem:[#allocation12 + $0x88] sm:$0xf]
          %v12027 = vld [vmem:[#allocation12 + $0x8c] sm:$0xf]
          %v12028 = vld [vmem:[#allocation12 + $0x90] sm:$0xf]
          %v12029 = vld [vmem:[#allocation12 + $0x94] sm:$0xf]
          %v12030 = vld [vmem:[#allocation12 + $0x98] sm:$0xf]
          %v12031 = vld [vmem:[#allocation12 + $0x9c] sm:$0xf]
          %v12032 = vld [vmem:[#allocation12 + $0xa0] sm:$0xf]
          %v12033 = vld [vmem:[#allocation12 + $0xa4] sm:$0xf]
          %v12034 = vld [vmem:[#allocation12 + $0xa8] sm:$0xf]
          %v12035 = vld [vmem:[#allocation12 + $0xac] sm:$0xf]
          %v12036 = vld [vmem:[#allocation12 + $0xb0] sm:$0xf]
          %v12037 = vld [vmem:[#allocation12 + $0xb4] sm:$0xf]
          %v12038 = vld [vmem:[#allocation12 + $0xb8] sm:$0xf]
          %v12039 = vld [vmem:[#allocation12 + $0xbc] sm:$0xf]
          %v12040 = vld [vmem:[#allocation12 + $0xc0] sm:$0xf]
          %v12041 = vld [vmem:[#allocation12 + $0xc4] sm:$0xf]
          %v12042 = vld [vmem:[#allocation12 + $0xc8] sm:$0xf]
          %v12043 = vld [vmem:[#allocation12 + $0xcc] sm:$0xf]
          %v12044 = vld [vmem:[#allocation12 + $0xd0] sm:$0xf]
          %v12045 = vld [vmem:[#allocation12 + $0xd4] sm:$0xf]
          %v12046 = vld [vmem:[#allocation12 + $0xd8] sm:$0xf]
          %v12047 = vld [vmem:[#allocation12 + $0xdc] sm:$0xf]
          %v12048 = vld [vmem:[#allocation12 + $0xe0] sm:$0xf]
          %v12049 = vld [vmem:[#allocation12 + $0xe4] sm:$0xf]
          %v12050 = vld [vmem:[#allocation12 + $0xe8] sm:$0xf]
          %v12051 = vld [vmem:[#allocation12 + $0xec] sm:$0xf]
          %v12052 = vld [vmem:[#allocation12 + $0xf0] sm:$0xf]
          %v12053 = vld [vmem:[#allocation12 + $0xf4] sm:$0xf]
          %v12054 = vld [vmem:[#allocation12 + $0xf8] sm:$0xf]
          %v12055 = vld [vmem:[#allocation12 + $0xfc] sm:$0xf]
          %v12056 = vld [vmem:[#allocation12 + $0x100] sm:$0xf]
          %v12057 = vld [vmem:[#allocation12 + $0x104] sm:$0xf]
          %v12058 = vld [vmem:[#allocation12 + $0x108] sm:$0xf]
          %v12059 = vld [vmem:[#allocation12 + $0x10c] sm:$0xf]
          %v12060 = vld [vmem:[#allocation12 + $0x110] sm:$0xf]
          %v12061 = vld [vmem:[#allocation12 + $0x114] sm:$0xf]
          %v12062 = vld [vmem:[#allocation12 + $0x118] sm:$0xf]
          %v12063 = vld [vmem:[#allocation12 + $0x11c] sm:$0xf]
          %v12064 = vld [vmem:[#allocation12 + $0x120] sm:$0xf]
          %v12065 = vld [vmem:[#allocation12 + $0x124] sm:$0xf]
          %v12066 = vld [vmem:[#allocation12 + $0x128] sm:$0xf]
          %v12067 = vld [vmem:[#allocation12 + $0x12c] sm:$0xf]
          %v12068 = vld [vmem:[#allocation12 + $0x130] sm:$0xf]
          %v12069 = vld [vmem:[#allocation12 + $0x134] sm:$0xf]
          %v12070 = vld [vmem:[#allocation12 + $0x138] sm:$0xf]
          %v12071 = vld [vmem:[#allocation12 + $0x13c] sm:$0xf]
          %v12072 = vld [vmem:[#allocation12 + $0x140] sm:$0xf]
          %v12073 = vld [vmem:[#allocation12 + $0x144] sm:$0xf]
          %v12074 = vld [vmem:[#allocation12 + $0x148] sm:$0xf]
          %v12075 = vld [vmem:[#allocation12 + $0x14c] sm:$0xf]
          %v12076 = vld [vmem:[#allocation12 + $0x150] sm:$0xf]
          %v12077 = vld [vmem:[#allocation12 + $0x154] sm:$0xf]
          %v12078 = vld [vmem:[#allocation12 + $0x158] sm:$0xf]
          %v12079 = vld [vmem:[#allocation12 + $0x15c] sm:$0xf]
          %v12080 = vld [vmem:[#allocation12 + $0x160] sm:$0xf]
          %v12081 = vld [vmem:[#allocation12 + $0x164] sm:$0xf]
          %v12082 = vld [vmem:[#allocation12 + $0x168] sm:$0xf]
          %v12083 = vld [vmem:[#allocation12 + $0x16c] sm:$0xf]
          %v12084 = vld [vmem:[#allocation12 + $0x170] sm:$0xf]
          %v12085 = vld [vmem:[#allocation12 + $0x174] sm:$0xf]
          %v12086 = vld [vmem:[#allocation12 + $0x178] sm:$0xf]
          %v12087 = vld [vmem:[#allocation12 + $0x17c] sm:$0xf]
          %v12088 = vld [vmem:[#allocation12 + $0x180] sm:$0xf]
          %v12089 = vld [vmem:[#allocation12 + $0x184] sm:$0xf]
          %v12090 = vld [vmem:[#allocation12 + $0x188] sm:$0xf]
          %v12091 = vld [vmem:[#allocation12 + $0x18c] sm:$0xf]
          %v12092 = vld [vmem:[#allocation12 + $0x190] sm:$0xf]
          %v12093 = vld [vmem:[#allocation12 + $0x194] sm:$0xf]
          %v12094 = vld [vmem:[#allocation12 + $0x198] sm:$0xf]
          %v12095 = vld [vmem:[#allocation12 + $0x19c] sm:$0xf]
          %v12096 = vld [vmem:[#allocation12 + $0x1a0] sm:$0xf]
          %v12097 = vld [vmem:[#allocation12 + $0x1a4] sm:$0xf]
          %v12098 = vld [vmem:[#allocation12 + $0x1a8] sm:$0xf]
          %v12099 = vld [vmem:[#allocation12 + $0x1ac] sm:$0xf]
          %v12100 = vld [vmem:[#allocation12 + $0x1b0] sm:$0xf]
          %v12101 = vld [vmem:[#allocation12 + $0x1b4] sm:$0xf]
          %v12102 = vld [vmem:[#allocation12 + $0x1b8] sm:$0xf]
          %v12103 = vld [vmem:[#allocation12 + $0x1bc] sm:$0xf]
          %v12104 = vld [vmem:[#allocation12 + $0x1c0] sm:$0xf]
          %v12105 = vld [vmem:[#allocation12 + $0x1c4] sm:$0xf]
          %v12106 = vld [vmem:[#allocation12 + $0x1c8] sm:$0xf]
          %v12107 = vld [vmem:[#allocation12 + $0x1cc] sm:$0xf]
          %v12108 = vld [vmem:[#allocation12 + $0x1d0] sm:$0xf]
          %v12109 = vld [vmem:[#allocation12 + $0x1d4] sm:$0xf]
          %v12110 = vld [vmem:[#allocation12 + $0x1d8] sm:$0xf]
          %v12111 = vld [vmem:[#allocation12 + $0x1dc] sm:$0xf]
          %v12112 = vld [vmem:[#allocation12 + $0x1e0] sm:$0xf]
          %v12113 = vld [vmem:[#allocation12 + $0x1e4] sm:$0xf]
          %v12114 = vld [vmem:[#allocation12 + $0x1e8] sm:$0xf]
          %v12115 = vld [vmem:[#allocation12 + $0x1ec] sm:$0xf]
          %v12116 = vld [vmem:[#allocation12 + $0x1f0] sm:$0xf]
          %v12117 = vld [vmem:[#allocation12 + $0x1f4] sm:$0xf]
          %v12118 = vld [vmem:[#allocation12 + $0x1f8] sm:$0xf]
          %v12119 = vld [vmem:[#allocation12 + $0x1fc] sm:$0xf]
          %v12120 = vld [vmem:[#allocation14] sm:$0x1]
          %v12122 = vlaneseq
          %v12123 = vshrl.u32 %v12122, 7
          %v12124 = vsub.s32 0, %v12123
          %v12125 = vrot.slane %v12120, %v12124
          %v12255 = vunpack.c.l.b16 %v11992
          %v12256 = vunpack.c.l.b16 %v11993
          %v12257 = vunpack.c.l.b16 %v11994
          %v12258 = vunpack.c.l.b16 %v11995
          %v12259 = vunpack.c.l.b16 %v11996
          %v12260 = vunpack.c.l.b16 %v11997
          %v12261 = vunpack.c.l.b16 %v11998
          %v12262 = vunpack.c.l.b16 %v11999
          %v12263 = vunpack.c.l.b16 %v12000
          %v12264 = vunpack.c.l.b16 %v12001
          %v12265 = vunpack.c.l.b16 %v12002
          %v12266 = vunpack.c.l.b16 %v12003
          %v12267 = vunpack.c.l.b16 %v12004
          %v12268 = vunpack.c.l.b16 %v12005
          %v12269 = vunpack.c.l.b16 %v12006
          %v12270 = vunpack.c.l.b16 %v12007
          %v12271 = vunpack.c.l.b16 %v12008
          %v12272 = vunpack.c.l.b16 %v12009
          %v12273 = vunpack.c.l.b16 %v12010
          %v12274 = vunpack.c.l.b16 %v12011
          %v12275 = vunpack.c.l.b16 %v12012
          %v12276 = vunpack.c.l.b16 %v12013
          %v12277 = vunpack.c.l.b16 %v12014
          %v12278 = vunpack.c.l.b16 %v12015
          %v12279 = vunpack.c.l.b16 %v12016
          %v12280 = vunpack.c.l.b16 %v12017
          %v12281 = vunpack.c.l.b16 %v12018
          %v12282 = vunpack.c.l.b16 %v12019
          %v12283 = vunpack.c.l.b16 %v12020
          %v12284 = vunpack.c.l.b16 %v12021
          %v12285 = vunpack.c.l.b16 %v12022
          %v12286 = vunpack.c.l.b16 %v12023
          %v12287 = vunpack.c.l.b16 %v12024
          %v12288 = vunpack.c.l.b16 %v12025
          %v12289 = vunpack.c.l.b16 %v12026
          %v12290 = vunpack.c.l.b16 %v12027
          %v12291 = vunpack.c.l.b16 %v12028
          %v12292 = vunpack.c.l.b16 %v12029
          %v12293 = vunpack.c.l.b16 %v12030
          %v12294 = vunpack.c.l.b16 %v12031
          %v12295 = vunpack.c.l.b16 %v12032
          %v12296 = vunpack.c.l.b16 %v12033
          %v12297 = vunpack.c.l.b16 %v12034
          %v12298 = vunpack.c.l.b16 %v12035
          %v12299 = vunpack.c.l.b16 %v12036
          %v12300 = vunpack.c.l.b16 %v12037
          %v12301 = vunpack.c.l.b16 %v12038
          %v12302 = vunpack.c.l.b16 %v12039
          %v12303 = vunpack.c.l.b16 %v12040
          %v12304 = vunpack.c.l.b16 %v12041
          %v12305 = vunpack.c.l.b16 %v12042
          %v12306 = vunpack.c.l.b16 %v12043
          %v12307 = vunpack.c.l.b16 %v12044
          %v12308 = vunpack.c.l.b16 %v12045
          %v12309 = vunpack.c.l.b16 %v12046
          %v12310 = vunpack.c.l.b16 %v12047
          %v12311 = vunpack.c.l.b16 %v12048
          %v12312 = vunpack.c.l.b16 %v12049
          %v12313 = vunpack.c.l.b16 %v12050
          %v12314 = vunpack.c.l.b16 %v12051
          %v12315 = vunpack.c.l.b16 %v12052
          %v12316 = vunpack.c.l.b16 %v12053
          %v12317 = vunpack.c.l.b16 %v12054
          %v12318 = vunpack.c.l.b16 %v12055
          %v12319 = vunpack.c.l.b16 %v12056
          %v12320 = vunpack.c.l.b16 %v12057
          %v12321 = vunpack.c.l.b16 %v12058
          %v12322 = vunpack.c.l.b16 %v12059
          %v12323 = vunpack.c.l.b16 %v12060
          %v12324 = vunpack.c.l.b16 %v12061
          %v12325 = vunpack.c.l.b16 %v12062
          %v12326 = vunpack.c.l.b16 %v12063
          %v12327 = vunpack.c.l.b16 %v12064
          %v12328 = vunpack.c.l.b16 %v12065
          %v12329 = vunpack.c.l.b16 %v12066
          %v12330 = vunpack.c.l.b16 %v12067
          %v12331 = vunpack.c.l.b16 %v12068
          %v12332 = vunpack.c.l.b16 %v12069
          %v12333 = vunpack.c.l.b16 %v12070
          %v12334 = vunpack.c.l.b16 %v12071
          %v12335 = vunpack.c.l.b16 %v12072
          %v12336 = vunpack.c.l.b16 %v12073
          %v12337 = vunpack.c.l.b16 %v12074
          %v12338 = vunpack.c.l.b16 %v12075
          %v12339 = vunpack.c.l.b16 %v12076
          %v12340 = vunpack.c.l.b16 %v12077
          %v12341 = vunpack.c.l.b16 %v12078
          %v12342 = vunpack.c.l.b16 %v12079
          %v12343 = vunpack.c.l.b16 %v12080
          %v12344 = vunpack.c.l.b16 %v12081
          %v12345 = vunpack.c.l.b16 %v12082
          %v12346 = vunpack.c.l.b16 %v12083
          %v12347 = vunpack.c.l.b16 %v12084
          %v12348 = vunpack.c.l.b16 %v12085
          %v12349 = vunpack.c.l.b16 %v12086
          %v12350 = vunpack.c.l.b16 %v12087
          %v12351 = vunpack.c.l.b16 %v12088
          %v12352 = vunpack.c.l.b16 %v12089
          %v12353 = vunpack.c.l.b16 %v12090
          %v12354 = vunpack.c.l.b16 %v12091
          %v12355 = vunpack.c.l.b16 %v12092
          %v12356 = vunpack.c.l.b16 %v12093
          %v12357 = vunpack.c.l.b16 %v12094
          %v12358 = vunpack.c.l.b16 %v12095
          %v12359 = vunpack.c.l.b16 %v12096
          %v12360 = vunpack.c.l.b16 %v12097
          %v12361 = vunpack.c.l.b16 %v12098
          %v12362 = vunpack.c.l.b16 %v12099
          %v12363 = vunpack.c.l.b16 %v12100
          %v12364 = vunpack.c.l.b16 %v12101
          %v12365 = vunpack.c.l.b16 %v12102
          %v12366 = vunpack.c.l.b16 %v12103
          %v12367 = vunpack.c.l.b16 %v12104
          %v12368 = vunpack.c.l.b16 %v12105
          %v12369 = vunpack.c.l.b16 %v12106
          %v12370 = vunpack.c.l.b16 %v12107
          %v12371 = vunpack.c.l.b16 %v12108
          %v12372 = vunpack.c.l.b16 %v12109
          %v12373 = vunpack.c.l.b16 %v12110
          %v12374 = vunpack.c.l.b16 %v12111
          %v12375 = vunpack.c.l.b16 %v12112
          %v12376 = vunpack.c.l.b16 %v12113
          %v12377 = vunpack.c.l.b16 %v12114
          %v12378 = vunpack.c.l.b16 %v12115
          %v12379 = vunpack.c.l.b16 %v12116
          %v12380 = vunpack.c.l.b16 %v12117
          %v12381 = vunpack.c.l.b16 %v12118
          %v12382 = vunpack.c.l.b16 %v12119
          %v12383 = vpack.c.b16 %v12256, %v12255
          %v12384 = vpack.c.b16 %v12258, %v12257
          %v12385 = vpack.c.b16 %v12260, %v12259
          %v12386 = vpack.c.b16 %v12262, %v12261
          %v12387 = vpack.c.b16 %v12264, %v12263
          %v12388 = vpack.c.b16 %v12266, %v12265
          %v12389 = vpack.c.b16 %v12268, %v12267
          %v12390 = vpack.c.b16 %v12270, %v12269
          %v12391 = vpack.c.b16 %v12272, %v12271
          %v12392 = vpack.c.b16 %v12274, %v12273
          %v12393 = vpack.c.b16 %v12276, %v12275
          %v12394 = vpack.c.b16 %v12278, %v12277
          %v12395 = vpack.c.b16 %v12280, %v12279
          %v12396 = vpack.c.b16 %v12282, %v12281
          %v12397 = vpack.c.b16 %v12284, %v12283
          %v12398 = vpack.c.b16 %v12286, %v12285
          %v12399 = vpack.c.b16 %v12288, %v12287
          %v12400 = vpack.c.b16 %v12290, %v12289
          %v12401 = vpack.c.b16 %v12292, %v12291
          %v12402 = vpack.c.b16 %v12294, %v12293
          %v12403 = vpack.c.b16 %v12296, %v12295
          %v12404 = vpack.c.b16 %v12298, %v12297
          %v12405 = vpack.c.b16 %v12300, %v12299
          %v12406 = vpack.c.b16 %v12302, %v12301
          %v12407 = vpack.c.b16 %v12304, %v12303
          %v12408 = vpack.c.b16 %v12306, %v12305
          %v12409 = vpack.c.b16 %v12308, %v12307
          %v12410 = vpack.c.b16 %v12310, %v12309
          %v12411 = vpack.c.b16 %v12312, %v12311
          %v12412 = vpack.c.b16 %v12314, %v12313
          %v12413 = vpack.c.b16 %v12316, %v12315
          %v12414 = vpack.c.b16 %v12318, %v12317
          %v12415 = vpack.c.b16 %v12320, %v12319
          %v12416 = vpack.c.b16 %v12322, %v12321
          %v12417 = vpack.c.b16 %v12324, %v12323
          %v12418 = vpack.c.b16 %v12326, %v12325
          %v12419 = vpack.c.b16 %v12328, %v12327
          %v12420 = vpack.c.b16 %v12330, %v12329
          %v12421 = vpack.c.b16 %v12332, %v12331
          %v12422 = vpack.c.b16 %v12334, %v12333
          %v12423 = vpack.c.b16 %v12336, %v12335
          %v12424 = vpack.c.b16 %v12338, %v12337
          %v12425 = vpack.c.b16 %v12340, %v12339
          %v12426 = vpack.c.b16 %v12342, %v12341
          %v12427 = vpack.c.b16 %v12344, %v12343
          %v12428 = vpack.c.b16 %v12346, %v12345
          %v12429 = vpack.c.b16 %v12348, %v12347
          %v12430 = vpack.c.b16 %v12350, %v12349
          %v12431 = vpack.c.b16 %v12352, %v12351
          %v12432 = vpack.c.b16 %v12354, %v12353
          %v12433 = vpack.c.b16 %v12356, %v12355
          %v12434 = vpack.c.b16 %v12358, %v12357
          %v12435 = vpack.c.b16 %v12360, %v12359
          %v12436 = vpack.c.b16 %v12362, %v12361
          %v12437 = vpack.c.b16 %v12364, %v12363
          %v12438 = vpack.c.b16 %v12366, %v12365
          %v12439 = vpack.c.b16 %v12368, %v12367
          %v12440 = vpack.c.b16 %v12370, %v12369
          %v12441 = vpack.c.b16 %v12372, %v12371
          %v12442 = vpack.c.b16 %v12374, %v12373
          %v12443 = vpack.c.b16 %v12376, %v12375
          %v12444 = vpack.c.b16 %v12378, %v12377
          %v12445 = vpack.c.b16 %v12380, %v12379
          %v12446 = vpack.c.b16 %v12382, %v12381
          %12511 = vmatprep.subr.bf16.mxu0 0
          %12512 = vmatpush1.bf16.msra.mxu0 %v12390
          %12513 = vmatprep.subr.bf16.mxu0 0
          %12514 = vmatpush1.bf16.msra.mxu0 %v12389
          %12515 = vmatprep.subr.bf16.mxu0 0
          %12516 = vmatpush1.bf16.msra.mxu0 %v12388
          %12517 = vmatprep.subr.bf16.mxu0 0
          %12518 = vmatpush1.bf16.msra.mxu0 %v12387
          %12519 = vmatprep.subr.bf16.mxu0 0
          %12520 = vmatpush1.bf16.msra.mxu0 %v12386
          %12521 = vmatprep.subr.bf16.mxu0 0
          %12522 = vmatpush1.bf16.msra.mxu0 %v12385
          %12523 = vmatprep.subr.bf16.mxu0 0
          %12524 = vmatpush1.bf16.msra.mxu0 %v12384
          %12525 = vmatprep.subr.bf16.mxu0 0
          %12526 = vmatpush1.bf16.msra.mxu0 %v12383
          %12527 = vmatprep.subr.bf16.mxu0 0
          %12528 = vmatpush2.bf16.msra.mxu0 %v12398
          %12529 = vmatprep.subr.bf16.mxu0 0
          %12530 = vmatpush2.bf16.msra.mxu0 %v12397
          %12531 = vmatprep.subr.bf16.mxu0 0
          %12532 = vmatpush2.bf16.msra.mxu0 %v12396
          %12533 = vmatprep.subr.bf16.mxu0 0
          %12534 = vmatpush2.bf16.msra.mxu0 %v12395
          %12535 = vmatprep.subr.bf16.mxu0 0
          %12536 = vmatpush2.bf16.msra.mxu0 %v12394
          %12537 = vmatprep.subr.bf16.mxu0 0
          %12538 = vmatpush2.bf16.msra.mxu0 %v12393
          %12539 = vmatprep.subr.bf16.mxu0 0
          %12540 = vmatpush2.bf16.msra.mxu0 %v12392
          %12541 = vmatprep.subr.bf16.mxu0 0
          %12542 = vmatpush2.bf16.msra.mxu0 %v12391
          %12543 = vmatprep.mubr.bf16.mxu0 %v11985
          %12544 = vmatmul.mubr.bf16.gmra.mxu0 %v11984
          %v12545 = vpop.f32.mrf.mxu0
          %v12546 = vadd.f32 %v12125, %v12545
          %v12547 = vpop.f32.mrf.mxu0
          %v12548 = vpop.f32.mrf.mxu0
          %v12549 = vpop.f32.mrf.mxu0
          %12550 = vdwg.mxu0
          %12551 = vmatprep.subr.bf16.mxu0 0
          %12552 = vmatpush1.bf16.msra.mxu0 %v12406
          %12553 = vmatprep.subr.bf16.mxu0 0
          %12554 = vmatpush1.bf16.msra.mxu0 %v12405
          %12555 = vmatprep.subr.bf16.mxu0 0
          %12556 = vmatpush1.bf16.msra.mxu0 %v12404
          %12557 = vmatprep.subr.bf16.mxu0 0
          %12558 = vmatpush1.bf16.msra.mxu0 %v12403
          %12559 = vmatprep.subr.bf16.mxu0 0
          %12560 = vmatpush1.bf16.msra.mxu0 %v12402
          %12561 = vmatprep.subr.bf16.mxu0 0
          %12562 = vmatpush1.bf16.msra.mxu0 %v12401
          %12563 = vmatprep.subr.bf16.mxu0 0
          %12564 = vmatpush1.bf16.msra.mxu0 %v12400
          %12565 = vmatprep.subr.bf16.mxu0 0
          %12566 = vmatpush1.bf16.msra.mxu0 %v12399
          %12567 = vmatprep.subr.bf16.mxu0 0
          %12568 = vmatpush2.bf16.msra.mxu0 %v12414
          %12569 = vmatprep.subr.bf16.mxu0 0
          %12570 = vmatpush2.bf16.msra.mxu0 %v12413
          %12571 = vmatprep.subr.bf16.mxu0 0
          %12572 = vmatpush2.bf16.msra.mxu0 %v12412
          %12573 = vmatprep.subr.bf16.mxu0 0
          %12574 = vmatpush2.bf16.msra.mxu0 %v12411
          %12575 = vmatprep.subr.bf16.mxu0 0
          %12576 = vmatpush2.bf16.msra.mxu0 %v12410
          %12577 = vmatprep.subr.bf16.mxu0 0
          %12578 = vmatpush2.bf16.msra.mxu0 %v12409
          %12579 = vmatprep.subr.bf16.mxu0 0
          %12580 = vmatpush2.bf16.msra.mxu0 %v12408
          %12581 = vmatprep.subr.bf16.mxu0 0
          %12582 = vmatpush2.bf16.msra.mxu0 %v12407
          %12583 = vmatprep.mubr.bf16.mxu0 %v11987
          %12584 = vmatmul.mubr.bf16.gmra.mxu0 %v11986
          %v12585 = vpop.f32.mrf.mxu0
          %v12586 = vadd.f32 %v12546, %v12585
          %v12587 = vpop.f32.mrf.mxu0
          %v12588 = vpop.f32.mrf.mxu0
          %v12589 = vpop.f32.mrf.mxu0
          %12590 = vdwg.mxu0
          %12591 = vmatprep.subr.bf16.mxu0 0
          %12592 = vmatpush1.bf16.msra.mxu0 %v12422
          %12593 = vmatprep.subr.bf16.mxu0 0
          %12594 = vmatpush1.bf16.msra.mxu0 %v12421
          %12595 = vmatprep.subr.bf16.mxu0 0
          %12596 = vmatpush1.bf16.msra.mxu0 %v12420
          %12597 = vmatprep.subr.bf16.mxu0 0
          %12598 = vmatpush1.bf16.msra.mxu0 %v12419
          %12599 = vmatprep.subr.bf16.mxu0 0
          %12600 = vmatpush1.bf16.msra.mxu0 %v12418
          %12601 = vmatprep.subr.bf16.mxu0 0
          %12602 = vmatpush1.bf16.msra.mxu0 %v12417
          %12603 = vmatprep.subr.bf16.mxu0 0
          %12604 = vmatpush1.bf16.msra.mxu0 %v12416
          %12605 = vmatprep.subr.bf16.mxu0 0
          %12606 = vmatpush1.bf16.msra.mxu0 %v12415
          %12607 = vmatprep.subr.bf16.mxu0 0
          %12608 = vmatpush2.bf16.msra.mxu0 %v12430
          %12609 = vmatprep.subr.bf16.mxu0 0
          %12610 = vmatpush2.bf16.msra.mxu0 %v12429
          %12611 = vmatprep.subr.bf16.mxu0 0
          %12612 = vmatpush2.bf16.msra.mxu0 %v12428
          %12613 = vmatprep.subr.bf16.mxu0 0
          %12614 = vmatpush2.bf16.msra.mxu0 %v12427
          %12615 = vmatprep.subr.bf16.mxu0 0
          %12616 = vmatpush2.bf16.msra.mxu0 %v12426
          %12617 = vmatprep.subr.bf16.mxu0 0
          %12618 = vmatpush2.bf16.msra.mxu0 %v12425
          %12619 = vmatprep.subr.bf16.mxu0 0
          %12620 = vmatpush2.bf16.msra.mxu0 %v12424
          %12621 = vmatprep.subr.bf16.mxu0 0
          %12622 = vmatpush2.bf16.msra.mxu0 %v12423
          %12623 = vmatprep.mubr.bf16.mxu0 %v11989
          %12624 = vmatmul.mubr.bf16.gmra.mxu0 %v11988
          %v12625 = vpop.f32.mrf.mxu0
          %v12626 = vadd.f32 %v12586, %v12625
          %v12627 = vpop.f32.mrf.mxu0
          %v12628 = vpop.f32.mrf.mxu0
          %v12629 = vpop.f32.mrf.mxu0
          %12630 = vdwg.mxu0
          %12631 = vmatprep.subr.bf16.mxu0 0
          %12632 = vmatpush1.bf16.msra.mxu0 %v12438
          %12633 = vmatprep.subr.bf16.mxu0 0
          %12634 = vmatpush1.bf16.msra.mxu0 %v12437
          %12635 = vmatprep.subr.bf16.mxu0 0
          %12636 = vmatpush1.bf16.msra.mxu0 %v12436
          %12637 = vmatprep.subr.bf16.mxu0 0
          %12638 = vmatpush1.bf16.msra.mxu0 %v12435
          %12639 = vmatprep.subr.bf16.mxu0 0
          %12640 = vmatpush1.bf16.msra.mxu0 %v12434
          %12641 = vmatprep.subr.bf16.mxu0 0
          %12642 = vmatpush1.bf16.msra.mxu0 %v12433
          %12643 = vmatprep.subr.bf16.mxu0 0
          %12644 = vmatpush1.bf16.msra.mxu0 %v12432
          %12645 = vmatprep.subr.bf16.mxu0 0
          %12646 = vmatpush1.bf16.msra.mxu0 %v12431
          %12647 = vmatprep.subr.bf16.mxu0 0
          %12648 = vmatpush2.bf16.msra.mxu0 %v12446
          %12649 = vmatprep.subr.bf16.mxu0 0
          %12650 = vmatpush2.bf16.msra.mxu0 %v12445
          %12651 = vmatprep.subr.bf16.mxu0 0
          %12652 = vmatpush2.bf16.msra.mxu0 %v12444
          %12653 = vmatprep.subr.bf16.mxu0 0
          %12654 = vmatpush2.bf16.msra.mxu0 %v12443
          %12655 = vmatprep.subr.bf16.mxu0 0
          %12656 = vmatpush2.bf16.msra.mxu0 %v12442
          %12657 = vmatprep.subr.bf16.mxu0 0
          %12658 = vmatpush2.bf16.msra.mxu0 %v12441
          %12659 = vmatprep.subr.bf16.mxu0 0
          %12660 = vmatpush2.bf16.msra.mxu0 %v12440
          %12661 = vmatprep.subr.bf16.mxu0 0
          %12662 = vmatpush2.bf16.msra.mxu0 %v12439
          %12663 = vmatprep.mubr.bf16.mxu0 %v11991
          %12664 = vmatmul.mubr.bf16.gmra.mxu0 %v11990
          %v12665 = vpop.f32.mrf.mxu0
          %v12666 = vadd.f32 %v12626, %v12665
          %v12667 = vpop.f32.mrf.mxu0
          %v12668 = vpop.f32.mrf.mxu0
          %v12669 = vpop.f32.mrf.mxu0
          %12670 = vdwg.mxu0
          %v12671 = vmul.f32 %v12666, 0.2
          %v12672 = vmax.f32 %v12666, %v12671
          %v12673 = vld [vmem:[#allocation15] sm:$0x1]
          %v12674 = vunpack.c.l.bf16 %v12673
          %v12675 = vlaneseq
          %v12676 = vshrl.u32 %v12675, 7
          %v12677 = vsub.s32 0, %v12676
          %v12678 = vrot.slane %v12674, %v12677
          %v12679 = vmul.f32 %v12672, %v12678
          %12680 = vadd.xlane.f32.xlu0 %v12679
          %v12681 = vpop.xlane.xlu0 %12680
          %v12682 = vld [vmem:[#allocation3] sm:$0x1]
          %v12684 = vlaneseq
          %v12685 = vshrl.u32 %v12684, 7
          %v12686 = vsub.s32 0, %v12685
          %v12687 = vrot.slane %v12682, %v12686
          %v12689 = vadd.f32 %v12681, %v12687
          %vm12690 = vcmask 7168
          %12691 = vst.msk [vmem:[%s488] sm:$0xff] %vm12690, %v12689
        $region96: #{tpu_custom_call.1} parent=55 // pred_fallthru
          _
        %p12692 = scmp.lt.s32.totalorder %s35, 0
        %s12693 = scalar_select %p12692, %s35, 0
        %s12694 = smul.addr %s12693, 8
        %s12695 = scalar_lea.vmem %s9, %s12694
        // Predicated region
        $region97: #{tpu_custom_call.1} parent=55 // pred_check
          %p12696 = pneg %p262
        $region98: #{tpu_custom_call.1} parent=55 // pred_check_branch
          %12698 = sbr.rel (%p12696) target = $region100
        $region99: #{tpu_custom_call.1} parent=55 // pred_region
          _
        $region100: #{tpu_custom_call.1} parent=55 // pred_fallthru
          _
        // Predicated region
        $region101: #{tpu_custom_call.1} parent=55 // pred_check
          %p12699 = pneg %p262
        $region102: #{tpu_custom_call.1} parent=55 // pred_check_branch
          %12701 = sbr.rel (%p12699) target = $region104
        $region103: #{tpu_custom_call.1} parent=55 // pred_region
          %p12702 = scmp.lt.s32.totalorder %s35, 0
          %s12703 = scalar_select %p12702, %s35, 0
          %s12704 = smul.addr %s12703, 8
          %s12705 = scalar_lea.vmem %s9, %s12704
        $region104: #{tpu_custom_call.1} parent=55 // pred_fallthru
          _
      $region56: #{tpu_custom_call.1} parent=5 // pred_fallthru
        _
      %p12706 = scmp.le.s32.totalorder 2, %s26
      // Predicated region
      $region105: #{tpu_custom_call.1} parent=5 // pred_check
        %p12707 = pneg %p12706
      $region106: #{tpu_custom_call.1} parent=5 // pred_check_branch
        %12709 = sbr.rel (%p12707) target = $region108
      $region107: #{tpu_custom_call.1} parent=5 // pred_region
        %s12710 = ssub.s32 %s26, 2
      $region108: #{tpu_custom_call.1} parent=5 // pred_fallthru
        _
    $region6: #{tpu_custom_call.1} parent=1 // loop_footer
      %s30 = sadd.s32 1, %s26
    $region7: #{tpu_custom_call.1} parent=1 // loop_footer_branch
      %25 = sbr.rel target = $region3
    $region8: #{tpu_custom_call.1} parent=1 // loop_exit
      _
    %12711 = vsyncpa [#allocation5], 1
    %s12712 = scalar_lea.sflag [#allocation5], 1
    %12713 = vsyncpa %s12712, 1
    %12714 = vsyncpa [#allocation7], 1
    %s12715 = scalar_lea.sflag [#allocation7], 1
    %12716 = vsyncpa %s12715, 1
    %12717 = vsyncpa [#allocation10], 1
    %12718 = vsyncpa [#allocation13], 1
    %12719 = vsyncpa [#allocation16], 1

</llo_original>
